<compile_context>
chip_gen: v5e
topology: v5e:2x2
jax: 0.10.0
libtpu: 0.0.40
codegen_flags: <defaults>
</compile_context>

<pallas_src>
import numpy as np
import jax
import jax.numpy as jnp
from jax import lax
from jax.experimental import pallas as pl
from jax.experimental.pallas import tpu as pltpu


# ----------------------------------------------------------------------------
# helpers
# ----------------------------------------------------------------------------
def _pool_matrix(L, O):
    """Matrix P with x @ P == F.adaptive_avg_pool1d(x, O) along the last dim."""
    P = np.zeros((L, O), dtype=np.float32)
    for i in range(O):
        s = (i * L) // O
        e = -((-(i + 1) * L) // O)  # ceil((i+1)*L/O)
        P[s:e, i] = 1.0 / (e - s)
    return jnp.asarray(P)


def _full_spec(a):
    nd = a.ndim
    return pl.BlockSpec(a.shape, lambda i: (0,) * nd)


def _full_specs(*arrays):
    return [_full_spec(a) for a in arrays]


def _leaky(y):
    return jnp.where(y >= 0.0, y, 0.2 * y)


# ----------------------------------------------------------------------------
# 1) Directional3DProcessor  (3 x Conv3d + ReLU, then mean over dir/spatial)
#    grid = (direction, k-tile); bf16 operands, f32 VMEM accumulator.
# ----------------------------------------------------------------------------
def _sp3d_kernel(x_ref, w_ref, b_ref, s_ref, o_ref, acc_ref):
    d = pl.program_id(0)
    k = pl.program_id(1)
    nk = pl.num_programs(1)

    @pl.when((d == 0) & (k == 0))
    def _():
        o_ref[...] = jnp.zeros_like(o_ref)

    @pl.when(k == 0)
    def _():
        acc_ref[...] = jnp.zeros_like(acc_ref)

    acc_ref[...] += jnp.dot(x_ref[0], w_ref[0],
                            preferred_element_type=jnp.float32)

    @pl.when(k == nk - 1)
    def _():
        y = jnp.maximum(acc_ref[...] + b_ref[0], 0.0)          # bias + ReLU
        # per-drug mean over (direction, spatial) folded into a small matmul
        o_ref[...] += jnp.dot(s_ref[...], y,
                              preferred_element_type=jnp.float32)


def directional_3d_processor(drug_3d, weights, biases):
    Nd, Cin = drug_3d.shape[0], drug_3d.shape[1]
    Cout = weights[0].shape[0]
    slabs, wmats, bvecs = [], [], []
    spatial = None
    for d_idx in range(3):
        x = drug_3d[:, :, 2 * d_idx:2 * d_idx + 2]
        _, _, D, H, W = x.shape
        spatial = D * H * W
        xp = jnp.pad(x, ((0, 0), (0, 0), (1, 1), (1, 1), (1, 1)))
        taps = [xp[:, :, kd:kd + D, kh:kh + H, kw:kw + W]
                for kd in range(3) for kh in range(3) for kw in range(3)]
        p = jnp.stack(taps, axis=2)                       # [Nd, Cin, 27, D,H,W]
        p = p.transpose(0, 3, 4, 5, 1, 2).reshape(Nd * spatial, Cin * 27)
        slabs.append(p)
        wmats.append(weights[d_idx].reshape(Cout, Cin * 27).T)
        bvecs.append(biases[d_idx].reshape(1, Cout))

    X = jnp.stack(slabs, 0).astype(jnp.bfloat16)          # [3, Nd*S, Cin*27]
    Wm = jnp.stack(wmats, 0).astype(jnp.bfloat16)         # [3, Cin*27, Cout]
    B = jnp.stack(bvecs, 0)[:, None, :].reshape(3, 1, Cout)

    M3 = Nd * spatial
    K = Cin * 27
    tk = 1152 if K % 1152 == 0 else K                     # K-tiled accumulation
    nk = K // tk

    S = np.zeros((Nd, M3), np.float32)
    for n in range(Nd):
        S[n, n * spatial:(n + 1) * spatial] = 1.0 / (3 * spatial)
    S = jnp.asarray(S)

    return pl.pallas_call(
        _sp3d_kernel,
        out_shape=jax.ShapeDtypeStruct((Nd, Cout), jnp.float32),
        grid=(3, nk),
        in_specs=[
            pl.BlockSpec((1, M3, tk), lambda d, k: (d, 0, k)),
            pl.BlockSpec((1, tk, Cout), lambda d, k: (d, k, 0)),
            pl.BlockSpec((1, 1, Cout), lambda d, k: (d, 0, 0)),
            pl.BlockSpec((Nd, M3), lambda d, k: (0, 0)),
        ],
        out_specs=pl.BlockSpec((Nd, Cout), lambda d, k: (0, 0)),
        scratch_shapes=[pltpu.VMEM((M3, Cout), jnp.float32)],
        compiler_params=pltpu.CompilerParams(
            dimension_semantics=("arbitrary", "arbitrary")),
    )(X, Wm, B, S)


# ----------------------------------------------------------------------------
# 2) pools + gate + gated concat-pool + BatchNorm1d(128)  (one fused kernel)
# ----------------------------------------------------------------------------
def _gate_fuse_kernel(xd_ref, d2_ref, e3_ref, p512_ref, p64_ref,
                      wg_ref, bg_ref, p0_ref, p1_ref, p2_ref,
                      gam_ref, bet_ref, o_ref):
    f32 = jnp.float32
    x1 = jnp.dot(xd_ref[...], p512_ref[...], preferred_element_type=f32)
    x2 = jnp.dot(d2_ref[...], p512_ref[...], preferred_element_type=f32)
    x3 = jnp.dot(e3_ref[...], p64_ref[...], preferred_element_type=f32)

    # collapsed gate MLP + AdaptiveAvgPool1d(1): m_i = x_i . w_eff + b_eff
    wg = wg_ref[...]                                      # [1, 256]
    bg = bg_ref[...]                                      # [1, 1]
    m1 = jnp.sum(x1 * wg, axis=1, keepdims=True) + bg
    m2 = jnp.sum(x2 * wg, axis=1, keepdims=True) + bg
    m3 = jnp.sum(x3 * wg, axis=1, keepdims=True) + bg

    s1 = 1.0 / (1.0 + jnp.exp(-m1))
    s2 = 1.0 / (1.0 + jnp.exp(-m2))
    s3 = 1.0 / (1.0 + jnp.exp(-m3))
    mx = jnp.maximum(jnp.maximum(s1, s2), s3)
    e1 = jnp.exp(s1 - mx)
    e2 = jnp.exp(s2 - mx)
    e3 = jnp.exp(s3 - mx)
    inv = 1.0 / (e1 + e2 + e3)
    g1, g2, g3 = e1 * inv, e2 * inv, e3 * inv             # softmax gates [Nd,1]

    # gated concat + 768->128 adaptive-avg-pool (three accumulated matmuls)
    pooled = jnp.dot(x1 * g1, p0_ref[...], preferred_element_type=f32)
    pooled += jnp.dot(x2 * g2, p1_ref[...], preferred_element_type=f32)
    pooled += jnp.dot(x3 * g3, p2_ref[...], preferred_element_type=f32)

    # BatchNorm1d(128), batch statistics, eps=1e-5
    mean = jnp.mean(pooled, axis=0, keepdims=True)
    var = jnp.mean(jnp.square(pooled - mean), axis=0, keepdims=True)
    o_ref[...] = ((pooled - mean) * lax.rsqrt(var + 1e-5)
                  * gam_ref[...] + bet_ref[...])


# ----------------------------------------------------------------------------
# 3-5) Conv1dNetwork: ConvTranspose1d(k=2,s=1,p=1)+ReLU+MaxPool1d(4) per stage
#      (each kernel: max over 4 tap-matmuls; last stage fuses residual + pool)
# ----------------------------------------------------------------------------
def _make_ct_pool_kernel(single_channel):
    def kernel(x_ref, w_ref, b_ref, o_ref):
        w = w_ref[...]
        b = b_ref[...]
        y = None
        for j in range(4):
            xj = x_ref[j]
            if single_channel:          # Cin=1 -> outer product on the VPU
                yj = xj[:, 0:1] * w[0:1, :] + xj[:, 1:2] * w[1:2, :]
            else:
                yj = jnp.dot(xj, w, preferred_element_type=jnp.float32)
            yj = jnp.maximum(yj + b, 0.0)
            y = yj if y is None else jnp.maximum(y, yj)
        o_ref[...] = y
    return kernel


def _ct_pool_res_kernel(x_ref, w_ref, b_ref, res_ref, p_ref, o_ref):
    w = w_ref[...]
    b = b_ref[...]
    y = None
    for j in range(4):
        yj = jnp.maximum(
            jnp.dot(x_ref[j], w, preferred_element_type=jnp.float32) + b, 0.0)
        y = yj if y is None else jnp.maximum(y, yj)
    # residual add + 128 -> 256 adaptive-avg-pool
    o_ref[...] = jnp.dot(y + res_ref[...], p_ref[...],
                         preferred_element_type=jnp.float32)


def _ct_layer_slabs(h, Lo):
    # h: [Nd, Cin, L] -> [4, Nd*Lo, 2*Cin]; row (n,o) = [x[:,t+1], x[:,t]],
    # t = 4*o + j (only the positions that survive MaxPool1d(4)).
    Nd, Cin, _ = h.shape
    slabs = []
    for j in range(4):
        a = h[:, :, j + 1::4][:, :, :Lo]
        b = h[:, :, j::4][:, :, :Lo]
        s = jnp.concatenate([a, b], axis=1)               # [Nd, 2Cin, Lo]
        s = s.transpose(0, 2, 1).reshape(Nd * Lo, 2 * Cin)
        slabs.append(s)
    return jnp.stack(slabs, axis=0)


def conv1d_network_residual_pool(xd128, p, P128_256):
    Nd = xd128.shape[0]
    h = xd128[:, None, :]                                 # [Nd, 1, 128]
    for li, (name, Cin, Cout) in enumerate(
            (("c1", 1, 32), ("c2", 32, 64), ("c3", 64, 128))):
        L = h.shape[2]
        Lo = (L - 1) // 4
        M = Nd * Lo
        slabs = _ct_layer_slabs(h, Lo)
        w = p[f"{name}_w"]
        wcat = jnp.concatenate([w[:, :, 0], w[:, :, 1]], axis=0)
        bias = p[f"{name}_b"].reshape(1, Cout)
        if li < 2:
            args = (slabs, wcat, bias)
            out = pl.pallas_call(
                _make_ct_pool_kernel(Cin == 1),
                out_shape=jax.ShapeDtypeStruct((M, Cout), jnp.float32),
                grid=(1,),
                in_specs=_full_specs(*args),
                out_specs=pl.BlockSpec((M, Cout), lambda i: (0, 0)),
            )(*args)
            h = out.reshape(Nd, Lo, Cout).transpose(0, 2, 1)
        else:
            # pool2 (AdaptiveAvgPool1d(128) on length 128) is the identity
            # and is deleted; residual + 128->256 pool are fused here.
            args = (slabs, wcat, bias, xd128, P128_256)
            return pl.pallas_call(
                _ct_pool_res_kernel,
                out_shape=jax.ShapeDtypeStruct((Nd, P128_256.shape[1]),
                                               jnp.float32),
                grid=(1,),
                in_specs=_full_specs(*args),
                out_specs=pl.BlockSpec((Nd, P128_256.shape[1]),
                                       lambda i: (0, 0)),
            )(*args)


# ----------------------------------------------------------------------------
# 6-8) HeteroConv(SAGEConv) layer, both relations fused (+lne on layer 1)
# ----------------------------------------------------------------------------
def _hetero_body(amd, adm, xd, xm, wl1, wr1, b1, wl2, wr2, b2, od_ref, om_ref):
    f32 = jnp.float32
    aggr_d = jnp.dot(amd, xm, preferred_element_type=f32)
    od = (jnp.dot(aggr_d, wl1, preferred_element_type=f32)
          + jnp.dot(xd, wr1, preferred_element_type=f32) + b1)
    od_ref[...] = _leaky(od)
    aggr_m = jnp.dot(adm, xd, preferred_element_type=f32)
    om = (jnp.dot(aggr_m, wl2, preferred_element_type=f32)
          + jnp.dot(xm, wr2, preferred_element_type=f32) + b2)
    om_ref[...] = _leaky(om)


def _hetero_kernel(amd_ref, adm_ref, xd_ref, xm_ref,
                   wl1_ref, wr1_ref, b1_ref, wl2_ref, wr2_ref, b2_ref,
                   od_ref, om_ref):
    _hetero_body(amd_ref[...], adm_ref[...], xd_ref[...], xm_ref[...],
                 wl1_ref[...], wr1_ref[...], b1_ref[...],
                 wl2_ref[...], wr2_ref[...], b2_ref[...], od_ref, om_ref)


def _hetero_lne_kernel(amd_ref, adm_ref, xd_ref, xmr_ref, wlne_ref, blne_ref,
                       wl1_ref, wr1_ref, b1_ref, wl2_ref, wr2_ref, b2_ref,
                       od_ref, om_ref):
    xm = (jnp.dot(xmr_ref[...], wlne_ref[...],
                  preferred_element_type=jnp.float32) + blne_ref[...])
    _hetero_body(amd_ref[...], adm_ref[...], xd_ref[...], xm,
                 wl1_ref[...], wr1_ref[...], b1_ref[...],
                 wl2_ref[...], wr2_ref[...], b2_ref[...], od_ref, om_ref)


def hetero_sage_layer(A_m2d, A_d2m, xd, xm,
                      wl_m2d, wr_m2d, b_m2d, wl_d2m, wr_d2m, b_d2m,
                      wlne=None, blne=None):
    Nd, Nm = A_m2d.shape[0], A_d2m.shape[0]
    Cout = wl_m2d.shape[1]
    if wlne is None:
        kernel = _hetero_kernel
        args = (A_m2d, A_d2m, xd, xm,
                wl_m2d, wr_m2d, b_m2d.reshape(1, Cout),
                wl_d2m, wr_d2m, b_d2m.reshape(1, Cout))
    else:
        kernel = _hetero_lne_kernel
        args = (A_m2d, A_d2m, xd, xm, wlne, blne.reshape(1, -1),
                wl_m2d, wr_m2d, b_m2d.reshape(1, Cout),
                wl_d2m, wr_d2m, b_d2m.reshape(1, Cout))
    return pl.pallas_call(
        kernel,
        out_shape=(jax.ShapeDtypeStruct((Nd, Cout), jnp.float32),
                   jax.ShapeDtypeStruct((Nm, Cout), jnp.float32)),
        grid=(1,),
        in_specs=_full_specs(*args),
        out_specs=(pl.BlockSpec((Nd, Cout), lambda i: (0, 0)),
                   pl.BlockSpec((Nm, Cout), lambda i: (0, 0))),
    )(*args)


def mean_adj(edge_index, n_src, n_tgt):
    # dense row-normalized adjacency: A[t, s] = 1/deg(t) for edge s -> t
    # TODO(synk): replace with a scalar-prefetch / segment-sum aggregation for
    # large graphs; dense A is fine at these node counts.
    src, tgt = edge_index[0], edge_index[1]
    A = jnp.zeros((n_tgt, n_src), jnp.float32).at[tgt, src].add(1.0)
    deg = A.sum(axis=1, keepdims=True)
    return A / jnp.maximum(deg, 1.0)


# ----------------------------------------------------------------------------
# MolVisGNN forward
# ----------------------------------------------------------------------------
def molvis_gnn_forward(x_dict, edge_index_dict, drug_2d_features,
                       drug_3d_features, p):
    x_drug, x_mirna = x_dict["drug"], x_dict["miRNA"]
    Nd, Nm = x_drug.shape[0], x_mirna.shape[0]

    # --- Directional3DProcessor + mean over (dir, D, H, W) : 1 call ---
    enc3 = directional_3d_processor(
        drug_3d_features,
        [p["sp_fr_w"], p["sp_bb_w"], p["sp_tl_w"]],
        [p["sp_fr_b"], p["sp_bb_b"], p["sp_tl_b"]])        # [Nd, 64]

    # --- pools + gate + gated concat-pool + BatchNorm : 1 call ---
    P512 = _pool_matrix(x_drug.shape[1], 256)
    P64 = _pool_matrix(enc3.shape[1], 256)
    P768 = _pool_matrix(3 * 256, 128)
    P0, P1, P2 = P768[0:256], P768[256:512], P768[512:768]
    # gate's lin1->lin2->lin3->mean has no nonlinearity: collapse exactly to a
    # single 256-vector projection.
    W123 = p["g_w1"] @ p["g_w2"] @ p["g_w3"]               # [256, 32]
    w_eff = jnp.mean(W123, axis=1).reshape(1, -1)          # [1, 256]
    b_eff = jnp.mean(p["g_b1"] @ p["g_w2"] @ p["g_w3"]
                     + p["g_b2"] @ p["g_w3"] + p["g_b3"]).reshape(1, 1)
    args = (x_drug, drug_2d_features, enc3, P512, P64, w_eff, b_eff,
            P0, P1, P2, p["nor3_g"].reshape(1, -1), p["nor3_b"].reshape(1, -1))
    xd128 = pl.pallas_call(
        _gate_fuse_kernel,
        out_shape=jax.ShapeDtypeStruct((Nd, 128), jnp.float32),
        grid=(1,),
        in_specs=_full_specs(*args),
        out_specs=pl.BlockSpec((Nd, 128), lambda i: (0, 0)),
    )(*args)

    # --- Conv1dNetwork + residual + 128->256 pool : 3 calls ---
    P128_256 = _pool_matrix(128, 256)
    xd = conv1d_network_residual_pool(xd128, p, P128_256)  # [Nd, 256]

    # --- hetero SAGE layers (layer 1 also applies lne) : 3 calls ---
    A_m2d = mean_adj(edge_index_dict[("miRNA", "interacts", "drug")], Nm, Nd)
    A_d2m = mean_adj(edge_index_dict[("drug", "interacts", "miRNA")], Nd, Nm)

    xm = x_mirna
    xd, xm = hetero_sage_layer(
        A_m2d, A_d2m, xd, xm,
        p["conv1_m2d_wl"], p["conv1_m2d_wr"], p["conv1_m2d_bl"],
        p["conv1_d2m_wl"], p["conv1_d2m_wr"], p["conv1_d2m_bl"],
        wlne=p["lne_w"], blne=p["lne_b"])
    for layer in ("conv2", "conv3"):
        xd, xm = hetero_sage_layer(
            A_m2d, A_d2m, xd, xm,
            p[f"{layer}_m2d_wl"], p[f"{layer}_m2d_wr"], p[f"{layer}_m2d_bl"],
            p[f"{layer}_d2m_wl"], p[f"{layer}_d2m_wr"], p[f"{layer}_d2m_bl"])
    return {"drug": xd, "miRNA": xm}


# ----------------------------------------------------------------------------
# Deterministic parameter init (shapes from the module __init__)
# ----------------------------------------------------------------------------
def init_params(key):
    keys = iter(jax.random.split(key, 64))

    def lin(fan_in, fan_out, bias=True):
        w = jax.random.normal(next(keys), (fan_in, fan_out),
                              jnp.float32) / np.sqrt(fan_in)
        b = (jax.random.normal(next(keys), (fan_out,), jnp.float32) * 0.01
             if bias else None)
        return w, b

    p = {}
    # Directional3DProcessor: 3 x Conv3d(128 -> 64, k=3, pad=1)
    for name in ("fr", "bb", "tl"):
        p[f"sp_{name}_w"] = jax.random.normal(
            next(keys), (64, 128, 3, 3, 3), jnp.float32) / np.sqrt(128 * 27)
        p[f"sp_{name}_b"] = jax.random.normal(next(keys), (64,), jnp.float32) * 0.01
    # gate
    p["g_w1"], p["g_b1"] = lin(256, 128)
    p["g_w2"], p["g_b2"] = lin(128, 64)
    p["g_w3"], p["g_b3"] = lin(64, 32)
    # lne
    p["lne_w"], p["lne_b"] = lin(382, 256)
    # nor3 (BatchNorm1d(128), default affine init)
    p["nor3_g"] = jnp.ones((128,), jnp.float32)
    p["nor3_b"] = jnp.zeros((128,), jnp.float32)
    # Conv1dNetwork: ConvTranspose1d weights [Cin, Cout, 2]
    for name, cin, cout in (("c1", 1, 32), ("c2", 32, 64), ("c3", 64, 128)):
        p[f"{name}_w"] = jax.random.normal(
            next(keys), (cin, cout, 2), jnp.float32) / np.sqrt(cin * 2)
        p[f"{name}_b"] = jax.random.normal(next(keys), (cout,), jnp.float32) * 0.01
    # HeteroConv SAGEConv layers (conv4 / mlp_pre unused in forward)
    for name, cin, cout in (("conv1", 256, 128), ("conv2", 128, 64),
                            ("conv3", 64, 32)):
        for rel in ("m2d", "d2m"):
            wl, bl = lin(cin, cout)
            wr, _ = lin(cin, cout, bias=False)
            p[f"{name}_{rel}_wl"], p[f"{name}_{rel}_bl"] = wl, bl
            p[f"{name}_{rel}_wr"] = wr
    return p


# ----------------------------------------------------------------------------
# Main
# ----------------------------------------------------------------------------
if __name__ == "__main__":
    key = jax.random.PRNGKey(0)
    k_d, k_m, k_2d, k_3d = jax.random.split(key, 4)

    N_drug, N_mirna = 4, 4
    x_dict = {
        "drug": jax.random.normal(k_d, (N_drug, 512), jnp.float32),
        "miRNA": jax.random.normal(k_m, (N_mirna, 382), jnp.float32),
    }
    drug_2d_features = jax.random.normal(k_2d, (N_drug, 512), jnp.float32)
    drug_3d_features = jax.random.normal(k_3d, (N_drug, 128, 6, 2, 2), jnp.float32)

    edge_index_dict = {
        ("miRNA", "interacts", "drug"): jnp.array([[0, 1, 2, 3, 0, 2],
                                                   [0, 1, 2, 3, 1, 3]], jnp.int32),
        ("drug", "interacts", "miRNA"): jnp.array([[0, 1, 2, 3, 1, 3],
                                                   [0, 1, 2, 3, 2, 0]], jnp.int32),
    }

    params = init_params(jax.random.PRNGKey(42))

    fwd = jax.jit(molvis_gnn_forward)
    out = fwd(x_dict, edge_index_dict, drug_2d_features, drug_3d_features, params)
    jax.block_until_ready(out["drug"])
    jax.block_until_ready(out["miRNA"])

    assert out["drug"].shape == (N_drug, 32)
    assert out["miRNA"].shape == (N_mirna, 32)
    print("KERNEL_OK")
</pallas_src>

<mosaic_0001>
module attributes {stable_mosaic.version = 11 : i64} {
  func.func @_sp3d_kernel(%arg0: i32, %arg1: i32, %arg2: memref<1x32x1152xbf16, #tpu.memory_space<vmem>>, %arg3: memref<1x1152x64xbf16, #tpu.memory_space<vmem>>, %arg4: memref<1x1x64xf32, #tpu.memory_space<vmem>>, %arg5: memref<4x32xf32, #tpu.memory_space<vmem>>, %arg6: memref<4x64xf32, #tpu.memory_space<vmem>>, %arg7: memref<32x64xf32, #tpu.memory_space<vmem>>) attributes {dimension_semantics = [#tpu.dimension_semantics<arbitrary>, #tpu.dimension_semantics<arbitrary>], iteration_bounds = array<i64: 3, 3>, scalar_prefetch = 0 : i64, scratch_operands = 1 : i64, tpu.core_type = #tpu.core_type<tc>, window_params = [{transform_indices = @transform_0, window_bounds = array<i64: 1, 32, 1152>}, {transform_indices = @transform_1, window_bounds = array<i64: 1, 1152, 64>}, {transform_indices = @transform_2, window_bounds = array<i64: 1, 1, 64>}, {pipeline_mode = #tpu.pipeline_mode<synchronous>, transform_indices = @transform_3, window_bounds = array<i64: 4, 32>}, {pipeline_mode = #tpu.pipeline_mode<synchronous>, transform_indices = @transform_4, window_bounds = array<i64: 4, 64>}]} {
    %c0_i32 = arith.constant 0 : i32
    %0 = arith.cmpi eq, %arg0, %c0_i32 : i32
    %c0_i32_0 = arith.constant 0 : i32
    %1 = arith.cmpi eq, %arg1, %c0_i32_0 : i32
    %2 = arith.andi %0, %1 : i1
    %3 = arith.extui %2 : i1 to i32
    %c0_i32_1 = arith.constant 0 : i32
    %4 = arith.cmpi ne, %3, %c0_i32_1 : i32
    scf.if %4 {
      %cst_14 = arith.constant 0.000000e+00 : f32
      %19 = vector.broadcast %cst_14 : f32 to vector<4x64xf32>
      %c0_15 = arith.constant 0 : index
      %c0_16 = arith.constant 0 : index
      %20 = vector.load %arg6[%c0_15, %c0_16] : memref<4x64xf32, #tpu.memory_space<vmem>>, vector<4x64xf32>
      tpu.vector_store %arg6[%c0_15, %c0_16], %19 {strides = array<i32>} : memref<4x64xf32, #tpu.memory_space<vmem>>, vector<4x64xf32>,
    } else {
    }
    %c0_i32_2 = arith.constant 0 : i32
    %5 = arith.cmpi eq, %arg1, %c0_i32_2 : i32
    %6 = arith.extui %5 : i1 to i32
    %c0_i32_3 = arith.constant 0 : i32
    %7 = arith.cmpi ne, %6, %c0_i32_3 : i32
    scf.if %7 {
      %cst_14 = arith.constant 0.000000e+00 : f32
      %19 = vector.broadcast %cst_14 : f32 to vector<32x64xf32>
      %c0_15 = arith.constant 0 : index
      %c0_16 = arith.constant 0 : index
      %20 = vector.load %arg7[%c0_15, %c0_16] : memref<32x64xf32, #tpu.memory_space<vmem>>, vector<32x64xf32>
      tpu.vector_store %arg7[%c0_15, %c0_16], %19 {strides = array<i32>} : memref<32x64xf32, #tpu.memory_space<vmem>>, vector<32x64xf32>,
    } else {
    }
    %c0 = arith.constant 0 : index
    %c0_4 = arith.constant 0 : index
    %8 = vector.load %arg7[%c0, %c0_4] : memref<32x64xf32, #tpu.memory_space<vmem>>, vector<32x64xf32>
    %c0_5 = arith.constant 0 : index
    %c0_6 = arith.constant 0 : index
    %c0_7 = arith.constant 0 : index
    %9 = vector.load %arg2[%c0_5, %c0_6, %c0_7] : memref<1x32x1152xbf16, #tpu.memory_space<vmem>>, vector<1x32x1152xbf16>
    %10 = vector.shape_cast %9 : vector<1x32x1152xbf16> to vector<32x1152xbf16>
    %c0_8 = arith.constant 0 : index
    %c0_9 = arith.constant 0 : index
    %c0_10 = arith.constant 0 : index
    %11 = vector.load %arg3[%c0_8, %c0_9, %c0_10] : memref<1x1152x64xbf16, #tpu.memory_space<vmem>>, vector<1x1152x64xbf16>
    %12 = vector.shape_cast %11 : vector<1x1152x64xbf16> to vector<1152x64xbf16>
    %cst = arith.constant dense<0.000000e+00> : vector<32x64xf32>
    %13 = tpu.matmul %10, %12, %cst {dimension_numbers = #tpu.dot_dimension_numbers<[1], [0], [0], [1], [0, 0, 1, 1], [], []>} : vector<32x1152xbf16>, vector<1152x64xbf16>, vector<32x64xf32> -> vector<32x64xf32>
    %14 = arith.addf %8, %13 : vector<32x64xf32>
    %c0_11 = arith.constant 0 : index
    %c0_12 = arith.constant 0 : index
    %15 = vector.load %arg7[%c0_11, %c0_12] : memref<32x64xf32, #tpu.memory_space<vmem>>, vector<32x64xf32>
    tpu.vector_store %arg7[%c0_11, %c0_12], %14 {strides = array<i32>} : memref<32x64xf32, #tpu.memory_space<vmem>>, vector<32x64xf32>,
    %c2_i32 = arith.constant 2 : i32
    %16 = arith.cmpi eq, %arg1, %c2_i32 : i32
    %17 = arith.extui %16 : i1 to i32
    %c0_i32_13 = arith.constant 0 : i32
    %18 = arith.cmpi ne, %17, %c0_i32_13 : i32
    scf.if %18 {
      %c0_14 = arith.constant 0 : index
      %c0_15 = arith.constant 0 : index
      %19 = vector.load %arg7[%c0_14, %c0_15] : memref<32x64xf32, #tpu.memory_space<vmem>>, vector<32x64xf32>
      %c0_16 = arith.constant 0 : index
      %c0_17 = arith.constant 0 : index
      %c0_18 = arith.constant 0 : index
      %20 = vector.load %arg4[%c0_16, %c0_17, %c0_18] : memref<1x1x64xf32, #tpu.memory_space<vmem>>, vector<1x1x64xf32>
      %21 = vector.shape_cast %20 : vector<1x1x64xf32> to vector<1x64xf32>
      %22 = vector.broadcast %21 : vector<1x64xf32> to vector<32x64xf32>
      %23 = arith.addf %19, %22 : vector<32x64xf32>
      %cst_19 = arith.constant 0.000000e+00 : f32
      %24 = vector.broadcast %cst_19 : f32 to vector<32x64xf32>
      %25 = arith.maximumf %23, %24 : vector<32x64xf32>
      %c0_20 = arith.constant 0 : index
      %c0_21 = arith.constant 0 : index
      %26 = vector.load %arg6[%c0_20, %c0_21] : memref<4x64xf32, #tpu.memory_space<vmem>>, vector<4x64xf32>
      %c0_22 = arith.constant 0 : index
      %c0_23 = arith.constant 0 : index
      %27 = vector.load %arg5[%c0_22, %c0_23] : memref<4x32xf32, #tpu.memory_space<vmem>>, vector<4x32xf32>
      %cst_24 = arith.constant dense<0.000000e+00> : vector<4x64xf32>
      %28 = tpu.matmul %27, %25, %cst_24 {dimension_numbers = #tpu.dot_dimension_numbers<[1], [0], [0], [1], [0, 0, 1, 1], [], []>} : vector<4x32xf32>, vector<32x64xf32>, vector<4x64xf32> -> vector<4x64xf32>
      %29 = arith.addf %26, %28 : vector<4x64xf32>
      %c0_25 = arith.constant 0 : index
      %c0_26 = arith.constant 0 : index
      %30 = vector.load %arg6[%c0_25, %c0_26] : memref<4x64xf32, #tpu.memory_space<vmem>>, vector<4x64xf32>
      tpu.vector_store %arg6[%c0_25, %c0_26], %29 {strides = array<i32>} : memref<4x64xf32, #tpu.memory_space<vmem>>, vector<4x64xf32>,
    } else {
    }
    return
  }
  func.func @transform_0(%arg0: i32, %arg1: i32) -> (i32, i32, i32) {
    %c0_i32 = arith.constant 0 : i32
    %c0_i32_0 = arith.constant 0 : i32
    return %arg0, %c0_i32, %arg1 : i32, i32, i32
  }
  func.func @transform_1(%arg0: i32, %arg1: i32) -> (i32, i32, i32) {
    %c0_i32 = arith.constant 0 : i32
    %c0_i32_0 = arith.constant 0 : i32
    return %arg0, %arg1, %c0_i32 : i32, i32, i32
  }
  func.func @transform_2(%arg0: i32, %arg1: i32) -> (i32, i32, i32) {
    %c0_i32 = arith.constant 0 : i32
    %c0_i32_0 = arith.constant 0 : i32
    %c0_i32_1 = arith.constant 0 : i32
    return %arg0, %c0_i32, %c0_i32_0 : i32, i32, i32
  }
  func.func @transform_3(%arg0: i32, %arg1: i32) -> (i32, i32) {
    %c0_i32 = arith.constant 0 : i32
    %c0_i32_0 = arith.constant 0 : i32
    %c0_i32_1 = arith.constant 0 : i32
    return %c0_i32, %c0_i32_0 : i32, i32
  }
  func.func @transform_4(%arg0: i32, %arg1: i32) -> (i32, i32) {
    %c0_i32 = arith.constant 0 : i32
    %c0_i32_0 = arith.constant 0 : i32
    %c0_i32_1 = arith.constant 0 : i32
    return %c0_i32, %c0_i32_0 : i32, i32
  }
}

module attributes {stable_mosaic.version = 11 : i64} {
  func.func @_gate_fuse_kernel(%arg0: i32, %arg1: memref<4x512xf32, #tpu.memory_space<vmem>>, %arg2: memref<4x512xf32, #tpu.memory_space<vmem>>, %arg3: memref<4x64xf32, #tpu.memory_space<vmem>>, %arg4: memref<512x256xf32, #tpu.memory_space<vmem>>, %arg5: memref<64x256xf32, #tpu.memory_space<vmem>>, %arg6: memref<1x256xf32, #tpu.memory_space<vmem>>, %arg7: memref<1x1xf32, #tpu.memory_space<vmem>>, %arg8: memref<256x128xf32, #tpu.memory_space<vmem>>, %arg9: memref<256x128xf32, #tpu.memory_space<vmem>>, %arg10: memref<256x128xf32, #tpu.memory_space<vmem>>, %arg11: memref<1x128xf32, #tpu.memory_space<vmem>>, %arg12: memref<1x128xf32, #tpu.memory_space<vmem>>, %arg13: memref<4x128xf32, #tpu.memory_space<vmem>>) attributes {dimension_semantics = [#tpu.dimension_semantics<arbitrary>], iteration_bounds = array<i64: 1>, scalar_prefetch = 0 : i64, scratch_operands = 0 : i64, tpu.core_type = #tpu.core_type<tc>, window_params = [{pipeline_mode = #tpu.pipeline_mode<synchronous>, transform_indices = @transform_0, window_bounds = array<i64: 4, 512>}, {pipeline_mode = #tpu.pipeline_mode<synchronous>, transform_indices = @transform_1, window_bounds = array<i64: 4, 512>}, {pipeline_mode = #tpu.pipeline_mode<synchronous>, transform_indices = @transform_2, window_bounds = array<i64: 4, 64>}, {pipeline_mode = #tpu.pipeline_mode<synchronous>, transform_indices = @transform_3, window_bounds = array<i64: 512, 256>}, {pipeline_mode = #tpu.pipeline_mode<synchronous>, transform_indices = @transform_4, window_bounds = array<i64: 64, 256>}, {pipeline_mode = #tpu.pipeline_mode<synchronous>, transform_indices = @transform_5, window_bounds = array<i64: 1, 256>}, {pipeline_mode = #tpu.pipeline_mode<synchronous>, transform_indices = @transform_6, window_bounds = array<i64: 1, 1>}, {pipeline_mode = #tpu.pipeline_mode<synchronous>, transform_indices = @transform_7, window_bounds = array<i64: 256, 128>}, {pipeline_mode = #tpu.pipeline_mode<synchronous>, transform_indices = @transform_8, window_bounds = array<i64: 256, 128>}, {pipeline_mode = #tpu.pipeline_mode<synchronous>, transform_indices = @transform_9, window_bounds = array<i64: 256, 128>}, {pipeline_mode = #tpu.pipeline_mode<synchronous>, transform_indices = @transform_10, window_bounds = array<i64: 1, 128>}, {pipeline_mode = #tpu.pipeline_mode<synchronous>, transform_indices = @transform_11, window_bounds = array<i64: 1, 128>}, {pipeline_mode = #tpu.pipeline_mode<synchronous>, transform_indices = @transform_12, window_bounds = array<i64: 4, 128>}]} {
    %c0 = arith.constant 0 : index
    %c0_0 = arith.constant 0 : index
    %0 = vector.load %arg1[%c0, %c0_0] : memref<4x512xf32, #tpu.memory_space<vmem>>, vector<4x512xf32>
    %c0_1 = arith.constant 0 : index
    %c0_2 = arith.constant 0 : index
    %1 = vector.load %arg4[%c0_1, %c0_2] : memref<512x256xf32, #tpu.memory_space<vmem>>, vector<512x256xf32>
    %cst = arith.constant dense<0.000000e+00> : vector<4x256xf32>
    %2 = tpu.matmul %0, %1, %cst {dimension_numbers = #tpu.dot_dimension_numbers<[1], [0], [0], [1], [0, 0, 1, 1], [], []>} : vector<4x512xf32>, vector<512x256xf32>, vector<4x256xf32> -> vector<4x256xf32>
    %c0_3 = arith.constant 0 : index
    %c0_4 = arith.constant 0 : index
    %3 = vector.load %arg2[%c0_3, %c0_4] : memref<4x512xf32, #tpu.memory_space<vmem>>, vector<4x512xf32>
    %c0_5 = arith.constant 0 : index
    %c0_6 = arith.constant 0 : index
    %4 = vector.load %arg4[%c0_5, %c0_6] : memref<512x256xf32, #tpu.memory_space<vmem>>, vector<512x256xf32>
    %cst_7 = arith.constant dense<0.000000e+00> : vector<4x256xf32>
    %5 = tpu.matmul %3, %4, %cst_7 {dimension_numbers = #tpu.dot_dimension_numbers<[1], [0], [0], [1], [0, 0, 1, 1], [], []>} : vector<4x512xf32>, vector<512x256xf32>, vector<4x256xf32> -> vector<4x256xf32>
    %c0_8 = arith.constant 0 : index
    %c0_9 = arith.constant 0 : index
    %6 = vector.load %arg3[%c0_8, %c0_9] : memref<4x64xf32, #tpu.memory_space<vmem>>, vector<4x64xf32>
    %c0_10 = arith.constant 0 : index
    %c0_11 = arith.constant 0 : index
    %7 = vector.load %arg5[%c0_10, %c0_11] : memref<64x256xf32, #tpu.memory_space<vmem>>, vector<64x256xf32>
    %cst_12 = arith.constant dense<0.000000e+00> : vector<4x256xf32>
    %8 = tpu.matmul %6, %7, %cst_12 {dimension_numbers = #tpu.dot_dimension_numbers<[1], [0], [0], [1], [0, 0, 1, 1], [], []>} : vector<4x64xf32>, vector<64x256xf32>, vector<4x256xf32> -> vector<4x256xf32>
    %c0_13 = arith.constant 0 : index
    %c0_14 = arith.constant 0 : index
    %9 = vector.load %arg6[%c0_13, %c0_14] : memref<1x256xf32, #tpu.memory_space<vmem>>, vector<1x256xf32>
    %c0_15 = arith.constant 0 : index
    %c0_16 = arith.constant 0 : index
    %10 = vector.load %arg7[%c0_15, %c0_16] : memref<1x1xf32, #tpu.memory_space<vmem>>, vector<1x1xf32>
    %11 = vector.broadcast %9 : vector<1x256xf32> to vector<4x256xf32>
    %12 = arith.mulf %2, %11 : vector<4x256xf32>
    %cst_17 = arith.constant dense<0.000000e+00> : vector<4xf32>
    %13 = vector.multi_reduction <add>, %12, %cst_17 [1] : vector<4x256xf32> to vector<4xf32>
    %14 = vector.shape_cast %13 : vector<4xf32> to vector<4x1xf32>
    %15 = vector.broadcast %10 : vector<1x1xf32> to vector<4x1xf32>
    %16 = arith.addf %14, %15 : vector<4x1xf32>
    %17 = vector.broadcast %9 : vector<1x256xf32> to vector<4x256xf32>
    %18 = arith.mulf %5, %17 : vector<4x256xf32>
    %cst_18 = arith.constant dense<0.000000e+00> : vector<4xf32>
    %19 = vector.multi_reduction <add>, %18, %cst_18 [1] : vector<4x256xf32> to vector<4xf32>
    %20 = vector.shape_cast %19 : vector<4xf32> to vector<4x1xf32>
    %21 = vector.broadcast %10 : vector<1x1xf32> to vector<4x1xf32>
    %22 = arith.addf %20, %21 : vector<4x1xf32>
    %23 = vector.broadcast %9 : vector<1x256xf32> to vector<4x256xf32>
    %24 = arith.mulf %8, %23 : vector<4x256xf32>
    %cst_19 = arith.constant dense<0.000000e+00> : vector<4xf32>
    %25 = vector.multi_reduction <add>, %24, %cst_19 [1] : vector<4x256xf32> to vector<4xf32>
    %26 = vector.shape_cast %25 : vector<4xf32> to vector<4x1xf32>
    %27 = vector.broadcast %10 : vector<1x1xf32> to vector<4x1xf32>
    %28 = arith.addf %26, %27 : vector<4x1xf32>
    %cst_20 = arith.constant 0.000000e+00 : f32
    %29 = vector.broadcast %cst_20 : f32 to vector<4x1xf32>
    %30 = arith.subf %29, %16 : vector<4x1xf32>
    %31 = math.exp %30 : vector<4x1xf32>
    %cst_21 = arith.constant 1.000000e+00 : f32
    %32 = vector.broadcast %cst_21 : f32 to vector<4x1xf32>
    %33 = arith.addf %32, %31 : vector<4x1xf32>
    %cst_22 = arith.constant 1.000000e+00 : f32
    %34 = vector.broadcast %cst_22 : f32 to vector<4x1xf32>
    %35 = arith.divf %34, %33 : vector<4x1xf32>
    %cst_23 = arith.constant 0.000000e+00 : f32
    %36 = vector.broadcast %cst_23 : f32 to vector<4x1xf32>
    %37 = arith.subf %36, %22 : vector<4x1xf32>
    %38 = math.exp %37 : vector<4x1xf32>
    %cst_24 = arith.constant 1.000000e+00 : f32
    %39 = vector.broadcast %cst_24 : f32 to vector<4x1xf32>
    %40 = arith.addf %39, %38 : vector<4x1xf32>
    %cst_25 = arith.constant 1.000000e+00 : f32
    %41 = vector.broadcast %cst_25 : f32 to vector<4x1xf32>
    %42 = arith.divf %41, %40 : vector<4x1xf32>
    %cst_26 = arith.constant 0.000000e+00 : f32
    %43 = vector.broadcast %cst_26 : f32 to vector<4x1xf32>
    %44 = arith.subf %43, %28 : vector<4x1xf32>
    %45 = math.exp %44 : vector<4x1xf32>
    %cst_27 = arith.constant 1.000000e+00 : f32
    %46 = vector.broadcast %cst_27 : f32 to vector<4x1xf32>
    %47 = arith.addf %46, %45 : vector<4x1xf32>
    %cst_28 = arith.constant 1.000000e+00 : f32
    %48 = vector.broadcast %cst_28 : f32 to vector<4x1xf32>
    %49 = arith.divf %48, %47 : vector<4x1xf32>
    %50 = arith.maximumf %35, %42 : vector<4x1xf32>
    %51 = arith.maximumf %50, %49 : vector<4x1xf32>
    %52 = arith.subf %35, %51 : vector<4x1xf32>
    %53 = math.exp %52 : vector<4x1xf32>
    %54 = arith.subf %42, %51 : vector<4x1xf32>
    %55 = math.exp %54 : vector<4x1xf32>
    %56 = arith.subf %49, %51 : vector<4x1xf32>
    %57 = math.exp %56 : vector<4x1xf32>
    %58 = arith.addf %53, %55 : vector<4x1xf32>
    %59 = arith.addf %58, %57 : vector<4x1xf32>
    %cst_29 = arith.constant 1.000000e+00 : f32
    %60 = vector.broadcast %cst_29 : f32 to vector<4x1xf32>
    %61 = arith.divf %60, %59 : vector<4x1xf32>
    %62 = arith.mulf %53, %61 : vector<4x1xf32>
    %63 = arith.mulf %55, %61 : vector<4x1xf32>
    %64 = arith.mulf %57, %61 : vector<4x1xf32>
    %65 = vector.broadcast %62 : vector<4x1xf32> to vector<4x256xf32>
    %66 = arith.mulf %2, %65 : vector<4x256xf32>
    %c0_30 = arith.constant 0 : index
    %c0_31 = arith.constant 0 : index
    %67 = vector.load %arg8[%c0_30, %c0_31] : memref<256x128xf32, #tpu.memory_space<vmem>>, vector<256x128xf32>
    %cst_32 = arith.constant dense<0.000000e+00> : vector<4x128xf32>
    %68 = tpu.matmul %66, %67, %cst_32 {dimension_numbers = #tpu.dot_dimension_numbers<[1], [0], [0], [1], [0, 0, 1, 1], [], []>} : vector<4x256xf32>, vector<256x128xf32>, vector<4x128xf32> -> vector<4x128xf32>
    %69 = vector.broadcast %63 : vector<4x1xf32> to vector<4x256xf32>
    %70 = arith.mulf %5, %69 : vector<4x256xf32>
    %c0_33 = arith.constant 0 : index
    %c0_34 = arith.constant 0 : index
    %71 = vector.load %arg9[%c0_33, %c0_34] : memref<256x128xf32, #tpu.memory_space<vmem>>, vector<256x128xf32>
    %cst_35 = arith.constant dense<0.000000e+00> : vector<4x128xf32>
    %72 = tpu.matmul %70, %71, %cst_35 {dimension_numbers = #tpu.dot_dimension_numbers<[1], [0], [0], [1], [0, 0, 1, 1], [], []>} : vector<4x256xf32>, vector<256x128xf32>, vector<4x128xf32> -> vector<4x128xf32>
    %73 = arith.addf %68, %72 : vector<4x128xf32>
    %74 = vector.broadcast %64 : vector<4x1xf32> to vector<4x256xf32>
    %75 = arith.mulf %8, %74 : vector<4x256xf32>
    %c0_36 = arith.constant 0 : index
    %c0_37 = arith.constant 0 : index
    %76 = vector.load %arg10[%c0_36, %c0_37] : memref<256x128xf32, #tpu.memory_space<vmem>>, vector<256x128xf32>
    %cst_38 = arith.constant dense<0.000000e+00> : vector<4x128xf32>
    %77 = tpu.matmul %75, %76, %cst_38 {dimension_numbers = #tpu.dot_dimension_numbers<[1], [0], [0], [1], [0, 0, 1, 1], [], []>} : vector<4x256xf32>, vector<256x128xf32>, vector<4x128xf32> -> vector<4x128xf32>
    %78 = arith.addf %73, %77 : vector<4x128xf32>
    %cst_39 = arith.constant dense<0.000000e+00> : vector<128xf32>
    %79 = vector.multi_reduction <add>, %78, %cst_39 [0] : vector<4x128xf32> to vector<128xf32>
    %80 = vector.shape_cast %79 : vector<128xf32> to vector<1x128xf32>
    %cst_40 = arith.constant 4.000000e+00 : f32
    %81 = vector.broadcast %cst_40 : f32 to vector<1x128xf32>
    %82 = arith.divf %80, %81 : vector<1x128xf32>
    %83 = vector.broadcast %82 : vector<1x128xf32> to vector<4x128xf32>
    %84 = arith.subf %78, %83 : vector<4x128xf32>
    %85 = arith.mulf %84, %84 : vector<4x128xf32>
    %cst_41 = arith.constant dense<0.000000e+00> : vector<128xf32>
    %86 = vector.multi_reduction <add>, %85, %cst_41 [0] : vector<4x128xf32> to vector<128xf32>
    %87 = vector.shape_cast %86 : vector<128xf32> to vector<1x128xf32>
    %cst_42 = arith.constant 4.000000e+00 : f32
    %88 = vector.broadcast %cst_42 : f32 to vector<1x128xf32>
    %89 = arith.divf %87, %88 : vector<1x128xf32>
    %90 = vector.broadcast %82 : vector<1x128xf32> to vector<4x128xf32>
    %91 = arith.subf %78, %90 : vector<4x128xf32>
    %cst_43 = arith.constant 9.99999974E-6 : f32
    %92 = vector.broadcast %cst_43 : f32 to vector<1x128xf32>
    %93 = arith.addf %89, %92 : vector<1x128xf32>
    %94 = math.rsqrt %93 : vector<1x128xf32>
    %95 = vector.broadcast %94 : vector<1x128xf32> to vector<4x128xf32>
    %96 = arith.mulf %91, %95 : vector<4x128xf32>
    %c0_44 = arith.constant 0 : index
    %c0_45 = arith.constant 0 : index
    %97 = vector.load %arg11[%c0_44, %c0_45] : memref<1x128xf32, #tpu.memory_space<vmem>>, vector<1x128xf32>
    %98 = vector.broadcast %97 : vector<1x128xf32> to vector<4x128xf32>
    %99 = arith.mulf %96, %98 : vector<4x128xf32>
    %c0_46 = arith.constant 0 : index
    %c0_47 = arith.constant 0 : index
    %100 = vector.load %arg12[%c0_46, %c0_47] : memref<1x128xf32, #tpu.memory_space<vmem>>, vector<1x128xf32>
    %101 = vector.broadcast %100 : vector<1x128xf32> to vector<4x128xf32>
    %102 = arith.addf %99, %101 : vector<4x128xf32>
    %c0_48 = arith.constant 0 : index
    %c0_49 = arith.constant 0 : index
    %103 = vector.load %arg13[%c0_48, %c0_49] : memref<4x128xf32, #tpu.memory_space<vmem>>, vector<4x128xf32>
    tpu.vector_store %arg13[%c0_48, %c0_49], %102 {strides = array<i32>} : memref<4x128xf32, #tpu.memory_space<vmem>>, vector<4x128xf32>,
    return
  }
  func.func @transform_0(%arg0: i32) -> (i32, i32) {
    %c0_i32 = arith.constant 0 : i32
    %c0_i32_0 = arith.constant 0 : i32
    %c0_i32_1 = arith.constant 0 : i32
    return %c0_i32, %c0_i32_0 : i32, i32
  }
  func.func @transform_1(%arg0: i32) -> (i32, i32) {
    %c0_i32 = arith.constant 0 : i32
    %c0_i32_0 = arith.constant 0 : i32
    %c0_i32_1 = arith.constant 0 : i32
    return %c0_i32, %c0_i32_0 : i32, i32
  }
  func.func @transform_2(%arg0: i32) -> (i32, i32) {
    %c0_i32 = arith.constant 0 : i32
    %c0_i32_0 = arith.constant 0 : i32
    %c0_i32_1 = arith.constant 0 : i32
    return %c0_i32, %c0_i32_0 : i32, i32
  }
  func.func @transform_3(%arg0: i32) -> (i32, i32) {
    %c0_i32 = arith.constant 0 : i32
    %c0_i32_0 = arith.constant 0 : i32
    %c0_i32_1 = arith.constant 0 : i32
    return %c0_i32, %c0_i32_0 : i32, i32
  }
  func.func @transform_4(%arg0: i32) -> (i32, i32) {
    %c0_i32 = arith.constant 0 : i32
    %c0_i32_0 = arith.constant 0 : i32
    %c0_i32_1 = arith.constant 0 : i32
    return %c0_i32, %c0_i32_0 : i32, i32
  }
  func.func @transform_5(%arg0: i32) -> (i32, i32) {
    %c0_i32 = arith.constant 0 : i32
    %c0_i32_0 = arith.constant 0 : i32
    %c0_i32_1 = arith.constant 0 : i32
    return %c0_i32, %c0_i32_0 : i32, i32
  }
  func.func @transform_6(%arg0: i32) -> (i32, i32) {
    %c0_i32 = arith.constant 0 : i32
    %c0_i32_0 = arith.constant 0 : i32
    %c0_i32_1 = arith.constant 0 : i32
    return %c0_i32, %c0_i32_0 : i32, i32
  }
  func.func @transform_7(%arg0: i32) -> (i32, i32) {
    %c0_i32 = arith.constant 0 : i32
    %c0_i32_0 = arith.constant 0 : i32
    %c0_i32_1 = arith.constant 0 : i32
    return %c0_i32, %c0_i32_0 : i32, i32
  }
  func.func @transform_8(%arg0: i32) -> (i32, i32) {
    %c0_i32 = arith.constant 0 : i32
    %c0_i32_0 = arith.constant 0 : i32
    %c0_i32_1 = arith.constant 0 : i32
    return %c0_i32, %c0_i32_0 : i32, i32
  }
  func.func @transform_9(%arg0: i32) -> (i32, i32) {
    %c0_i32 = arith.constant 0 : i32
    %c0_i32_0 = arith.constant 0 : i32
    %c0_i32_1 = arith.constant 0 : i32
    return %c0_i32, %c0_i32_0 : i32, i32
  }
  func.func @transform_10(%arg0: i32) -> (i32, i32) {
    %c0_i32 = arith.constant 0 : i32
    %c0_i32_0 = arith.constant 0 : i32
    %c0_i32_1 = arith.constant 0 : i32
    return %c0_i32, %c0_i32_0 : i32, i32
  }
  func.func @transform_11(%arg0: i32) -> (i32, i32) {
    %c0_i32 = arith.constant 0 : i32
    %c0_i32_0 = arith.constant 0 : i32
    %c0_i32_1 = arith.constant 0 : i32
    return %c0_i32, %c0_i32_0 : i32, i32
  }
  func.func @transform_12(%arg0: i32) -> (i32, i32) {
    %c0_i32 = arith.constant 0 : i32
    %c0_i32_0 = arith.constant 0 : i32
    %c0_i32_1 = arith.constant 0 : i32
    return %c0_i32, %c0_i32_0 : i32, i32
  }
}

module attributes {stable_mosaic.version = 11 : i64} {
  func.func @kernel(%arg0: i32, %arg1: memref<4x124x2xf32, #tpu.memory_space<vmem>>, %arg2: memref<2x32xf32, #tpu.memory_space<vmem>>, %arg3: memref<1x32xf32, #tpu.memory_space<vmem>>, %arg4: memref<124x32xf32, #tpu.memory_space<vmem>>) attributes {dimension_semantics = [#tpu.dimension_semantics<arbitrary>], iteration_bounds = array<i64: 1>, scalar_prefetch = 0 : i64, scratch_operands = 0 : i64, tpu.core_type = #tpu.core_type<tc>, window_params = [{pipeline_mode = #tpu.pipeline_mode<synchronous>, transform_indices = @transform_0, window_bounds = array<i64: 4, 124, 2>}, {pipeline_mode = #tpu.pipeline_mode<synchronous>, transform_indices = @transform_1, window_bounds = array<i64: 2, 32>}, {pipeline_mode = #tpu.pipeline_mode<synchronous>, transform_indices = @transform_2, window_bounds = array<i64: 1, 32>}, {pipeline_mode = #tpu.pipeline_mode<synchronous>, transform_indices = @transform_3, window_bounds = array<i64: 124, 32>}]} {
    %c0 = arith.constant 0 : index
    %c0_0 = arith.constant 0 : index
    %0 = vector.load %arg2[%c0, %c0_0] : memref<2x32xf32, #tpu.memory_space<vmem>>, vector<2x32xf32>
    %c0_1 = arith.constant 0 : index
    %c0_2 = arith.constant 0 : index
    %1 = vector.load %arg3[%c0_1, %c0_2] : memref<1x32xf32, #tpu.memory_space<vmem>>, vector<1x32xf32>
    %c0_3 = arith.constant 0 : index
    %c0_4 = arith.constant 0 : index
    %c0_5 = arith.constant 0 : index
    %2 = vector.load %arg1[%c0_3, %c0_4, %c0_5] : memref<4x124x2xf32, #tpu.memory_space<vmem>>, vector<1x124x2xf32>
    %3 = vector.shape_cast %2 : vector<1x124x2xf32> to vector<124x2xf32>
    %4 = vector.extract_strided_slice %3 {offsets = [0, 0], sizes = [124, 1], strides = [1, 1]} : vector<124x2xf32> to vector<124x1xf32>
    %5 = vector.extract_strided_slice %0 {offsets = [0, 0], sizes = [1, 32], strides = [1, 1]} : vector<2x32xf32> to vector<1x32xf32>
    %6 = vector.broadcast %4 : vector<124x1xf32> to vector<124x32xf32>
    %7 = vector.broadcast %5 : vector<1x32xf32> to vector<124x32xf32>
    %8 = arith.mulf %6, %7 : vector<124x32xf32>
    %9 = vector.extract_strided_slice %3 {offsets = [0, 1], sizes = [124, 1], strides = [1, 1]} : vector<124x2xf32> to vector<124x1xf32>
    %10 = vector.extract_strided_slice %0 {offsets = [1, 0], sizes = [1, 32], strides = [1, 1]} : vector<2x32xf32> to vector<1x32xf32>
    %11 = vector.broadcast %9 : vector<124x1xf32> to vector<124x32xf32>
    %12 = vector.broadcast %10 : vector<1x32xf32> to vector<124x32xf32>
    %13 = arith.mulf %11, %12 : vector<124x32xf32>
    %14 = arith.addf %8, %13 : vector<124x32xf32>
    %15 = vector.broadcast %1 : vector<1x32xf32> to vector<124x32xf32>
    %16 = arith.addf %14, %15 : vector<124x32xf32>
    %cst = arith.constant 0.000000e+00 : f32
    %17 = vector.broadcast %cst : f32 to vector<124x32xf32>
    %18 = arith.maximumf %16, %17 : vector<124x32xf32>
    %c1 = arith.constant 1 : index
    %c0_6 = arith.constant 0 : index
    %c0_7 = arith.constant 0 : index
    %19 = vector.load %arg1[%c1, %c0_6, %c0_7] : memref<4x124x2xf32, #tpu.memory_space<vmem>>, vector<1x124x2xf32>
    %20 = vector.shape_cast %19 : vector<1x124x2xf32> to vector<124x2xf32>
    %21 = vector.extract_strided_slice %20 {offsets = [0, 0], sizes = [124, 1], strides = [1, 1]} : vector<124x2xf32> to vector<124x1xf32>
    %22 = vector.extract_strided_slice %0 {offsets = [0, 0], sizes = [1, 32], strides = [1, 1]} : vector<2x32xf32> to vector<1x32xf32>
    %23 = vector.broadcast %21 : vector<124x1xf32> to vector<124x32xf32>
    %24 = vector.broadcast %22 : vector<1x32xf32> to vector<124x32xf32>
    %25 = arith.mulf %23, %24 : vector<124x32xf32>
    %26 = vector.extract_strided_slice %20 {offsets = [0, 1], sizes = [124, 1], strides = [1, 1]} : vector<124x2xf32> to vector<124x1xf32>
    %27 = vector.extract_strided_slice %0 {offsets = [1, 0], sizes = [1, 32], strides = [1, 1]} : vector<2x32xf32> to vector<1x32xf32>
    %28 = vector.broadcast %26 : vector<124x1xf32> to vector<124x32xf32>
    %29 = vector.broadcast %27 : vector<1x32xf32> to vector<124x32xf32>
    %30 = arith.mulf %28, %29 : vector<124x32xf32>
    %31 = arith.addf %25, %30 : vector<124x32xf32>
    %32 = vector.broadcast %1 : vector<1x32xf32> to vector<124x32xf32>
    %33 = arith.addf %31, %32 : vector<124x32xf32>
    %cst_8 = arith.constant 0.000000e+00 : f32
    %34 = vector.broadcast %cst_8 : f32 to vector<124x32xf32>
    %35 = arith.maximumf %33, %34 : vector<124x32xf32>
    %36 = arith.maximumf %18, %35 : vector<124x32xf32>
    %c2 = arith.constant 2 : index
    %c0_9 = arith.constant 0 : index
    %c0_10 = arith.constant 0 : index
    %37 = vector.load %arg1[%c2, %c0_9, %c0_10] : memref<4x124x2xf32, #tpu.memory_space<vmem>>, vector<1x124x2xf32>
    %38 = vector.shape_cast %37 : vector<1x124x2xf32> to vector<124x2xf32>
    %39 = vector.extract_strided_slice %38 {offsets = [0, 0], sizes = [124, 1], strides = [1, 1]} : vector<124x2xf32> to vector<124x1xf32>
    %40 = vector.extract_strided_slice %0 {offsets = [0, 0], sizes = [1, 32], strides = [1, 1]} : vector<2x32xf32> to vector<1x32xf32>
    %41 = vector.broadcast %39 : vector<124x1xf32> to vector<124x32xf32>
    %42 = vector.broadcast %40 : vector<1x32xf32> to vector<124x32xf32>
    %43 = arith.mulf %41, %42 : vector<124x32xf32>
    %44 = vector.extract_strided_slice %38 {offsets = [0, 1], sizes = [124, 1], strides = [1, 1]} : vector<124x2xf32> to vector<124x1xf32>
    %45 = vector.extract_strided_slice %0 {offsets = [1, 0], sizes = [1, 32], strides = [1, 1]} : vector<2x32xf32> to vector<1x32xf32>
    %46 = vector.broadcast %44 : vector<124x1xf32> to vector<124x32xf32>
    %47 = vector.broadcast %45 : vector<1x32xf32> to vector<124x32xf32>
    %48 = arith.mulf %46, %47 : vector<124x32xf32>
    %49 = arith.addf %43, %48 : vector<124x32xf32>
    %50 = vector.broadcast %1 : vector<1x32xf32> to vector<124x32xf32>
    %51 = arith.addf %49, %50 : vector<124x32xf32>
    %cst_11 = arith.constant 0.000000e+00 : f32
    %52 = vector.broadcast %cst_11 : f32 to vector<124x32xf32>
    %53 = arith.maximumf %51, %52 : vector<124x32xf32>
    %54 = arith.maximumf %36, %53 : vector<124x32xf32>
    %c3 = arith.constant 3 : index
    %c0_12 = arith.constant 0 : index
    %c0_13 = arith.constant 0 : index
    %55 = vector.load %arg1[%c3, %c0_12, %c0_13] : memref<4x124x2xf32, #tpu.memory_space<vmem>>, vector<1x124x2xf32>
    %56 = vector.shape_cast %55 : vector<1x124x2xf32> to vector<124x2xf32>
    %57 = vector.extract_strided_slice %56 {offsets = [0, 0], sizes = [124, 1], strides = [1, 1]} : vector<124x2xf32> to vector<124x1xf32>
    %58 = vector.extract_strided_slice %0 {offsets = [0, 0], sizes = [1, 32], strides = [1, 1]} : vector<2x32xf32> to vector<1x32xf32>
    %59 = vector.broadcast %57 : vector<124x1xf32> to vector<124x32xf32>
    %60 = vector.broadcast %58 : vector<1x32xf32> to vector<124x32xf32>
    %61 = arith.mulf %59, %60 : vector<124x32xf32>
    %62 = vector.extract_strided_slice %56 {offsets = [0, 1], sizes = [124, 1], strides = [1, 1]} : vector<124x2xf32> to vector<124x1xf32>
    %63 = vector.extract_strided_slice %0 {offsets = [1, 0], sizes = [1, 32], strides = [1, 1]} : vector<2x32xf32> to vector<1x32xf32>
    %64 = vector.broadcast %62 : vector<124x1xf32> to vector<124x32xf32>
    %65 = vector.broadcast %63 : vector<1x32xf32> to vector<124x32xf32>
    %66 = arith.mulf %64, %65 : vector<124x32xf32>
    %67 = arith.addf %61, %66 : vector<124x32xf32>
    %68 = vector.broadcast %1 : vector<1x32xf32> to vector<124x32xf32>
    %69 = arith.addf %67, %68 : vector<124x32xf32>
    %cst_14 = arith.constant 0.000000e+00 : f32
    %70 = vector.broadcast %cst_14 : f32 to vector<124x32xf32>
    %71 = arith.maximumf %69, %70 : vector<124x32xf32>
    %72 = arith.maximumf %54, %71 : vector<124x32xf32>
    %c0_15 = arith.constant 0 : index
    %c0_16 = arith.constant 0 : index
    %73 = vector.load %arg4[%c0_15, %c0_16] : memref<124x32xf32, #tpu.memory_space<vmem>>, vector<124x32xf32>
    tpu.vector_store %arg4[%c0_15, %c0_16], %72 {strides = array<i32>} : memref<124x32xf32, #tpu.memory_space<vmem>>, vector<124x32xf32>,
    return
  }
  func.func @transform_0(%arg0: i32) -> (i32, i32, i32) {
    %c0_i32 = arith.constant 0 : i32
    %c0_i32_0 = arith.constant 0 : i32
    %c0_i32_1 = arith.constant 0 : i32
    %c0_i32_2 = arith.constant 0 : i32
    return %c0_i32, %c0_i32_0, %c0_i32_1 : i32, i32, i32
  }
  func.func @transform_1(%arg0: i32) -> (i32, i32) {
    %c0_i32 = arith.constant 0 : i32
    %c0_i32_0 = arith.constant 0 : i32
    %c0_i32_1 = arith.constant 0 : i32
    return %c0_i32, %c0_i32_0 : i32, i32
  }
  func.func @transform_2(%arg0: i32) -> (i32, i32) {
    %c0_i32 = arith.constant 0 : i32
    %c0_i32_0 = arith.constant 0 : i32
    %c0_i32_1 = arith.constant 0 : i32
    return %c0_i32, %c0_i32_0 : i32, i32
  }
  func.func @transform_3(%arg0: i32) -> (i32, i32) {
    %c0_i32 = arith.constant 0 : i32
    %c0_i32_0 = arith.constant 0 : i32
    %c0_i32_1 = arith.constant 0 : i32
    return %c0_i32, %c0_i32_0 : i32, i32
  }
}

module attributes {stable_mosaic.version = 11 : i64} {
  func.func @kernel(%arg0: i32, %arg1: memref<4x28x64xf32, #tpu.memory_space<vmem>>, %arg2: memref<64x64xf32, #tpu.memory_space<vmem>>, %arg3: memref<1x64xf32, #tpu.memory_space<vmem>>, %arg4: memref<28x64xf32, #tpu.memory_space<vmem>>) attributes {dimension_semantics = [#tpu.dimension_semantics<arbitrary>], iteration_bounds = array<i64: 1>, scalar_prefetch = 0 : i64, scratch_operands = 0 : i64, tpu.core_type = #tpu.core_type<tc>, window_params = [{pipeline_mode = #tpu.pipeline_mode<synchronous>, transform_indices = @transform_0, window_bounds = array<i64: 4, 28, 64>}, {pipeline_mode = #tpu.pipeline_mode<synchronous>, transform_indices = @transform_1, window_bounds = array<i64: 64, 64>}, {pipeline_mode = #tpu.pipeline_mode<synchronous>, transform_indices = @transform_2, window_bounds = array<i64: 1, 64>}, {pipeline_mode = #tpu.pipeline_mode<synchronous>, transform_indices = @transform_3, window_bounds = array<i64: 28, 64>}]} {
    %c0 = arith.constant 0 : index
    %c0_0 = arith.constant 0 : index
    %0 = vector.load %arg2[%c0, %c0_0] : memref<64x64xf32, #tpu.memory_space<vmem>>, vector<64x64xf32>
    %c0_1 = arith.constant 0 : index
    %c0_2 = arith.constant 0 : index
    %1 = vector.load %arg3[%c0_1, %c0_2] : memref<1x64xf32, #tpu.memory_space<vmem>>, vector<1x64xf32>
    %c0_3 = arith.constant 0 : index
    %c0_4 = arith.constant 0 : index
    %c0_5 = arith.constant 0 : index
    %2 = vector.load %arg1[%c0_3, %c0_4, %c0_5] : memref<4x28x64xf32, #tpu.memory_space<vmem>>, vector<1x28x64xf32>
    %3 = vector.shape_cast %2 : vector<1x28x64xf32> to vector<28x64xf32>
    %cst = arith.constant dense<0.000000e+00> : vector<28x64xf32>
    %4 = tpu.matmul %3, %0, %cst {dimension_numbers = #tpu.dot_dimension_numbers<[1], [0], [0], [1], [0, 0, 1, 1], [], []>} : vector<28x64xf32>, vector<64x64xf32>, vector<28x64xf32> -> vector<28x64xf32>
    %5 = vector.broadcast %1 : vector<1x64xf32> to vector<28x64xf32>
    %6 = arith.addf %4, %5 : vector<28x64xf32>
    %cst_6 = arith.constant 0.000000e+00 : f32
    %7 = vector.broadcast %cst_6 : f32 to vector<28x64xf32>
    %8 = arith.maximumf %6, %7 : vector<28x64xf32>
    %c1 = arith.constant 1 : index
    %c0_7 = arith.constant 0 : index
    %c0_8 = arith.constant 0 : index
    %9 = vector.load %arg1[%c1, %c0_7, %c0_8] : memref<4x28x64xf32, #tpu.memory_space<vmem>>, vector<1x28x64xf32>
    %10 = vector.shape_cast %9 : vector<1x28x64xf32> to vector<28x64xf32>
    %cst_9 = arith.constant dense<0.000000e+00> : vector<28x64xf32>
    %11 = tpu.matmul %10, %0, %cst_9 {dimension_numbers = #tpu.dot_dimension_numbers<[1], [0], [0], [1], [0, 0, 1, 1], [], []>} : vector<28x64xf32>, vector<64x64xf32>, vector<28x64xf32> -> vector<28x64xf32>
    %12 = vector.broadcast %1 : vector<1x64xf32> to vector<28x64xf32>
    %13 = arith.addf %11, %12 : vector<28x64xf32>
    %cst_10 = arith.constant 0.000000e+00 : f32
    %14 = vector.broadcast %cst_10 : f32 to vector<28x64xf32>
    %15 = arith.maximumf %13, %14 : vector<28x64xf32>
    %16 = arith.maximumf %8, %15 : vector<28x64xf32>
    %c2 = arith.constant 2 : index
    %c0_11 = arith.constant 0 : index
    %c0_12 = arith.constant 0 : index
    %17 = vector.load %arg1[%c2, %c0_11, %c0_12] : memref<4x28x64xf32, #tpu.memory_space<vmem>>, vector<1x28x64xf32>
    %18 = vector.shape_cast %17 : vector<1x28x64xf32> to vector<28x64xf32>
    %cst_13 = arith.constant dense<0.000000e+00> : vector<28x64xf32>
    %19 = tpu.matmul %18, %0, %cst_13 {dimension_numbers = #tpu.dot_dimension_numbers<[1], [0], [0], [1], [0, 0, 1, 1], [], []>} : vector<28x64xf32>, vector<64x64xf32>, vector<28x64xf32> -> vector<28x64xf32>
    %20 = vector.broadcast %1 : vector<1x64xf32> to vector<28x64xf32>
    %21 = arith.addf %19, %20 : vector<28x64xf32>
    %cst_14 = arith.constant 0.000000e+00 : f32
    %22 = vector.broadcast %cst_14 : f32 to vector<28x64xf32>
    %23 = arith.maximumf %21, %22 : vector<28x64xf32>
    %24 = arith.maximumf %16, %23 : vector<28x64xf32>
    %c3 = arith.constant 3 : index
    %c0_15 = arith.constant 0 : index
    %c0_16 = arith.constant 0 : index
    %25 = vector.load %arg1[%c3, %c0_15, %c0_16] : memref<4x28x64xf32, #tpu.memory_space<vmem>>, vector<1x28x64xf32>
    %26 = vector.shape_cast %25 : vector<1x28x64xf32> to vector<28x64xf32>
    %cst_17 = arith.constant dense<0.000000e+00> : vector<28x64xf32>
    %27 = tpu.matmul %26, %0, %cst_17 {dimension_numbers = #tpu.dot_dimension_numbers<[1], [0], [0], [1], [0, 0, 1, 1], [], []>} : vector<28x64xf32>, vector<64x64xf32>, vector<28x64xf32> -> vector<28x64xf32>
    %28 = vector.broadcast %1 : vector<1x64xf32> to vector<28x64xf32>
    %29 = arith.addf %27, %28 : vector<28x64xf32>
    %cst_18 = arith.constant 0.000000e+00 : f32
    %30 = vector.broadcast %cst_18 : f32 to vector<28x64xf32>
    %31 = arith.maximumf %29, %30 : vector<28x64xf32>
    %32 = arith.maximumf %24, %31 : vector<28x64xf32>
    %c0_19 = arith.constant 0 : index
    %c0_20 = arith.constant 0 : index
    %33 = vector.load %arg4[%c0_19, %c0_20] : memref<28x64xf32, #tpu.memory_space<vmem>>, vector<28x64xf32>
    tpu.vector_store %arg4[%c0_19, %c0_20], %32 {strides = array<i32>} : memref<28x64xf32, #tpu.memory_space<vmem>>, vector<28x64xf32>,
    return
  }
  func.func @transform_0(%arg0: i32) -> (i32, i32, i32) {
    %c0_i32 = arith.constant 0 : i32
    %c0_i32_0 = arith.constant 0 : i32
    %c0_i32_1 = arith.constant 0 : i32
    %c0_i32_2 = arith.constant 0 : i32
    return %c0_i32, %c0_i32_0, %c0_i32_1 : i32, i32, i32
  }
  func.func @transform_1(%arg0: i32) -> (i32, i32) {
    %c0_i32 = arith.constant 0 : i32
    %c0_i32_0 = arith.constant 0 : i32
    %c0_i32_1 = arith.constant 0 : i32
    return %c0_i32, %c0_i32_0 : i32, i32
  }
  func.func @transform_2(%arg0: i32) -> (i32, i32) {
    %c0_i32 = arith.constant 0 : i32
    %c0_i32_0 = arith.constant 0 : i32
    %c0_i32_1 = arith.constant 0 : i32
    return %c0_i32, %c0_i32_0 : i32, i32
  }
  func.func @transform_3(%arg0: i32) -> (i32, i32) {
    %c0_i32 = arith.constant 0 : i32
    %c0_i32_0 = arith.constant 0 : i32
    %c0_i32_1 = arith.constant 0 : i32
    return %c0_i32, %c0_i32_0 : i32, i32
  }
}

module attributes {stable_mosaic.version = 11 : i64} {
  func.func @_ct_pool_res_kernel(%arg0: i32, %arg1: memref<4x4x128xf32, #tpu.memory_space<vmem>>, %arg2: memref<128x128xf32, #tpu.memory_space<vmem>>, %arg3: memref<1x128xf32, #tpu.memory_space<vmem>>, %arg4: memref<4x128xf32, #tpu.memory_space<vmem>>, %arg5: memref<128x256xf32, #tpu.memory_space<vmem>>, %arg6: memref<4x256xf32, #tpu.memory_space<vmem>>) attributes {dimension_semantics = [#tpu.dimension_semantics<arbitrary>], iteration_bounds = array<i64: 1>, scalar_prefetch = 0 : i64, scratch_operands = 0 : i64, tpu.core_type = #tpu.core_type<tc>, window_params = [{pipeline_mode = #tpu.pipeline_mode<synchronous>, transform_indices = @transform_0, window_bounds = array<i64: 4, 4, 128>}, {pipeline_mode = #tpu.pipeline_mode<synchronous>, transform_indices = @transform_1, window_bounds = array<i64: 128, 128>}, {pipeline_mode = #tpu.pipeline_mode<synchronous>, transform_indices = @transform_2, window_bounds = array<i64: 1, 128>}, {pipeline_mode = #tpu.pipeline_mode<synchronous>, transform_indices = @transform_3, window_bounds = array<i64: 4, 128>}, {pipeline_mode = #tpu.pipeline_mode<synchronous>, transform_indices = @transform_4, window_bounds = array<i64: 128, 256>}, {pipeline_mode = #tpu.pipeline_mode<synchronous>, transform_indices = @transform_5, window_bounds = array<i64: 4, 256>}]} {
    %c0 = arith.constant 0 : index
    %c0_0 = arith.constant 0 : index
    %0 = vector.load %arg2[%c0, %c0_0] : memref<128x128xf32, #tpu.memory_space<vmem>>, vector<128x128xf32>
    %c0_1 = arith.constant 0 : index
    %c0_2 = arith.constant 0 : index
    %1 = vector.load %arg3[%c0_1, %c0_2] : memref<1x128xf32, #tpu.memory_space<vmem>>, vector<1x128xf32>
    %c0_3 = arith.constant 0 : index
    %c0_4 = arith.constant 0 : index
    %c0_5 = arith.constant 0 : index
    %2 = vector.load %arg1[%c0_3, %c0_4, %c0_5] : memref<4x4x128xf32, #tpu.memory_space<vmem>>, vector<1x4x128xf32>
    %3 = vector.shape_cast %2 : vector<1x4x128xf32> to vector<4x128xf32>
    %cst = arith.constant dense<0.000000e+00> : vector<4x128xf32>
    %4 = tpu.matmul %3, %0, %cst {dimension_numbers = #tpu.dot_dimension_numbers<[1], [0], [0], [1], [0, 0, 1, 1], [], []>} : vector<4x128xf32>, vector<128x128xf32>, vector<4x128xf32> -> vector<4x128xf32>
    %5 = vector.broadcast %1 : vector<1x128xf32> to vector<4x128xf32>
    %6 = arith.addf %4, %5 : vector<4x128xf32>
    %cst_6 = arith.constant 0.000000e+00 : f32
    %7 = vector.broadcast %cst_6 : f32 to vector<4x128xf32>
    %8 = arith.maximumf %6, %7 : vector<4x128xf32>
    %c1 = arith.constant 1 : index
    %c0_7 = arith.constant 0 : index
    %c0_8 = arith.constant 0 : index
    %9 = vector.load %arg1[%c1, %c0_7, %c0_8] : memref<4x4x128xf32, #tpu.memory_space<vmem>>, vector<1x4x128xf32>
    %10 = vector.shape_cast %9 : vector<1x4x128xf32> to vector<4x128xf32>
    %cst_9 = arith.constant dense<0.000000e+00> : vector<4x128xf32>
    %11 = tpu.matmul %10, %0, %cst_9 {dimension_numbers = #tpu.dot_dimension_numbers<[1], [0], [0], [1], [0, 0, 1, 1], [], []>} : vector<4x128xf32>, vector<128x128xf32>, vector<4x128xf32> -> vector<4x128xf32>
    %12 = vector.broadcast %1 : vector<1x128xf32> to vector<4x128xf32>
    %13 = arith.addf %11, %12 : vector<4x128xf32>
    %cst_10 = arith.constant 0.000000e+00 : f32
    %14 = vector.broadcast %cst_10 : f32 to vector<4x128xf32>
    %15 = arith.maximumf %13, %14 : vector<4x128xf32>
    %16 = arith.maximumf %8, %15 : vector<4x128xf32>
    %c2 = arith.constant 2 : index
    %c0_11 = arith.constant 0 : index
    %c0_12 = arith.constant 0 : index
    %17 = vector.load %arg1[%c2, %c0_11, %c0_12] : memref<4x4x128xf32, #tpu.memory_space<vmem>>, vector<1x4x128xf32>
    %18 = vector.shape_cast %17 : vector<1x4x128xf32> to vector<4x128xf32>
    %cst_13 = arith.constant dense<0.000000e+00> : vector<4x128xf32>
    %19 = tpu.matmul %18, %0, %cst_13 {dimension_numbers = #tpu.dot_dimension_numbers<[1], [0], [0], [1], [0, 0, 1, 1], [], []>} : vector<4x128xf32>, vector<128x128xf32>, vector<4x128xf32> -> vector<4x128xf32>
    %20 = vector.broadcast %1 : vector<1x128xf32> to vector<4x128xf32>
    %21 = arith.addf %19, %20 : vector<4x128xf32>
    %cst_14 = arith.constant 0.000000e+00 : f32
    %22 = vector.broadcast %cst_14 : f32 to vector<4x128xf32>
    %23 = arith.maximumf %21, %22 : vector<4x128xf32>
    %24 = arith.maximumf %16, %23 : vector<4x128xf32>
    %c3 = arith.constant 3 : index
    %c0_15 = arith.constant 0 : index
    %c0_16 = arith.constant 0 : index
    %25 = vector.load %arg1[%c3, %c0_15, %c0_16] : memref<4x4x128xf32, #tpu.memory_space<vmem>>, vector<1x4x128xf32>
    %26 = vector.shape_cast %25 : vector<1x4x128xf32> to vector<4x128xf32>
    %cst_17 = arith.constant dense<0.000000e+00> : vector<4x128xf32>
    %27 = tpu.matmul %26, %0, %cst_17 {dimension_numbers = #tpu.dot_dimension_numbers<[1], [0], [0], [1], [0, 0, 1, 1], [], []>} : vector<4x128xf32>, vector<128x128xf32>, vector<4x128xf32> -> vector<4x128xf32>
    %28 = vector.broadcast %1 : vector<1x128xf32> to vector<4x128xf32>
    %29 = arith.addf %27, %28 : vector<4x128xf32>
    %cst_18 = arith.constant 0.000000e+00 : f32
    %30 = vector.broadcast %cst_18 : f32 to vector<4x128xf32>
    %31 = arith.maximumf %29, %30 : vector<4x128xf32>
    %32 = arith.maximumf %24, %31 : vector<4x128xf32>
    %c0_19 = arith.constant 0 : index
    %c0_20 = arith.constant 0 : index
    %33 = vector.load %arg4[%c0_19, %c0_20] : memref<4x128xf32, #tpu.memory_space<vmem>>, vector<4x128xf32>
    %34 = arith.addf %32, %33 : vector<4x128xf32>
    %c0_21 = arith.constant 0 : index
    %c0_22 = arith.constant 0 : index
    %35 = vector.load %arg5[%c0_21, %c0_22] : memref<128x256xf32, #tpu.memory_space<vmem>>, vector<128x256xf32>
    %cst_23 = arith.constant dense<0.000000e+00> : vector<4x256xf32>
    %36 = tpu.matmul %34, %35, %cst_23 {dimension_numbers = #tpu.dot_dimension_numbers<[1], [0], [0], [1], [0, 0, 1, 1], [], []>} : vector<4x128xf32>, vector<128x256xf32>, vector<4x256xf32> -> vector<4x256xf32>
    %c0_24 = arith.constant 0 : index
    %c0_25 = arith.constant 0 : index
    %37 = vector.load %arg6[%c0_24, %c0_25] : memref<4x256xf32, #tpu.memory_space<vmem>>, vector<4x256xf32>
    tpu.vector_store %arg6[%c0_24, %c0_25], %36 {strides = array<i32>} : memref<4x256xf32, #tpu.memory_space<vmem>>, vector<4x256xf32>,
    return
  }
  func.func @transform_0(%arg0: i32) -> (i32, i32, i32) {
    %c0_i32 = arith.constant 0 : i32
    %c0_i32_0 = arith.constant 0 : i32
    %c0_i32_1 = arith.constant 0 : i32
    %c0_i32_2 = arith.constant 0 : i32
    return %c0_i32, %c0_i32_0, %c0_i32_1 : i32, i32, i32
  }
  func.func @transform_1(%arg0: i32) -> (i32, i32) {
    %c0_i32 = arith.constant 0 : i32
    %c0_i32_0 = arith.constant 0 : i32
    %c0_i32_1 = arith.constant 0 : i32
    return %c0_i32, %c0_i32_0 : i32, i32
  }
  func.func @transform_2(%arg0: i32) -> (i32, i32) {
    %c0_i32 = arith.constant 0 : i32
    %c0_i32_0 = arith.constant 0 : i32
    %c0_i32_1 = arith.constant 0 : i32
    return %c0_i32, %c0_i32_0 : i32, i32
  }
  func.func @transform_3(%arg0: i32) -> (i32, i32) {
    %c0_i32 = arith.constant 0 : i32
    %c0_i32_0 = arith.constant 0 : i32
    %c0_i32_1 = arith.constant 0 : i32
    return %c0_i32, %c0_i32_0 : i32, i32
  }
  func.func @transform_4(%arg0: i32) -> (i32, i32) {
    %c0_i32 = arith.constant 0 : i32
    %c0_i32_0 = arith.constant 0 : i32
    %c0_i32_1 = arith.constant 0 : i32
    return %c0_i32, %c0_i32_0 : i32, i32
  }
  func.func @transform_5(%arg0: i32) -> (i32, i32) {
    %c0_i32 = arith.constant 0 : i32
    %c0_i32_0 = arith.constant 0 : i32
    %c0_i32_1 = arith.constant 0 : i32
    return %c0_i32, %c0_i32_0 : i32, i32
  }
}

module attributes {stable_mosaic.version = 11 : i64} {
  func.func @_hetero_lne_kernel(%arg0: i32, %arg1: memref<4x4xf32, #tpu.memory_space<vmem>>, %arg2: memref<4x4xf32, #tpu.memory_space<vmem>>, %arg3: memref<4x256xf32, #tpu.memory_space<vmem>>, %arg4: memref<4x382xf32, #tpu.memory_space<vmem>>, %arg5: memref<382x256xf32, #tpu.memory_space<vmem>>, %arg6: memref<1x256xf32, #tpu.memory_space<vmem>>, %arg7: memref<256x128xf32, #tpu.memory_space<vmem>>, %arg8: memref<256x128xf32, #tpu.memory_space<vmem>>, %arg9: memref<1x128xf32, #tpu.memory_space<vmem>>, %arg10: memref<256x128xf32, #tpu.memory_space<vmem>>, %arg11: memref<256x128xf32, #tpu.memory_space<vmem>>, %arg12: memref<1x128xf32, #tpu.memory_space<vmem>>, %arg13: memref<4x128xf32, #tpu.memory_space<vmem>>, %arg14: memref<4x128xf32, #tpu.memory_space<vmem>>) attributes {dimension_semantics = [#tpu.dimension_semantics<arbitrary>], iteration_bounds = array<i64: 1>, scalar_prefetch = 0 : i64, scratch_operands = 0 : i64, tpu.core_type = #tpu.core_type<tc>, window_params = [{pipeline_mode = #tpu.pipeline_mode<synchronous>, transform_indices = @transform_0, window_bounds = array<i64: 4, 4>}, {pipeline_mode = #tpu.pipeline_mode<synchronous>, transform_indices = @transform_1, window_bounds = array<i64: 4, 4>}, {pipeline_mode = #tpu.pipeline_mode<synchronous>, transform_indices = @transform_2, window_bounds = array<i64: 4, 256>}, {pipeline_mode = #tpu.pipeline_mode<synchronous>, transform_indices = @transform_3, window_bounds = array<i64: 4, 382>}, {pipeline_mode = #tpu.pipeline_mode<synchronous>, transform_indices = @transform_4, window_bounds = array<i64: 382, 256>}, {pipeline_mode = #tpu.pipeline_mode<synchronous>, transform_indices = @transform_5, window_bounds = array<i64: 1, 256>}, {pipeline_mode = #tpu.pipeline_mode<synchronous>, transform_indices = @transform_6, window_bounds = array<i64: 256, 128>}, {pipeline_mode = #tpu.pipeline_mode<synchronous>, transform_indices = @transform_7, window_bounds = array<i64: 256, 128>}, {pipeline_mode = #tpu.pipeline_mode<synchronous>, transform_indices = @transform_8, window_bounds = array<i64: 1, 128>}, {pipeline_mode = #tpu.pipeline_mode<synchronous>, transform_indices = @transform_9, window_bounds = array<i64: 256, 128>}, {pipeline_mode = #tpu.pipeline_mode<synchronous>, transform_indices = @transform_10, window_bounds = array<i64: 256, 128>}, {pipeline_mode = #tpu.pipeline_mode<synchronous>, transform_indices = @transform_11, window_bounds = array<i64: 1, 128>}, {pipeline_mode = #tpu.pipeline_mode<synchronous>, transform_indices = @transform_12, window_bounds = array<i64: 4, 128>}, {pipeline_mode = #tpu.pipeline_mode<synchronous>, transform_indices = @transform_13, window_bounds = array<i64: 4, 128>}]} {
    %c0 = arith.constant 0 : index
    %c0_0 = arith.constant 0 : index
    %0 = vector.load %arg4[%c0, %c0_0] : memref<4x382xf32, #tpu.memory_space<vmem>>, vector<4x382xf32>
    %c0_1 = arith.constant 0 : index
    %c0_2 = arith.constant 0 : index
    %1 = vector.load %arg5[%c0_1, %c0_2] : memref<382x256xf32, #tpu.memory_space<vmem>>, vector<382x256xf32>
    %cst = arith.constant dense<0.000000e+00> : vector<4x256xf32>
    %2 = tpu.matmul %0, %1, %cst {dimension_numbers = #tpu.dot_dimension_numbers<[1], [0], [0], [1], [0, 0, 1, 1], [], []>} : vector<4x382xf32>, vector<382x256xf32>, vector<4x256xf32> -> vector<4x256xf32>
    %c0_3 = arith.constant 0 : index
    %c0_4 = arith.constant 0 : index
    %3 = vector.load %arg6[%c0_3, %c0_4] : memref<1x256xf32, #tpu.memory_space<vmem>>, vector<1x256xf32>
    %4 = vector.broadcast %3 : vector<1x256xf32> to vector<4x256xf32>
    %5 = arith.addf %2, %4 : vector<4x256xf32>
    %c0_5 = arith.constant 0 : index
    %c0_6 = arith.constant 0 : index
    %6 = vector.load %arg1[%c0_5, %c0_6] : memref<4x4xf32, #tpu.memory_space<vmem>>, vector<4x4xf32>
    %c0_7 = arith.constant 0 : index
    %c0_8 = arith.constant 0 : index
    %7 = vector.load %arg2[%c0_7, %c0_8] : memref<4x4xf32, #tpu.memory_space<vmem>>, vector<4x4xf32>
    %c0_9 = arith.constant 0 : index
    %c0_10 = arith.constant 0 : index
    %8 = vector.load %arg3[%c0_9, %c0_10] : memref<4x256xf32, #tpu.memory_space<vmem>>, vector<4x256xf32>
    %c0_11 = arith.constant 0 : index
    %c0_12 = arith.constant 0 : index
    %9 = vector.load %arg7[%c0_11, %c0_12] : memref<256x128xf32, #tpu.memory_space<vmem>>, vector<256x128xf32>
    %c0_13 = arith.constant 0 : index
    %c0_14 = arith.constant 0 : index
    %10 = vector.load %arg8[%c0_13, %c0_14] : memref<256x128xf32, #tpu.memory_space<vmem>>, vector<256x128xf32>
    %c0_15 = arith.constant 0 : index
    %c0_16 = arith.constant 0 : index
    %11 = vector.load %arg9[%c0_15, %c0_16] : memref<1x128xf32, #tpu.memory_space<vmem>>, vector<1x128xf32>
    %c0_17 = arith.constant 0 : index
    %c0_18 = arith.constant 0 : index
    %12 = vector.load %arg10[%c0_17, %c0_18] : memref<256x128xf32, #tpu.memory_space<vmem>>, vector<256x128xf32>
    %c0_19 = arith.constant 0 : index
    %c0_20 = arith.constant 0 : index
    %13 = vector.load %arg11[%c0_19, %c0_20] : memref<256x128xf32, #tpu.memory_space<vmem>>, vector<256x128xf32>
    %c0_21 = arith.constant 0 : index
    %c0_22 = arith.constant 0 : index
    %14 = vector.load %arg12[%c0_21, %c0_22] : memref<1x128xf32, #tpu.memory_space<vmem>>, vector<1x128xf32>
    %cst_23 = arith.constant dense<0.000000e+00> : vector<4x256xf32>
    %15 = tpu.matmul %6, %5, %cst_23 {dimension_numbers = #tpu.dot_dimension_numbers<[1], [0], [0], [1], [0, 0, 1, 1], [], []>} : vector<4x4xf32>, vector<4x256xf32>, vector<4x256xf32> -> vector<4x256xf32>
    %cst_24 = arith.constant dense<0.000000e+00> : vector<4x128xf32>
    %16 = tpu.matmul %15, %9, %cst_24 {dimension_numbers = #tpu.dot_dimension_numbers<[1], [0], [0], [1], [0, 0, 1, 1], [], []>} : vector<4x256xf32>, vector<256x128xf32>, vector<4x128xf32> -> vector<4x128xf32>
    %cst_25 = arith.constant dense<0.000000e+00> : vector<4x128xf32>
    %17 = tpu.matmul %8, %10, %cst_25 {dimension_numbers = #tpu.dot_dimension_numbers<[1], [0], [0], [1], [0, 0, 1, 1], [], []>} : vector<4x256xf32>, vector<256x128xf32>, vector<4x128xf32> -> vector<4x128xf32>
    %18 = arith.addf %16, %17 : vector<4x128xf32>
    %19 = vector.broadcast %11 : vector<1x128xf32> to vector<4x128xf32>
    %20 = arith.addf %18, %19 : vector<4x128xf32>
    %cst_26 = arith.constant 0.000000e+00 : f32
    %21 = vector.broadcast %cst_26 : f32 to vector<4x128xf32>
    %22 = arith.cmpf oge, %20, %21 : vector<4x128xf32>
    %cst_27 = arith.constant 2.000000e-01 : f32
    %23 = vector.broadcast %cst_27 : f32 to vector<4x128xf32>
    %24 = arith.mulf %23, %20 : vector<4x128xf32>
    %25 = arith.select %22, %20, %24 : vector<4x128xi1>, vector<4x128xf32>
    %c0_28 = arith.constant 0 : index
    %c0_29 = arith.constant 0 : index
    %26 = vector.load %arg13[%c0_28, %c0_29] : memref<4x128xf32, #tpu.memory_space<vmem>>, vector<4x128xf32>
    tpu.vector_store %arg13[%c0_28, %c0_29], %25 {strides = array<i32>} : memref<4x128xf32, #tpu.memory_space<vmem>>, vector<4x128xf32>,
    %cst_30 = arith.constant dense<0.000000e+00> : vector<4x256xf32>
    %27 = tpu.matmul %7, %8, %cst_30 {dimension_numbers = #tpu.dot_dimension_numbers<[1], [0], [0], [1], [0, 0, 1, 1], [], []>} : vector<4x4xf32>, vector<4x256xf32>, vector<4x256xf32> -> vector<4x256xf32>
    %cst_31 = arith.constant dense<0.000000e+00> : vector<4x128xf32>
    %28 = tpu.matmul %27, %12, %cst_31 {dimension_numbers = #tpu.dot_dimension_numbers<[1], [0], [0], [1], [0, 0, 1, 1], [], []>} : vector<4x256xf32>, vector<256x128xf32>, vector<4x128xf32> -> vector<4x128xf32>
    %cst_32 = arith.constant dense<0.000000e+00> : vector<4x128xf32>
    %29 = tpu.matmul %5, %13, %cst_32 {dimension_numbers = #tpu.dot_dimension_numbers<[1], [0], [0], [1], [0, 0, 1, 1], [], []>} : vector<4x256xf32>, vector<256x128xf32>, vector<4x128xf32> -> vector<4x128xf32>
    %30 = arith.addf %28, %29 : vector<4x128xf32>
    %31 = vector.broadcast %14 : vector<1x128xf32> to vector<4x128xf32>
    %32 = arith.addf %30, %31 : vector<4x128xf32>
    %cst_33 = arith.constant 0.000000e+00 : f32
    %33 = vector.broadcast %cst_33 : f32 to vector<4x128xf32>
    %34 = arith.cmpf oge, %32, %33 : vector<4x128xf32>
    %cst_34 = arith.constant 2.000000e-01 : f32
    %35 = vector.broadcast %cst_34 : f32 to vector<4x128xf32>
    %36 = arith.mulf %35, %32 : vector<4x128xf32>
    %37 = arith.select %34, %32, %36 : vector<4x128xi1>, vector<4x128xf32>
    %c0_35 = arith.constant 0 : index
    %c0_36 = arith.constant 0 : index
    %38 = vector.load %arg14[%c0_35, %c0_36] : memref<4x128xf32, #tpu.memory_space<vmem>>, vector<4x128xf32>
    tpu.vector_store %arg14[%c0_35, %c0_36], %37 {strides = array<i32>} : memref<4x128xf32, #tpu.memory_space<vmem>>, vector<4x128xf32>,
    return
  }
  func.func @transform_0(%arg0: i32) -> (i32, i32) {
    %c0_i32 = arith.constant 0 : i32
    %c0_i32_0 = arith.constant 0 : i32
    %c0_i32_1 = arith.constant 0 : i32
    return %c0_i32, %c0_i32_0 : i32, i32
  }
  func.func @transform_1(%arg0: i32) -> (i32, i32) {
    %c0_i32 = arith.constant 0 : i32
    %c0_i32_0 = arith.constant 0 : i32
    %c0_i32_1 = arith.constant 0 : i32
    return %c0_i32, %c0_i32_0 : i32, i32
  }
  func.func @transform_2(%arg0: i32) -> (i32, i32) {
    %c0_i32 = arith.constant 0 : i32
    %c0_i32_0 = arith.constant 0 : i32
    %c0_i32_1 = arith.constant 0 : i32
    return %c0_i32, %c0_i32_0 : i32, i32
  }
  func.func @transform_3(%arg0: i32) -> (i32, i32) {
    %c0_i32 = arith.constant 0 : i32
    %c0_i32_0 = arith.constant 0 : i32
    %c0_i32_1 = arith.constant 0 : i32
    return %c0_i32, %c0_i32_0 : i32, i32
  }
  func.func @transform_4(%arg0: i32) -> (i32, i32) {
    %c0_i32 = arith.constant 0 : i32
    %c0_i32_0 = arith.constant 0 : i32
    %c0_i32_1 = arith.constant 0 : i32
    return %c0_i32, %c0_i32_0 : i32, i32
  }
  func.func @transform_5(%arg0: i32) -> (i32, i32) {
    %c0_i32 = arith.constant 0 : i32
    %c0_i32_0 = arith.constant 0 : i32
    %c0_i32_1 = arith.constant 0 : i32
    return %c0_i32, %c0_i32_0 : i32, i32
  }
  func.func @transform_6(%arg0: i32) -> (i32, i32) {
    %c0_i32 = arith.constant 0 : i32
    %c0_i32_0 = arith.constant 0 : i32
    %c0_i32_1 = arith.constant 0 : i32
    return %c0_i32, %c0_i32_0 : i32, i32
  }
  func.func @transform_7(%arg0: i32) -> (i32, i32) {
    %c0_i32 = arith.constant 0 : i32
    %c0_i32_0 = arith.constant 0 : i32
    %c0_i32_1 = arith.constant 0 : i32
    return %c0_i32, %c0_i32_0 : i32, i32
  }
  func.func @transform_8(%arg0: i32) -> (i32, i32) {
    %c0_i32 = arith.constant 0 : i32
    %c0_i32_0 = arith.constant 0 : i32
    %c0_i32_1 = arith.constant 0 : i32
    return %c0_i32, %c0_i32_0 : i32, i32
  }
  func.func @transform_9(%arg0: i32) -> (i32, i32) {
    %c0_i32 = arith.constant 0 : i32
    %c0_i32_0 = arith.constant 0 : i32
    %c0_i32_1 = arith.constant 0 : i32
    return %c0_i32, %c0_i32_0 : i32, i32
  }
  func.func @transform_10(%arg0: i32) -> (i32, i32) {
    %c0_i32 = arith.constant 0 : i32
    %c0_i32_0 = arith.constant 0 : i32
    %c0_i32_1 = arith.constant 0 : i32
    return %c0_i32, %c0_i32_0 : i32, i32
  }
  func.func @transform_11(%arg0: i32) -> (i32, i32) {
    %c0_i32 = arith.constant 0 : i32
    %c0_i32_0 = arith.constant 0 : i32
    %c0_i32_1 = arith.constant 0 : i32
    return %c0_i32, %c0_i32_0 : i32, i32
  }
  func.func @transform_12(%arg0: i32) -> (i32, i32) {
    %c0_i32 = arith.constant 0 : i32
    %c0_i32_0 = arith.constant 0 : i32
    %c0_i32_1 = arith.constant 0 : i32
    return %c0_i32, %c0_i32_0 : i32, i32
  }
  func.func @transform_13(%arg0: i32) -> (i32, i32) {
    %c0_i32 = arith.constant 0 : i32
    %c0_i32_0 = arith.constant 0 : i32
    %c0_i32_1 = arith.constant 0 : i32
    return %c0_i32, %c0_i32_0 : i32, i32
  }
}

module attributes {stable_mosaic.version = 11 : i64} {
  func.func @_hetero_kernel(%arg0: i32, %arg1: memref<4x4xf32, #tpu.memory_space<vmem>>, %arg2: memref<4x4xf32, #tpu.memory_space<vmem>>, %arg3: memref<4x128xf32, #tpu.memory_space<vmem>>, %arg4: memref<4x128xf32, #tpu.memory_space<vmem>>, %arg5: memref<128x64xf32, #tpu.memory_space<vmem>>, %arg6: memref<128x64xf32, #tpu.memory_space<vmem>>, %arg7: memref<1x64xf32, #tpu.memory_space<vmem>>, %arg8: memref<128x64xf32, #tpu.memory_space<vmem>>, %arg9: memref<128x64xf32, #tpu.memory_space<vmem>>, %arg10: memref<1x64xf32, #tpu.memory_space<vmem>>, %arg11: memref<4x64xf32, #tpu.memory_space<vmem>>, %arg12: memref<4x64xf32, #tpu.memory_space<vmem>>) attributes {dimension_semantics = [#tpu.dimension_semantics<arbitrary>], iteration_bounds = array<i64: 1>, scalar_prefetch = 0 : i64, scratch_operands = 0 : i64, tpu.core_type = #tpu.core_type<tc>, window_params = [{pipeline_mode = #tpu.pipeline_mode<synchronous>, transform_indices = @transform_0, window_bounds = array<i64: 4, 4>}, {pipeline_mode = #tpu.pipeline_mode<synchronous>, transform_indices = @transform_1, window_bounds = array<i64: 4, 4>}, {pipeline_mode = #tpu.pipeline_mode<synchronous>, transform_indices = @transform_2, window_bounds = array<i64: 4, 128>}, {pipeline_mode = #tpu.pipeline_mode<synchronous>, transform_indices = @transform_3, window_bounds = array<i64: 4, 128>}, {pipeline_mode = #tpu.pipeline_mode<synchronous>, transform_indices = @transform_4, window_bounds = array<i64: 128, 64>}, {pipeline_mode = #tpu.pipeline_mode<synchronous>, transform_indices = @transform_5, window_bounds = array<i64: 128, 64>}, {pipeline_mode = #tpu.pipeline_mode<synchronous>, transform_indices = @transform_6, window_bounds = array<i64: 1, 64>}, {pipeline_mode = #tpu.pipeline_mode<synchronous>, transform_indices = @transform_7, window_bounds = array<i64: 128, 64>}, {pipeline_mode = #tpu.pipeline_mode<synchronous>, transform_indices = @transform_8, window_bounds = array<i64: 128, 64>}, {pipeline_mode = #tpu.pipeline_mode<synchronous>, transform_indices = @transform_9, window_bounds = array<i64: 1, 64>}, {pipeline_mode = #tpu.pipeline_mode<synchronous>, transform_indices = @transform_10, window_bounds = array<i64: 4, 64>}, {pipeline_mode = #tpu.pipeline_mode<synchronous>, transform_indices = @transform_11, window_bounds = array<i64: 4, 64>}]} {
    %c0 = arith.constant 0 : index
    %c0_0 = arith.constant 0 : index
    %0 = vector.load %arg1[%c0, %c0_0] : memref<4x4xf32, #tpu.memory_space<vmem>>, vector<4x4xf32>
    %c0_1 = arith.constant 0 : index
    %c0_2 = arith.constant 0 : index
    %1 = vector.load %arg2[%c0_1, %c0_2] : memref<4x4xf32, #tpu.memory_space<vmem>>, vector<4x4xf32>
    %c0_3 = arith.constant 0 : index
    %c0_4 = arith.constant 0 : index
    %2 = vector.load %arg3[%c0_3, %c0_4] : memref<4x128xf32, #tpu.memory_space<vmem>>, vector<4x128xf32>
    %c0_5 = arith.constant 0 : index
    %c0_6 = arith.constant 0 : index
    %3 = vector.load %arg4[%c0_5, %c0_6] : memref<4x128xf32, #tpu.memory_space<vmem>>, vector<4x128xf32>
    %c0_7 = arith.constant 0 : index
    %c0_8 = arith.constant 0 : index
    %4 = vector.load %arg5[%c0_7, %c0_8] : memref<128x64xf32, #tpu.memory_space<vmem>>, vector<128x64xf32>
    %c0_9 = arith.constant 0 : index
    %c0_10 = arith.constant 0 : index
    %5 = vector.load %arg6[%c0_9, %c0_10] : memref<128x64xf32, #tpu.memory_space<vmem>>, vector<128x64xf32>
    %c0_11 = arith.constant 0 : index
    %c0_12 = arith.constant 0 : index
    %6 = vector.load %arg7[%c0_11, %c0_12] : memref<1x64xf32, #tpu.memory_space<vmem>>, vector<1x64xf32>
    %c0_13 = arith.constant 0 : index
    %c0_14 = arith.constant 0 : index
    %7 = vector.load %arg8[%c0_13, %c0_14] : memref<128x64xf32, #tpu.memory_space<vmem>>, vector<128x64xf32>
    %c0_15 = arith.constant 0 : index
    %c0_16 = arith.constant 0 : index
    %8 = vector.load %arg9[%c0_15, %c0_16] : memref<128x64xf32, #tpu.memory_space<vmem>>, vector<128x64xf32>
    %c0_17 = arith.constant 0 : index
    %c0_18 = arith.constant 0 : index
    %9 = vector.load %arg10[%c0_17, %c0_18] : memref<1x64xf32, #tpu.memory_space<vmem>>, vector<1x64xf32>
    %cst = arith.constant dense<0.000000e+00> : vector<4x128xf32>
    %10 = tpu.matmul %0, %3, %cst {dimension_numbers = #tpu.dot_dimension_numbers<[1], [0], [0], [1], [0, 0, 1, 1], [], []>} : vector<4x4xf32>, vector<4x128xf32>, vector<4x128xf32> -> vector<4x128xf32>
    %cst_19 = arith.constant dense<0.000000e+00> : vector<4x64xf32>
    %11 = tpu.matmul %10, %4, %cst_19 {dimension_numbers = #tpu.dot_dimension_numbers<[1], [0], [0], [1], [0, 0, 1, 1], [], []>} : vector<4x128xf32>, vector<128x64xf32>, vector<4x64xf32> -> vector<4x64xf32>
    %cst_20 = arith.constant dense<0.000000e+00> : vector<4x64xf32>
    %12 = tpu.matmul %2, %5, %cst_20 {dimension_numbers = #tpu.dot_dimension_numbers<[1], [0], [0], [1], [0, 0, 1, 1], [], []>} : vector<4x128xf32>, vector<128x64xf32>, vector<4x64xf32> -> vector<4x64xf32>
    %13 = arith.addf %11, %12 : vector<4x64xf32>
    %14 = vector.broadcast %6 : vector<1x64xf32> to vector<4x64xf32>
    %15 = arith.addf %13, %14 : vector<4x64xf32>
    %cst_21 = arith.constant 0.000000e+00 : f32
    %16 = vector.broadcast %cst_21 : f32 to vector<4x64xf32>
    %17 = arith.cmpf oge, %15, %16 : vector<4x64xf32>
    %cst_22 = arith.constant 2.000000e-01 : f32
    %18 = vector.broadcast %cst_22 : f32 to vector<4x64xf32>
    %19 = arith.mulf %18, %15 : vector<4x64xf32>
    %20 = arith.select %17, %15, %19 : vector<4x64xi1>, vector<4x64xf32>
    %c0_23 = arith.constant 0 : index
    %c0_24 = arith.constant 0 : index
    %21 = vector.load %arg11[%c0_23, %c0_24] : memref<4x64xf32, #tpu.memory_space<vmem>>, vector<4x64xf32>
    tpu.vector_store %arg11[%c0_23, %c0_24], %20 {strides = array<i32>} : memref<4x64xf32, #tpu.memory_space<vmem>>, vector<4x64xf32>,
    %cst_25 = arith.constant dense<0.000000e+00> : vector<4x128xf32>
    %22 = tpu.matmul %1, %2, %cst_25 {dimension_numbers = #tpu.dot_dimension_numbers<[1], [0], [0], [1], [0, 0, 1, 1], [], []>} : vector<4x4xf32>, vector<4x128xf32>, vector<4x128xf32> -> vector<4x128xf32>
    %cst_26 = arith.constant dense<0.000000e+00> : vector<4x64xf32>
    %23 = tpu.matmul %22, %7, %cst_26 {dimension_numbers = #tpu.dot_dimension_numbers<[1], [0], [0], [1], [0, 0, 1, 1], [], []>} : vector<4x128xf32>, vector<128x64xf32>, vector<4x64xf32> -> vector<4x64xf32>
    %cst_27 = arith.constant dense<0.000000e+00> : vector<4x64xf32>
    %24 = tpu.matmul %3, %8, %cst_27 {dimension_numbers = #tpu.dot_dimension_numbers<[1], [0], [0], [1], [0, 0, 1, 1], [], []>} : vector<4x128xf32>, vector<128x64xf32>, vector<4x64xf32> -> vector<4x64xf32>
    %25 = arith.addf %23, %24 : vector<4x64xf32>
    %26 = vector.broadcast %9 : vector<1x64xf32> to vector<4x64xf32>
    %27 = arith.addf %25, %26 : vector<4x64xf32>
    %cst_28 = arith.constant 0.000000e+00 : f32
    %28 = vector.broadcast %cst_28 : f32 to vector<4x64xf32>
    %29 = arith.cmpf oge, %27, %28 : vector<4x64xf32>
    %cst_29 = arith.constant 2.000000e-01 : f32
    %30 = vector.broadcast %cst_29 : f32 to vector<4x64xf32>
    %31 = arith.mulf %30, %27 : vector<4x64xf32>
    %32 = arith.select %29, %27, %31 : vector<4x64xi1>, vector<4x64xf32>
    %c0_30 = arith.constant 0 : index
    %c0_31 = arith.constant 0 : index
    %33 = vector.load %arg12[%c0_30, %c0_31] : memref<4x64xf32, #tpu.memory_space<vmem>>, vector<4x64xf32>
    tpu.vector_store %arg12[%c0_30, %c0_31], %32 {strides = array<i32>} : memref<4x64xf32, #tpu.memory_space<vmem>>, vector<4x64xf32>,
    return
  }
  func.func @transform_0(%arg0: i32) -> (i32, i32) {
    %c0_i32 = arith.constant 0 : i32
    %c0_i32_0 = arith.constant 0 : i32
    %c0_i32_1 = arith.constant 0 : i32
    return %c0_i32, %c0_i32_0 : i32, i32
  }
  func.func @transform_1(%arg0: i32) -> (i32, i32) {
    %c0_i32 = arith.constant 0 : i32
    %c0_i32_0 = arith.constant 0 : i32
    %c0_i32_1 = arith.constant 0 : i32
    return %c0_i32, %c0_i32_0 : i32, i32
  }
  func.func @transform_2(%arg0: i32) -> (i32, i32) {
    %c0_i32 = arith.constant 0 : i32
    %c0_i32_0 = arith.constant 0 : i32
    %c0_i32_1 = arith.constant 0 : i32
    return %c0_i32, %c0_i32_0 : i32, i32
  }
  func.func @transform_3(%arg0: i32) -> (i32, i32) {
    %c0_i32 = arith.constant 0 : i32
    %c0_i32_0 = arith.constant 0 : i32
    %c0_i32_1 = arith.constant 0 : i32
    return %c0_i32, %c0_i32_0 : i32, i32
  }
  func.func @transform_4(%arg0: i32) -> (i32, i32) {
    %c0_i32 = arith.constant 0 : i32
    %c0_i32_0 = arith.constant 0 : i32
    %c0_i32_1 = arith.constant 0 : i32
    return %c0_i32, %c0_i32_0 : i32, i32
  }
  func.func @transform_5(%arg0: i32) -> (i32, i32) {
    %c0_i32 = arith.constant 0 : i32
    %c0_i32_0 = arith.constant 0 : i32
    %c0_i32_1 = arith.constant 0 : i32
    return %c0_i32, %c0_i32_0 : i32, i32
  }
  func.func @transform_6(%arg0: i32) -> (i32, i32) {
    %c0_i32 = arith.constant 0 : i32
    %c0_i32_0 = arith.constant 0 : i32
    %c0_i32_1 = arith.constant 0 : i32
    return %c0_i32, %c0_i32_0 : i32, i32
  }
  func.func @transform_7(%arg0: i32) -> (i32, i32) {
    %c0_i32 = arith.constant 0 : i32
    %c0_i32_0 = arith.constant 0 : i32
    %c0_i32_1 = arith.constant 0 : i32
    return %c0_i32, %c0_i32_0 : i32, i32
  }
  func.func @transform_8(%arg0: i32) -> (i32, i32) {
    %c0_i32 = arith.constant 0 : i32
    %c0_i32_0 = arith.constant 0 : i32
    %c0_i32_1 = arith.constant 0 : i32
    return %c0_i32, %c0_i32_0 : i32, i32
  }
  func.func @transform_9(%arg0: i32) -> (i32, i32) {
    %c0_i32 = arith.constant 0 : i32
    %c0_i32_0 = arith.constant 0 : i32
    %c0_i32_1 = arith.constant 0 : i32
    return %c0_i32, %c0_i32_0 : i32, i32
  }
  func.func @transform_10(%arg0: i32) -> (i32, i32) {
    %c0_i32 = arith.constant 0 : i32
    %c0_i32_0 = arith.constant 0 : i32
    %c0_i32_1 = arith.constant 0 : i32
    return %c0_i32, %c0_i32_0 : i32, i32
  }
  func.func @transform_11(%arg0: i32) -> (i32, i32) {
    %c0_i32 = arith.constant 0 : i32
    %c0_i32_0 = arith.constant 0 : i32
    %c0_i32_1 = arith.constant 0 : i32
    return %c0_i32, %c0_i32_0 : i32, i32
  }
}

module attributes {stable_mosaic.version = 11 : i64} {
  func.func @_hetero_kernel(%arg0: i32, %arg1: memref<4x4xf32, #tpu.memory_space<vmem>>, %arg2: memref<4x4xf32, #tpu.memory_space<vmem>>, %arg3: memref<4x64xf32, #tpu.memory_space<vmem>>, %arg4: memref<4x64xf32, #tpu.memory_space<vmem>>, %arg5: memref<64x32xf32, #tpu.memory_space<vmem>>, %arg6: memref<64x32xf32, #tpu.memory_space<vmem>>, %arg7: memref<1x32xf32, #tpu.memory_space<vmem>>, %arg8: memref<64x32xf32, #tpu.memory_space<vmem>>, %arg9: memref<64x32xf32, #tpu.memory_space<vmem>>, %arg10: memref<1x32xf32, #tpu.memory_space<vmem>>, %arg11: memref<4x32xf32, #tpu.memory_space<vmem>>, %arg12: memref<4x32xf32, #tpu.memory_space<vmem>>) attributes {dimension_semantics = [#tpu.dimension_semantics<arbitrary>], iteration_bounds = array<i64: 1>, scalar_prefetch = 0 : i64, scratch_operands = 0 : i64, tpu.core_type = #tpu.core_type<tc>, window_params = [{pipeline_mode = #tpu.pipeline_mode<synchronous>, transform_indices = @transform_0, window_bounds = array<i64: 4, 4>}, {pipeline_mode = #tpu.pipeline_mode<synchronous>, transform_indices = @transform_1, window_bounds = array<i64: 4, 4>}, {pipeline_mode = #tpu.pipeline_mode<synchronous>, transform_indices = @transform_2, window_bounds = array<i64: 4, 64>}, {pipeline_mode = #tpu.pipeline_mode<synchronous>, transform_indices = @transform_3, window_bounds = array<i64: 4, 64>}, {pipeline_mode = #tpu.pipeline_mode<synchronous>, transform_indices = @transform_4, window_bounds = array<i64: 64, 32>}, {pipeline_mode = #tpu.pipeline_mode<synchronous>, transform_indices = @transform_5, window_bounds = array<i64: 64, 32>}, {pipeline_mode = #tpu.pipeline_mode<synchronous>, transform_indices = @transform_6, window_bounds = array<i64: 1, 32>}, {pipeline_mode = #tpu.pipeline_mode<synchronous>, transform_indices = @transform_7, window_bounds = array<i64: 64, 32>}, {pipeline_mode = #tpu.pipeline_mode<synchronous>, transform_indices = @transform_8, window_bounds = array<i64: 64, 32>}, {pipeline_mode = #tpu.pipeline_mode<synchronous>, transform_indices = @transform_9, window_bounds = array<i64: 1, 32>}, {pipeline_mode = #tpu.pipeline_mode<synchronous>, transform_indices = @transform_10, window_bounds = array<i64: 4, 32>}, {pipeline_mode = #tpu.pipeline_mode<synchronous>, transform_indices = @transform_11, window_bounds = array<i64: 4, 32>}]} {
    %c0 = arith.constant 0 : index
    %c0_0 = arith.constant 0 : index
    %0 = vector.load %arg1[%c0, %c0_0] : memref<4x4xf32, #tpu.memory_space<vmem>>, vector<4x4xf32>
    %c0_1 = arith.constant 0 : index
    %c0_2 = arith.constant 0 : index
    %1 = vector.load %arg2[%c0_1, %c0_2] : memref<4x4xf32, #tpu.memory_space<vmem>>, vector<4x4xf32>
    %c0_3 = arith.constant 0 : index
    %c0_4 = arith.constant 0 : index
    %2 = vector.load %arg3[%c0_3, %c0_4] : memref<4x64xf32, #tpu.memory_space<vmem>>, vector<4x64xf32>
    %c0_5 = arith.constant 0 : index
    %c0_6 = arith.constant 0 : index
    %3 = vector.load %arg4[%c0_5, %c0_6] : memref<4x64xf32, #tpu.memory_space<vmem>>, vector<4x64xf32>
    %c0_7 = arith.constant 0 : index
    %c0_8 = arith.constant 0 : index
    %4 = vector.load %arg5[%c0_7, %c0_8] : memref<64x32xf32, #tpu.memory_space<vmem>>, vector<64x32xf32>
    %c0_9 = arith.constant 0 : index
    %c0_10 = arith.constant 0 : index
    %5 = vector.load %arg6[%c0_9, %c0_10] : memref<64x32xf32, #tpu.memory_space<vmem>>, vector<64x32xf32>
    %c0_11 = arith.constant 0 : index
    %c0_12 = arith.constant 0 : index
    %6 = vector.load %arg7[%c0_11, %c0_12] : memref<1x32xf32, #tpu.memory_space<vmem>>, vector<1x32xf32>
    %c0_13 = arith.constant 0 : index
    %c0_14 = arith.constant 0 : index
    %7 = vector.load %arg8[%c0_13, %c0_14] : memref<64x32xf32, #tpu.memory_space<vmem>>, vector<64x32xf32>
    %c0_15 = arith.constant 0 : index
    %c0_16 = arith.constant 0 : index
    %8 = vector.load %arg9[%c0_15, %c0_16] : memref<64x32xf32, #tpu.memory_space<vmem>>, vector<64x32xf32>
    %c0_17 = arith.constant 0 : index
    %c0_18 = arith.constant 0 : index
    %9 = vector.load %arg10[%c0_17, %c0_18] : memref<1x32xf32, #tpu.memory_space<vmem>>, vector<1x32xf32>
    %cst = arith.constant dense<0.000000e+00> : vector<4x64xf32>
    %10 = tpu.matmul %0, %3, %cst {dimension_numbers = #tpu.dot_dimension_numbers<[1], [0], [0], [1], [0, 0, 1, 1], [], []>} : vector<4x4xf32>, vector<4x64xf32>, vector<4x64xf32> -> vector<4x64xf32>
    %cst_19 = arith.constant dense<0.000000e+00> : vector<4x32xf32>
    %11 = tpu.matmul %10, %4, %cst_19 {dimension_numbers = #tpu.dot_dimension_numbers<[1], [0], [0], [1], [0, 0, 1, 1], [], []>} : vector<4x64xf32>, vector<64x32xf32>, vector<4x32xf32> -> vector<4x32xf32>
    %cst_20 = arith.constant dense<0.000000e+00> : vector<4x32xf32>
    %12 = tpu.matmul %2, %5, %cst_20 {dimension_numbers = #tpu.dot_dimension_numbers<[1], [0], [0], [1], [0, 0, 1, 1], [], []>} : vector<4x64xf32>, vector<64x32xf32>, vector<4x32xf32> -> vector<4x32xf32>
    %13 = arith.addf %11, %12 : vector<4x32xf32>
    %14 = vector.broadcast %6 : vector<1x32xf32> to vector<4x32xf32>
    %15 = arith.addf %13, %14 : vector<4x32xf32>
    %cst_21 = arith.constant 0.000000e+00 : f32
    %16 = vector.broadcast %cst_21 : f32 to vector<4x32xf32>
    %17 = arith.cmpf oge, %15, %16 : vector<4x32xf32>
    %cst_22 = arith.constant 2.000000e-01 : f32
    %18 = vector.broadcast %cst_22 : f32 to vector<4x32xf32>
    %19 = arith.mulf %18, %15 : vector<4x32xf32>
    %20 = arith.select %17, %15, %19 : vector<4x32xi1>, vector<4x32xf32>
    %c0_23 = arith.constant 0 : index
    %c0_24 = arith.constant 0 : index
    %21 = vector.load %arg11[%c0_23, %c0_24] : memref<4x32xf32, #tpu.memory_space<vmem>>, vector<4x32xf32>
    tpu.vector_store %arg11[%c0_23, %c0_24], %20 {strides = array<i32>} : memref<4x32xf32, #tpu.memory_space<vmem>>, vector<4x32xf32>,
    %cst_25 = arith.constant dense<0.000000e+00> : vector<4x64xf32>
    %22 = tpu.matmul %1, %2, %cst_25 {dimension_numbers = #tpu.dot_dimension_numbers<[1], [0], [0], [1], [0, 0, 1, 1], [], []>} : vector<4x4xf32>, vector<4x64xf32>, vector<4x64xf32> -> vector<4x64xf32>
    %cst_26 = arith.constant dense<0.000000e+00> : vector<4x32xf32>
    %23 = tpu.matmul %22, %7, %cst_26 {dimension_numbers = #tpu.dot_dimension_numbers<[1], [0], [0], [1], [0, 0, 1, 1], [], []>} : vector<4x64xf32>, vector<64x32xf32>, vector<4x32xf32> -> vector<4x32xf32>
    %cst_27 = arith.constant dense<0.000000e+00> : vector<4x32xf32>
    %24 = tpu.matmul %3, %8, %cst_27 {dimension_numbers = #tpu.dot_dimension_numbers<[1], [0], [0], [1], [0, 0, 1, 1], [], []>} : vector<4x64xf32>, vector<64x32xf32>, vector<4x32xf32> -> vector<4x32xf32>
    %25 = arith.addf %23, %24 : vector<4x32xf32>
    %26 = vector.broadcast %9 : vector<1x32xf32> to vector<4x32xf32>
    %27 = arith.addf %25, %26 : vector<4x32xf32>
    %cst_28 = arith.constant 0.000000e+00 : f32
    %28 = vector.broadcast %cst_28 : f32 to vector<4x32xf32>
    %29 = arith.cmpf oge, %27, %28 : vector<4x32xf32>
    %cst_29 = arith.constant 2.000000e-01 : f32
    %30 = vector.broadcast %cst_29 : f32 to vector<4x32xf32>
    %31 = arith.mulf %30, %27 : vector<4x32xf32>
    %32 = arith.select %29, %27, %31 : vector<4x32xi1>, vector<4x32xf32>
    %c0_30 = arith.constant 0 : index
    %c0_31 = arith.constant 0 : index
    %33 = vector.load %arg12[%c0_30, %c0_31] : memref<4x32xf32, #tpu.memory_space<vmem>>, vector<4x32xf32>
    tpu.vector_store %arg12[%c0_30, %c0_31], %32 {strides = array<i32>} : memref<4x32xf32, #tpu.memory_space<vmem>>, vector<4x32xf32>,
    return
  }
  func.func @transform_0(%arg0: i32) -> (i32, i32) {
    %c0_i32 = arith.constant 0 : i32
    %c0_i32_0 = arith.constant 0 : i32
    %c0_i32_1 = arith.constant 0 : i32
    return %c0_i32, %c0_i32_0 : i32, i32
  }
  func.func @transform_1(%arg0: i32) -> (i32, i32) {
    %c0_i32 = arith.constant 0 : i32
    %c0_i32_0 = arith.constant 0 : i32
    %c0_i32_1 = arith.constant 0 : i32
    return %c0_i32, %c0_i32_0 : i32, i32
  }
  func.func @transform_2(%arg0: i32) -> (i32, i32) {
    %c0_i32 = arith.constant 0 : i32
    %c0_i32_0 = arith.constant 0 : i32
    %c0_i32_1 = arith.constant 0 : i32
    return %c0_i32, %c0_i32_0 : i32, i32
  }
  func.func @transform_3(%arg0: i32) -> (i32, i32) {
    %c0_i32 = arith.constant 0 : i32
    %c0_i32_0 = arith.constant 0 : i32
    %c0_i32_1 = arith.constant 0 : i32
    return %c0_i32, %c0_i32_0 : i32, i32
  }
  func.func @transform_4(%arg0: i32) -> (i32, i32) {
    %c0_i32 = arith.constant 0 : i32
    %c0_i32_0 = arith.constant 0 : i32
    %c0_i32_1 = arith.constant 0 : i32
    return %c0_i32, %c0_i32_0 : i32, i32
  }
  func.func @transform_5(%arg0: i32) -> (i32, i32) {
    %c0_i32 = arith.constant 0 : i32
    %c0_i32_0 = arith.constant 0 : i32
    %c0_i32_1 = arith.constant 0 : i32
    return %c0_i32, %c0_i32_0 : i32, i32
  }
  func.func @transform_6(%arg0: i32) -> (i32, i32) {
    %c0_i32 = arith.constant 0 : i32
    %c0_i32_0 = arith.constant 0 : i32
    %c0_i32_1 = arith.constant 0 : i32
    return %c0_i32, %c0_i32_0 : i32, i32
  }
  func.func @transform_7(%arg0: i32) -> (i32, i32) {
    %c0_i32 = arith.constant 0 : i32
    %c0_i32_0 = arith.constant 0 : i32
    %c0_i32_1 = arith.constant 0 : i32
    return %c0_i32, %c0_i32_0 : i32, i32
  }
  func.func @transform_8(%arg0: i32) -> (i32, i32) {
    %c0_i32 = arith.constant 0 : i32
    %c0_i32_0 = arith.constant 0 : i32
    %c0_i32_1 = arith.constant 0 : i32
    return %c0_i32, %c0_i32_0 : i32, i32
  }
  func.func @transform_9(%arg0: i32) -> (i32, i32) {
    %c0_i32 = arith.constant 0 : i32
    %c0_i32_0 = arith.constant 0 : i32
    %c0_i32_1 = arith.constant 0 : i32
    return %c0_i32, %c0_i32_0 : i32, i32
  }
  func.func @transform_10(%arg0: i32) -> (i32, i32) {
    %c0_i32 = arith.constant 0 : i32
    %c0_i32_0 = arith.constant 0 : i32
    %c0_i32_1 = arith.constant 0 : i32
    return %c0_i32, %c0_i32_0 : i32, i32
  }
  func.func @transform_11(%arg0: i32) -> (i32, i32) {
    %c0_i32 = arith.constant 0 : i32
    %c0_i32_0 = arith.constant 0 : i32
    %c0_i32_1 = arith.constant 0 : i32
    return %c0_i32, %c0_i32_0 : i32, i32
  }
}

</mosaic_0001>

<llo_original>
// kernel: molvis_gnn_forward.8
$region0: #{molvis_gnn_forward.8}
  #allocation0 [shape = 'u32[]', space=smem, size = 0x4, offset = 0x4, fixed_abs, tag = 'smem constant byte address 0x4 - core index']
  #allocation1 [shape = 'u32[72,128]{1,0:T(1,128)}', space=vmem, size = 0x9000, scoped, tag = 'internal scratch']
  #allocation2 [shape = 'f32[32,64]{1,0:T(8,128)}', space=vmem, size = 0x4000, scoped, tag = 'scratch operand']
  %s0 = inlined_call_operand.vmem [shape: bf16[3,32,3456], index: 0, kind: input, shape index: {}]
  %s1 = inlined_call_operand.vmem [shape: bf16[3,3456,64], index: 1, kind: input, shape index: {}]
  %s2 = inlined_call_operand.vmem [shape: f32[3,1,64], index: 2, kind: input, shape index: {}]
  %s3 = inlined_call_operand.vmem [shape: f32[4,32], index: 3, kind: input, shape index: {}]
  %s4 = inlined_call_operand.vmem [shape: f32[4,64], index: 4, kind: output, shape index: {}]
  %s5 = sld [smem:[#allocation0]]
  $region87: #{molvis_gnn_forward.8} parent=0
    _
  %s7 = ssub.s32 1, %s5
  %s8 = scalar_select 0, %s7, %s5
  $region1: #{molvis_gnn_forward.8} parent=0
    #allocation3 [shape = 'u8[147456]{0}', space=vmem, size = 0x24000, scoped, tag = 'input window, operand 0']
    loop: start=0, step=1, limit=11
    $region2: #{molvis_gnn_forward.8} parent=1 // loop_pre_header
      _
    $region3: #{molvis_gnn_forward.8} parent=1 // loop_header
      %s10 = sphi 0, %s14
      %p11 = scmp.ge.s32.totalorder %s10, 11
      %s17 = sphi 0, %s29
      %s18 = sphi 0, %s25
      %s19 = sphi 0, %s17
      %s20 = sphi 0, %s18
      %s21 = sphi 0, %s19
      %s22 = sphi 0, %s20
      %s34 = sphi 0, %s36
      %s37 = sphi 0, %s34
      %s38 = sphi 0, %s37
      %s54 = sphi 0, %s38
      %s62 = sphi 0, %s64
      %s65 = sphi 0, %s62
      %s66 = sphi 0, %s65
      %s82 = sphi 0, %s66
      %s88 = sphi 0, %s90
      %s91 = sphi 0, %s88
      %s92 = sphi 0, %s91
      %s108 = sphi 0, %s92
      %s112 = sphi 0, %s112
      %s114 = sphi 0, %s112
      %s115 = sphi 0, %s114
      %s129 = sphi 0, %s115
      %s133 = sphi 0, %s133
      %s135 = sphi 0, %s133
      %s136 = sphi 0, %s135
      %s150 = sphi 0, %s136
    $region4: #{molvis_gnn_forward.8} parent=1 // loop_header_branch
      %13 = sbr.rel (%p11) target = $region8
    $region5: #{molvis_gnn_forward.8} parent=1 // loop_body
      %s15 = ssub.s32 %s10, 1
      %s16 = ssub.s32 %s10, 2
      %s23 = sadd.s32 1, %s18
      %p24 = scmp.ge.s32.totalorder %s23, 3
      %s25 = scalar_select %p24, 0, %s23
      %s26 = sadd.s32 1, %s17
      %s27 = scalar_select %p24, %s26, %s17
      %p28 = scmp.ge.s32.totalorder %s27, 3
      %s29 = scalar_select %p28, 0, %s27
      %s30 = ssub.s32 %s17, %s29
      %s31 = ssub.s32 %s18, %s25
      %s32 = sor.u32 %s30, %s31
      %p33 = scmp.eq.s32.totalorder %s32, 0
      %s35 = sadd.s32 %s34, 1
      %s36 = scalar_select %p33, %s34, %s35
      %p39 = pneg %p33
      %p40 = scmp.eq.s32.totalorder %s10, 8
      %p41 = por %p39, %p40
      %p42 = scmp.ne.s32.totalorder %s34, %s37
      %p43 = scmp.eq.s32.totalorder %s10, 0
      %p44 = por %p42, %p43
      %p45 = scmp.ne.s32.totalorder %s34, %s37
      %p46 = scmp.eq.s32.totalorder %s15, 8
      %p47 = por %p45, %p46
      %p48 = scmp.ne.s32.totalorder %s37, %s38
      %p49 = scmp.eq.s32.totalorder %s15, 0
      %p50 = por %p48, %p49
      %p51 = scmp.ne.s32.totalorder %s37, %s38
      %p52 = scmp.eq.s32.totalorder %s16, 8
      %p53 = por %p51, %p52
      %p55 = scmp.ne.s32.totalorder %s38, %s54
      %p56 = scmp.eq.s32.totalorder %s16, 0
      %p57 = por %p55, %p56
      %s58 = ssub.s32 %s17, %s29
      %s59 = ssub.s32 %s18, %s25
      %s60 = sor.u32 %s58, %s59
      %p61 = scmp.eq.s32.totalorder %s60, 0
      %s63 = sadd.s32 %s62, 1
      %s64 = scalar_select %p61, %s62, %s63
      %p67 = pneg %p61
      %p68 = scmp.eq.s32.totalorder %s10, 8
      %p69 = por %p67, %p68
      %p70 = scmp.ne.s32.totalorder %s62, %s65
      %p71 = scmp.eq.s32.totalorder %s10, 0
      %p72 = por %p70, %p71
      %p73 = scmp.ne.s32.totalorder %s62, %s65
      %p74 = scmp.eq.s32.totalorder %s15, 8
      %p75 = por %p73, %p74
      %p76 = scmp.ne.s32.totalorder %s65, %s66
      %p77 = scmp.eq.s32.totalorder %s15, 0
      %p78 = por %p76, %p77
      %p79 = scmp.ne.s32.totalorder %s65, %s66
      %p80 = scmp.eq.s32.totalorder %s16, 8
      %p81 = por %p79, %p80
      %p83 = scmp.ne.s32.totalorder %s66, %s82
      %p84 = scmp.eq.s32.totalorder %s16, 0
      %p85 = por %p83, %p84
      %s86 = ssub.s32 %s17, %s29
      %p87 = scmp.eq.s32.totalorder %s86, 0
      %s89 = sadd.s32 %s88, 1
      %s90 = scalar_select %p87, %s88, %s89
      %p93 = pneg %p87
      %p94 = scmp.eq.s32.totalorder %s10, 8
      %p95 = por %p93, %p94
      %p96 = scmp.ne.s32.totalorder %s88, %s91
      %p97 = scmp.eq.s32.totalorder %s10, 0
      %p98 = por %p96, %p97
      %p99 = scmp.ne.s32.totalorder %s88, %s91
      %p100 = scmp.eq.s32.totalorder %s15, 8
      %p101 = por %p99, %p100
      %p102 = scmp.ne.s32.totalorder %s91, %s92
      %p103 = scmp.eq.s32.totalorder %s15, 0
      %p104 = por %p102, %p103
      %p105 = scmp.ne.s32.totalorder %s91, %s92
      %p106 = scmp.eq.s32.totalorder %s16, 8
      %p107 = por %p105, %p106
      %p109 = scmp.ne.s32.totalorder %s92, %s108
      %p110 = scmp.eq.s32.totalorder %s16, 0
      %p111 = por %p109, %p110
      %s113 = sadd.s32 %s112, 1
      %p116 = scmp.eq.s32.totalorder %s10, 8
      %p117 = scmp.ne.s32.totalorder %s112, %s114
      %p118 = scmp.eq.s32.totalorder %s10, 0
      %p119 = por %p117, %p118
      %p120 = scmp.ne.s32.totalorder %s112, %s114
      %p121 = scmp.eq.s32.totalorder %s15, 8
      %p122 = por %p120, %p121
      %p123 = scmp.ne.s32.totalorder %s114, %s115
      %p124 = scmp.eq.s32.totalorder %s15, 0
      %p125 = por %p123, %p124
      %p126 = scmp.ne.s32.totalorder %s114, %s115
      %p127 = scmp.eq.s32.totalorder %s16, 8
      %p128 = por %p126, %p127
      %p130 = scmp.ne.s32.totalorder %s115, %s129
      %p131 = scmp.eq.s32.totalorder %s16, 0
      %p132 = por %p130, %p131
      %s134 = sadd.s32 %s133, 1
      %p137 = scmp.eq.s32.totalorder %s10, 8
      %p138 = scmp.ne.s32.totalorder %s133, %s135
      %p139 = scmp.eq.s32.totalorder %s10, 0
      %p140 = por %p138, %p139
      %p141 = scmp.ne.s32.totalorder %s133, %s135
      %p142 = scmp.eq.s32.totalorder %s15, 8
      %p143 = por %p141, %p142
      %p144 = scmp.ne.s32.totalorder %s135, %s136
      %p145 = scmp.eq.s32.totalorder %s15, 0
      %p146 = por %p144, %p145
      %p147 = scmp.ne.s32.totalorder %s135, %s136
      %p148 = scmp.eq.s32.totalorder %s16, 8
      %p149 = por %p147, %p148
      %p151 = scmp.ne.s32.totalorder %s136, %s150
      %p152 = scmp.eq.s32.totalorder %s16, 0
      %p153 = por %p151, %p152
      %p154 = scmp.le.s32.totalorder 1, %s10
      %p155 = scmp.lt.s32.totalorder %s10, 10
      %p156 = pnand %p154, %p155
      %p157 = pneg %p156
      // Predicated region
      $region9: #{molvis_gnn_forward.8} parent=5 // pred_check
        _
      $region10: #{molvis_gnn_forward.8} parent=5 // pred_check_branch
        %159 = sbr.rel (%p156) target = $region12
      $region11: #{molvis_gnn_forward.8} parent=5 // pred_region
        %s160 = ssub.s32 %s10, 1
        // Predicated region
        $region13: #{molvis_gnn_forward.8} parent=11 // pred_check
          %p161 = pneg %p125
        $region14: #{molvis_gnn_forward.8} parent=11 // pred_check_branch
          %163 = sbr.rel (%p161) target = $region16
        $region15: #{molvis_gnn_forward.8} parent=11 // pred_region
          _
        $region16: #{molvis_gnn_forward.8} parent=11 // pred_fallthru
          _
      $region12: #{molvis_gnn_forward.8} parent=5 // pred_fallthru
        _
      %p164 = scmp.lt.s32.totalorder %s10, 9
      // Predicated region
      $region17: #{molvis_gnn_forward.8} parent=5 // pred_check
        %p165 = pneg %p164
      $region18: #{molvis_gnn_forward.8} parent=5 // pred_check_branch
        %167 = sbr.rel (%p165) target = $region20
      $region19: #{molvis_gnn_forward.8} parent=5 // pred_region
        // Predicated region
        $region21: #{molvis_gnn_forward.8} parent=19 // pred_check
          %p168 = pneg %p44
        $region22: #{molvis_gnn_forward.8} parent=19 // pred_check_branch
          %170 = sbr.rel (%p168) target = $region24
        $region23: #{molvis_gnn_forward.8} parent=19 // pred_region
          %s171 = sand.u32 %s34, 1
          %s172 = sand.u32 %s34, 1
          %s173 = smul.addr %s172, 144
          %s174 = scalar_lea.vmem [#allocation3], %s173
          %s175 = smul.u32 9, %s18
          %s176 = smul.addr %s17, 108
          %s177 = sadd.s32 %s175, %s176
          %s178 = smul.addr %s177, 4
          %s179 = scalar_lea.vmem %s0, %s178
          // Predicated region
          $region25: #{molvis_gnn_forward.8} parent=23 // pred_check
            _
          $region26: #{molvis_gnn_forward.8} parent=23 // pred_check_branch
            %181 = sbr.rel (0) target = $region28
          $region27: #{molvis_gnn_forward.8} parent=23 // pred_region
            // Predicated region
            $region29: #{molvis_gnn_forward.8} parent=27 // pred_check
              _
            $region30: #{molvis_gnn_forward.8} parent=27 // pred_check_branch
              %183 = sbr.rel (0) target = $region32
            $region31: #{molvis_gnn_forward.8} parent=27 // pred_region
              %s184 = scalar_lea.vmem %s179, 32
              %s185 = scalar_lea.vmem %s174, 32 [#allocation3]
              loop: start=0, step=1, limit=1
              $region33: #{molvis_gnn_forward.8} parent=31 // loop_pre_header
                _
              $region34: #{molvis_gnn_forward.8} parent=31 // loop_header
                %s187 = sphi 0, %s191
                %p188 = scmp.ge.s32.totalorder %s187, 1
                %s192 = sphi %s179, %s179
                %s193 = sphi %s174, %s174
              $region35: #{molvis_gnn_forward.8} parent=31 // loop_header_branch
                %190 = sbr.rel (%p188) target = $region39
              $region36: #{molvis_gnn_forward.8} parent=31 // loop_body
                %v194 = vld [vmem:[%s192] sm:$0xff]
                %195 = vst [vmem:[%s193] sm:$0xff] %v194
                %v196 = vld [vmem:[%s192 + $0x8] sm:$0xff]
                %197 = vst [vmem:[%s193 + $0x8] sm:$0xff] %v196
                %v198 = vld [vmem:[%s192 + $0x10] sm:$0xff]
                %199 = vst [vmem:[%s193 + $0x10] sm:$0xff] %v198
                %v200 = vld [vmem:[%s192 + $0x18] sm:$0xff]
                %201 = vst [vmem:[%s193 + $0x18] sm:$0xff] %v200
                %v202 = vld [vmem:[%s192 + $0x6c] sm:$0xff]
                %203 = vst [vmem:[%s193 + $0x24] sm:$0xff] %v202
                %v204 = vld [vmem:[%s192 + $0x74] sm:$0xff]
                %205 = vst [vmem:[%s193 + $0x2c] sm:$0xff] %v204
                %v206 = vld [vmem:[%s192 + $0x7c] sm:$0xff]
                %207 = vst [vmem:[%s193 + $0x34] sm:$0xff] %v206
                %v208 = vld [vmem:[%s192 + $0x84] sm:$0xff]
                %209 = vst [vmem:[%s193 + $0x3c] sm:$0xff] %v208
                %v210 = vld [vmem:[%s192 + $0xd8] sm:$0xff]
                %211 = vst [vmem:[%s193 + $0x48] sm:$0xff] %v210
                %v212 = vld [vmem:[%s192 + $0xe0] sm:$0xff]
                %213 = vst [vmem:[%s193 + $0x50] sm:$0xff] %v212
                %v214 = vld [vmem:[%s192 + $0xe8] sm:$0xff]
                %215 = vst [vmem:[%s193 + $0x58] sm:$0xff] %v214
                %v216 = vld [vmem:[%s192 + $0xf0] sm:$0xff]
                %217 = vst [vmem:[%s193 + $0x60] sm:$0xff] %v216
                %v218 = vld [vmem:[%s192 + $0x144] sm:$0xff]
                %219 = vst [vmem:[%s193 + $0x6c] sm:$0xff] %v218
                %v220 = vld [vmem:[%s192 + $0x14c] sm:$0xff]
                %221 = vst [vmem:[%s193 + $0x74] sm:$0xff] %v220
                %v222 = vld [vmem:[%s192 + $0x154] sm:$0xff]
                %223 = vst [vmem:[%s193 + $0x7c] sm:$0xff] %v222
                %v224 = vld [vmem:[%s192 + $0x15c] sm:$0xff]
                %225 = vst [vmem:[%s193 + $0x84] sm:$0xff] %v224
              $region37: #{molvis_gnn_forward.8} parent=31 // loop_footer
                %s191 = sadd.s32 1, %s187
              $region38: #{molvis_gnn_forward.8} parent=31 // loop_footer_branch
                %186 = sbr.rel target = $region34
              $region39: #{molvis_gnn_forward.8} parent=31 // loop_exit
                _
              %s227 = ssub.s32 16, 1
              loop: start=0, step=1, limit=1
              $region40: #{molvis_gnn_forward.8} parent=31 // loop_pre_header
                _
              $region41: #{molvis_gnn_forward.8} parent=31 // loop_header
                %s229 = sphi 0, %s233
                %p230 = scmp.ge.s32.totalorder %s229, 1
                %s234 = sphi %s184, %s184
                %s235 = sphi %s185, %s185
              $region42: #{molvis_gnn_forward.8} parent=31 // loop_header_branch
                %232 = sbr.rel (%p230) target = $region46
              $region43: #{molvis_gnn_forward.8} parent=31 // loop_body
                %v236 = vld [vmem:[%s234] sm:%s227]
                %237 = vst [vmem:[%s235] sm:%s227] %v236
                %v238 = vld [vmem:[%s234 + $0x6c] sm:%s227]
                %239 = vst [vmem:[%s235 + $0x24] sm:%s227] %v238
                %v240 = vld [vmem:[%s234 + $0xd8] sm:%s227]
                %241 = vst [vmem:[%s235 + $0x48] sm:%s227] %v240
                %v242 = vld [vmem:[%s234 + $0x144] sm:%s227]
                %243 = vst [vmem:[%s235 + $0x6c] sm:%s227] %v242
              $region44: #{molvis_gnn_forward.8} parent=31 // loop_footer
                %s233 = sadd.s32 1, %s229
              $region45: #{molvis_gnn_forward.8} parent=31 // loop_footer_branch
                %228 = sbr.rel target = $region41
              $region46: #{molvis_gnn_forward.8} parent=31 // loop_exit
                _
            $region32: #{molvis_gnn_forward.8} parent=27 // pred_fallthru
              _
          $region28: #{molvis_gnn_forward.8} parent=23 // pred_fallthru
            _
          %244 = vnop
        $region24: #{molvis_gnn_forward.8} parent=19 // pred_fallthru
          _
        // Predicated region
        $region47: #{molvis_gnn_forward.8} parent=19 // pred_check
          %p245 = pneg %p72
        $region48: #{molvis_gnn_forward.8} parent=19 // pred_check_branch
          %247 = sbr.rel (%p245) target = $region50
        $region49: #{molvis_gnn_forward.8} parent=19 // pred_region
          %s248 = smul.u32 144, %s18
          %p249 = scmp.lt.s32.totalorder %s17, 2
          %s250 = scalar_select %p249, %s17, 2
          %p251 = scmp.lt.s32.totalorder %s248, 431
          %s252 = scalar_select %p251, %s248, 431
          %s253 = smul.addr %s250, 432
          %s254 = sadd.s32 %s252, %s253
          %s255 = smul.addr %s254, 4
          %s256 = scalar_lea.vmem %s1, %s255
          %s257 = smul.u32 144, %s18
        $region50: #{molvis_gnn_forward.8} parent=19 // pred_fallthru
          _
        // Predicated region
        $region51: #{molvis_gnn_forward.8} parent=19 // pred_check
          %p258 = pneg %p98
        $region52: #{molvis_gnn_forward.8} parent=19 // pred_check_branch
          %260 = sbr.rel (%p258) target = $region54
        $region53: #{molvis_gnn_forward.8} parent=19 // pred_region
          %p261 = scmp.lt.s32.totalorder %s17, 2
          %s262 = scalar_select %p261, %s17, 2
          %s263 = scalar_lea.vmem %s2, %s262
        $region54: #{molvis_gnn_forward.8} parent=19 // pred_fallthru
          _
      $region20: #{molvis_gnn_forward.8} parent=5 // pred_fallthru
        _
      %p264 = scmp.le.s32.totalorder 1, %s10
      %p265 = scmp.lt.s32.totalorder %s10, 10
      %p266 = pnand %p264, %p265
      %p267 = pneg %p266
      // Predicated region
      $region55: #{molvis_gnn_forward.8} parent=5 // pred_check
        _
      $region56: #{molvis_gnn_forward.8} parent=5 // pred_check_branch
        %269 = sbr.rel (%p266) target = $region58
      $region57: #{molvis_gnn_forward.8} parent=5 // pred_region
        %s270 = ssub.s32 %s10, 1
        %s271 = sand.u32 %s37, 1
        %s272 = sand.u32 %s37, 1
        %s273 = smul.addr %s272, 144
        %s274 = scalar_lea.vmem [#allocation3], %s273
        // Predicated region
        $region59: #{molvis_gnn_forward.8} parent=57 // pred_check
          %p275 = pneg %p50
        $region60: #{molvis_gnn_forward.8} parent=57 // pred_check_branch
          %277 = sbr.rel (%p275) target = $region62
        $region61: #{molvis_gnn_forward.8} parent=57 // pred_region
          _
        $region62: #{molvis_gnn_forward.8} parent=57 // pred_fallthru
          _
        %s278 = sand.u32 %s37, 1
        %s279 = sand.u32 %s37, 1
        %s280 = smul.addr %s279, 144
        %s281 = scalar_lea.vmem [#allocation3], %s280
        %p282 = pneg %p50
        %p283 = pneg %p47
        %s284 = smul.u32 144, %s20
        %p285 = scmp.lt.s32.totalorder %s19, 2
        %s286 = scalar_select %p285, %s19, 2
        %p287 = scmp.lt.s32.totalorder %s284, 431
        %s288 = scalar_select %p287, %s284, 431
        %s289 = smul.addr %s286, 432
        %s290 = sadd.s32 %s288, %s289
        %s291 = smul.addr %s290, 4
        %s292 = scalar_lea.vmem %s1, %s291
        %p293 = pneg %p78
        %p294 = pneg %p75
        %p295 = scmp.lt.s32.totalorder %s19, 2
        %s296 = scalar_select %p295, %s19, 2
        %s297 = scalar_lea.vmem %s2, %s296
        %p298 = pneg %p104
        %p299 = pneg %p101
        %p300 = pneg %p125
        %p301 = pneg %p122
        %p302 = pneg %p146
        %p303 = pneg %p143
        %s304 = smul.u32 9, %s20
        %s305 = smul.u32 144, %s20
        %p306 = scmp.lt.s32.totalorder %s19, 2
        %s307 = scalar_select %p306, %s19, 2
        %p308 = scmp.lt.s32.totalorder %s305, 431
        %s309 = scalar_select %p308, %s305, 431
        %s310 = smul.addr %s307, 432
        %s311 = sadd.s32 %s309, %s310
        %s312 = smul.addr %s311, 4
        %s313 = scalar_lea.vmem %s1, %s312
        %s314 = smul.u32 144, %s20
        %p315 = scmp.lt.s32.totalorder %s19, 2
        %s316 = scalar_select %p315, %s19, 2
        %s317 = scalar_lea.vmem %s2, %s316
        %p318 = scmp.eq.s32.totalorder %s19, 0
        %p319 = scmp.eq.s32.totalorder %s20, 0
        %p320 = pnand %p318, %p319
        %p321 = pneg %p320
        // Predicated region
        $region63: #{molvis_gnn_forward.8} parent=57 // pred_check
          _
        $region64: #{molvis_gnn_forward.8} parent=57 // pred_check_branch
          %323 = sbr.rel (%p320) target = $region66
        $region65: #{molvis_gnn_forward.8} parent=57 // pred_region
          %vm324 = vcmask 519168
          %325 = vst.msk [vmem:[%s4] sm:$0xf] %vm324, 0.0
        $region66: #{molvis_gnn_forward.8} parent=57 // pred_fallthru
          _
        // Predicated region
        $region67: #{molvis_gnn_forward.8} parent=57 // pred_check
          %p326 = pneg %p319
        $region68: #{molvis_gnn_forward.8} parent=57 // pred_check_branch
          %328 = sbr.rel (%p326) target = $region70
        $region69: #{molvis_gnn_forward.8} parent=57 // pred_region
          %vm329 = vcmask 523264
          %330 = vst.msk [vmem:[#allocation2] sm:$0xff] %vm329, 0.0
          %331 = vst.msk [vmem:[#allocation2 + $0x8] sm:$0xff] %vm329, 0.0
          %332 = vst.msk [vmem:[#allocation2 + $0x10] sm:$0xff] %vm329, 0.0
          %333 = vst.msk [vmem:[#allocation2 + $0x18] sm:$0xff] %vm329, 0.0
        $region70: #{molvis_gnn_forward.8} parent=57 // pred_fallthru
          _
        %v334 = vld [vmem:[#allocation2] sm:$0xff]
        %v335 = vld [vmem:[#allocation2 + $0x8] sm:$0xff]
        %v336 = vld [vmem:[#allocation2 + $0x10] sm:$0xff]
        %v337 = vld [vmem:[#allocation2 + $0x18] sm:$0xff]
        %v338 = vld [vmem:[%s274] sm:$0xff]
        %v339 = vld [vmem:[%s274 + $0x8] sm:$0xff]
        %v340 = vld [vmem:[%s274 + $0x10] sm:$0xff]
        %v341 = vld [vmem:[%s274 + $0x18] sm:$0xff]
        %v342 = vld [vmem:[%s274 + $0x20] sm:$0xf]
        %v343 = vld [vmem:[%s274 + $0x24] sm:$0xff]
        %v344 = vld [vmem:[%s274 + $0x2c] sm:$0xff]
        %v345 = vld [vmem:[%s274 + $0x34] sm:$0xff]
        %v346 = vld [vmem:[%s274 + $0x3c] sm:$0xff]
        %v347 = vld [vmem:[%s274 + $0x44] sm:$0xf]
        %v348 = vld [vmem:[%s274 + $0x48] sm:$0xff]
        %v349 = vld [vmem:[%s274 + $0x50] sm:$0xff]
        %v350 = vld [vmem:[%s274 + $0x58] sm:$0xff]
        %v351 = vld [vmem:[%s274 + $0x60] sm:$0xff]
        %v352 = vld [vmem:[%s274 + $0x68] sm:$0xf]
        %v353 = vld [vmem:[%s274 + $0x6c] sm:$0xff]
        %v354 = vld [vmem:[%s274 + $0x74] sm:$0xff]
        %v355 = vld [vmem:[%s274 + $0x7c] sm:$0xff]
        %v356 = vld [vmem:[%s274 + $0x84] sm:$0xff]
        %v357 = vld [vmem:[%s274 + $0x8c] sm:$0xf]
        %v358 = vld [vmem:[%s313] sm:$0xf]
        %v359 = vld [vmem:[%s313 + $0x4] sm:$0xf]
        %v360 = vld [vmem:[%s313 + $0x8] sm:$0xf]
        %v361 = vld [vmem:[%s313 + $0xc] sm:$0xf]
        %v362 = vld [vmem:[%s313 + $0x10] sm:$0xf]
        %v363 = vld [vmem:[%s313 + $0x14] sm:$0xf]
        %v364 = vld [vmem:[%s313 + $0x18] sm:$0xf]
        %v365 = vld [vmem:[%s313 + $0x1c] sm:$0xf]
        %v366 = vld [vmem:[%s313 + $0x20] sm:$0xf]
        %v367 = vld [vmem:[%s313 + $0x24] sm:$0xf]
        %v368 = vld [vmem:[%s313 + $0x28] sm:$0xf]
        %v369 = vld [vmem:[%s313 + $0x2c] sm:$0xf]
        %v370 = vld [vmem:[%s313 + $0x30] sm:$0xf]
        %v371 = vld [vmem:[%s313 + $0x34] sm:$0xf]
        %v372 = vld [vmem:[%s313 + $0x38] sm:$0xf]
        %v373 = vld [vmem:[%s313 + $0x3c] sm:$0xf]
        %v374 = vld [vmem:[%s313 + $0x40] sm:$0xf]
        %v375 = vld [vmem:[%s313 + $0x44] sm:$0xf]
        %v376 = vld [vmem:[%s313 + $0x48] sm:$0xf]
        %v377 = vld [vmem:[%s313 + $0x4c] sm:$0xf]
        %v378 = vld [vmem:[%s313 + $0x50] sm:$0xf]
        %v379 = vld [vmem:[%s313 + $0x54] sm:$0xf]
        %v380 = vld [vmem:[%s313 + $0x58] sm:$0xf]
        %v381 = vld [vmem:[%s313 + $0x5c] sm:$0xf]
        %v382 = vld [vmem:[%s313 + $0x60] sm:$0xf]
        %v383 = vld [vmem:[%s313 + $0x64] sm:$0xf]
        %v384 = vld [vmem:[%s313 + $0x68] sm:$0xf]
        %v385 = vld [vmem:[%s313 + $0x6c] sm:$0xf]
        %v386 = vld [vmem:[%s313 + $0x70] sm:$0xf]
        %v387 = vld [vmem:[%s313 + $0x74] sm:$0xf]
        %v388 = vld [vmem:[%s313 + $0x78] sm:$0xf]
        %v389 = vld [vmem:[%s313 + $0x7c] sm:$0xf]
        %v390 = vld [vmem:[%s313 + $0x80] sm:$0xf]
        %v391 = vld [vmem:[%s313 + $0x84] sm:$0xf]
        %v392 = vld [vmem:[%s313 + $0x88] sm:$0xf]
        %v393 = vld [vmem:[%s313 + $0x8c] sm:$0xf]
        %v394 = vld [vmem:[%s313 + $0x90] sm:$0xf]
        %v395 = vld [vmem:[%s313 + $0x94] sm:$0xf]
        %v396 = vld [vmem:[%s313 + $0x98] sm:$0xf]
        %v397 = vld [vmem:[%s313 + $0x9c] sm:$0xf]
        %v398 = vld [vmem:[%s313 + $0xa0] sm:$0xf]
        %v399 = vld [vmem:[%s313 + $0xa4] sm:$0xf]
        %v400 = vld [vmem:[%s313 + $0xa8] sm:$0xf]
        %v401 = vld [vmem:[%s313 + $0xac] sm:$0xf]
        %v402 = vld [vmem:[%s313 + $0xb0] sm:$0xf]
        %v403 = vld [vmem:[%s313 + $0xb4] sm:$0xf]
        %v404 = vld [vmem:[%s313 + $0xb8] sm:$0xf]
        %v405 = vld [vmem:[%s313 + $0xbc] sm:$0xf]
        %v406 = vld [vmem:[%s313 + $0xc0] sm:$0xf]
        %v407 = vld [vmem:[%s313 + $0xc4] sm:$0xf]
        %v408 = vld [vmem:[%s313 + $0xc8] sm:$0xf]
        %v409 = vld [vmem:[%s313 + $0xcc] sm:$0xf]
        %v410 = vld [vmem:[%s313 + $0xd0] sm:$0xf]
        %v411 = vld [vmem:[%s313 + $0xd4] sm:$0xf]
        %v412 = vld [vmem:[%s313 + $0xd8] sm:$0xf]
        %v413 = vld [vmem:[%s313 + $0xdc] sm:$0xf]
        %v414 = vld [vmem:[%s313 + $0xe0] sm:$0xf]
        %v415 = vld [vmem:[%s313 + $0xe4] sm:$0xf]
        %v416 = vld [vmem:[%s313 + $0xe8] sm:$0xf]
        %v417 = vld [vmem:[%s313 + $0xec] sm:$0xf]
        %v418 = vld [vmem:[%s313 + $0xf0] sm:$0xf]
        %v419 = vld [vmem:[%s313 + $0xf4] sm:$0xf]
        %v420 = vld [vmem:[%s313 + $0xf8] sm:$0xf]
        %v421 = vld [vmem:[%s313 + $0xfc] sm:$0xf]
        %v422 = vld [vmem:[%s313 + $0x100] sm:$0xf]
        %v423 = vld [vmem:[%s313 + $0x104] sm:$0xf]
        %v424 = vld [vmem:[%s313 + $0x108] sm:$0xf]
        %v425 = vld [vmem:[%s313 + $0x10c] sm:$0xf]
        %v426 = vld [vmem:[%s313 + $0x110] sm:$0xf]
        %v427 = vld [vmem:[%s313 + $0x114] sm:$0xf]
        %v428 = vld [vmem:[%s313 + $0x118] sm:$0xf]
        %v429 = vld [vmem:[%s313 + $0x11c] sm:$0xf]
        %v430 = vld [vmem:[%s313 + $0x120] sm:$0xf]
        %v431 = vld [vmem:[%s313 + $0x124] sm:$0xf]
        %v432 = vld [vmem:[%s313 + $0x128] sm:$0xf]
        %v433 = vld [vmem:[%s313 + $0x12c] sm:$0xf]
        %v434 = vld [vmem:[%s313 + $0x130] sm:$0xf]
        %v435 = vld [vmem:[%s313 + $0x134] sm:$0xf]
        %v436 = vld [vmem:[%s313 + $0x138] sm:$0xf]
        %v437 = vld [vmem:[%s313 + $0x13c] sm:$0xf]
        %v438 = vld [vmem:[%s313 + $0x140] sm:$0xf]
        %v439 = vld [vmem:[%s313 + $0x144] sm:$0xf]
        %v440 = vld [vmem:[%s313 + $0x148] sm:$0xf]
        %v441 = vld [vmem:[%s313 + $0x14c] sm:$0xf]
        %v442 = vld [vmem:[%s313 + $0x150] sm:$0xf]
        %v443 = vld [vmem:[%s313 + $0x154] sm:$0xf]
        %v444 = vld [vmem:[%s313 + $0x158] sm:$0xf]
        %v445 = vld [vmem:[%s313 + $0x15c] sm:$0xf]
        %v446 = vld [vmem:[%s313 + $0x160] sm:$0xf]
        %v447 = vld [vmem:[%s313 + $0x164] sm:$0xf]
        %v448 = vld [vmem:[%s313 + $0x168] sm:$0xf]
        %v449 = vld [vmem:[%s313 + $0x16c] sm:$0xf]
        %v450 = vld [vmem:[%s313 + $0x170] sm:$0xf]
        %v451 = vld [vmem:[%s313 + $0x174] sm:$0xf]
        %v452 = vld [vmem:[%s313 + $0x178] sm:$0xf]
        %v453 = vld [vmem:[%s313 + $0x17c] sm:$0xf]
        %v454 = vld [vmem:[%s313 + $0x180] sm:$0xf]
        %v455 = vld [vmem:[%s313 + $0x184] sm:$0xf]
        %v456 = vld [vmem:[%s313 + $0x188] sm:$0xf]
        %v457 = vld [vmem:[%s313 + $0x18c] sm:$0xf]
        %v458 = vld [vmem:[%s313 + $0x190] sm:$0xf]
        %v459 = vld [vmem:[%s313 + $0x194] sm:$0xf]
        %v460 = vld [vmem:[%s313 + $0x198] sm:$0xf]
        %v461 = vld [vmem:[%s313 + $0x19c] sm:$0xf]
        %v462 = vld [vmem:[%s313 + $0x1a0] sm:$0xf]
        %v463 = vld [vmem:[%s313 + $0x1a4] sm:$0xf]
        %v464 = vld [vmem:[%s313 + $0x1a8] sm:$0xf]
        %v465 = vld [vmem:[%s313 + $0x1ac] sm:$0xf]
        %v466 = vld [vmem:[%s313 + $0x1b0] sm:$0xf]
        %v467 = vld [vmem:[%s313 + $0x1b4] sm:$0xf]
        %v468 = vld [vmem:[%s313 + $0x1b8] sm:$0xf]
        %v469 = vld [vmem:[%s313 + $0x1bc] sm:$0xf]
        %v470 = vld [vmem:[%s313 + $0x1c0] sm:$0xf]
        %v471 = vld [vmem:[%s313 + $0x1c4] sm:$0xf]
        %v472 = vld [vmem:[%s313 + $0x1c8] sm:$0xf]
        %v473 = vld [vmem:[%s313 + $0x1cc] sm:$0xf]
        %v474 = vld [vmem:[%s313 + $0x1d0] sm:$0xf]
        %v475 = vld [vmem:[%s313 + $0x1d4] sm:$0xf]
        %v476 = vld [vmem:[%s313 + $0x1d8] sm:$0xf]
        %v477 = vld [vmem:[%s313 + $0x1dc] sm:$0xf]
        %v478 = vld [vmem:[%s313 + $0x1e0] sm:$0xf]
        %v479 = vld [vmem:[%s313 + $0x1e4] sm:$0xf]
        %v480 = vld [vmem:[%s313 + $0x1e8] sm:$0xf]
        %v481 = vld [vmem:[%s313 + $0x1ec] sm:$0xf]
        %v482 = vld [vmem:[%s313 + $0x1f0] sm:$0xf]
        %v483 = vld [vmem:[%s313 + $0x1f4] sm:$0xf]
        %v484 = vld [vmem:[%s313 + $0x1f8] sm:$0xf]
        %v485 = vld [vmem:[%s313 + $0x1fc] sm:$0xf]
        %v486 = vld [vmem:[%s313 + $0x200] sm:$0xf]
        %v487 = vld [vmem:[%s313 + $0x204] sm:$0xf]
        %v488 = vld [vmem:[%s313 + $0x208] sm:$0xf]
        %v489 = vld [vmem:[%s313 + $0x20c] sm:$0xf]
        %v490 = vld [vmem:[%s313 + $0x210] sm:$0xf]
        %v491 = vld [vmem:[%s313 + $0x214] sm:$0xf]
        %v492 = vld [vmem:[%s313 + $0x218] sm:$0xf]
        %v493 = vld [vmem:[%s313 + $0x21c] sm:$0xf]
        %v494 = vld [vmem:[%s313 + $0x220] sm:$0xf]
        %v495 = vld [vmem:[%s313 + $0x224] sm:$0xf]
        %v496 = vld [vmem:[%s313 + $0x228] sm:$0xf]
        %v497 = vld [vmem:[%s313 + $0x22c] sm:$0xf]
        %v498 = vld [vmem:[%s313 + $0x230] sm:$0xf]
        %v499 = vld [vmem:[%s313 + $0x234] sm:$0xf]
        %v500 = vld [vmem:[%s313 + $0x238] sm:$0xf]
        %v501 = vld [vmem:[%s313 + $0x23c] sm:$0xf]
        %v522 = vunpack.c.l.b16 %v338
        %v523 = vunpack.c.h.b16 %v338
        %v524 = vunpack.c.l.b16 %v339
        %v525 = vunpack.c.h.b16 %v339
        %v526 = vunpack.c.l.b16 %v340
        %v527 = vunpack.c.h.b16 %v340
        %v528 = vunpack.c.l.b16 %v341
        %v529 = vunpack.c.h.b16 %v341
        %v530 = vunpack.c.l.b16 %v342
        %v531 = vunpack.c.l.b16 %v343
        %v532 = vunpack.c.h.b16 %v343
        %v533 = vunpack.c.l.b16 %v344
        %v534 = vunpack.c.h.b16 %v344
        %v535 = vunpack.c.l.b16 %v345
        %v536 = vunpack.c.h.b16 %v345
        %v537 = vunpack.c.l.b16 %v346
        %v538 = vunpack.c.h.b16 %v346
        %v539 = vunpack.c.l.b16 %v347
        %v540 = vunpack.c.l.b16 %v348
        %v541 = vunpack.c.h.b16 %v348
        %v542 = vunpack.c.l.b16 %v349
        %v543 = vunpack.c.h.b16 %v349
        %v544 = vunpack.c.l.b16 %v350
        %v545 = vunpack.c.h.b16 %v350
        %v546 = vunpack.c.l.b16 %v351
        %v547 = vunpack.c.h.b16 %v351
        %v548 = vunpack.c.l.b16 %v352
        %v549 = vunpack.c.l.b16 %v353
        %v550 = vunpack.c.h.b16 %v353
        %v551 = vunpack.c.l.b16 %v354
        %v552 = vunpack.c.h.b16 %v354
        %v553 = vunpack.c.l.b16 %v355
        %v554 = vunpack.c.h.b16 %v355
        %v555 = vunpack.c.l.b16 %v356
        %v556 = vunpack.c.h.b16 %v356
        %v557 = vunpack.c.l.b16 %v357
        %v558 = vpack.c.b16 %v531, %v522
        %v559 = vpack.c.b16 %v532, %v523
        %v560 = vpack.c.b16 %v533, %v524
        %v561 = vpack.c.b16 %v534, %v525
        %v562 = vpack.c.b16 %v535, %v526
        %v563 = vpack.c.b16 %v536, %v527
        %v564 = vpack.c.b16 %v537, %v528
        %v565 = vpack.c.b16 %v538, %v529
        %v566 = vpack.c.b16 %v539, %v530
        %v567 = vpack.c.b16 %v549, %v540
        %v568 = vpack.c.b16 %v550, %v541
        %v569 = vpack.c.b16 %v551, %v542
        %v570 = vpack.c.b16 %v552, %v543
        %v571 = vpack.c.b16 %v553, %v544
        %v572 = vpack.c.b16 %v554, %v545
        %v573 = vpack.c.b16 %v555, %v546
        %v574 = vpack.c.b16 %v556, %v547
        %v575 = vpack.c.b16 %v557, %v548
        %v738 = vunpack.c.l.b16 %v358
        %v739 = vunpack.c.l.b16 %v359
        %v740 = vunpack.c.l.b16 %v360
        %v741 = vunpack.c.l.b16 %v361
        %v742 = vunpack.c.l.b16 %v362
        %v743 = vunpack.c.l.b16 %v363
        %v744 = vunpack.c.l.b16 %v364
        %v745 = vunpack.c.l.b16 %v365
        %v746 = vunpack.c.l.b16 %v366
        %v747 = vunpack.c.l.b16 %v367
        %v748 = vunpack.c.l.b16 %v368
        %v749 = vunpack.c.l.b16 %v369
        %v750 = vunpack.c.l.b16 %v370
        %v751 = vunpack.c.l.b16 %v371
        %v752 = vunpack.c.l.b16 %v372
        %v753 = vunpack.c.l.b16 %v373
        %v754 = vunpack.c.l.b16 %v374
        %v755 = vunpack.c.l.b16 %v375
        %v756 = vunpack.c.l.b16 %v376
        %v757 = vunpack.c.l.b16 %v377
        %v758 = vunpack.c.l.b16 %v378
        %v759 = vunpack.c.l.b16 %v379
        %v760 = vunpack.c.l.b16 %v380
        %v761 = vunpack.c.l.b16 %v381
        %v762 = vunpack.c.l.b16 %v382
        %v763 = vunpack.c.l.b16 %v383
        %v764 = vunpack.c.l.b16 %v384
        %v765 = vunpack.c.l.b16 %v385
        %v766 = vunpack.c.l.b16 %v386
        %v767 = vunpack.c.l.b16 %v387
        %v768 = vunpack.c.l.b16 %v388
        %v769 = vunpack.c.l.b16 %v389
        %v770 = vunpack.c.l.b16 %v390
        %v771 = vunpack.c.l.b16 %v391
        %v772 = vunpack.c.l.b16 %v392
        %v773 = vunpack.c.l.b16 %v393
        %v774 = vunpack.c.l.b16 %v394
        %v775 = vunpack.c.l.b16 %v395
        %v776 = vunpack.c.l.b16 %v396
        %v777 = vunpack.c.l.b16 %v397
        %v778 = vunpack.c.l.b16 %v398
        %v779 = vunpack.c.l.b16 %v399
        %v780 = vunpack.c.l.b16 %v400
        %v781 = vunpack.c.l.b16 %v401
        %v782 = vunpack.c.l.b16 %v402
        %v783 = vunpack.c.l.b16 %v403
        %v784 = vunpack.c.l.b16 %v404
        %v785 = vunpack.c.l.b16 %v405
        %v786 = vunpack.c.l.b16 %v406
        %v787 = vunpack.c.l.b16 %v407
        %v788 = vunpack.c.l.b16 %v408
        %v789 = vunpack.c.l.b16 %v409
        %v790 = vunpack.c.l.b16 %v410
        %v791 = vunpack.c.l.b16 %v411
        %v792 = vunpack.c.l.b16 %v412
        %v793 = vunpack.c.l.b16 %v413
        %v794 = vunpack.c.l.b16 %v414
        %v795 = vunpack.c.l.b16 %v415
        %v796 = vunpack.c.l.b16 %v416
        %v797 = vunpack.c.l.b16 %v417
        %v798 = vunpack.c.l.b16 %v418
        %v799 = vunpack.c.l.b16 %v419
        %v800 = vunpack.c.l.b16 %v420
        %v801 = vunpack.c.l.b16 %v421
        %v802 = vunpack.c.l.b16 %v422
        %v803 = vunpack.c.l.b16 %v423
        %v804 = vunpack.c.l.b16 %v424
        %v805 = vunpack.c.l.b16 %v425
        %v806 = vunpack.c.l.b16 %v426
        %v807 = vunpack.c.l.b16 %v427
        %v808 = vunpack.c.l.b16 %v428
        %v809 = vunpack.c.l.b16 %v429
        %v810 = vunpack.c.l.b16 %v430
        %v811 = vunpack.c.l.b16 %v431
        %v812 = vunpack.c.l.b16 %v432
        %v813 = vunpack.c.l.b16 %v433
        %v814 = vunpack.c.l.b16 %v434
        %v815 = vunpack.c.l.b16 %v435
        %v816 = vunpack.c.l.b16 %v436
        %v817 = vunpack.c.l.b16 %v437
        %v818 = vunpack.c.l.b16 %v438
        %v819 = vunpack.c.l.b16 %v439
        %v820 = vunpack.c.l.b16 %v440
        %v821 = vunpack.c.l.b16 %v441
        %v822 = vunpack.c.l.b16 %v442
        %v823 = vunpack.c.l.b16 %v443
        %v824 = vunpack.c.l.b16 %v444
        %v825 = vunpack.c.l.b16 %v445
        %v826 = vunpack.c.l.b16 %v446
        %v827 = vunpack.c.l.b16 %v447
        %v828 = vunpack.c.l.b16 %v448
        %v829 = vunpack.c.l.b16 %v449
        %v830 = vunpack.c.l.b16 %v450
        %v831 = vunpack.c.l.b16 %v451
        %v832 = vunpack.c.l.b16 %v452
        %v833 = vunpack.c.l.b16 %v453
        %v834 = vunpack.c.l.b16 %v454
        %v835 = vunpack.c.l.b16 %v455
        %v836 = vunpack.c.l.b16 %v456
        %v837 = vunpack.c.l.b16 %v457
        %v838 = vunpack.c.l.b16 %v458
        %v839 = vunpack.c.l.b16 %v459
        %v840 = vunpack.c.l.b16 %v460
        %v841 = vunpack.c.l.b16 %v461
        %v842 = vunpack.c.l.b16 %v462
        %v843 = vunpack.c.l.b16 %v463
        %v844 = vunpack.c.l.b16 %v464
        %v845 = vunpack.c.l.b16 %v465
        %v846 = vunpack.c.l.b16 %v466
        %v847 = vunpack.c.l.b16 %v467
        %v848 = vunpack.c.l.b16 %v468
        %v849 = vunpack.c.l.b16 %v469
        %v850 = vunpack.c.l.b16 %v470
        %v851 = vunpack.c.l.b16 %v471
        %v852 = vunpack.c.l.b16 %v472
        %v853 = vunpack.c.l.b16 %v473
        %v854 = vunpack.c.l.b16 %v474
        %v855 = vunpack.c.l.b16 %v475
        %v856 = vunpack.c.l.b16 %v476
        %v857 = vunpack.c.l.b16 %v477
        %v858 = vunpack.c.l.b16 %v478
        %v859 = vunpack.c.l.b16 %v479
        %v860 = vunpack.c.l.b16 %v480
        %v861 = vunpack.c.l.b16 %v481
        %v862 = vunpack.c.l.b16 %v482
        %v863 = vunpack.c.l.b16 %v483
        %v864 = vunpack.c.l.b16 %v484
        %v865 = vunpack.c.l.b16 %v485
        %v866 = vunpack.c.l.b16 %v486
        %v867 = vunpack.c.l.b16 %v487
        %v868 = vunpack.c.l.b16 %v488
        %v869 = vunpack.c.l.b16 %v489
        %v870 = vunpack.c.l.b16 %v490
        %v871 = vunpack.c.l.b16 %v491
        %v872 = vunpack.c.l.b16 %v492
        %v873 = vunpack.c.l.b16 %v493
        %v874 = vunpack.c.l.b16 %v494
        %v875 = vunpack.c.l.b16 %v495
        %v876 = vunpack.c.l.b16 %v496
        %v877 = vunpack.c.l.b16 %v497
        %v878 = vunpack.c.l.b16 %v498
        %v879 = vunpack.c.l.b16 %v499
        %v880 = vunpack.c.l.b16 %v500
        %v881 = vunpack.c.l.b16 %v501
        %v882 = vpack.c.b16 %v739, %v738
        %v883 = vpack.c.b16 %v741, %v740
        %v884 = vpack.c.b16 %v743, %v742
        %v885 = vpack.c.b16 %v745, %v744
        %v886 = vpack.c.b16 %v747, %v746
        %v887 = vpack.c.b16 %v749, %v748
        %v888 = vpack.c.b16 %v751, %v750
        %v889 = vpack.c.b16 %v753, %v752
        %v890 = vpack.c.b16 %v755, %v754
        %v891 = vpack.c.b16 %v757, %v756
        %v892 = vpack.c.b16 %v759, %v758
        %v893 = vpack.c.b16 %v761, %v760
        %v894 = vpack.c.b16 %v763, %v762
        %v895 = vpack.c.b16 %v765, %v764
        %v896 = vpack.c.b16 %v767, %v766
        %v897 = vpack.c.b16 %v769, %v768
        %v898 = vpack.c.b16 %v771, %v770
        %v899 = vpack.c.b16 %v773, %v772
        %v900 = vpack.c.b16 %v775, %v774
        %v901 = vpack.c.b16 %v777, %v776
        %v902 = vpack.c.b16 %v779, %v778
        %v903 = vpack.c.b16 %v781, %v780
        %v904 = vpack.c.b16 %v783, %v782
        %v905 = vpack.c.b16 %v785, %v784
        %v906 = vpack.c.b16 %v787, %v786
        %v907 = vpack.c.b16 %v789, %v788
        %v908 = vpack.c.b16 %v791, %v790
        %v909 = vpack.c.b16 %v793, %v792
        %v910 = vpack.c.b16 %v795, %v794
        %v911 = vpack.c.b16 %v797, %v796
        %v912 = vpack.c.b16 %v799, %v798
        %v913 = vpack.c.b16 %v801, %v800
        %v914 = vpack.c.b16 %v803, %v802
        %v915 = vpack.c.b16 %v805, %v804
        %v916 = vpack.c.b16 %v807, %v806
        %v917 = vpack.c.b16 %v809, %v808
        %v918 = vpack.c.b16 %v811, %v810
        %v919 = vpack.c.b16 %v813, %v812
        %v920 = vpack.c.b16 %v815, %v814
        %v921 = vpack.c.b16 %v817, %v816
        %v922 = vpack.c.b16 %v819, %v818
        %v923 = vpack.c.b16 %v821, %v820
        %v924 = vpack.c.b16 %v823, %v822
        %v925 = vpack.c.b16 %v825, %v824
        %v926 = vpack.c.b16 %v827, %v826
        %v927 = vpack.c.b16 %v829, %v828
        %v928 = vpack.c.b16 %v831, %v830
        %v929 = vpack.c.b16 %v833, %v832
        %v930 = vpack.c.b16 %v835, %v834
        %v931 = vpack.c.b16 %v837, %v836
        %v932 = vpack.c.b16 %v839, %v838
        %v933 = vpack.c.b16 %v841, %v840
        %v934 = vpack.c.b16 %v843, %v842
        %v935 = vpack.c.b16 %v845, %v844
        %v936 = vpack.c.b16 %v847, %v846
        %v937 = vpack.c.b16 %v849, %v848
        %v938 = vpack.c.b16 %v851, %v850
        %v939 = vpack.c.b16 %v853, %v852
        %v940 = vpack.c.b16 %v855, %v854
        %v941 = vpack.c.b16 %v857, %v856
        %v942 = vpack.c.b16 %v859, %v858
        %v943 = vpack.c.b16 %v861, %v860
        %v944 = vpack.c.b16 %v863, %v862
        %v945 = vpack.c.b16 %v865, %v864
        %v946 = vpack.c.b16 %v867, %v866
        %v947 = vpack.c.b16 %v869, %v868
        %v948 = vpack.c.b16 %v871, %v870
        %v949 = vpack.c.b16 %v873, %v872
        %v950 = vpack.c.b16 %v875, %v874
        %v951 = vpack.c.b16 %v877, %v876
        %v952 = vpack.c.b16 %v879, %v878
        %v953 = vpack.c.b16 %v881, %v880
        %1026 = vmatpush.bf16.msra.mxu0 %v889
        %1027 = vmatpush.bf16.msra.mxu0 %v888
        %1028 = vmatpush.bf16.msra.mxu0 %v887
        %1029 = vmatpush.bf16.msra.mxu0 %v886
        %1030 = vmatpush.bf16.msra.mxu0 %v885
        %1031 = vmatpush.bf16.msra.mxu0 %v884
        %1032 = vmatpush.bf16.msra.mxu0 %v883
        %1033 = vmatpush.bf16.msra.mxu0 %v882
        %1034 = vmatmul.bf16.gmra.mxu0 %v558
        %v1035 = vpop.f32.mrf.mxu0
        %v1036 = vadd.f32 0.0, %v1035
        %v1037 = vpop.f32.mrf.mxu0
        %v1038 = vadd.f32 0.0, %v1037
        %1039 = vmatmul.bf16.gmra.mxu0 %v567
        %v1040 = vpop.f32.mrf.mxu0
        %v1041 = vadd.f32 0.0, %v1040
        %v1042 = vpop.f32.mrf.mxu0
        %v1043 = vadd.f32 0.0, %v1042
        %1044 = vdwg.mxu0
        %1045 = vmatpush.bf16.msra.mxu0 %v897
        %1046 = vmatpush.bf16.msra.mxu0 %v896
        %1047 = vmatpush.bf16.msra.mxu0 %v895
        %1048 = vmatpush.bf16.msra.mxu0 %v894
        %1049 = vmatpush.bf16.msra.mxu0 %v893
        %1050 = vmatpush.bf16.msra.mxu0 %v892
        %1051 = vmatpush.bf16.msra.mxu0 %v891
        %1052 = vmatpush.bf16.msra.mxu0 %v890
        %1053 = vmatmul.bf16.gmra.mxu0 %v559
        %v1054 = vpop.f32.mrf.mxu0
        %v1055 = vadd.f32 %v1036, %v1054
        %v1056 = vpop.f32.mrf.mxu0
        %v1057 = vadd.f32 %v1038, %v1056
        %1058 = vmatmul.bf16.gmra.mxu0 %v568
        %v1059 = vpop.f32.mrf.mxu0
        %v1060 = vadd.f32 %v1041, %v1059
        %v1061 = vpop.f32.mrf.mxu0
        %v1062 = vadd.f32 %v1043, %v1061
        %1063 = vdwg.mxu0
        %1064 = vmatpush.bf16.msra.mxu0 %v905
        %1065 = vmatpush.bf16.msra.mxu0 %v904
        %1066 = vmatpush.bf16.msra.mxu0 %v903
        %1067 = vmatpush.bf16.msra.mxu0 %v902
        %1068 = vmatpush.bf16.msra.mxu0 %v901
        %1069 = vmatpush.bf16.msra.mxu0 %v900
        %1070 = vmatpush.bf16.msra.mxu0 %v899
        %1071 = vmatpush.bf16.msra.mxu0 %v898
        %1072 = vmatmul.bf16.gmra.mxu0 %v560
        %v1073 = vpop.f32.mrf.mxu0
        %v1074 = vadd.f32 %v1055, %v1073
        %v1075 = vpop.f32.mrf.mxu0
        %v1076 = vadd.f32 %v1057, %v1075
        %1077 = vmatmul.bf16.gmra.mxu0 %v569
        %v1078 = vpop.f32.mrf.mxu0
        %v1079 = vadd.f32 %v1060, %v1078
        %v1080 = vpop.f32.mrf.mxu0
        %v1081 = vadd.f32 %v1062, %v1080
        %1082 = vdwg.mxu0
        %1083 = vmatpush.bf16.msra.mxu0 %v913
        %1084 = vmatpush.bf16.msra.mxu0 %v912
        %1085 = vmatpush.bf16.msra.mxu0 %v911
        %1086 = vmatpush.bf16.msra.mxu0 %v910
        %1087 = vmatpush.bf16.msra.mxu0 %v909
        %1088 = vmatpush.bf16.msra.mxu0 %v908
        %1089 = vmatpush.bf16.msra.mxu0 %v907
        %1090 = vmatpush.bf16.msra.mxu0 %v906
        %1091 = vmatmul.bf16.gmra.mxu0 %v561
        %v1092 = vpop.f32.mrf.mxu0
        %v1093 = vadd.f32 %v1074, %v1092
        %v1094 = vpop.f32.mrf.mxu0
        %v1095 = vadd.f32 %v1076, %v1094
        %1096 = vmatmul.bf16.gmra.mxu0 %v570
        %v1097 = vpop.f32.mrf.mxu0
        %v1098 = vadd.f32 %v1079, %v1097
        %v1099 = vpop.f32.mrf.mxu0
        %v1100 = vadd.f32 %v1081, %v1099
        %1101 = vdwg.mxu0
        %1102 = vmatpush.bf16.msra.mxu0 %v921
        %1103 = vmatpush.bf16.msra.mxu0 %v920
        %1104 = vmatpush.bf16.msra.mxu0 %v919
        %1105 = vmatpush.bf16.msra.mxu0 %v918
        %1106 = vmatpush.bf16.msra.mxu0 %v917
        %1107 = vmatpush.bf16.msra.mxu0 %v916
        %1108 = vmatpush.bf16.msra.mxu0 %v915
        %1109 = vmatpush.bf16.msra.mxu0 %v914
        %1110 = vmatmul.bf16.gmra.mxu0 %v562
        %v1111 = vpop.f32.mrf.mxu0
        %v1112 = vadd.f32 %v1093, %v1111
        %v1113 = vpop.f32.mrf.mxu0
        %v1114 = vadd.f32 %v1095, %v1113
        %1115 = vmatmul.bf16.gmra.mxu0 %v571
        %v1116 = vpop.f32.mrf.mxu0
        %v1117 = vadd.f32 %v1098, %v1116
        %v1118 = vpop.f32.mrf.mxu0
        %v1119 = vadd.f32 %v1100, %v1118
        %1120 = vdwg.mxu0
        %1121 = vmatpush.bf16.msra.mxu0 %v929
        %1122 = vmatpush.bf16.msra.mxu0 %v928
        %1123 = vmatpush.bf16.msra.mxu0 %v927
        %1124 = vmatpush.bf16.msra.mxu0 %v926
        %1125 = vmatpush.bf16.msra.mxu0 %v925
        %1126 = vmatpush.bf16.msra.mxu0 %v924
        %1127 = vmatpush.bf16.msra.mxu0 %v923
        %1128 = vmatpush.bf16.msra.mxu0 %v922
        %1129 = vmatmul.bf16.gmra.mxu0 %v563
        %v1130 = vpop.f32.mrf.mxu0
        %v1131 = vadd.f32 %v1112, %v1130
        %v1132 = vpop.f32.mrf.mxu0
        %v1133 = vadd.f32 %v1114, %v1132
        %1134 = vmatmul.bf16.gmra.mxu0 %v572
        %v1135 = vpop.f32.mrf.mxu0
        %v1136 = vadd.f32 %v1117, %v1135
        %v1137 = vpop.f32.mrf.mxu0
        %v1138 = vadd.f32 %v1119, %v1137
        %1139 = vdwg.mxu0
        %1140 = vmatpush.bf16.msra.mxu0 %v937
        %1141 = vmatpush.bf16.msra.mxu0 %v936
        %1142 = vmatpush.bf16.msra.mxu0 %v935
        %1143 = vmatpush.bf16.msra.mxu0 %v934
        %1144 = vmatpush.bf16.msra.mxu0 %v933
        %1145 = vmatpush.bf16.msra.mxu0 %v932
        %1146 = vmatpush.bf16.msra.mxu0 %v931
        %1147 = vmatpush.bf16.msra.mxu0 %v930
        %1148 = vmatmul.bf16.gmra.mxu0 %v564
        %v1149 = vpop.f32.mrf.mxu0
        %v1150 = vadd.f32 %v1131, %v1149
        %v1151 = vpop.f32.mrf.mxu0
        %v1152 = vadd.f32 %v1133, %v1151
        %1153 = vmatmul.bf16.gmra.mxu0 %v573
        %v1154 = vpop.f32.mrf.mxu0
        %v1155 = vadd.f32 %v1136, %v1154
        %v1156 = vpop.f32.mrf.mxu0
        %v1157 = vadd.f32 %v1138, %v1156
        %1158 = vdwg.mxu0
        %1159 = vmatpush.bf16.msra.mxu0 %v945
        %1160 = vmatpush.bf16.msra.mxu0 %v944
        %1161 = vmatpush.bf16.msra.mxu0 %v943
        %1162 = vmatpush.bf16.msra.mxu0 %v942
        %1163 = vmatpush.bf16.msra.mxu0 %v941
        %1164 = vmatpush.bf16.msra.mxu0 %v940
        %1165 = vmatpush.bf16.msra.mxu0 %v939
        %1166 = vmatpush.bf16.msra.mxu0 %v938
        %1167 = vmatmul.bf16.gmra.mxu0 %v565
        %v1168 = vpop.f32.mrf.mxu0
        %v1169 = vadd.f32 %v1150, %v1168
        %v1170 = vpop.f32.mrf.mxu0
        %v1171 = vadd.f32 %v1152, %v1170
        %1172 = vmatmul.bf16.gmra.mxu0 %v574
        %v1173 = vpop.f32.mrf.mxu0
        %v1174 = vadd.f32 %v1155, %v1173
        %v1175 = vpop.f32.mrf.mxu0
        %v1176 = vadd.f32 %v1157, %v1175
        %1177 = vdwg.mxu0
        %1178 = vmatpush.bf16.msra.mxu0 %v953
        %1179 = vmatpush.bf16.msra.mxu0 %v952
        %1180 = vmatpush.bf16.msra.mxu0 %v951
        %1181 = vmatpush.bf16.msra.mxu0 %v950
        %1182 = vmatpush.bf16.msra.mxu0 %v949
        %1183 = vmatpush.bf16.msra.mxu0 %v948
        %1184 = vmatpush.bf16.msra.mxu0 %v947
        %1185 = vmatpush.bf16.msra.mxu0 %v946
        %1186 = vmatmul.bf16.gmra.mxu0 %v566
        %v1187 = vpop.f32.mrf.mxu0
        %v1188 = vadd.f32 %v1169, %v1187
        %v1189 = vpop.f32.mrf.mxu0
        %v1190 = vadd.f32 %v1171, %v1189
        %1191 = vmatmul.bf16.gmra.mxu0 %v575
        %v1192 = vpop.f32.mrf.mxu0
        %v1193 = vadd.f32 %v1174, %v1192
        %v1194 = vpop.f32.mrf.mxu0
        %v1195 = vadd.f32 %v1176, %v1194
        %1196 = vdwg.mxu0
        %v1197 = vadd.f32 %v334, %v1188
        %v1198 = vadd.f32 %v335, %v1190
        %v1199 = vadd.f32 %v336, %v1193
        %v1200 = vadd.f32 %v337, %v1195
        %vm1201 = vcmask 523264
        %1202 = vst.msk [vmem:[#allocation2] sm:$0xff] %vm1201, %v1197
        %1203 = vst.msk [vmem:[#allocation2 + $0x8] sm:$0xff] %vm1201, %v1198
        %1204 = vst.msk [vmem:[#allocation2 + $0x10] sm:$0xff] %vm1201, %v1199
        %1205 = vst.msk [vmem:[#allocation2 + $0x18] sm:$0xff] %vm1201, %v1200
        %p1206 = scmp.eq.s32.totalorder %s20, 2
        // Predicated region
        $region71: #{molvis_gnn_forward.8} parent=57 // pred_check
          %p1207 = pneg %p1206
        $region72: #{molvis_gnn_forward.8} parent=57 // pred_check_branch
          %1209 = sbr.rel (%p1207) target = $region74
        $region73: #{molvis_gnn_forward.8} parent=57 // pred_region
          %v1210 = vld [vmem:[#allocation2] sm:$0xff]
          %v1211 = vld [vmem:[#allocation2 + $0x8] sm:$0xff]
          %v1212 = vld [vmem:[#allocation2 + $0x10] sm:$0xff]
          %v1213 = vld [vmem:[#allocation2 + $0x18] sm:$0xff]
          %v1214 = vld [vmem:[%s317] sm:$0x1]
          %v1216 = vperm.slane %v1214, 0
          %v1218 = vadd.f32 %v1210, %v1216
          %v1219 = vadd.f32 %v1211, %v1216
          %v1220 = vadd.f32 %v1212, %v1216
          %v1221 = vadd.f32 %v1213, %v1216
          %v1222 = vmax.f32 %v1218, 0.0
          %v1223 = vmax.f32 %v1219, 0.0
          %v1224 = vmax.f32 %v1220, 0.0
          %v1225 = vmax.f32 %v1221, 0.0
          %v1226 = vld [vmem:[%s4] sm:$0xf]
          %v1227 = vld [vmem:[%s3] sm:$0xf]
          %vm1228 = vcmask 261120
          %v1230 = vsel %vm1228, %v1227, 0
          %1232 = vmatpush.msra.mxu0 0.0
          %1233 = vmatpush.msra.mxu0 0.0
          %1234 = vmatpush.msra.mxu0 0.0
          %1235 = vmatpush.msra.mxu0 0.0
          %1236 = vmatpush.msra.mxu0 0.0
          %1237 = vmatpush.msra.mxu0 0.0
          %1238 = vmatpush.msra.mxu0 0.0
          %1239 = vmatpush.msra.mxu0 0.0
          %1240 = vmatpush.msra.mxu0 0.0
          %1241 = vmatpush.msra.mxu0 0.0
          %1242 = vmatpush.msra.mxu0 0.0
          %1243 = vmatpush.msra.mxu0 0.0
          %1244 = vmatpush.msra.mxu0 %v1225
          %1245 = vmatpush.msra.mxu0 %v1224
          %1246 = vmatpush.msra.mxu0 %v1223
          %1247 = vmatpush.msra.mxu0 %v1222
          %1248 = vmatmul.f32.gmra.mxu0 %v1230
          %v1249 = vpop.f32.mrf.mxu0
          %v1250 = vadd.f32 0.0, %v1249
          %1251 = vdwg.mxu0
          %v1252 = vadd.f32 %v1226, %v1250
          %vm1253 = vcmask 519168
          %1254 = vst.msk [vmem:[%s4] sm:$0xf] %vm1253, %v1252
        $region74: #{molvis_gnn_forward.8} parent=57 // pred_fallthru
          _
        // Predicated region
        $region75: #{molvis_gnn_forward.8} parent=57 // pred_check
          %p1255 = pneg %p143
        $region76: #{molvis_gnn_forward.8} parent=57 // pred_check_branch
          %1257 = sbr.rel (%p1255) target = $region78
        $region77: #{molvis_gnn_forward.8} parent=57 // pred_region
          _
        $region78: #{molvis_gnn_forward.8} parent=57 // pred_fallthru
          _
        // Predicated region
        $region79: #{molvis_gnn_forward.8} parent=57 // pred_check
          %p1258 = pneg %p143
        $region80: #{molvis_gnn_forward.8} parent=57 // pred_check_branch
          %1260 = sbr.rel (%p1258) target = $region82
        $region81: #{molvis_gnn_forward.8} parent=57 // pred_region
          _
        $region82: #{molvis_gnn_forward.8} parent=57 // pred_fallthru
          _
      $region58: #{molvis_gnn_forward.8} parent=5 // pred_fallthru
        _
      %p1261 = scmp.le.s32.totalorder 2, %s10
      // Predicated region
      $region83: #{molvis_gnn_forward.8} parent=5 // pred_check
        %p1262 = pneg %p1261
      $region84: #{molvis_gnn_forward.8} parent=5 // pred_check_branch
        %1264 = sbr.rel (%p1262) target = $region86
      $region85: #{molvis_gnn_forward.8} parent=5 // pred_region
        %s1265 = ssub.s32 %s10, 2
      $region86: #{molvis_gnn_forward.8} parent=5 // pred_fallthru
        _
    $region6: #{molvis_gnn_forward.8} parent=1 // loop_footer
      %s14 = sadd.s32 1, %s10
    $region7: #{molvis_gnn_forward.8} parent=1 // loop_footer_branch
      %9 = sbr.rel target = $region3
    $region8: #{molvis_gnn_forward.8} parent=1 // loop_exit
      _

// kernel: molvis_gnn_forward.9
$region0: #{molvis_gnn_forward.9}
  #allocation0 [shape = 'u32[]', space=smem, size = 0x4, offset = 0x4, fixed_abs, tag = 'smem constant byte address 0x4 - core index']
  #allocation1 [shape = 'u32[72,128]{1,0:T(1,128)}', space=vmem, size = 0x9000, scoped, tag = 'internal scratch']
  #allocation2 [shape = 'f32[1,1]{1,0:T(1,128)S(1)}', space=vmem, size = 0x200, scoped, tag = 'scoped memory for molvis_gnn_forward.9']
  %s0 = inlined_call_operand.vmem [shape: f32[4,512], index: 0, kind: input, shape index: {}]
  %s1 = inlined_call_operand.vmem [shape: f32[4,512], index: 1, kind: input, shape index: {}]
  %s2 = inlined_call_operand.vmem [shape: f32[4,64], index: 2, kind: input, shape index: {}]
  %s3 = inlined_call_operand.vmem [shape: f32[512,256], index: 3, kind: input, shape index: {}]
  %s4 = inlined_call_operand.vmem [shape: f32[64,256], index: 4, kind: input, shape index: {}]
  %s5 = inlined_call_operand.vmem [shape: f32[1,256], index: 5, kind: input, shape index: {}]
  %s6 = inlined_call_operand.<no memory space> [shape: f32[1,1], index: 6, kind: input, shape index: {}]
  %s7 = inlined_call_operand.vmem [shape: f32[256,128], index: 7, kind: input, shape index: {}]
  %s8 = inlined_call_operand.vmem [shape: f32[256,128], index: 8, kind: input, shape index: {}]
  %s9 = inlined_call_operand.vmem [shape: f32[256,128], index: 9, kind: input, shape index: {}]
  %s10 = inlined_call_operand.vmem [shape: f32[1,128], index: 10, kind: input, shape index: {}]
  %s11 = inlined_call_operand.vmem [shape: f32[1,128], index: 11, kind: input, shape index: {}]
  %s12 = inlined_call_operand.vmem [shape: f32[4,128], index: 12, kind: output, shape index: {}]
  %s13 = sld [smem:[#allocation0]]
  $region58: #{molvis_gnn_forward.9} parent=0
    _
  %s15 = ssub.s32 1, %s13
  %s16 = scalar_select 0, %s15, %s13
  %v17 = vstv %s6
  %18 = vst [vmem:[#allocation2] sm:$0x1] %v17
  // Predicated region
  $region2: #{molvis_gnn_forward.9} parent=0 // pred_check
    _
  $region3: #{molvis_gnn_forward.9} parent=0 // pred_check_branch
    %20 = sbr.rel (0) target = $region5
  $region4: #{molvis_gnn_forward.9} parent=0 // pred_region
    _
  $region5: #{molvis_gnn_forward.9} parent=0 // pred_fallthru
    _
  // Predicated region
  $region6: #{molvis_gnn_forward.9} parent=0 // pred_check
    _
  $region7: #{molvis_gnn_forward.9} parent=0 // pred_check_branch
    %22 = sbr.rel (0) target = $region9
  $region8: #{molvis_gnn_forward.9} parent=0 // pred_region
    _
  $region9: #{molvis_gnn_forward.9} parent=0 // pred_fallthru
    _
  // Predicated region
  $region10: #{molvis_gnn_forward.9} parent=0 // pred_check
    _
  $region11: #{molvis_gnn_forward.9} parent=0 // pred_check_branch
    %24 = sbr.rel (0) target = $region13
  $region12: #{molvis_gnn_forward.9} parent=0 // pred_region
    _
  $region13: #{molvis_gnn_forward.9} parent=0 // pred_fallthru
    _
  // Predicated region
  $region14: #{molvis_gnn_forward.9} parent=0 // pred_check
    _
  $region15: #{molvis_gnn_forward.9} parent=0 // pred_check_branch
    %26 = sbr.rel (0) target = $region17
  $region16: #{molvis_gnn_forward.9} parent=0 // pred_region
    _
  $region17: #{molvis_gnn_forward.9} parent=0 // pred_fallthru
    _
  // Predicated region
  $region18: #{molvis_gnn_forward.9} parent=0 // pred_check
    _
  $region19: #{molvis_gnn_forward.9} parent=0 // pred_check_branch
    %28 = sbr.rel (0) target = $region21
  $region20: #{molvis_gnn_forward.9} parent=0 // pred_region
    _
  $region21: #{molvis_gnn_forward.9} parent=0 // pred_fallthru
    _
  // Predicated region
  $region22: #{molvis_gnn_forward.9} parent=0 // pred_check
    _
  $region23: #{molvis_gnn_forward.9} parent=0 // pred_check_branch
    %30 = sbr.rel (0) target = $region25
  $region24: #{molvis_gnn_forward.9} parent=0 // pred_region
    _
  $region25: #{molvis_gnn_forward.9} parent=0 // pred_fallthru
    _
  // Predicated region
  $region26: #{molvis_gnn_forward.9} parent=0 // pred_check
    _
  $region27: #{molvis_gnn_forward.9} parent=0 // pred_check_branch
    %32 = sbr.rel (0) target = $region29
  $region28: #{molvis_gnn_forward.9} parent=0 // pred_region
    _
  $region29: #{molvis_gnn_forward.9} parent=0 // pred_fallthru
    _
  // Predicated region
  $region30: #{molvis_gnn_forward.9} parent=0 // pred_check
    _
  $region31: #{molvis_gnn_forward.9} parent=0 // pred_check_branch
    %34 = sbr.rel (0) target = $region33
  $region32: #{molvis_gnn_forward.9} parent=0 // pred_region
    _
  $region33: #{molvis_gnn_forward.9} parent=0 // pred_fallthru
    _
  // Predicated region
  $region34: #{molvis_gnn_forward.9} parent=0 // pred_check
    _
  $region35: #{molvis_gnn_forward.9} parent=0 // pred_check_branch
    %36 = sbr.rel (0) target = $region37
  $region36: #{molvis_gnn_forward.9} parent=0 // pred_region
    _
  $region37: #{molvis_gnn_forward.9} parent=0 // pred_fallthru
    _
  // Predicated region
  $region38: #{molvis_gnn_forward.9} parent=0 // pred_check
    _
  $region39: #{molvis_gnn_forward.9} parent=0 // pred_check_branch
    %38 = sbr.rel (0) target = $region41
  $region40: #{molvis_gnn_forward.9} parent=0 // pred_region
    _
  $region41: #{molvis_gnn_forward.9} parent=0 // pred_fallthru
    _
  // Predicated region
  $region42: #{molvis_gnn_forward.9} parent=0 // pred_check
    _
  $region43: #{molvis_gnn_forward.9} parent=0 // pred_check_branch
    %40 = sbr.rel (0) target = $region45
  $region44: #{molvis_gnn_forward.9} parent=0 // pred_region
    _
  $region45: #{molvis_gnn_forward.9} parent=0 // pred_fallthru
    _
  // Predicated region
  $region46: #{molvis_gnn_forward.9} parent=0 // pred_check
    _
  $region47: #{molvis_gnn_forward.9} parent=0 // pred_check_branch
    %42 = sbr.rel (0) target = $region49
  $region48: #{molvis_gnn_forward.9} parent=0 // pred_region
    _
  $region49: #{molvis_gnn_forward.9} parent=0 // pred_fallthru
    _
  %v43 = vld [vmem:[%s0] sm:$0xff]
  %v44 = vld [vmem:[%s0 + $0x8] sm:$0xff]
  %v45 = vld [vmem:[%s3] sm:$0xff]
  %v46 = vld [vmem:[%s3 + $0x8] sm:$0xff]
  %v47 = vld [vmem:[%s3 + $0x10] sm:$0xff]
  %v48 = vld [vmem:[%s3 + $0x18] sm:$0xff]
  %v49 = vld [vmem:[%s3 + $0x20] sm:$0xff]
  %v50 = vld [vmem:[%s3 + $0x28] sm:$0xff]
  %v51 = vld [vmem:[%s3 + $0x30] sm:$0xff]
  %v52 = vld [vmem:[%s3 + $0x38] sm:$0xff]
  %v53 = vld [vmem:[%s3 + $0x40] sm:$0xff]
  %v54 = vld [vmem:[%s3 + $0x48] sm:$0xff]
  %v55 = vld [vmem:[%s3 + $0x50] sm:$0xff]
  %v56 = vld [vmem:[%s3 + $0x58] sm:$0xff]
  %v57 = vld [vmem:[%s3 + $0x60] sm:$0xff]
  %v58 = vld [vmem:[%s3 + $0x68] sm:$0xff]
  %v59 = vld [vmem:[%s3 + $0x70] sm:$0xff]
  %v60 = vld [vmem:[%s3 + $0x78] sm:$0xff]
  %v61 = vld [vmem:[%s3 + $0x80] sm:$0xff]
  %v62 = vld [vmem:[%s3 + $0x88] sm:$0xff]
  %v63 = vld [vmem:[%s3 + $0x90] sm:$0xff]
  %v64 = vld [vmem:[%s3 + $0x98] sm:$0xff]
  %v65 = vld [vmem:[%s3 + $0xa0] sm:$0xff]
  %v66 = vld [vmem:[%s3 + $0xa8] sm:$0xff]
  %v67 = vld [vmem:[%s3 + $0xb0] sm:$0xff]
  %v68 = vld [vmem:[%s3 + $0xb8] sm:$0xff]
  %v69 = vld [vmem:[%s3 + $0xc0] sm:$0xff]
  %v70 = vld [vmem:[%s3 + $0xc8] sm:$0xff]
  %v71 = vld [vmem:[%s3 + $0xd0] sm:$0xff]
  %v72 = vld [vmem:[%s3 + $0xd8] sm:$0xff]
  %v73 = vld [vmem:[%s3 + $0xe0] sm:$0xff]
  %v74 = vld [vmem:[%s3 + $0xe8] sm:$0xff]
  %v75 = vld [vmem:[%s3 + $0xf0] sm:$0xff]
  %v76 = vld [vmem:[%s3 + $0xf8] sm:$0xff]
  %v77 = vld [vmem:[%s3 + $0x100] sm:$0xff]
  %v78 = vld [vmem:[%s3 + $0x108] sm:$0xff]
  %v79 = vld [vmem:[%s3 + $0x110] sm:$0xff]
  %v80 = vld [vmem:[%s3 + $0x118] sm:$0xff]
  %v81 = vld [vmem:[%s3 + $0x120] sm:$0xff]
  %v82 = vld [vmem:[%s3 + $0x128] sm:$0xff]
  %v83 = vld [vmem:[%s3 + $0x130] sm:$0xff]
  %v84 = vld [vmem:[%s3 + $0x138] sm:$0xff]
  %v85 = vld [vmem:[%s3 + $0x140] sm:$0xff]
  %v86 = vld [vmem:[%s3 + $0x148] sm:$0xff]
  %v87 = vld [vmem:[%s3 + $0x150] sm:$0xff]
  %v88 = vld [vmem:[%s3 + $0x158] sm:$0xff]
  %v89 = vld [vmem:[%s3 + $0x160] sm:$0xff]
  %v90 = vld [vmem:[%s3 + $0x168] sm:$0xff]
  %v91 = vld [vmem:[%s3 + $0x170] sm:$0xff]
  %v92 = vld [vmem:[%s3 + $0x178] sm:$0xff]
  %v93 = vld [vmem:[%s3 + $0x180] sm:$0xff]
  %v94 = vld [vmem:[%s3 + $0x188] sm:$0xff]
  %v95 = vld [vmem:[%s3 + $0x190] sm:$0xff]
  %v96 = vld [vmem:[%s3 + $0x198] sm:$0xff]
  %v97 = vld [vmem:[%s3 + $0x1a0] sm:$0xff]
  %v98 = vld [vmem:[%s3 + $0x1a8] sm:$0xff]
  %v99 = vld [vmem:[%s3 + $0x1b0] sm:$0xff]
  %v100 = vld [vmem:[%s3 + $0x1b8] sm:$0xff]
  %v101 = vld [vmem:[%s3 + $0x1c0] sm:$0xff]
  %v102 = vld [vmem:[%s3 + $0x1c8] sm:$0xff]
  %v103 = vld [vmem:[%s3 + $0x1d0] sm:$0xff]
  %v104 = vld [vmem:[%s3 + $0x1d8] sm:$0xff]
  %v105 = vld [vmem:[%s3 + $0x1e0] sm:$0xff]
  %v106 = vld [vmem:[%s3 + $0x1e8] sm:$0xff]
  %v107 = vld [vmem:[%s3 + $0x1f0] sm:$0xff]
  %v108 = vld [vmem:[%s3 + $0x1f8] sm:$0xff]
  %v109 = vld [vmem:[%s3 + $0x200] sm:$0xff]
  %v110 = vld [vmem:[%s3 + $0x208] sm:$0xff]
  %v111 = vld [vmem:[%s3 + $0x210] sm:$0xff]
  %v112 = vld [vmem:[%s3 + $0x218] sm:$0xff]
  %v113 = vld [vmem:[%s3 + $0x220] sm:$0xff]
  %v114 = vld [vmem:[%s3 + $0x228] sm:$0xff]
  %v115 = vld [vmem:[%s3 + $0x230] sm:$0xff]
  %v116 = vld [vmem:[%s3 + $0x238] sm:$0xff]
  %v117 = vld [vmem:[%s3 + $0x240] sm:$0xff]
  %v118 = vld [vmem:[%s3 + $0x248] sm:$0xff]
  %v119 = vld [vmem:[%s3 + $0x250] sm:$0xff]
  %v120 = vld [vmem:[%s3 + $0x258] sm:$0xff]
  %v121 = vld [vmem:[%s3 + $0x260] sm:$0xff]
  %v122 = vld [vmem:[%s3 + $0x268] sm:$0xff]
  %v123 = vld [vmem:[%s3 + $0x270] sm:$0xff]
  %v124 = vld [vmem:[%s3 + $0x278] sm:$0xff]
  %v125 = vld [vmem:[%s3 + $0x280] sm:$0xff]
  %v126 = vld [vmem:[%s3 + $0x288] sm:$0xff]
  %v127 = vld [vmem:[%s3 + $0x290] sm:$0xff]
  %v128 = vld [vmem:[%s3 + $0x298] sm:$0xff]
  %v129 = vld [vmem:[%s3 + $0x2a0] sm:$0xff]
  %v130 = vld [vmem:[%s3 + $0x2a8] sm:$0xff]
  %v131 = vld [vmem:[%s3 + $0x2b0] sm:$0xff]
  %v132 = vld [vmem:[%s3 + $0x2b8] sm:$0xff]
  %v133 = vld [vmem:[%s3 + $0x2c0] sm:$0xff]
  %v134 = vld [vmem:[%s3 + $0x2c8] sm:$0xff]
  %v135 = vld [vmem:[%s3 + $0x2d0] sm:$0xff]
  %v136 = vld [vmem:[%s3 + $0x2d8] sm:$0xff]
  %v137 = vld [vmem:[%s3 + $0x2e0] sm:$0xff]
  %v138 = vld [vmem:[%s3 + $0x2e8] sm:$0xff]
  %v139 = vld [vmem:[%s3 + $0x2f0] sm:$0xff]
  %v140 = vld [vmem:[%s3 + $0x2f8] sm:$0xff]
  %v141 = vld [vmem:[%s3 + $0x300] sm:$0xff]
  %v142 = vld [vmem:[%s3 + $0x308] sm:$0xff]
  %v143 = vld [vmem:[%s3 + $0x310] sm:$0xff]
  %v144 = vld [vmem:[%s3 + $0x318] sm:$0xff]
  %v145 = vld [vmem:[%s3 + $0x320] sm:$0xff]
  %v146 = vld [vmem:[%s3 + $0x328] sm:$0xff]
  %v147 = vld [vmem:[%s3 + $0x330] sm:$0xff]
  %v148 = vld [vmem:[%s3 + $0x338] sm:$0xff]
  %v149 = vld [vmem:[%s3 + $0x340] sm:$0xff]
  %v150 = vld [vmem:[%s3 + $0x348] sm:$0xff]
  %v151 = vld [vmem:[%s3 + $0x350] sm:$0xff]
  %v152 = vld [vmem:[%s3 + $0x358] sm:$0xff]
  %v153 = vld [vmem:[%s3 + $0x360] sm:$0xff]
  %v154 = vld [vmem:[%s3 + $0x368] sm:$0xff]
  %v155 = vld [vmem:[%s3 + $0x370] sm:$0xff]
  %v156 = vld [vmem:[%s3 + $0x378] sm:$0xff]
  %v157 = vld [vmem:[%s3 + $0x380] sm:$0xff]
  %v158 = vld [vmem:[%s3 + $0x388] sm:$0xff]
  %v159 = vld [vmem:[%s3 + $0x390] sm:$0xff]
  %v160 = vld [vmem:[%s3 + $0x398] sm:$0xff]
  %v161 = vld [vmem:[%s3 + $0x3a0] sm:$0xff]
  %v162 = vld [vmem:[%s3 + $0x3a8] sm:$0xff]
  %v163 = vld [vmem:[%s3 + $0x3b0] sm:$0xff]
  %v164 = vld [vmem:[%s3 + $0x3b8] sm:$0xff]
  %v165 = vld [vmem:[%s3 + $0x3c0] sm:$0xff]
  %v166 = vld [vmem:[%s3 + $0x3c8] sm:$0xff]
  %v167 = vld [vmem:[%s3 + $0x3d0] sm:$0xff]
  %v168 = vld [vmem:[%s3 + $0x3d8] sm:$0xff]
  %v169 = vld [vmem:[%s3 + $0x3e0] sm:$0xff]
  %v170 = vld [vmem:[%s3 + $0x3e8] sm:$0xff]
  %v171 = vld [vmem:[%s3 + $0x3f0] sm:$0xff]
  %v172 = vld [vmem:[%s3 + $0x3f8] sm:$0xff]
  %175 = vst [vmem:[#allocation1] ss:$2 sm:$0xff] %v43
  %s176 = scalar_lea.vmem [#allocation1], 16
  %177 = vst [vmem:[%s176] ss:$2 sm:$0xff] %v44
  %v178 = vld.sshfl [vmem:[#allocation1] sm:$0xff pattern:$0x75316420]
  %v179 = vld.sshfl [vmem:[#allocation1 + $0x8] sm:$0xff pattern:$0x75316420]
  %v180 = vld.sshfl [vmem:[#allocation1 + $0x10] sm:$0xff pattern:$0x75316420]
  %v181 = vld.sshfl [vmem:[#allocation1 + $0x18] sm:$0xff pattern:$0x75316420]
  %186 = vmatpush.msra.mxu0 %v75
  %187 = vmatpush.msra.mxu0 %v73
  %188 = vmatpush.msra.mxu0 %v71
  %189 = vmatpush.msra.mxu0 %v69
  %190 = vmatpush.msra.mxu0 %v67
  %191 = vmatpush.msra.mxu0 %v65
  %192 = vmatpush.msra.mxu0 %v63
  %193 = vmatpush.msra.mxu0 %v61
  %194 = vmatpush.msra.mxu0 %v59
  %195 = vmatpush.msra.mxu0 %v57
  %196 = vmatpush.msra.mxu0 %v55
  %197 = vmatpush.msra.mxu0 %v53
  %198 = vmatpush.msra.mxu0 %v51
  %199 = vmatpush.msra.mxu0 %v49
  %200 = vmatpush.msra.mxu0 %v47
  %201 = vmatpush.msra.mxu0 %v45
  %202 = vmatmul.f32.gmra.mxu0 %v178
  %v203 = vpop.f32.mrf.mxu0
  %v204 = vadd.f32 0.0, %v203
  %205 = vdwg.mxu0
  %206 = vmatpush.msra.mxu0 %v107
  %207 = vmatpush.msra.mxu0 %v105
  %208 = vmatpush.msra.mxu0 %v103
  %209 = vmatpush.msra.mxu0 %v101
  %210 = vmatpush.msra.mxu0 %v99
  %211 = vmatpush.msra.mxu0 %v97
  %212 = vmatpush.msra.mxu0 %v95
  %213 = vmatpush.msra.mxu0 %v93
  %214 = vmatpush.msra.mxu0 %v91
  %215 = vmatpush.msra.mxu0 %v89
  %216 = vmatpush.msra.mxu0 %v87
  %217 = vmatpush.msra.mxu0 %v85
  %218 = vmatpush.msra.mxu0 %v83
  %219 = vmatpush.msra.mxu0 %v81
  %220 = vmatpush.msra.mxu0 %v79
  %221 = vmatpush.msra.mxu0 %v77
  %222 = vmatmul.f32.gmra.mxu0 %v179
  %v223 = vpop.f32.mrf.mxu0
  %v224 = vadd.f32 %v204, %v223
  %225 = vdwg.mxu0
  %226 = vmatpush.msra.mxu0 %v139
  %227 = vmatpush.msra.mxu0 %v137
  %228 = vmatpush.msra.mxu0 %v135
  %229 = vmatpush.msra.mxu0 %v133
  %230 = vmatpush.msra.mxu0 %v131
  %231 = vmatpush.msra.mxu0 %v129
  %232 = vmatpush.msra.mxu0 %v127
  %233 = vmatpush.msra.mxu0 %v125
  %234 = vmatpush.msra.mxu0 %v123
  %235 = vmatpush.msra.mxu0 %v121
  %236 = vmatpush.msra.mxu0 %v119
  %237 = vmatpush.msra.mxu0 %v117
  %238 = vmatpush.msra.mxu0 %v115
  %239 = vmatpush.msra.mxu0 %v113
  %240 = vmatpush.msra.mxu0 %v111
  %241 = vmatpush.msra.mxu0 %v109
  %242 = vmatmul.f32.gmra.mxu0 %v180
  %v243 = vpop.f32.mrf.mxu0
  %v244 = vadd.f32 %v224, %v243
  %245 = vdwg.mxu0
  %246 = vmatpush.msra.mxu0 %v171
  %247 = vmatpush.msra.mxu0 %v169
  %248 = vmatpush.msra.mxu0 %v167
  %249 = vmatpush.msra.mxu0 %v165
  %250 = vmatpush.msra.mxu0 %v163
  %251 = vmatpush.msra.mxu0 %v161
  %252 = vmatpush.msra.mxu0 %v159
  %253 = vmatpush.msra.mxu0 %v157
  %254 = vmatpush.msra.mxu0 %v155
  %255 = vmatpush.msra.mxu0 %v153
  %256 = vmatpush.msra.mxu0 %v151
  %257 = vmatpush.msra.mxu0 %v149
  %258 = vmatpush.msra.mxu0 %v147
  %259 = vmatpush.msra.mxu0 %v145
  %260 = vmatpush.msra.mxu0 %v143
  %261 = vmatpush.msra.mxu0 %v141
  %262 = vmatmul.f32.gmra.mxu0 %v181
  %v263 = vpop.f32.mrf.mxu0
  %v264 = vadd.f32 %v244, %v263
  %265 = vdwg.mxu0
  %266 = vmatpush.msra.mxu0 %v76
  %267 = vmatpush.msra.mxu0 %v74
  %268 = vmatpush.msra.mxu0 %v72
  %269 = vmatpush.msra.mxu0 %v70
  %270 = vmatpush.msra.mxu0 %v68
  %271 = vmatpush.msra.mxu0 %v66
  %272 = vmatpush.msra.mxu0 %v64
  %273 = vmatpush.msra.mxu0 %v62
  %274 = vmatpush.msra.mxu0 %v60
  %275 = vmatpush.msra.mxu0 %v58
  %276 = vmatpush.msra.mxu0 %v56
  %277 = vmatpush.msra.mxu0 %v54
  %278 = vmatpush.msra.mxu0 %v52
  %279 = vmatpush.msra.mxu0 %v50
  %280 = vmatpush.msra.mxu0 %v48
  %281 = vmatpush.msra.mxu0 %v46
  %282 = vmatmul.f32.gmra.mxu0 %v178
  %v283 = vpop.f32.mrf.mxu0
  %v284 = vadd.f32 0.0, %v283
  %285 = vdwg.mxu0
  %286 = vmatpush.msra.mxu0 %v108
  %287 = vmatpush.msra.mxu0 %v106
  %288 = vmatpush.msra.mxu0 %v104
  %289 = vmatpush.msra.mxu0 %v102
  %290 = vmatpush.msra.mxu0 %v100
  %291 = vmatpush.msra.mxu0 %v98
  %292 = vmatpush.msra.mxu0 %v96
  %293 = vmatpush.msra.mxu0 %v94
  %294 = vmatpush.msra.mxu0 %v92
  %295 = vmatpush.msra.mxu0 %v90
  %296 = vmatpush.msra.mxu0 %v88
  %297 = vmatpush.msra.mxu0 %v86
  %298 = vmatpush.msra.mxu0 %v84
  %299 = vmatpush.msra.mxu0 %v82
  %300 = vmatpush.msra.mxu0 %v80
  %301 = vmatpush.msra.mxu0 %v78
  %302 = vmatmul.f32.gmra.mxu0 %v179
  %v303 = vpop.f32.mrf.mxu0
  %v304 = vadd.f32 %v284, %v303
  %305 = vdwg.mxu0
  %306 = vmatpush.msra.mxu0 %v140
  %307 = vmatpush.msra.mxu0 %v138
  %308 = vmatpush.msra.mxu0 %v136
  %309 = vmatpush.msra.mxu0 %v134
  %310 = vmatpush.msra.mxu0 %v132
  %311 = vmatpush.msra.mxu0 %v130
  %312 = vmatpush.msra.mxu0 %v128
  %313 = vmatpush.msra.mxu0 %v126
  %314 = vmatpush.msra.mxu0 %v124
  %315 = vmatpush.msra.mxu0 %v122
  %316 = vmatpush.msra.mxu0 %v120
  %317 = vmatpush.msra.mxu0 %v118
  %318 = vmatpush.msra.mxu0 %v116
  %319 = vmatpush.msra.mxu0 %v114
  %320 = vmatpush.msra.mxu0 %v112
  %321 = vmatpush.msra.mxu0 %v110
  %322 = vmatmul.f32.gmra.mxu0 %v180
  %v323 = vpop.f32.mrf.mxu0
  %v324 = vadd.f32 %v304, %v323
  %325 = vdwg.mxu0
  %326 = vmatpush.msra.mxu0 %v172
  %327 = vmatpush.msra.mxu0 %v170
  %328 = vmatpush.msra.mxu0 %v168
  %329 = vmatpush.msra.mxu0 %v166
  %330 = vmatpush.msra.mxu0 %v164
  %331 = vmatpush.msra.mxu0 %v162
  %332 = vmatpush.msra.mxu0 %v160
  %333 = vmatpush.msra.mxu0 %v158
  %334 = vmatpush.msra.mxu0 %v156
  %335 = vmatpush.msra.mxu0 %v154
  %336 = vmatpush.msra.mxu0 %v152
  %337 = vmatpush.msra.mxu0 %v150
  %338 = vmatpush.msra.mxu0 %v148
  %339 = vmatpush.msra.mxu0 %v146
  %340 = vmatpush.msra.mxu0 %v144
  %341 = vmatpush.msra.mxu0 %v142
  %342 = vmatmul.f32.gmra.mxu0 %v181
  %v343 = vpop.f32.mrf.mxu0
  %v344 = vadd.f32 %v324, %v343
  %345 = vdwg.mxu0
  %v346 = vld [vmem:[%s1] sm:$0xff]
  %v347 = vld [vmem:[%s1 + $0x8] sm:$0xff]
  %350 = vst [vmem:[#allocation1] ss:$2 sm:$0xff] %v346
  %s351 = scalar_lea.vmem [#allocation1], 16
  %352 = vst [vmem:[%s351] ss:$2 sm:$0xff] %v347
  %v353 = vld.sshfl [vmem:[#allocation1] sm:$0xff pattern:$0x75316420]
  %v354 = vld.sshfl [vmem:[#allocation1 + $0x8] sm:$0xff pattern:$0x75316420]
  %v355 = vld.sshfl [vmem:[#allocation1 + $0x10] sm:$0xff pattern:$0x75316420]
  %v356 = vld.sshfl [vmem:[#allocation1 + $0x18] sm:$0xff pattern:$0x75316420]
  %361 = vmatpush.msra.mxu0 %v75
  %362 = vmatpush.msra.mxu0 %v73
  %363 = vmatpush.msra.mxu0 %v71
  %364 = vmatpush.msra.mxu0 %v69
  %365 = vmatpush.msra.mxu0 %v67
  %366 = vmatpush.msra.mxu0 %v65
  %367 = vmatpush.msra.mxu0 %v63
  %368 = vmatpush.msra.mxu0 %v61
  %369 = vmatpush.msra.mxu0 %v59
  %370 = vmatpush.msra.mxu0 %v57
  %371 = vmatpush.msra.mxu0 %v55
  %372 = vmatpush.msra.mxu0 %v53
  %373 = vmatpush.msra.mxu0 %v51
  %374 = vmatpush.msra.mxu0 %v49
  %375 = vmatpush.msra.mxu0 %v47
  %376 = vmatpush.msra.mxu0 %v45
  %377 = vmatmul.f32.gmra.mxu0 %v353
  %v378 = vpop.f32.mrf.mxu0
  %v379 = vadd.f32 0.0, %v378
  %380 = vdwg.mxu0
  %381 = vmatpush.msra.mxu0 %v107
  %382 = vmatpush.msra.mxu0 %v105
  %383 = vmatpush.msra.mxu0 %v103
  %384 = vmatpush.msra.mxu0 %v101
  %385 = vmatpush.msra.mxu0 %v99
  %386 = vmatpush.msra.mxu0 %v97
  %387 = vmatpush.msra.mxu0 %v95
  %388 = vmatpush.msra.mxu0 %v93
  %389 = vmatpush.msra.mxu0 %v91
  %390 = vmatpush.msra.mxu0 %v89
  %391 = vmatpush.msra.mxu0 %v87
  %392 = vmatpush.msra.mxu0 %v85
  %393 = vmatpush.msra.mxu0 %v83
  %394 = vmatpush.msra.mxu0 %v81
  %395 = vmatpush.msra.mxu0 %v79
  %396 = vmatpush.msra.mxu0 %v77
  %397 = vmatmul.f32.gmra.mxu0 %v354
  %v398 = vpop.f32.mrf.mxu0
  %v399 = vadd.f32 %v379, %v398
  %400 = vdwg.mxu0
  %401 = vmatpush.msra.mxu0 %v139
  %402 = vmatpush.msra.mxu0 %v137
  %403 = vmatpush.msra.mxu0 %v135
  %404 = vmatpush.msra.mxu0 %v133
  %405 = vmatpush.msra.mxu0 %v131
  %406 = vmatpush.msra.mxu0 %v129
  %407 = vmatpush.msra.mxu0 %v127
  %408 = vmatpush.msra.mxu0 %v125
  %409 = vmatpush.msra.mxu0 %v123
  %410 = vmatpush.msra.mxu0 %v121
  %411 = vmatpush.msra.mxu0 %v119
  %412 = vmatpush.msra.mxu0 %v117
  %413 = vmatpush.msra.mxu0 %v115
  %414 = vmatpush.msra.mxu0 %v113
  %415 = vmatpush.msra.mxu0 %v111
  %416 = vmatpush.msra.mxu0 %v109
  %417 = vmatmul.f32.gmra.mxu0 %v355
  %v418 = vpop.f32.mrf.mxu0
  %v419 = vadd.f32 %v399, %v418
  %420 = vdwg.mxu0
  %421 = vmatpush.msra.mxu0 %v171
  %422 = vmatpush.msra.mxu0 %v169
  %423 = vmatpush.msra.mxu0 %v167
  %424 = vmatpush.msra.mxu0 %v165
  %425 = vmatpush.msra.mxu0 %v163
  %426 = vmatpush.msra.mxu0 %v161
  %427 = vmatpush.msra.mxu0 %v159
  %428 = vmatpush.msra.mxu0 %v157
  %429 = vmatpush.msra.mxu0 %v155
  %430 = vmatpush.msra.mxu0 %v153
  %431 = vmatpush.msra.mxu0 %v151
  %432 = vmatpush.msra.mxu0 %v149
  %433 = vmatpush.msra.mxu0 %v147
  %434 = vmatpush.msra.mxu0 %v145
  %435 = vmatpush.msra.mxu0 %v143
  %436 = vmatpush.msra.mxu0 %v141
  %437 = vmatmul.f32.gmra.mxu0 %v356
  %v438 = vpop.f32.mrf.mxu0
  %v439 = vadd.f32 %v419, %v438
  %440 = vdwg.mxu0
  %441 = vmatpush.msra.mxu0 %v76
  %442 = vmatpush.msra.mxu0 %v74
  %443 = vmatpush.msra.mxu0 %v72
  %444 = vmatpush.msra.mxu0 %v70
  %445 = vmatpush.msra.mxu0 %v68
  %446 = vmatpush.msra.mxu0 %v66
  %447 = vmatpush.msra.mxu0 %v64
  %448 = vmatpush.msra.mxu0 %v62
  %449 = vmatpush.msra.mxu0 %v60
  %450 = vmatpush.msra.mxu0 %v58
  %451 = vmatpush.msra.mxu0 %v56
  %452 = vmatpush.msra.mxu0 %v54
  %453 = vmatpush.msra.mxu0 %v52
  %454 = vmatpush.msra.mxu0 %v50
  %455 = vmatpush.msra.mxu0 %v48
  %456 = vmatpush.msra.mxu0 %v46
  %457 = vmatmul.f32.gmra.mxu0 %v353
  %v458 = vpop.f32.mrf.mxu0
  %v459 = vadd.f32 0.0, %v458
  %460 = vdwg.mxu0
  %461 = vmatpush.msra.mxu0 %v108
  %462 = vmatpush.msra.mxu0 %v106
  %463 = vmatpush.msra.mxu0 %v104
  %464 = vmatpush.msra.mxu0 %v102
  %465 = vmatpush.msra.mxu0 %v100
  %466 = vmatpush.msra.mxu0 %v98
  %467 = vmatpush.msra.mxu0 %v96
  %468 = vmatpush.msra.mxu0 %v94
  %469 = vmatpush.msra.mxu0 %v92
  %470 = vmatpush.msra.mxu0 %v90
  %471 = vmatpush.msra.mxu0 %v88
  %472 = vmatpush.msra.mxu0 %v86
  %473 = vmatpush.msra.mxu0 %v84
  %474 = vmatpush.msra.mxu0 %v82
  %475 = vmatpush.msra.mxu0 %v80
  %476 = vmatpush.msra.mxu0 %v78
  %477 = vmatmul.f32.gmra.mxu0 %v354
  %v478 = vpop.f32.mrf.mxu0
  %v479 = vadd.f32 %v459, %v478
  %480 = vdwg.mxu0
  %481 = vmatpush.msra.mxu0 %v140
  %482 = vmatpush.msra.mxu0 %v138
  %483 = vmatpush.msra.mxu0 %v136
  %484 = vmatpush.msra.mxu0 %v134
  %485 = vmatpush.msra.mxu0 %v132
  %486 = vmatpush.msra.mxu0 %v130
  %487 = vmatpush.msra.mxu0 %v128
  %488 = vmatpush.msra.mxu0 %v126
  %489 = vmatpush.msra.mxu0 %v124
  %490 = vmatpush.msra.mxu0 %v122
  %491 = vmatpush.msra.mxu0 %v120
  %492 = vmatpush.msra.mxu0 %v118
  %493 = vmatpush.msra.mxu0 %v116
  %494 = vmatpush.msra.mxu0 %v114
  %495 = vmatpush.msra.mxu0 %v112
  %496 = vmatpush.msra.mxu0 %v110
  %497 = vmatmul.f32.gmra.mxu0 %v355
  %v498 = vpop.f32.mrf.mxu0
  %v499 = vadd.f32 %v479, %v498
  %500 = vdwg.mxu0
  %501 = vmatpush.msra.mxu0 %v172
  %502 = vmatpush.msra.mxu0 %v170
  %503 = vmatpush.msra.mxu0 %v168
  %504 = vmatpush.msra.mxu0 %v166
  %505 = vmatpush.msra.mxu0 %v164
  %506 = vmatpush.msra.mxu0 %v162
  %507 = vmatpush.msra.mxu0 %v160
  %508 = vmatpush.msra.mxu0 %v158
  %509 = vmatpush.msra.mxu0 %v156
  %510 = vmatpush.msra.mxu0 %v154
  %511 = vmatpush.msra.mxu0 %v152
  %512 = vmatpush.msra.mxu0 %v150
  %513 = vmatpush.msra.mxu0 %v148
  %514 = vmatpush.msra.mxu0 %v146
  %515 = vmatpush.msra.mxu0 %v144
  %516 = vmatpush.msra.mxu0 %v142
  %517 = vmatmul.f32.gmra.mxu0 %v356
  %v518 = vpop.f32.mrf.mxu0
  %v519 = vadd.f32 %v499, %v518
  %520 = vdwg.mxu0
  %v521 = vld [vmem:[%s2] sm:$0xf]
  %v522 = vld [vmem:[%s4] sm:$0xff]
  %v523 = vld [vmem:[%s4 + $0x8] sm:$0xff]
  %v524 = vld [vmem:[%s4 + $0x10] sm:$0xff]
  %v525 = vld [vmem:[%s4 + $0x18] sm:$0xff]
  %v526 = vld [vmem:[%s4 + $0x20] sm:$0xff]
  %v527 = vld [vmem:[%s4 + $0x28] sm:$0xff]
  %v528 = vld [vmem:[%s4 + $0x30] sm:$0xff]
  %v529 = vld [vmem:[%s4 + $0x38] sm:$0xff]
  %v530 = vld [vmem:[%s4 + $0x40] sm:$0xff]
  %v531 = vld [vmem:[%s4 + $0x48] sm:$0xff]
  %v532 = vld [vmem:[%s4 + $0x50] sm:$0xff]
  %v533 = vld [vmem:[%s4 + $0x58] sm:$0xff]
  %v534 = vld [vmem:[%s4 + $0x60] sm:$0xff]
  %v535 = vld [vmem:[%s4 + $0x68] sm:$0xff]
  %v536 = vld [vmem:[%s4 + $0x70] sm:$0xff]
  %v537 = vld [vmem:[%s4 + $0x78] sm:$0xff]
  %vm538 = vcmask 523264
  %v540 = vsel %vm538, %v521, 0
  %542 = vmatpush.msra.mxu0 0.0
  %543 = vmatpush.msra.mxu0 0.0
  %544 = vmatpush.msra.mxu0 0.0
  %545 = vmatpush.msra.mxu0 0.0
  %546 = vmatpush.msra.mxu0 0.0
  %547 = vmatpush.msra.mxu0 0.0
  %548 = vmatpush.msra.mxu0 0.0
  %549 = vmatpush.msra.mxu0 0.0
  %550 = vmatpush.msra.mxu0 %v536
  %551 = vmatpush.msra.mxu0 %v534
  %552 = vmatpush.msra.mxu0 %v532
  %553 = vmatpush.msra.mxu0 %v530
  %554 = vmatpush.msra.mxu0 %v528
  %555 = vmatpush.msra.mxu0 %v526
  %556 = vmatpush.msra.mxu0 %v524
  %557 = vmatpush.msra.mxu0 %v522
  %558 = vmatmul.f32.gmra.mxu0 %v540
  %v559 = vpop.f32.mrf.mxu0
  %v560 = vadd.f32 0.0, %v559
  %561 = vdwg.mxu0
  %562 = vmatpush.msra.mxu0 0.0
  %563 = vmatpush.msra.mxu0 0.0
  %564 = vmatpush.msra.mxu0 0.0
  %565 = vmatpush.msra.mxu0 0.0
  %566 = vmatpush.msra.mxu0 0.0
  %567 = vmatpush.msra.mxu0 0.0
  %568 = vmatpush.msra.mxu0 0.0
  %569 = vmatpush.msra.mxu0 0.0
  %570 = vmatpush.msra.mxu0 %v537
  %571 = vmatpush.msra.mxu0 %v535
  %572 = vmatpush.msra.mxu0 %v533
  %573 = vmatpush.msra.mxu0 %v531
  %574 = vmatpush.msra.mxu0 %v529
  %575 = vmatpush.msra.mxu0 %v527
  %576 = vmatpush.msra.mxu0 %v525
  %577 = vmatpush.msra.mxu0 %v523
  %578 = vmatmul.f32.gmra.mxu0 %v540
  %v579 = vpop.f32.mrf.mxu0
  %v580 = vadd.f32 0.0, %v579
  %581 = vdwg.mxu0
  %v582 = vld [vmem:[%s5] sm:$0x3]
  %v583 = vld [vmem:[#allocation2] sm:$0x1]
  %v585 = vperm.slane %v582, 0
  %v586 = vperm.slane %v582, 1
  %v589 = vmul.f32 %v264, %v585
  %v590 = vmul.f32 %v344, %v586
  %vm591 = vcmask 1043456
  %v592 = vsel %vm591, %v589, 0.0
  %v593 = vsel %vm591, %v590, 0.0
  %v594 = vadd.f32 %v592, %v593
  %595 = vadd.xlane.f32.xlu0 %v594
  %v596 = vpop.xlane.xlu0 %595
  %v598 = vperm.slane %v583, 0
  %v600 = vadd.f32 %v596, %v598
  %v601 = vmul.f32 %v439, %v585
  %v602 = vmul.f32 %v519, %v586
  %v603 = vsel %vm591, %v601, 0.0
  %v604 = vsel %vm591, %v602, 0.0
  %v605 = vadd.f32 %v603, %v604
  %606 = vadd.xlane.f32.xlu0 %v605
  %v607 = vpop.xlane.xlu0 %606
  %v608 = vadd.f32 %v607, %v598
  %v609 = vmul.f32 %v560, %v585
  %v610 = vmul.f32 %v580, %v586
  %v611 = vsel %vm591, %v609, 0.0
  %v612 = vsel %vm591, %v610, 0.0
  %v613 = vadd.f32 %v611, %v612
  %614 = vadd.xlane.f32.xlu0 %v613
  %v615 = vpop.xlane.xlu0 %614
  %v616 = vadd.f32 %v615, %v598
  %v617 = vsub.f32 0.0, %v600
  %v618 = vmul.f32 %v617, 1.442695
  %v619 = vpow.pop %v618
  %v620 = vadd.f32 %v619, 1.0
  %v621 = vrcp.pop %v620
  %v622 = vmul.f32 %v620, %v621
  %v623 = vsub.f32 1.0, %v622
  %v624 = vmul.f32 %v621, %v623
  %v625 = vadd.f32 %v621, %v624
  %vm626 = vweird.f32 %v620
  %vm627 = vweird.f32 %v621
  %vm628 = vmor %vm626, %vm627
  %v629 = vsel %vm628, %v621, %v625
  %v630 = vand.u32 2147483647, %v620
  %vm631 = vcmp.eq.f32.partialorder %v630, 8.507059e+37
  %v632 = vand.u32 %v620, 2147483648
  %v633 = vor.u32 1.1754944e-38, %v632
  %v634 = vsel %vm631, %v633, %v629
  %v635 = vmul.f32 1.0, %v634
  %v636 = vsub.f32 0.0, %v608
  %v637 = vmul.f32 %v636, 1.442695
  %v638 = vpow.pop %v637
  %v639 = vadd.f32 %v638, 1.0
  %v640 = vrcp.pop %v639
  %v641 = vmul.f32 %v639, %v640
  %v642 = vsub.f32 1.0, %v641
  %v643 = vmul.f32 %v640, %v642
  %v644 = vadd.f32 %v640, %v643
  %vm645 = vweird.f32 %v639
  %vm646 = vweird.f32 %v640
  %vm647 = vmor %vm645, %vm646
  %v648 = vsel %vm647, %v640, %v644
  %v649 = vand.u32 2147483647, %v639
  %vm650 = vcmp.eq.f32.partialorder %v649, 8.507059e+37
  %v651 = vand.u32 %v639, 2147483648
  %v652 = vor.u32 1.1754944e-38, %v651
  %v653 = vsel %vm650, %v652, %v648
  %v654 = vmul.f32 1.0, %v653
  %v655 = vsub.f32 0.0, %v616
  %v656 = vmul.f32 %v655, 1.442695
  %v657 = vpow.pop %v656
  %v658 = vadd.f32 %v657, 1.0
  %v659 = vrcp.pop %v658
  %v660 = vmul.f32 %v658, %v659
  %v661 = vsub.f32 1.0, %v660
  %v662 = vmul.f32 %v659, %v661
  %v663 = vadd.f32 %v659, %v662
  %vm664 = vweird.f32 %v658
  %vm665 = vweird.f32 %v659
  %vm666 = vmor %vm664, %vm665
  %v667 = vsel %vm666, %v659, %v663
  %v668 = vand.u32 2147483647, %v658
  %vm669 = vcmp.eq.f32.partialorder %v668, 8.507059e+37
  %v670 = vand.u32 %v658, 2147483648
  %v671 = vor.u32 1.1754944e-38, %v670
  %v672 = vsel %vm669, %v671, %v667
  %v673 = vmul.f32 1.0, %v672
  %v674 = vmax.f32 %v635, %v654
  %v675 = vmax.f32 %v674, %v673
  %v676 = vsub.f32 %v635, %v675
  %v677 = vmul.f32 %v676, 1.442695
  %v678 = vpow.pop %v677
  %v679 = vsub.f32 %v654, %v675
  %v680 = vmul.f32 %v679, 1.442695
  %v681 = vpow.pop %v680
  %v682 = vsub.f32 %v673, %v675
  %v683 = vmul.f32 %v682, 1.442695
  %v684 = vpow.pop %v683
  %v685 = vadd.f32 %v678, %v681
  %v686 = vadd.f32 %v685, %v684
  %v687 = vrcp.pop %v686
  %v688 = vmul.f32 %v686, %v687
  %v689 = vsub.f32 1.0, %v688
  %v690 = vmul.f32 %v687, %v689
  %v691 = vadd.f32 %v687, %v690
  %vm692 = vweird.f32 %v686
  %vm693 = vweird.f32 %v687
  %vm694 = vmor %vm692, %vm693
  %v695 = vsel %vm694, %v687, %v691
  %v696 = vand.u32 2147483647, %v686
  %vm697 = vcmp.eq.f32.partialorder %v696, 8.507059e+37
  %v698 = vand.u32 %v686, 2147483648
  %v699 = vor.u32 1.1754944e-38, %v698
  %v700 = vsel %vm697, %v699, %v695
  %v701 = vmul.f32 1.0, %v700
  %v702 = vmul.f32 %v678, %v701
  %v703 = vmul.f32 %v681, %v701
  %v704 = vmul.f32 %v684, %v701
  %706 = vset.pattern.permute.xlu0 0
  %707 = vperm.xlu0 %706, %v702
  %v708 = vpop.permute.xlu0 %707
  %v710 = vmul.f32 %v264, %v708
  %v711 = vmul.f32 %v344, %v708
  %v712 = vld [vmem:[%s7] sm:$0xff]
  %v713 = vld [vmem:[%s7 + $0x8] sm:$0xff]
  %v714 = vld [vmem:[%s7 + $0x10] sm:$0xff]
  %v715 = vld [vmem:[%s7 + $0x18] sm:$0xff]
  %v716 = vld [vmem:[%s7 + $0x20] sm:$0xff]
  %v717 = vld [vmem:[%s7 + $0x28] sm:$0xff]
  %v718 = vld [vmem:[%s7 + $0x30] sm:$0xff]
  %v719 = vld [vmem:[%s7 + $0x38] sm:$0xff]
  %v720 = vld [vmem:[%s7 + $0x40] sm:$0xff]
  %v721 = vld [vmem:[%s7 + $0x48] sm:$0xff]
  %v722 = vld [vmem:[%s7 + $0x50] sm:$0xff]
  %v723 = vld [vmem:[%s7 + $0x58] sm:$0xff]
  %v724 = vld [vmem:[%s7 + $0x60] sm:$0xff]
  %v725 = vld [vmem:[%s7 + $0x68] sm:$0xff]
  %v726 = vld [vmem:[%s7 + $0x70] sm:$0xff]
  %v727 = vld [vmem:[%s7 + $0x78] sm:$0xff]
  %v728 = vld [vmem:[%s7 + $0x80] sm:$0xff]
  %v729 = vld [vmem:[%s7 + $0x88] sm:$0xff]
  %v730 = vld [vmem:[%s7 + $0x90] sm:$0xff]
  %v731 = vld [vmem:[%s7 + $0x98] sm:$0xff]
  %v732 = vld [vmem:[%s7 + $0xa0] sm:$0xff]
  %v733 = vld [vmem:[%s7 + $0xa8] sm:$0xff]
  %v734 = vld [vmem:[%s7 + $0xb0] sm:$0xff]
  %v735 = vld [vmem:[%s7 + $0xb8] sm:$0xff]
  %v736 = vld [vmem:[%s7 + $0xc0] sm:$0xff]
  %v737 = vld [vmem:[%s7 + $0xc8] sm:$0xff]
  %v738 = vld [vmem:[%s7 + $0xd0] sm:$0xff]
  %v739 = vld [vmem:[%s7 + $0xd8] sm:$0xff]
  %v740 = vld [vmem:[%s7 + $0xe0] sm:$0xff]
  %v741 = vld [vmem:[%s7 + $0xe8] sm:$0xff]
  %v742 = vld [vmem:[%s7 + $0xf0] sm:$0xff]
  %v743 = vld [vmem:[%s7 + $0xf8] sm:$0xff]
  %745 = vset.pattern.permute.xlu0 0
  %746 = vperm.xlu0 %745, %v703
  %v747 = vpop.permute.xlu0 %746
  %v749 = vmul.f32 %v439, %v747
  %v750 = vmul.f32 %v519, %v747
  %v751 = vld [vmem:[%s8] sm:$0xff]
  %v752 = vld [vmem:[%s8 + $0x8] sm:$0xff]
  %v753 = vld [vmem:[%s8 + $0x10] sm:$0xff]
  %v754 = vld [vmem:[%s8 + $0x18] sm:$0xff]
  %v755 = vld [vmem:[%s8 + $0x20] sm:$0xff]
  %v756 = vld [vmem:[%s8 + $0x28] sm:$0xff]
  %v757 = vld [vmem:[%s8 + $0x30] sm:$0xff]
  %v758 = vld [vmem:[%s8 + $0x38] sm:$0xff]
  %v759 = vld [vmem:[%s8 + $0x40] sm:$0xff]
  %v760 = vld [vmem:[%s8 + $0x48] sm:$0xff]
  %v761 = vld [vmem:[%s8 + $0x50] sm:$0xff]
  %v762 = vld [vmem:[%s8 + $0x58] sm:$0xff]
  %v763 = vld [vmem:[%s8 + $0x60] sm:$0xff]
  %v764 = vld [vmem:[%s8 + $0x68] sm:$0xff]
  %v765 = vld [vmem:[%s8 + $0x70] sm:$0xff]
  %v766 = vld [vmem:[%s8 + $0x78] sm:$0xff]
  %v767 = vld [vmem:[%s8 + $0x80] sm:$0xff]
  %v768 = vld [vmem:[%s8 + $0x88] sm:$0xff]
  %v769 = vld [vmem:[%s8 + $0x90] sm:$0xff]
  %v770 = vld [vmem:[%s8 + $0x98] sm:$0xff]
  %v771 = vld [vmem:[%s8 + $0xa0] sm:$0xff]
  %v772 = vld [vmem:[%s8 + $0xa8] sm:$0xff]
  %v773 = vld [vmem:[%s8 + $0xb0] sm:$0xff]
  %v774 = vld [vmem:[%s8 + $0xb8] sm:$0xff]
  %v775 = vld [vmem:[%s8 + $0xc0] sm:$0xff]
  %v776 = vld [vmem:[%s8 + $0xc8] sm:$0xff]
  %v777 = vld [vmem:[%s8 + $0xd0] sm:$0xff]
  %v778 = vld [vmem:[%s8 + $0xd8] sm:$0xff]
  %v779 = vld [vmem:[%s8 + $0xe0] sm:$0xff]
  %v780 = vld [vmem:[%s8 + $0xe8] sm:$0xff]
  %v781 = vld [vmem:[%s8 + $0xf0] sm:$0xff]
  %v782 = vld [vmem:[%s8 + $0xf8] sm:$0xff]
  %783 = vmatpush.msra.mxu0 %v766
  %784 = vmatpush.msra.mxu0 %v765
  %785 = vmatpush.msra.mxu0 %v764
  %786 = vmatpush.msra.mxu0 %v763
  %787 = vmatpush.msra.mxu0 %v762
  %788 = vmatpush.msra.mxu0 %v761
  %789 = vmatpush.msra.mxu0 %v760
  %790 = vmatpush.msra.mxu0 %v759
  %791 = vmatpush.msra.mxu0 %v758
  %792 = vmatpush.msra.mxu0 %v757
  %793 = vmatpush.msra.mxu0 %v756
  %794 = vmatpush.msra.mxu0 %v755
  %795 = vmatpush.msra.mxu0 %v754
  %796 = vmatpush.msra.mxu0 %v753
  %797 = vmatpush.msra.mxu0 %v752
  %798 = vmatpush.msra.mxu0 %v751
  %799 = vmatmul.f32.gmra.mxu0 %v749
  %v800 = vpop.f32.mrf.mxu0
  %v801 = vadd.f32 0.0, %v800
  %802 = vdwg.mxu0
  %803 = vmatpush.msra.mxu0 %v782
  %804 = vmatpush.msra.mxu0 %v781
  %805 = vmatpush.msra.mxu0 %v780
  %806 = vmatpush.msra.mxu0 %v779
  %807 = vmatpush.msra.mxu0 %v778
  %808 = vmatpush.msra.mxu0 %v777
  %809 = vmatpush.msra.mxu0 %v776
  %810 = vmatpush.msra.mxu0 %v775
  %811 = vmatpush.msra.mxu0 %v774
  %812 = vmatpush.msra.mxu0 %v773
  %813 = vmatpush.msra.mxu0 %v772
  %814 = vmatpush.msra.mxu0 %v771
  %815 = vmatpush.msra.mxu0 %v770
  %816 = vmatpush.msra.mxu0 %v769
  %817 = vmatpush.msra.mxu0 %v768
  %818 = vmatpush.msra.mxu0 %v767
  %819 = vmatmul.f32.gmra.mxu0 %v750
  %v820 = vpop.f32.mrf.mxu0
  %v821 = vadd.f32 %v801, %v820
  %822 = vdwg.mxu0
  %823 = vmatpush.msra.mxu0 %v727
  %824 = vmatpush.msra.mxu0 %v726
  %825 = vmatpush.msra.mxu0 %v725
  %826 = vmatpush.msra.mxu0 %v724
  %827 = vmatpush.msra.mxu0 %v723
  %828 = vmatpush.msra.mxu0 %v722
  %829 = vmatpush.msra.mxu0 %v721
  %830 = vmatpush.msra.mxu0 %v720
  %831 = vmatpush.msra.mxu0 %v719
  %832 = vmatpush.msra.mxu0 %v718
  %833 = vmatpush.msra.mxu0 %v717
  %834 = vmatpush.msra.mxu0 %v716
  %835 = vmatpush.msra.mxu0 %v715
  %836 = vmatpush.msra.mxu0 %v714
  %837 = vmatpush.msra.mxu0 %v713
  %838 = vmatpush.msra.mxu0 %v712
  %839 = vmatmul.f32.gmra.mxu0 %v710
  %v840 = vpop.f32.mrf.mxu0
  %v841 = vadd.f32 %v821, %v840
  %842 = vdwg.mxu0
  %843 = vmatpush.msra.mxu0 %v743
  %844 = vmatpush.msra.mxu0 %v742
  %845 = vmatpush.msra.mxu0 %v741
  %846 = vmatpush.msra.mxu0 %v740
  %847 = vmatpush.msra.mxu0 %v739
  %848 = vmatpush.msra.mxu0 %v738
  %849 = vmatpush.msra.mxu0 %v737
  %850 = vmatpush.msra.mxu0 %v736
  %851 = vmatpush.msra.mxu0 %v735
  %852 = vmatpush.msra.mxu0 %v734
  %853 = vmatpush.msra.mxu0 %v733
  %854 = vmatpush.msra.mxu0 %v732
  %855 = vmatpush.msra.mxu0 %v731
  %856 = vmatpush.msra.mxu0 %v730
  %857 = vmatpush.msra.mxu0 %v729
  %858 = vmatpush.msra.mxu0 %v728
  %859 = vmatmul.f32.gmra.mxu0 %v711
  %v860 = vpop.f32.mrf.mxu0
  %v861 = vadd.f32 %v841, %v860
  %862 = vdwg.mxu0
  %864 = vset.pattern.permute.xlu0 0
  %865 = vperm.xlu0 %864, %v704
  %v866 = vpop.permute.xlu0 %865
  %v868 = vmul.f32 %v560, %v866
  %v869 = vmul.f32 %v580, %v866
  %v870 = vld [vmem:[%s9] sm:$0xff]
  %v871 = vld [vmem:[%s9 + $0x8] sm:$0xff]
  %v872 = vld [vmem:[%s9 + $0x10] sm:$0xff]
  %v873 = vld [vmem:[%s9 + $0x18] sm:$0xff]
  %v874 = vld [vmem:[%s9 + $0x20] sm:$0xff]
  %v875 = vld [vmem:[%s9 + $0x28] sm:$0xff]
  %v876 = vld [vmem:[%s9 + $0x30] sm:$0xff]
  %v877 = vld [vmem:[%s9 + $0x38] sm:$0xff]
  %v878 = vld [vmem:[%s9 + $0x40] sm:$0xff]
  %v879 = vld [vmem:[%s9 + $0x48] sm:$0xff]
  %v880 = vld [vmem:[%s9 + $0x50] sm:$0xff]
  %v881 = vld [vmem:[%s9 + $0x58] sm:$0xff]
  %v882 = vld [vmem:[%s9 + $0x60] sm:$0xff]
  %v883 = vld [vmem:[%s9 + $0x68] sm:$0xff]
  %v884 = vld [vmem:[%s9 + $0x70] sm:$0xff]
  %v885 = vld [vmem:[%s9 + $0x78] sm:$0xff]
  %v886 = vld [vmem:[%s9 + $0x80] sm:$0xff]
  %v887 = vld [vmem:[%s9 + $0x88] sm:$0xff]
  %v888 = vld [vmem:[%s9 + $0x90] sm:$0xff]
  %v889 = vld [vmem:[%s9 + $0x98] sm:$0xff]
  %v890 = vld [vmem:[%s9 + $0xa0] sm:$0xff]
  %v891 = vld [vmem:[%s9 + $0xa8] sm:$0xff]
  %v892 = vld [vmem:[%s9 + $0xb0] sm:$0xff]
  %v893 = vld [vmem:[%s9 + $0xb8] sm:$0xff]
  %v894 = vld [vmem:[%s9 + $0xc0] sm:$0xff]
  %v895 = vld [vmem:[%s9 + $0xc8] sm:$0xff]
  %v896 = vld [vmem:[%s9 + $0xd0] sm:$0xff]
  %v897 = vld [vmem:[%s9 + $0xd8] sm:$0xff]
  %v898 = vld [vmem:[%s9 + $0xe0] sm:$0xff]
  %v899 = vld [vmem:[%s9 + $0xe8] sm:$0xff]
  %v900 = vld [vmem:[%s9 + $0xf0] sm:$0xff]
  %v901 = vld [vmem:[%s9 + $0xf8] sm:$0xff]
  %902 = vmatpush.msra.mxu0 %v885
  %903 = vmatpush.msra.mxu0 %v884
  %904 = vmatpush.msra.mxu0 %v883
  %905 = vmatpush.msra.mxu0 %v882
  %906 = vmatpush.msra.mxu0 %v881
  %907 = vmatpush.msra.mxu0 %v880
  %908 = vmatpush.msra.mxu0 %v879
  %909 = vmatpush.msra.mxu0 %v878
  %910 = vmatpush.msra.mxu0 %v877
  %911 = vmatpush.msra.mxu0 %v876
  %912 = vmatpush.msra.mxu0 %v875
  %913 = vmatpush.msra.mxu0 %v874
  %914 = vmatpush.msra.mxu0 %v873
  %915 = vmatpush.msra.mxu0 %v872
  %916 = vmatpush.msra.mxu0 %v871
  %917 = vmatpush.msra.mxu0 %v870
  %918 = vmatmul.f32.gmra.mxu0 %v868
  %v919 = vpop.f32.mrf.mxu0
  %v920 = vadd.f32 0.0, %v919
  %921 = vdwg.mxu0
  %922 = vmatpush.msra.mxu0 %v901
  %923 = vmatpush.msra.mxu0 %v900
  %924 = vmatpush.msra.mxu0 %v899
  %925 = vmatpush.msra.mxu0 %v898
  %926 = vmatpush.msra.mxu0 %v897
  %927 = vmatpush.msra.mxu0 %v896
  %928 = vmatpush.msra.mxu0 %v895
  %929 = vmatpush.msra.mxu0 %v894
  %930 = vmatpush.msra.mxu0 %v893
  %931 = vmatpush.msra.mxu0 %v892
  %932 = vmatpush.msra.mxu0 %v891
  %933 = vmatpush.msra.mxu0 %v890
  %934 = vmatpush.msra.mxu0 %v889
  %935 = vmatpush.msra.mxu0 %v888
  %936 = vmatpush.msra.mxu0 %v887
  %937 = vmatpush.msra.mxu0 %v886
  %938 = vmatmul.f32.gmra.mxu0 %v869
  %v939 = vpop.f32.mrf.mxu0
  %v940 = vadd.f32 %v920, %v939
  %941 = vdwg.mxu0
  %v942 = vadd.f32 %v861, %v940
  %v943 = vsel %vm591, %v942, 0.0
  %v944 = vrot.slane %v943, 4
  %v945 = vadd.f32 %v943, %v944
  %v946 = vrot.slane %v945, 2
  %v947 = vadd.f32 %v945, %v946
  %v948 = vrot.slane %v947, 1
  %v949 = vadd.f32 %v947, %v948
  %v950 = vrcp.pop 4.0
  %v951 = vmul.f32 4.0, %v950
  %v952 = vsub.f32 1.0, %v951
  %v953 = vmul.f32 %v950, %v952
  %v954 = vadd.f32 %v950, %v953
  %vm955 = vweird.f32 %v950
  %v956 = vsel %vm955, %v950, %v954
  %v957 = vmul.f32 %v949, %v956
  %v958 = vsub.f32 %v942, %v957
  %v959 = vmul.f32 %v958, %v958
  %v960 = vsel %vm591, %v959, 0.0
  %v961 = vrot.slane %v960, 4
  %v962 = vadd.f32 %v960, %v961
  %v963 = vrot.slane %v962, 2
  %v964 = vadd.f32 %v962, %v963
  %v965 = vrot.slane %v964, 1
  %v966 = vadd.f32 %v964, %v965
  %v967 = vmul.f32 %v966, %v956
  %v968 = vadd.f32 %v967, 1e-05
  %v969 = vrsqrt.pop %v968
  %v970 = vmul.f32 %v969, %v968
  %v971 = vmul.f32 %v970, %v969
  %v972 = vmul.f32 0.5, %v971
  %v973 = vsub.f32 1.5, %v972
  %v974 = vmul.f32 %v969, %v973
  %vm975 = vweird.f32 %v968
  %vm976 = vweird.f32 %v969
  %vm977 = vmor %vm975, %vm976
  %v978 = vsel %vm977, %v969, %v974
  %v979 = vmul.f32 %v958, %v978
  %v980 = vld [vmem:[%s10] sm:$0x1]
  %v982 = vperm.slane %v980, 0
  %v984 = vmul.f32 %v979, %v982
  %v985 = vld [vmem:[%s11] sm:$0x1]
  %v987 = vperm.slane %v985, 0
  %v989 = vadd.f32 %v984, %v987
  %990 = vst [vmem:[%s12] sm:$0xf] %v989
  // Predicated region
  $region50: #{molvis_gnn_forward.9} parent=0 // pred_check
    _
  $region51: #{molvis_gnn_forward.9} parent=0 // pred_check_branch
    %992 = sbr.rel (0) target = $region53
  $region52: #{molvis_gnn_forward.9} parent=0 // pred_region
    _
  $region53: #{molvis_gnn_forward.9} parent=0 // pred_fallthru
    _
  // Predicated region
  $region54: #{molvis_gnn_forward.9} parent=0 // pred_check
    _
  $region55: #{molvis_gnn_forward.9} parent=0 // pred_check_branch
    %994 = sbr.rel (0) target = $region57
  $region56: #{molvis_gnn_forward.9} parent=0 // pred_region
    _
  $region57: #{molvis_gnn_forward.9} parent=0 // pred_fallthru
    _

// kernel: molvis_gnn_forward.10
$region0: #{molvis_gnn_forward.10}
  #allocation0 [shape = 'u32[]', space=smem, size = 0x4, offset = 0x4, fixed_abs, tag = 'smem constant byte address 0x4 - core index']
  #allocation1 [shape = 'u32[72,128]{1,0:T(1,128)}', space=vmem, size = 0x9000, scoped, tag = 'internal scratch']
  %s0 = inlined_call_operand.vmem [shape: f32[4,124,2], index: 0, kind: input, shape index: {}]
  %s1 = inlined_call_operand.vmem [shape: f32[2,32], index: 1, kind: input, shape index: {}]
  %s2 = inlined_call_operand.hbm [shape: f32[1,32], index: 2, kind: input, shape index: {}]
  %s3 = inlined_call_operand.vmem [shape: f32[124,32], index: 3, kind: output, shape index: {}]
  %s4 = sld [smem:[#allocation0]]
  $region26: #{molvis_gnn_forward.10} parent=0
    _
  %s6 = ssub.s32 1, %s4
  %s7 = scalar_select 0, %s6, %s4
  $region1: #{molvis_gnn_forward.10} parent=0
    #allocation2 [shape = 'u8[512]{0}', space=vmem, size = 0x400, scoped, tag = 'input window, operand 2, single buffered']
    #allocation3 [shape = 's32[1]{0}', space=sflag, size = 0x4, scoped, tag = 'scoped memory for molvis_gnn_forward.10']
    %8 = vsyncpa [#allocation3], 0
    // Predicated region
    $region2: #{molvis_gnn_forward.10} parent=1 // pred_check
      _
    $region3: #{molvis_gnn_forward.10} parent=1 // pred_check_branch
      %10 = sbr.rel (0) target = $region5
    $region4: #{molvis_gnn_forward.10} parent=1 // pred_region
      _
    $region5: #{molvis_gnn_forward.10} parent=1 // pred_fallthru
      _
    // Predicated region
    $region6: #{molvis_gnn_forward.10} parent=1 // pred_check
      _
    $region7: #{molvis_gnn_forward.10} parent=1 // pred_check_branch
      %12 = sbr.rel (0) target = $region9
    $region8: #{molvis_gnn_forward.10} parent=1 // pred_region
      _
    $region9: #{molvis_gnn_forward.10} parent=1 // pred_fallthru
      _
    // Predicated region
    $region10: #{molvis_gnn_forward.10} parent=1 // pred_check
      _
    $region11: #{molvis_gnn_forward.10} parent=1 // pred_check_branch
      %14 = sbr.rel (0) target = $region13
    $region12: #{molvis_gnn_forward.10} parent=1 // pred_region
      %16 = vsyncadd [#allocation3], 0
      %s18 = sshll.u32 %s2, 4
      %s19 = int_to_ptr.hbm [resolvable:$true] %s18
      %s20 = sshll.u32 [#allocation2], 4
      %s21 = int_to_ptr.vmem [resolvable:$true] %s20
      %23 = dma.hbm_to_vmem [thread:$0]  %s19, 16, %s21, [#allocation3]
    $region13: #{molvis_gnn_forward.10} parent=1 // pred_fallthru
      _
    // Predicated region
    $region14: #{molvis_gnn_forward.10} parent=1 // pred_check
      _
    $region15: #{molvis_gnn_forward.10} parent=1 // pred_check_branch
      %25 = sbr.rel (0) target = $region17
    $region16: #{molvis_gnn_forward.10} parent=1 // pred_region
      %27 = dma.done [#allocation3], 16
    $region17: #{molvis_gnn_forward.10} parent=1 // pred_fallthru
      _
    %v28 = vld [vmem:[%s1] sm:$0x3]
    %v29 = vld [vmem:[#allocation2] sm:$0x1]
    %v30 = vld [vmem:[%s0] sm:$0xff]
    %v31 = vld [vmem:[%s0 + $0x8] sm:$0xff]
    %v32 = vld [vmem:[%s0 + $0x10] sm:$0xff]
    %v33 = vld [vmem:[%s0 + $0x18] sm:$0xff]
    %v34 = vld [vmem:[%s0 + $0x20] sm:$0xff]
    %v35 = vld [vmem:[%s0 + $0x28] sm:$0xff]
    %v36 = vld [vmem:[%s0 + $0x30] sm:$0xff]
    %v37 = vld [vmem:[%s0 + $0x38] sm:$0xff]
    %v38 = vld [vmem:[%s0 + $0x40] sm:$0xff]
    %v39 = vld [vmem:[%s0 + $0x48] sm:$0xff]
    %v40 = vld [vmem:[%s0 + $0x50] sm:$0xff]
    %v41 = vld [vmem:[%s0 + $0x58] sm:$0xff]
    %v42 = vld [vmem:[%s0 + $0x60] sm:$0xff]
    %v43 = vld [vmem:[%s0 + $0x68] sm:$0xff]
    %v44 = vld [vmem:[%s0 + $0x70] sm:$0xff]
    %v45 = vld [vmem:[%s0 + $0x78] sm:$0xf]
    %47 = vset.pattern.permute.xlu0 0
    %48 = vperm.xlu0 %47, %v30
    %v49 = vpop.permute.xlu0 %48
    %52 = vset.pattern.permute.xlu0 0
    %53 = vperm.xlu0 %52, %v31
    %v54 = vpop.permute.xlu0 %53
    %57 = vset.pattern.permute.xlu0 0
    %58 = vperm.xlu0 %57, %v32
    %v59 = vpop.permute.xlu0 %58
    %62 = vset.pattern.permute.xlu0 0
    %63 = vperm.xlu0 %62, %v33
    %v64 = vpop.permute.xlu0 %63
    %67 = vset.pattern.permute.xlu0 0
    %68 = vperm.xlu0 %67, %v34
    %v69 = vpop.permute.xlu0 %68
    %72 = vset.pattern.permute.xlu0 0
    %73 = vperm.xlu0 %72, %v35
    %v74 = vpop.permute.xlu0 %73
    %77 = vset.pattern.permute.xlu0 0
    %78 = vperm.xlu0 %77, %v36
    %v79 = vpop.permute.xlu0 %78
    %82 = vset.pattern.permute.xlu0 0
    %83 = vperm.xlu0 %82, %v37
    %v84 = vpop.permute.xlu0 %83
    %87 = vset.pattern.permute.xlu0 0
    %88 = vperm.xlu0 %87, %v38
    %v89 = vpop.permute.xlu0 %88
    %92 = vset.pattern.permute.xlu0 0
    %93 = vperm.xlu0 %92, %v39
    %v94 = vpop.permute.xlu0 %93
    %97 = vset.pattern.permute.xlu0 0
    %98 = vperm.xlu0 %97, %v40
    %v99 = vpop.permute.xlu0 %98
    %102 = vset.pattern.permute.xlu0 0
    %103 = vperm.xlu0 %102, %v41
    %v104 = vpop.permute.xlu0 %103
    %107 = vset.pattern.permute.xlu0 0
    %108 = vperm.xlu0 %107, %v42
    %v109 = vpop.permute.xlu0 %108
    %112 = vset.pattern.permute.xlu0 0
    %113 = vperm.xlu0 %112, %v43
    %v114 = vpop.permute.xlu0 %113
    %117 = vset.pattern.permute.xlu0 0
    %118 = vperm.xlu0 %117, %v44
    %v119 = vpop.permute.xlu0 %118
    %122 = vset.pattern.permute.xlu0 0
    %123 = vperm.xlu0 %122, %v45
    %v124 = vpop.permute.xlu0 %123
    %v126 = vperm.slane %v28, 0
    %v127 = vmul.f32 %v49, %v126
    %v128 = vmul.f32 %v54, %v126
    %v129 = vmul.f32 %v59, %v126
    %v130 = vmul.f32 %v64, %v126
    %v131 = vmul.f32 %v69, %v126
    %v132 = vmul.f32 %v74, %v126
    %v133 = vmul.f32 %v79, %v126
    %v134 = vmul.f32 %v84, %v126
    %v135 = vmul.f32 %v89, %v126
    %v136 = vmul.f32 %v94, %v126
    %v137 = vmul.f32 %v99, %v126
    %v138 = vmul.f32 %v104, %v126
    %v139 = vmul.f32 %v109, %v126
    %v140 = vmul.f32 %v114, %v126
    %v141 = vmul.f32 %v119, %v126
    %v142 = vmul.f32 %v124, %v126
    %143 = vset.pattern.permute.xlu0 1
    %144 = vperm.xlu0 %143, %v30
    %v145 = vpop.permute.xlu0 %144
    %147 = vset.pattern.permute.xlu0 1
    %148 = vperm.xlu0 %147, %v31
    %v149 = vpop.permute.xlu0 %148
    %151 = vset.pattern.permute.xlu0 1
    %152 = vperm.xlu0 %151, %v32
    %v153 = vpop.permute.xlu0 %152
    %155 = vset.pattern.permute.xlu0 1
    %156 = vperm.xlu0 %155, %v33
    %v157 = vpop.permute.xlu0 %156
    %159 = vset.pattern.permute.xlu0 1
    %160 = vperm.xlu0 %159, %v34
    %v161 = vpop.permute.xlu0 %160
    %163 = vset.pattern.permute.xlu0 1
    %164 = vperm.xlu0 %163, %v35
    %v165 = vpop.permute.xlu0 %164
    %167 = vset.pattern.permute.xlu0 1
    %168 = vperm.xlu0 %167, %v36
    %v169 = vpop.permute.xlu0 %168
    %171 = vset.pattern.permute.xlu0 1
    %172 = vperm.xlu0 %171, %v37
    %v173 = vpop.permute.xlu0 %172
    %175 = vset.pattern.permute.xlu0 1
    %176 = vperm.xlu0 %175, %v38
    %v177 = vpop.permute.xlu0 %176
    %179 = vset.pattern.permute.xlu0 1
    %180 = vperm.xlu0 %179, %v39
    %v181 = vpop.permute.xlu0 %180
    %183 = vset.pattern.permute.xlu0 1
    %184 = vperm.xlu0 %183, %v40
    %v185 = vpop.permute.xlu0 %184
    %187 = vset.pattern.permute.xlu0 1
    %188 = vperm.xlu0 %187, %v41
    %v189 = vpop.permute.xlu0 %188
    %191 = vset.pattern.permute.xlu0 1
    %192 = vperm.xlu0 %191, %v42
    %v193 = vpop.permute.xlu0 %192
    %195 = vset.pattern.permute.xlu0 1
    %196 = vperm.xlu0 %195, %v43
    %v197 = vpop.permute.xlu0 %196
    %199 = vset.pattern.permute.xlu0 1
    %200 = vperm.xlu0 %199, %v44
    %v201 = vpop.permute.xlu0 %200
    %203 = vset.pattern.permute.xlu0 1
    %204 = vperm.xlu0 %203, %v45
    %v205 = vpop.permute.xlu0 %204
    %v207 = vperm.slane %v28, 1
    %v208 = vmul.f32 %v145, %v207
    %v209 = vmul.f32 %v149, %v207
    %v210 = vmul.f32 %v153, %v207
    %v211 = vmul.f32 %v157, %v207
    %v212 = vmul.f32 %v161, %v207
    %v213 = vmul.f32 %v165, %v207
    %v214 = vmul.f32 %v169, %v207
    %v215 = vmul.f32 %v173, %v207
    %v216 = vmul.f32 %v177, %v207
    %v217 = vmul.f32 %v181, %v207
    %v218 = vmul.f32 %v185, %v207
    %v219 = vmul.f32 %v189, %v207
    %v220 = vmul.f32 %v193, %v207
    %v221 = vmul.f32 %v197, %v207
    %v222 = vmul.f32 %v201, %v207
    %v223 = vmul.f32 %v205, %v207
    %v224 = vadd.f32 %v127, %v208
    %v225 = vadd.f32 %v128, %v209
    %v226 = vadd.f32 %v129, %v210
    %v227 = vadd.f32 %v130, %v211
    %v228 = vadd.f32 %v131, %v212
    %v229 = vadd.f32 %v132, %v213
    %v230 = vadd.f32 %v133, %v214
    %v231 = vadd.f32 %v134, %v215
    %v232 = vadd.f32 %v135, %v216
    %v233 = vadd.f32 %v136, %v217
    %v234 = vadd.f32 %v137, %v218
    %v235 = vadd.f32 %v138, %v219
    %v236 = vadd.f32 %v139, %v220
    %v237 = vadd.f32 %v140, %v221
    %v238 = vadd.f32 %v141, %v222
    %v239 = vadd.f32 %v142, %v223
    %v241 = vperm.slane %v29, 0
    %v243 = vadd.f32 %v224, %v241
    %v244 = vadd.f32 %v225, %v241
    %v245 = vadd.f32 %v226, %v241
    %v246 = vadd.f32 %v227, %v241
    %v247 = vadd.f32 %v228, %v241
    %v248 = vadd.f32 %v229, %v241
    %v249 = vadd.f32 %v230, %v241
    %v250 = vadd.f32 %v231, %v241
    %v251 = vadd.f32 %v232, %v241
    %v252 = vadd.f32 %v233, %v241
    %v253 = vadd.f32 %v234, %v241
    %v254 = vadd.f32 %v235, %v241
    %v255 = vadd.f32 %v236, %v241
    %v256 = vadd.f32 %v237, %v241
    %v257 = vadd.f32 %v238, %v241
    %v258 = vadd.f32 %v239, %v241
    %v259 = vmax.f32 %v243, 0.0
    %v260 = vmax.f32 %v244, 0.0
    %v261 = vmax.f32 %v245, 0.0
    %v262 = vmax.f32 %v246, 0.0
    %v263 = vmax.f32 %v247, 0.0
    %v264 = vmax.f32 %v248, 0.0
    %v265 = vmax.f32 %v249, 0.0
    %v266 = vmax.f32 %v250, 0.0
    %v267 = vmax.f32 %v251, 0.0
    %v268 = vmax.f32 %v252, 0.0
    %v269 = vmax.f32 %v253, 0.0
    %v270 = vmax.f32 %v254, 0.0
    %v271 = vmax.f32 %v255, 0.0
    %v272 = vmax.f32 %v256, 0.0
    %v273 = vmax.f32 %v257, 0.0
    %v274 = vmax.f32 %v258, 0.0
    %s275 = scalar_lea.vmem %s0, 128
    %v276 = vld [vmem:[%s275] sm:$0xff]
    %v277 = vld [vmem:[%s275 + $0x8] sm:$0xff]
    %v278 = vld [vmem:[%s275 + $0x10] sm:$0xff]
    %v279 = vld [vmem:[%s275 + $0x18] sm:$0xff]
    %v280 = vld [vmem:[%s275 + $0x20] sm:$0xff]
    %v281 = vld [vmem:[%s275 + $0x28] sm:$0xff]
    %v282 = vld [vmem:[%s275 + $0x30] sm:$0xff]
    %v283 = vld [vmem:[%s275 + $0x38] sm:$0xff]
    %v284 = vld [vmem:[%s275 + $0x40] sm:$0xff]
    %v285 = vld [vmem:[%s275 + $0x48] sm:$0xff]
    %v286 = vld [vmem:[%s275 + $0x50] sm:$0xff]
    %v287 = vld [vmem:[%s275 + $0x58] sm:$0xff]
    %v288 = vld [vmem:[%s275 + $0x60] sm:$0xff]
    %v289 = vld [vmem:[%s275 + $0x68] sm:$0xff]
    %v290 = vld [vmem:[%s275 + $0x70] sm:$0xff]
    %v291 = vld [vmem:[%s275 + $0x78] sm:$0xf]
    %293 = vset.pattern.permute.xlu0 0
    %294 = vperm.xlu0 %293, %v276
    %v295 = vpop.permute.xlu0 %294
    %298 = vset.pattern.permute.xlu0 0
    %299 = vperm.xlu0 %298, %v277
    %v300 = vpop.permute.xlu0 %299
    %303 = vset.pattern.permute.xlu0 0
    %304 = vperm.xlu0 %303, %v278
    %v305 = vpop.permute.xlu0 %304
    %308 = vset.pattern.permute.xlu0 0
    %309 = vperm.xlu0 %308, %v279
    %v310 = vpop.permute.xlu0 %309
    %313 = vset.pattern.permute.xlu0 0
    %314 = vperm.xlu0 %313, %v280
    %v315 = vpop.permute.xlu0 %314
    %318 = vset.pattern.permute.xlu0 0
    %319 = vperm.xlu0 %318, %v281
    %v320 = vpop.permute.xlu0 %319
    %323 = vset.pattern.permute.xlu0 0
    %324 = vperm.xlu0 %323, %v282
    %v325 = vpop.permute.xlu0 %324
    %328 = vset.pattern.permute.xlu0 0
    %329 = vperm.xlu0 %328, %v283
    %v330 = vpop.permute.xlu0 %329
    %333 = vset.pattern.permute.xlu0 0
    %334 = vperm.xlu0 %333, %v284
    %v335 = vpop.permute.xlu0 %334
    %338 = vset.pattern.permute.xlu0 0
    %339 = vperm.xlu0 %338, %v285
    %v340 = vpop.permute.xlu0 %339
    %343 = vset.pattern.permute.xlu0 0
    %344 = vperm.xlu0 %343, %v286
    %v345 = vpop.permute.xlu0 %344
    %348 = vset.pattern.permute.xlu0 0
    %349 = vperm.xlu0 %348, %v287
    %v350 = vpop.permute.xlu0 %349
    %353 = vset.pattern.permute.xlu0 0
    %354 = vperm.xlu0 %353, %v288
    %v355 = vpop.permute.xlu0 %354
    %358 = vset.pattern.permute.xlu0 0
    %359 = vperm.xlu0 %358, %v289
    %v360 = vpop.permute.xlu0 %359
    %363 = vset.pattern.permute.xlu0 0
    %364 = vperm.xlu0 %363, %v290
    %v365 = vpop.permute.xlu0 %364
    %368 = vset.pattern.permute.xlu0 0
    %369 = vperm.xlu0 %368, %v291
    %v370 = vpop.permute.xlu0 %369
    %v372 = vmul.f32 %v295, %v126
    %v373 = vmul.f32 %v300, %v126
    %v374 = vmul.f32 %v305, %v126
    %v375 = vmul.f32 %v310, %v126
    %v376 = vmul.f32 %v315, %v126
    %v377 = vmul.f32 %v320, %v126
    %v378 = vmul.f32 %v325, %v126
    %v379 = vmul.f32 %v330, %v126
    %v380 = vmul.f32 %v335, %v126
    %v381 = vmul.f32 %v340, %v126
    %v382 = vmul.f32 %v345, %v126
    %v383 = vmul.f32 %v350, %v126
    %v384 = vmul.f32 %v355, %v126
    %v385 = vmul.f32 %v360, %v126
    %v386 = vmul.f32 %v365, %v126
    %v387 = vmul.f32 %v370, %v126
    %388 = vset.pattern.permute.xlu0 1
    %389 = vperm.xlu0 %388, %v276
    %v390 = vpop.permute.xlu0 %389
    %392 = vset.pattern.permute.xlu0 1
    %393 = vperm.xlu0 %392, %v277
    %v394 = vpop.permute.xlu0 %393
    %396 = vset.pattern.permute.xlu0 1
    %397 = vperm.xlu0 %396, %v278
    %v398 = vpop.permute.xlu0 %397
    %400 = vset.pattern.permute.xlu0 1
    %401 = vperm.xlu0 %400, %v279
    %v402 = vpop.permute.xlu0 %401
    %404 = vset.pattern.permute.xlu0 1
    %405 = vperm.xlu0 %404, %v280
    %v406 = vpop.permute.xlu0 %405
    %408 = vset.pattern.permute.xlu0 1
    %409 = vperm.xlu0 %408, %v281
    %v410 = vpop.permute.xlu0 %409
    %412 = vset.pattern.permute.xlu0 1
    %413 = vperm.xlu0 %412, %v282
    %v414 = vpop.permute.xlu0 %413
    %416 = vset.pattern.permute.xlu0 1
    %417 = vperm.xlu0 %416, %v283
    %v418 = vpop.permute.xlu0 %417
    %420 = vset.pattern.permute.xlu0 1
    %421 = vperm.xlu0 %420, %v284
    %v422 = vpop.permute.xlu0 %421
    %424 = vset.pattern.permute.xlu0 1
    %425 = vperm.xlu0 %424, %v285
    %v426 = vpop.permute.xlu0 %425
    %428 = vset.pattern.permute.xlu0 1
    %429 = vperm.xlu0 %428, %v286
    %v430 = vpop.permute.xlu0 %429
    %432 = vset.pattern.permute.xlu0 1
    %433 = vperm.xlu0 %432, %v287
    %v434 = vpop.permute.xlu0 %433
    %436 = vset.pattern.permute.xlu0 1
    %437 = vperm.xlu0 %436, %v288
    %v438 = vpop.permute.xlu0 %437
    %440 = vset.pattern.permute.xlu0 1
    %441 = vperm.xlu0 %440, %v289
    %v442 = vpop.permute.xlu0 %441
    %444 = vset.pattern.permute.xlu0 1
    %445 = vperm.xlu0 %444, %v290
    %v446 = vpop.permute.xlu0 %445
    %448 = vset.pattern.permute.xlu0 1
    %449 = vperm.xlu0 %448, %v291
    %v450 = vpop.permute.xlu0 %449
    %v452 = vmul.f32 %v390, %v207
    %v453 = vmul.f32 %v394, %v207
    %v454 = vmul.f32 %v398, %v207
    %v455 = vmul.f32 %v402, %v207
    %v456 = vmul.f32 %v406, %v207
    %v457 = vmul.f32 %v410, %v207
    %v458 = vmul.f32 %v414, %v207
    %v459 = vmul.f32 %v418, %v207
    %v460 = vmul.f32 %v422, %v207
    %v461 = vmul.f32 %v426, %v207
    %v462 = vmul.f32 %v430, %v207
    %v463 = vmul.f32 %v434, %v207
    %v464 = vmul.f32 %v438, %v207
    %v465 = vmul.f32 %v442, %v207
    %v466 = vmul.f32 %v446, %v207
    %v467 = vmul.f32 %v450, %v207
    %v468 = vadd.f32 %v372, %v452
    %v469 = vadd.f32 %v373, %v453
    %v470 = vadd.f32 %v374, %v454
    %v471 = vadd.f32 %v375, %v455
    %v472 = vadd.f32 %v376, %v456
    %v473 = vadd.f32 %v377, %v457
    %v474 = vadd.f32 %v378, %v458
    %v475 = vadd.f32 %v379, %v459
    %v476 = vadd.f32 %v380, %v460
    %v477 = vadd.f32 %v381, %v461
    %v478 = vadd.f32 %v382, %v462
    %v479 = vadd.f32 %v383, %v463
    %v480 = vadd.f32 %v384, %v464
    %v481 = vadd.f32 %v385, %v465
    %v482 = vadd.f32 %v386, %v466
    %v483 = vadd.f32 %v387, %v467
    %v484 = vadd.f32 %v468, %v241
    %v485 = vadd.f32 %v469, %v241
    %v486 = vadd.f32 %v470, %v241
    %v487 = vadd.f32 %v471, %v241
    %v488 = vadd.f32 %v472, %v241
    %v489 = vadd.f32 %v473, %v241
    %v490 = vadd.f32 %v474, %v241
    %v491 = vadd.f32 %v475, %v241
    %v492 = vadd.f32 %v476, %v241
    %v493 = vadd.f32 %v477, %v241
    %v494 = vadd.f32 %v478, %v241
    %v495 = vadd.f32 %v479, %v241
    %v496 = vadd.f32 %v480, %v241
    %v497 = vadd.f32 %v481, %v241
    %v498 = vadd.f32 %v482, %v241
    %v499 = vadd.f32 %v483, %v241
    %v500 = vmax.f32 %v484, 0.0
    %v501 = vmax.f32 %v485, 0.0
    %v502 = vmax.f32 %v486, 0.0
    %v503 = vmax.f32 %v487, 0.0
    %v504 = vmax.f32 %v488, 0.0
    %v505 = vmax.f32 %v489, 0.0
    %v506 = vmax.f32 %v490, 0.0
    %v507 = vmax.f32 %v491, 0.0
    %v508 = vmax.f32 %v492, 0.0
    %v509 = vmax.f32 %v493, 0.0
    %v510 = vmax.f32 %v494, 0.0
    %v511 = vmax.f32 %v495, 0.0
    %v512 = vmax.f32 %v496, 0.0
    %v513 = vmax.f32 %v497, 0.0
    %v514 = vmax.f32 %v498, 0.0
    %v515 = vmax.f32 %v499, 0.0
    %v516 = vmax.f32 %v259, %v500
    %v517 = vmax.f32 %v260, %v501
    %v518 = vmax.f32 %v261, %v502
    %v519 = vmax.f32 %v262, %v503
    %v520 = vmax.f32 %v263, %v504
    %v521 = vmax.f32 %v264, %v505
    %v522 = vmax.f32 %v265, %v506
    %v523 = vmax.f32 %v266, %v507
    %v524 = vmax.f32 %v267, %v508
    %v525 = vmax.f32 %v268, %v509
    %v526 = vmax.f32 %v269, %v510
    %v527 = vmax.f32 %v270, %v511
    %v528 = vmax.f32 %v271, %v512
    %v529 = vmax.f32 %v272, %v513
    %v530 = vmax.f32 %v273, %v514
    %v531 = vmax.f32 %v274, %v515
    %s532 = scalar_lea.vmem %s0, 256
    %v533 = vld [vmem:[%s532] sm:$0xff]
    %v534 = vld [vmem:[%s532 + $0x8] sm:$0xff]
    %v535 = vld [vmem:[%s532 + $0x10] sm:$0xff]
    %v536 = vld [vmem:[%s532 + $0x18] sm:$0xff]
    %v537 = vld [vmem:[%s532 + $0x20] sm:$0xff]
    %v538 = vld [vmem:[%s532 + $0x28] sm:$0xff]
    %v539 = vld [vmem:[%s532 + $0x30] sm:$0xff]
    %v540 = vld [vmem:[%s532 + $0x38] sm:$0xff]
    %v541 = vld [vmem:[%s532 + $0x40] sm:$0xff]
    %v542 = vld [vmem:[%s532 + $0x48] sm:$0xff]
    %v543 = vld [vmem:[%s532 + $0x50] sm:$0xff]
    %v544 = vld [vmem:[%s532 + $0x58] sm:$0xff]
    %v545 = vld [vmem:[%s532 + $0x60] sm:$0xff]
    %v546 = vld [vmem:[%s532 + $0x68] sm:$0xff]
    %v547 = vld [vmem:[%s532 + $0x70] sm:$0xff]
    %v548 = vld [vmem:[%s532 + $0x78] sm:$0xf]
    %550 = vset.pattern.permute.xlu0 0
    %551 = vperm.xlu0 %550, %v533
    %v552 = vpop.permute.xlu0 %551
    %555 = vset.pattern.permute.xlu0 0
    %556 = vperm.xlu0 %555, %v534
    %v557 = vpop.permute.xlu0 %556
    %560 = vset.pattern.permute.xlu0 0
    %561 = vperm.xlu0 %560, %v535
    %v562 = vpop.permute.xlu0 %561
    %565 = vset.pattern.permute.xlu0 0
    %566 = vperm.xlu0 %565, %v536
    %v567 = vpop.permute.xlu0 %566
    %570 = vset.pattern.permute.xlu0 0
    %571 = vperm.xlu0 %570, %v537
    %v572 = vpop.permute.xlu0 %571
    %575 = vset.pattern.permute.xlu0 0
    %576 = vperm.xlu0 %575, %v538
    %v577 = vpop.permute.xlu0 %576
    %580 = vset.pattern.permute.xlu0 0
    %581 = vperm.xlu0 %580, %v539
    %v582 = vpop.permute.xlu0 %581
    %585 = vset.pattern.permute.xlu0 0
    %586 = vperm.xlu0 %585, %v540
    %v587 = vpop.permute.xlu0 %586
    %590 = vset.pattern.permute.xlu0 0
    %591 = vperm.xlu0 %590, %v541
    %v592 = vpop.permute.xlu0 %591
    %595 = vset.pattern.permute.xlu0 0
    %596 = vperm.xlu0 %595, %v542
    %v597 = vpop.permute.xlu0 %596
    %600 = vset.pattern.permute.xlu0 0
    %601 = vperm.xlu0 %600, %v543
    %v602 = vpop.permute.xlu0 %601
    %605 = vset.pattern.permute.xlu0 0
    %606 = vperm.xlu0 %605, %v544
    %v607 = vpop.permute.xlu0 %606
    %610 = vset.pattern.permute.xlu0 0
    %611 = vperm.xlu0 %610, %v545
    %v612 = vpop.permute.xlu0 %611
    %615 = vset.pattern.permute.xlu0 0
    %616 = vperm.xlu0 %615, %v546
    %v617 = vpop.permute.xlu0 %616
    %620 = vset.pattern.permute.xlu0 0
    %621 = vperm.xlu0 %620, %v547
    %v622 = vpop.permute.xlu0 %621
    %625 = vset.pattern.permute.xlu0 0
    %626 = vperm.xlu0 %625, %v548
    %v627 = vpop.permute.xlu0 %626
    %v629 = vmul.f32 %v552, %v126
    %v630 = vmul.f32 %v557, %v126
    %v631 = vmul.f32 %v562, %v126
    %v632 = vmul.f32 %v567, %v126
    %v633 = vmul.f32 %v572, %v126
    %v634 = vmul.f32 %v577, %v126
    %v635 = vmul.f32 %v582, %v126
    %v636 = vmul.f32 %v587, %v126
    %v637 = vmul.f32 %v592, %v126
    %v638 = vmul.f32 %v597, %v126
    %v639 = vmul.f32 %v602, %v126
    %v640 = vmul.f32 %v607, %v126
    %v641 = vmul.f32 %v612, %v126
    %v642 = vmul.f32 %v617, %v126
    %v643 = vmul.f32 %v622, %v126
    %v644 = vmul.f32 %v627, %v126
    %645 = vset.pattern.permute.xlu0 1
    %646 = vperm.xlu0 %645, %v533
    %v647 = vpop.permute.xlu0 %646
    %649 = vset.pattern.permute.xlu0 1
    %650 = vperm.xlu0 %649, %v534
    %v651 = vpop.permute.xlu0 %650
    %653 = vset.pattern.permute.xlu0 1
    %654 = vperm.xlu0 %653, %v535
    %v655 = vpop.permute.xlu0 %654
    %657 = vset.pattern.permute.xlu0 1
    %658 = vperm.xlu0 %657, %v536
    %v659 = vpop.permute.xlu0 %658
    %661 = vset.pattern.permute.xlu0 1
    %662 = vperm.xlu0 %661, %v537
    %v663 = vpop.permute.xlu0 %662
    %665 = vset.pattern.permute.xlu0 1
    %666 = vperm.xlu0 %665, %v538
    %v667 = vpop.permute.xlu0 %666
    %669 = vset.pattern.permute.xlu0 1
    %670 = vperm.xlu0 %669, %v539
    %v671 = vpop.permute.xlu0 %670
    %673 = vset.pattern.permute.xlu0 1
    %674 = vperm.xlu0 %673, %v540
    %v675 = vpop.permute.xlu0 %674
    %677 = vset.pattern.permute.xlu0 1
    %678 = vperm.xlu0 %677, %v541
    %v679 = vpop.permute.xlu0 %678
    %681 = vset.pattern.permute.xlu0 1
    %682 = vperm.xlu0 %681, %v542
    %v683 = vpop.permute.xlu0 %682
    %685 = vset.pattern.permute.xlu0 1
    %686 = vperm.xlu0 %685, %v543
    %v687 = vpop.permute.xlu0 %686
    %689 = vset.pattern.permute.xlu0 1
    %690 = vperm.xlu0 %689, %v544
    %v691 = vpop.permute.xlu0 %690
    %693 = vset.pattern.permute.xlu0 1
    %694 = vperm.xlu0 %693, %v545
    %v695 = vpop.permute.xlu0 %694
    %697 = vset.pattern.permute.xlu0 1
    %698 = vperm.xlu0 %697, %v546
    %v699 = vpop.permute.xlu0 %698
    %701 = vset.pattern.permute.xlu0 1
    %702 = vperm.xlu0 %701, %v547
    %v703 = vpop.permute.xlu0 %702
    %705 = vset.pattern.permute.xlu0 1
    %706 = vperm.xlu0 %705, %v548
    %v707 = vpop.permute.xlu0 %706
    %v709 = vmul.f32 %v647, %v207
    %v710 = vmul.f32 %v651, %v207
    %v711 = vmul.f32 %v655, %v207
    %v712 = vmul.f32 %v659, %v207
    %v713 = vmul.f32 %v663, %v207
    %v714 = vmul.f32 %v667, %v207
    %v715 = vmul.f32 %v671, %v207
    %v716 = vmul.f32 %v675, %v207
    %v717 = vmul.f32 %v679, %v207
    %v718 = vmul.f32 %v683, %v207
    %v719 = vmul.f32 %v687, %v207
    %v720 = vmul.f32 %v691, %v207
    %v721 = vmul.f32 %v695, %v207
    %v722 = vmul.f32 %v699, %v207
    %v723 = vmul.f32 %v703, %v207
    %v724 = vmul.f32 %v707, %v207
    %v725 = vadd.f32 %v629, %v709
    %v726 = vadd.f32 %v630, %v710
    %v727 = vadd.f32 %v631, %v711
    %v728 = vadd.f32 %v632, %v712
    %v729 = vadd.f32 %v633, %v713
    %v730 = vadd.f32 %v634, %v714
    %v731 = vadd.f32 %v635, %v715
    %v732 = vadd.f32 %v636, %v716
    %v733 = vadd.f32 %v637, %v717
    %v734 = vadd.f32 %v638, %v718
    %v735 = vadd.f32 %v639, %v719
    %v736 = vadd.f32 %v640, %v720
    %v737 = vadd.f32 %v641, %v721
    %v738 = vadd.f32 %v642, %v722
    %v739 = vadd.f32 %v643, %v723
    %v740 = vadd.f32 %v644, %v724
    %v741 = vadd.f32 %v725, %v241
    %v742 = vadd.f32 %v726, %v241
    %v743 = vadd.f32 %v727, %v241
    %v744 = vadd.f32 %v728, %v241
    %v745 = vadd.f32 %v729, %v241
    %v746 = vadd.f32 %v730, %v241
    %v747 = vadd.f32 %v731, %v241
    %v748 = vadd.f32 %v732, %v241
    %v749 = vadd.f32 %v733, %v241
    %v750 = vadd.f32 %v734, %v241
    %v751 = vadd.f32 %v735, %v241
    %v752 = vadd.f32 %v736, %v241
    %v753 = vadd.f32 %v737, %v241
    %v754 = vadd.f32 %v738, %v241
    %v755 = vadd.f32 %v739, %v241
    %v756 = vadd.f32 %v740, %v241
    %v757 = vmax.f32 %v741, 0.0
    %v758 = vmax.f32 %v742, 0.0
    %v759 = vmax.f32 %v743, 0.0
    %v760 = vmax.f32 %v744, 0.0
    %v761 = vmax.f32 %v745, 0.0
    %v762 = vmax.f32 %v746, 0.0
    %v763 = vmax.f32 %v747, 0.0
    %v764 = vmax.f32 %v748, 0.0
    %v765 = vmax.f32 %v749, 0.0
    %v766 = vmax.f32 %v750, 0.0
    %v767 = vmax.f32 %v751, 0.0
    %v768 = vmax.f32 %v752, 0.0
    %v769 = vmax.f32 %v753, 0.0
    %v770 = vmax.f32 %v754, 0.0
    %v771 = vmax.f32 %v755, 0.0
    %v772 = vmax.f32 %v756, 0.0
    %v773 = vmax.f32 %v516, %v757
    %v774 = vmax.f32 %v517, %v758
    %v775 = vmax.f32 %v518, %v759
    %v776 = vmax.f32 %v519, %v760
    %v777 = vmax.f32 %v520, %v761
    %v778 = vmax.f32 %v521, %v762
    %v779 = vmax.f32 %v522, %v763
    %v780 = vmax.f32 %v523, %v764
    %v781 = vmax.f32 %v524, %v765
    %v782 = vmax.f32 %v525, %v766
    %v783 = vmax.f32 %v526, %v767
    %v784 = vmax.f32 %v527, %v768
    %v785 = vmax.f32 %v528, %v769
    %v786 = vmax.f32 %v529, %v770
    %v787 = vmax.f32 %v530, %v771
    %v788 = vmax.f32 %v531, %v772
    %s789 = scalar_lea.vmem %s0, 384
    %v790 = vld [vmem:[%s789] sm:$0xff]
    %v791 = vld [vmem:[%s789 + $0x8] sm:$0xff]
    %v792 = vld [vmem:[%s789 + $0x10] sm:$0xff]
    %v793 = vld [vmem:[%s789 + $0x18] sm:$0xff]
    %v794 = vld [vmem:[%s789 + $0x20] sm:$0xff]
    %v795 = vld [vmem:[%s789 + $0x28] sm:$0xff]
    %v796 = vld [vmem:[%s789 + $0x30] sm:$0xff]
    %v797 = vld [vmem:[%s789 + $0x38] sm:$0xff]
    %v798 = vld [vmem:[%s789 + $0x40] sm:$0xff]
    %v799 = vld [vmem:[%s789 + $0x48] sm:$0xff]
    %v800 = vld [vmem:[%s789 + $0x50] sm:$0xff]
    %v801 = vld [vmem:[%s789 + $0x58] sm:$0xff]
    %v802 = vld [vmem:[%s789 + $0x60] sm:$0xff]
    %v803 = vld [vmem:[%s789 + $0x68] sm:$0xff]
    %v804 = vld [vmem:[%s789 + $0x70] sm:$0xff]
    %v805 = vld [vmem:[%s789 + $0x78] sm:$0xf]
    %807 = vset.pattern.permute.xlu0 0
    %808 = vperm.xlu0 %807, %v790
    %v809 = vpop.permute.xlu0 %808
    %812 = vset.pattern.permute.xlu0 0
    %813 = vperm.xlu0 %812, %v791
    %v814 = vpop.permute.xlu0 %813
    %817 = vset.pattern.permute.xlu0 0
    %818 = vperm.xlu0 %817, %v792
    %v819 = vpop.permute.xlu0 %818
    %822 = vset.pattern.permute.xlu0 0
    %823 = vperm.xlu0 %822, %v793
    %v824 = vpop.permute.xlu0 %823
    %827 = vset.pattern.permute.xlu0 0
    %828 = vperm.xlu0 %827, %v794
    %v829 = vpop.permute.xlu0 %828
    %832 = vset.pattern.permute.xlu0 0
    %833 = vperm.xlu0 %832, %v795
    %v834 = vpop.permute.xlu0 %833
    %837 = vset.pattern.permute.xlu0 0
    %838 = vperm.xlu0 %837, %v796
    %v839 = vpop.permute.xlu0 %838
    %842 = vset.pattern.permute.xlu0 0
    %843 = vperm.xlu0 %842, %v797
    %v844 = vpop.permute.xlu0 %843
    %847 = vset.pattern.permute.xlu0 0
    %848 = vperm.xlu0 %847, %v798
    %v849 = vpop.permute.xlu0 %848
    %852 = vset.pattern.permute.xlu0 0
    %853 = vperm.xlu0 %852, %v799
    %v854 = vpop.permute.xlu0 %853
    %857 = vset.pattern.permute.xlu0 0
    %858 = vperm.xlu0 %857, %v800
    %v859 = vpop.permute.xlu0 %858
    %862 = vset.pattern.permute.xlu0 0
    %863 = vperm.xlu0 %862, %v801
    %v864 = vpop.permute.xlu0 %863
    %867 = vset.pattern.permute.xlu0 0
    %868 = vperm.xlu0 %867, %v802
    %v869 = vpop.permute.xlu0 %868
    %872 = vset.pattern.permute.xlu0 0
    %873 = vperm.xlu0 %872, %v803
    %v874 = vpop.permute.xlu0 %873
    %877 = vset.pattern.permute.xlu0 0
    %878 = vperm.xlu0 %877, %v804
    %v879 = vpop.permute.xlu0 %878
    %882 = vset.pattern.permute.xlu0 0
    %883 = vperm.xlu0 %882, %v805
    %v884 = vpop.permute.xlu0 %883
    %v886 = vmul.f32 %v809, %v126
    %v887 = vmul.f32 %v814, %v126
    %v888 = vmul.f32 %v819, %v126
    %v889 = vmul.f32 %v824, %v126
    %v890 = vmul.f32 %v829, %v126
    %v891 = vmul.f32 %v834, %v126
    %v892 = vmul.f32 %v839, %v126
    %v893 = vmul.f32 %v844, %v126
    %v894 = vmul.f32 %v849, %v126
    %v895 = vmul.f32 %v854, %v126
    %v896 = vmul.f32 %v859, %v126
    %v897 = vmul.f32 %v864, %v126
    %v898 = vmul.f32 %v869, %v126
    %v899 = vmul.f32 %v874, %v126
    %v900 = vmul.f32 %v879, %v126
    %v901 = vmul.f32 %v884, %v126
    %902 = vset.pattern.permute.xlu0 1
    %903 = vperm.xlu0 %902, %v790
    %v904 = vpop.permute.xlu0 %903
    %906 = vset.pattern.permute.xlu0 1
    %907 = vperm.xlu0 %906, %v791
    %v908 = vpop.permute.xlu0 %907
    %910 = vset.pattern.permute.xlu0 1
    %911 = vperm.xlu0 %910, %v792
    %v912 = vpop.permute.xlu0 %911
    %914 = vset.pattern.permute.xlu0 1
    %915 = vperm.xlu0 %914, %v793
    %v916 = vpop.permute.xlu0 %915
    %918 = vset.pattern.permute.xlu0 1
    %919 = vperm.xlu0 %918, %v794
    %v920 = vpop.permute.xlu0 %919
    %922 = vset.pattern.permute.xlu0 1
    %923 = vperm.xlu0 %922, %v795
    %v924 = vpop.permute.xlu0 %923
    %926 = vset.pattern.permute.xlu0 1
    %927 = vperm.xlu0 %926, %v796
    %v928 = vpop.permute.xlu0 %927
    %930 = vset.pattern.permute.xlu0 1
    %931 = vperm.xlu0 %930, %v797
    %v932 = vpop.permute.xlu0 %931
    %934 = vset.pattern.permute.xlu0 1
    %935 = vperm.xlu0 %934, %v798
    %v936 = vpop.permute.xlu0 %935
    %938 = vset.pattern.permute.xlu0 1
    %939 = vperm.xlu0 %938, %v799
    %v940 = vpop.permute.xlu0 %939
    %942 = vset.pattern.permute.xlu0 1
    %943 = vperm.xlu0 %942, %v800
    %v944 = vpop.permute.xlu0 %943
    %946 = vset.pattern.permute.xlu0 1
    %947 = vperm.xlu0 %946, %v801
    %v948 = vpop.permute.xlu0 %947
    %950 = vset.pattern.permute.xlu0 1
    %951 = vperm.xlu0 %950, %v802
    %v952 = vpop.permute.xlu0 %951
    %954 = vset.pattern.permute.xlu0 1
    %955 = vperm.xlu0 %954, %v803
    %v956 = vpop.permute.xlu0 %955
    %958 = vset.pattern.permute.xlu0 1
    %959 = vperm.xlu0 %958, %v804
    %v960 = vpop.permute.xlu0 %959
    %962 = vset.pattern.permute.xlu0 1
    %963 = vperm.xlu0 %962, %v805
    %v964 = vpop.permute.xlu0 %963
    %v966 = vmul.f32 %v904, %v207
    %v967 = vmul.f32 %v908, %v207
    %v968 = vmul.f32 %v912, %v207
    %v969 = vmul.f32 %v916, %v207
    %v970 = vmul.f32 %v920, %v207
    %v971 = vmul.f32 %v924, %v207
    %v972 = vmul.f32 %v928, %v207
    %v973 = vmul.f32 %v932, %v207
    %v974 = vmul.f32 %v936, %v207
    %v975 = vmul.f32 %v940, %v207
    %v976 = vmul.f32 %v944, %v207
    %v977 = vmul.f32 %v948, %v207
    %v978 = vmul.f32 %v952, %v207
    %v979 = vmul.f32 %v956, %v207
    %v980 = vmul.f32 %v960, %v207
    %v981 = vmul.f32 %v964, %v207
    %v982 = vadd.f32 %v886, %v966
    %v983 = vadd.f32 %v887, %v967
    %v984 = vadd.f32 %v888, %v968
    %v985 = vadd.f32 %v889, %v969
    %v986 = vadd.f32 %v890, %v970
    %v987 = vadd.f32 %v891, %v971
    %v988 = vadd.f32 %v892, %v972
    %v989 = vadd.f32 %v893, %v973
    %v990 = vadd.f32 %v894, %v974
    %v991 = vadd.f32 %v895, %v975
    %v992 = vadd.f32 %v896, %v976
    %v993 = vadd.f32 %v897, %v977
    %v994 = vadd.f32 %v898, %v978
    %v995 = vadd.f32 %v899, %v979
    %v996 = vadd.f32 %v900, %v980
    %v997 = vadd.f32 %v901, %v981
    %v998 = vadd.f32 %v982, %v241
    %v999 = vadd.f32 %v983, %v241
    %v1000 = vadd.f32 %v984, %v241
    %v1001 = vadd.f32 %v985, %v241
    %v1002 = vadd.f32 %v986, %v241
    %v1003 = vadd.f32 %v987, %v241
    %v1004 = vadd.f32 %v988, %v241
    %v1005 = vadd.f32 %v989, %v241
    %v1006 = vadd.f32 %v990, %v241
    %v1007 = vadd.f32 %v991, %v241
    %v1008 = vadd.f32 %v992, %v241
    %v1009 = vadd.f32 %v993, %v241
    %v1010 = vadd.f32 %v994, %v241
    %v1011 = vadd.f32 %v995, %v241
    %v1012 = vadd.f32 %v996, %v241
    %v1013 = vadd.f32 %v997, %v241
    %v1014 = vmax.f32 %v998, 0.0
    %v1015 = vmax.f32 %v999, 0.0
    %v1016 = vmax.f32 %v1000, 0.0
    %v1017 = vmax.f32 %v1001, 0.0
    %v1018 = vmax.f32 %v1002, 0.0
    %v1019 = vmax.f32 %v1003, 0.0
    %v1020 = vmax.f32 %v1004, 0.0
    %v1021 = vmax.f32 %v1005, 0.0
    %v1022 = vmax.f32 %v1006, 0.0
    %v1023 = vmax.f32 %v1007, 0.0
    %v1024 = vmax.f32 %v1008, 0.0
    %v1025 = vmax.f32 %v1009, 0.0
    %v1026 = vmax.f32 %v1010, 0.0
    %v1027 = vmax.f32 %v1011, 0.0
    %v1028 = vmax.f32 %v1012, 0.0
    %v1029 = vmax.f32 %v1013, 0.0
    %v1030 = vmax.f32 %v773, %v1014
    %v1031 = vmax.f32 %v774, %v1015
    %v1032 = vmax.f32 %v775, %v1016
    %v1033 = vmax.f32 %v776, %v1017
    %v1034 = vmax.f32 %v777, %v1018
    %v1035 = vmax.f32 %v778, %v1019
    %v1036 = vmax.f32 %v779, %v1020
    %v1037 = vmax.f32 %v780, %v1021
    %v1038 = vmax.f32 %v781, %v1022
    %v1039 = vmax.f32 %v782, %v1023
    %v1040 = vmax.f32 %v783, %v1024
    %v1041 = vmax.f32 %v784, %v1025
    %v1042 = vmax.f32 %v785, %v1026
    %v1043 = vmax.f32 %v786, %v1027
    %v1044 = vmax.f32 %v787, %v1028
    %v1045 = vmax.f32 %v788, %v1029
    %vm1046 = vcmask 261120
    %1047 = vst.msk [vmem:[%s3] sm:$0xff] %vm1046, %v1030
    %1048 = vst.msk [vmem:[%s3 + $0x8] sm:$0xff] %vm1046, %v1031
    %1049 = vst.msk [vmem:[%s3 + $0x10] sm:$0xff] %vm1046, %v1032
    %1050 = vst.msk [vmem:[%s3 + $0x18] sm:$0xff] %vm1046, %v1033
    %1051 = vst.msk [vmem:[%s3 + $0x20] sm:$0xff] %vm1046, %v1034
    %1052 = vst.msk [vmem:[%s3 + $0x28] sm:$0xff] %vm1046, %v1035
    %1053 = vst.msk [vmem:[%s3 + $0x30] sm:$0xff] %vm1046, %v1036
    %1054 = vst.msk [vmem:[%s3 + $0x38] sm:$0xff] %vm1046, %v1037
    %1055 = vst.msk [vmem:[%s3 + $0x40] sm:$0xff] %vm1046, %v1038
    %1056 = vst.msk [vmem:[%s3 + $0x48] sm:$0xff] %vm1046, %v1039
    %1057 = vst.msk [vmem:[%s3 + $0x50] sm:$0xff] %vm1046, %v1040
    %1058 = vst.msk [vmem:[%s3 + $0x58] sm:$0xff] %vm1046, %v1041
    %1059 = vst.msk [vmem:[%s3 + $0x60] sm:$0xff] %vm1046, %v1042
    %1060 = vst.msk [vmem:[%s3 + $0x68] sm:$0xff] %vm1046, %v1043
    %1061 = vst.msk [vmem:[%s3 + $0x70] sm:$0xff] %vm1046, %v1044
    %vm1062 = vcmask 257024
    %1063 = vst.msk [vmem:[%s3 + $0x78] sm:$0xf] %vm1062, %v1045
    // Predicated region
    $region18: #{molvis_gnn_forward.10} parent=1 // pred_check
      _
    $region19: #{molvis_gnn_forward.10} parent=1 // pred_check_branch
      %1065 = sbr.rel (0) target = $region21
    $region20: #{molvis_gnn_forward.10} parent=1 // pred_region
      _
    $region21: #{molvis_gnn_forward.10} parent=1 // pred_fallthru
      _
    // Predicated region
    $region22: #{molvis_gnn_forward.10} parent=1 // pred_check
      _
    $region23: #{molvis_gnn_forward.10} parent=1 // pred_check_branch
      %1067 = sbr.rel (0) target = $region25
    $region24: #{molvis_gnn_forward.10} parent=1 // pred_region
      _
    $region25: #{molvis_gnn_forward.10} parent=1 // pred_fallthru
      _
    %1068 = vsyncpa [#allocation3], 1

// kernel: molvis_gnn_forward.11
$region0: #{molvis_gnn_forward.11}
  #allocation0 [shape = 'u32[]', space=smem, size = 0x4, offset = 0x4, fixed_abs, tag = 'smem constant byte address 0x4 - core index']
  #allocation1 [shape = 'u32[72,128]{1,0:T(1,128)}', space=vmem, size = 0x9000, scoped, tag = 'internal scratch']
  %s0 = inlined_call_operand.vmem [shape: f32[4,28,64], index: 0, kind: input, shape index: {}]
  %s1 = inlined_call_operand.vmem [shape: f32[64,64], index: 1, kind: input, shape index: {}]
  %s2 = inlined_call_operand.vmem [shape: f32[1,64], index: 2, kind: input, shape index: {}]
  %s3 = inlined_call_operand.vmem [shape: f32[28,64], index: 3, kind: output, shape index: {}]
  %s4 = sld [smem:[#allocation0]]
  $region22: #{molvis_gnn_forward.11} parent=0
    _
  %s6 = ssub.s32 1, %s4
  %s7 = scalar_select 0, %s6, %s4
  // Predicated region
  $region2: #{molvis_gnn_forward.11} parent=0 // pred_check
    _
  $region3: #{molvis_gnn_forward.11} parent=0 // pred_check_branch
    %9 = sbr.rel (0) target = $region5
  $region4: #{molvis_gnn_forward.11} parent=0 // pred_region
    _
  $region5: #{molvis_gnn_forward.11} parent=0 // pred_fallthru
    _
  // Predicated region
  $region6: #{molvis_gnn_forward.11} parent=0 // pred_check
    _
  $region7: #{molvis_gnn_forward.11} parent=0 // pred_check_branch
    %11 = sbr.rel (0) target = $region9
  $region8: #{molvis_gnn_forward.11} parent=0 // pred_region
    _
  $region9: #{molvis_gnn_forward.11} parent=0 // pred_fallthru
    _
  // Predicated region
  $region10: #{molvis_gnn_forward.11} parent=0 // pred_check
    _
  $region11: #{molvis_gnn_forward.11} parent=0 // pred_check_branch
    %13 = sbr.rel (0) target = $region13
  $region12: #{molvis_gnn_forward.11} parent=0 // pred_region
    _
  $region13: #{molvis_gnn_forward.11} parent=0 // pred_fallthru
    _
  %v14 = vld [vmem:[%s1] sm:$0xff]
  %v15 = vld [vmem:[%s1 + $0x8] sm:$0xff]
  %v16 = vld [vmem:[%s1 + $0x10] sm:$0xff]
  %v17 = vld [vmem:[%s1 + $0x18] sm:$0xff]
  %v18 = vld [vmem:[%s1 + $0x20] sm:$0xff]
  %v19 = vld [vmem:[%s1 + $0x28] sm:$0xff]
  %v20 = vld [vmem:[%s1 + $0x30] sm:$0xff]
  %v21 = vld [vmem:[%s1 + $0x38] sm:$0xff]
  %v22 = vld [vmem:[%s2] sm:$0x1]
  %v23 = vld [vmem:[%s0] sm:$0xff]
  %v24 = vld [vmem:[%s0 + $0x8] sm:$0xff]
  %v25 = vld [vmem:[%s0 + $0x10] sm:$0xff]
  %v26 = vld [vmem:[%s0 + $0x18] sm:$0xf]
  %v28 = vperm.slane %v22, 0
  %vm30 = vcmask 523264
  %v32 = vsel %vm30, %v23, 0
  %v35 = vsel %vm30, %v24, 0
  %v38 = vsel %vm30, %v25, 0
  %v41 = vsel %vm30, %v26, 0
  %43 = vmatpush.msra.mxu0 0.0
  %44 = vmatpush.msra.mxu0 0.0
  %45 = vmatpush.msra.mxu0 0.0
  %46 = vmatpush.msra.mxu0 0.0
  %47 = vmatpush.msra.mxu0 0.0
  %48 = vmatpush.msra.mxu0 0.0
  %49 = vmatpush.msra.mxu0 0.0
  %50 = vmatpush.msra.mxu0 0.0
  %51 = vmatpush.msra.mxu0 %v21
  %52 = vmatpush.msra.mxu0 %v20
  %53 = vmatpush.msra.mxu0 %v19
  %54 = vmatpush.msra.mxu0 %v18
  %55 = vmatpush.msra.mxu0 %v17
  %56 = vmatpush.msra.mxu0 %v16
  %57 = vmatpush.msra.mxu0 %v15
  %58 = vmatpush.msra.mxu0 %v14
  %59 = vmatmul.f32.gmra.mxu0 %v32
  %v60 = vpop.f32.mrf.mxu0
  %v61 = vadd.f32 %v28, %v60
  %62 = vmatmul.f32.gmra.mxu0 %v35
  %v63 = vpop.f32.mrf.mxu0
  %v64 = vadd.f32 %v28, %v63
  %65 = vmatmul.f32.gmra.mxu0 %v38
  %v66 = vpop.f32.mrf.mxu0
  %v67 = vadd.f32 %v28, %v66
  %68 = vmatmul.f32.gmra.mxu0 %v41
  %v69 = vpop.f32.mrf.mxu0
  %v70 = vadd.f32 %v28, %v69
  %71 = vdwg.mxu0
  %v72 = vmax.f32 %v61, 0.0
  %v73 = vmax.f32 %v64, 0.0
  %v74 = vmax.f32 %v67, 0.0
  %v75 = vmax.f32 %v70, 0.0
  %s76 = scalar_lea.vmem %s0, 32
  %v77 = vld [vmem:[%s76] sm:$0xff]
  %v78 = vld [vmem:[%s76 + $0x8] sm:$0xff]
  %v79 = vld [vmem:[%s76 + $0x10] sm:$0xff]
  %v80 = vld [vmem:[%s76 + $0x18] sm:$0xf]
  %v82 = vsel %vm30, %v77, 0
  %v85 = vsel %vm30, %v78, 0
  %v88 = vsel %vm30, %v79, 0
  %v91 = vsel %vm30, %v80, 0
  %93 = vmatpush.msra.mxu0 0.0
  %94 = vmatpush.msra.mxu0 0.0
  %95 = vmatpush.msra.mxu0 0.0
  %96 = vmatpush.msra.mxu0 0.0
  %97 = vmatpush.msra.mxu0 0.0
  %98 = vmatpush.msra.mxu0 0.0
  %99 = vmatpush.msra.mxu0 0.0
  %100 = vmatpush.msra.mxu0 0.0
  %101 = vmatpush.msra.mxu0 %v21
  %102 = vmatpush.msra.mxu0 %v20
  %103 = vmatpush.msra.mxu0 %v19
  %104 = vmatpush.msra.mxu0 %v18
  %105 = vmatpush.msra.mxu0 %v17
  %106 = vmatpush.msra.mxu0 %v16
  %107 = vmatpush.msra.mxu0 %v15
  %108 = vmatpush.msra.mxu0 %v14
  %109 = vmatmul.f32.gmra.mxu0 %v82
  %v110 = vpop.f32.mrf.mxu0
  %v111 = vadd.f32 %v28, %v110
  %112 = vmatmul.f32.gmra.mxu0 %v85
  %v113 = vpop.f32.mrf.mxu0
  %v114 = vadd.f32 %v28, %v113
  %115 = vmatmul.f32.gmra.mxu0 %v88
  %v116 = vpop.f32.mrf.mxu0
  %v117 = vadd.f32 %v28, %v116
  %118 = vmatmul.f32.gmra.mxu0 %v91
  %v119 = vpop.f32.mrf.mxu0
  %v120 = vadd.f32 %v28, %v119
  %121 = vdwg.mxu0
  %v122 = vmax.f32 %v111, 0.0
  %v123 = vmax.f32 %v114, 0.0
  %v124 = vmax.f32 %v117, 0.0
  %v125 = vmax.f32 %v120, 0.0
  %v126 = vmax.f32 %v72, %v122
  %v127 = vmax.f32 %v73, %v123
  %v128 = vmax.f32 %v74, %v124
  %v129 = vmax.f32 %v75, %v125
  %s130 = scalar_lea.vmem %s0, 64
  %v131 = vld [vmem:[%s130] sm:$0xff]
  %v132 = vld [vmem:[%s130 + $0x8] sm:$0xff]
  %v133 = vld [vmem:[%s130 + $0x10] sm:$0xff]
  %v134 = vld [vmem:[%s130 + $0x18] sm:$0xf]
  %v136 = vsel %vm30, %v131, 0
  %v139 = vsel %vm30, %v132, 0
  %v142 = vsel %vm30, %v133, 0
  %v145 = vsel %vm30, %v134, 0
  %147 = vmatpush.msra.mxu0 0.0
  %148 = vmatpush.msra.mxu0 0.0
  %149 = vmatpush.msra.mxu0 0.0
  %150 = vmatpush.msra.mxu0 0.0
  %151 = vmatpush.msra.mxu0 0.0
  %152 = vmatpush.msra.mxu0 0.0
  %153 = vmatpush.msra.mxu0 0.0
  %154 = vmatpush.msra.mxu0 0.0
  %155 = vmatpush.msra.mxu0 %v21
  %156 = vmatpush.msra.mxu0 %v20
  %157 = vmatpush.msra.mxu0 %v19
  %158 = vmatpush.msra.mxu0 %v18
  %159 = vmatpush.msra.mxu0 %v17
  %160 = vmatpush.msra.mxu0 %v16
  %161 = vmatpush.msra.mxu0 %v15
  %162 = vmatpush.msra.mxu0 %v14
  %163 = vmatmul.f32.gmra.mxu0 %v136
  %v164 = vpop.f32.mrf.mxu0
  %v165 = vadd.f32 %v28, %v164
  %166 = vmatmul.f32.gmra.mxu0 %v139
  %v167 = vpop.f32.mrf.mxu0
  %v168 = vadd.f32 %v28, %v167
  %169 = vmatmul.f32.gmra.mxu0 %v142
  %v170 = vpop.f32.mrf.mxu0
  %v171 = vadd.f32 %v28, %v170
  %172 = vmatmul.f32.gmra.mxu0 %v145
  %v173 = vpop.f32.mrf.mxu0
  %v174 = vadd.f32 %v28, %v173
  %175 = vdwg.mxu0
  %v176 = vmax.f32 %v165, 0.0
  %v177 = vmax.f32 %v168, 0.0
  %v178 = vmax.f32 %v171, 0.0
  %v179 = vmax.f32 %v174, 0.0
  %v180 = vmax.f32 %v126, %v176
  %v181 = vmax.f32 %v127, %v177
  %v182 = vmax.f32 %v128, %v178
  %v183 = vmax.f32 %v129, %v179
  %s184 = scalar_lea.vmem %s0, 96
  %v185 = vld [vmem:[%s184] sm:$0xff]
  %v186 = vld [vmem:[%s184 + $0x8] sm:$0xff]
  %v187 = vld [vmem:[%s184 + $0x10] sm:$0xff]
  %v188 = vld [vmem:[%s184 + $0x18] sm:$0xf]
  %v190 = vsel %vm30, %v185, 0
  %v193 = vsel %vm30, %v186, 0
  %v196 = vsel %vm30, %v187, 0
  %v199 = vsel %vm30, %v188, 0
  %201 = vmatpush.msra.mxu0 0.0
  %202 = vmatpush.msra.mxu0 0.0
  %203 = vmatpush.msra.mxu0 0.0
  %204 = vmatpush.msra.mxu0 0.0
  %205 = vmatpush.msra.mxu0 0.0
  %206 = vmatpush.msra.mxu0 0.0
  %207 = vmatpush.msra.mxu0 0.0
  %208 = vmatpush.msra.mxu0 0.0
  %209 = vmatpush.msra.mxu0 %v21
  %210 = vmatpush.msra.mxu0 %v20
  %211 = vmatpush.msra.mxu0 %v19
  %212 = vmatpush.msra.mxu0 %v18
  %213 = vmatpush.msra.mxu0 %v17
  %214 = vmatpush.msra.mxu0 %v16
  %215 = vmatpush.msra.mxu0 %v15
  %216 = vmatpush.msra.mxu0 %v14
  %217 = vmatmul.f32.gmra.mxu0 %v190
  %v218 = vpop.f32.mrf.mxu0
  %v219 = vadd.f32 %v28, %v218
  %220 = vmatmul.f32.gmra.mxu0 %v193
  %v221 = vpop.f32.mrf.mxu0
  %v222 = vadd.f32 %v28, %v221
  %223 = vmatmul.f32.gmra.mxu0 %v196
  %v224 = vpop.f32.mrf.mxu0
  %v225 = vadd.f32 %v28, %v224
  %226 = vmatmul.f32.gmra.mxu0 %v199
  %v227 = vpop.f32.mrf.mxu0
  %v228 = vadd.f32 %v28, %v227
  %229 = vdwg.mxu0
  %v230 = vmax.f32 %v219, 0.0
  %v231 = vmax.f32 %v222, 0.0
  %v232 = vmax.f32 %v225, 0.0
  %v233 = vmax.f32 %v228, 0.0
  %v234 = vmax.f32 %v180, %v230
  %v235 = vmax.f32 %v181, %v231
  %v236 = vmax.f32 %v182, %v232
  %v237 = vmax.f32 %v183, %v233
  %238 = vst.msk [vmem:[%s3] sm:$0xff] %vm30, %v234
  %239 = vst.msk [vmem:[%s3 + $0x8] sm:$0xff] %vm30, %v235
  %240 = vst.msk [vmem:[%s3 + $0x10] sm:$0xff] %vm30, %v236
  %vm241 = vcmask 519168
  %242 = vst.msk [vmem:[%s3 + $0x18] sm:$0xf] %vm241, %v237
  // Predicated region
  $region14: #{molvis_gnn_forward.11} parent=0 // pred_check
    _
  $region15: #{molvis_gnn_forward.11} parent=0 // pred_check_branch
    %244 = sbr.rel (0) target = $region17
  $region16: #{molvis_gnn_forward.11} parent=0 // pred_region
    _
  $region17: #{molvis_gnn_forward.11} parent=0 // pred_fallthru
    _
  // Predicated region
  $region18: #{molvis_gnn_forward.11} parent=0 // pred_check
    _
  $region19: #{molvis_gnn_forward.11} parent=0 // pred_check_branch
    %246 = sbr.rel (0) target = $region21
  $region20: #{molvis_gnn_forward.11} parent=0 // pred_region
    _
  $region21: #{molvis_gnn_forward.11} parent=0 // pred_fallthru
    _

// kernel: molvis_gnn_forward.12
$region0: #{molvis_gnn_forward.12}
  #allocation0 [shape = 'u32[]', space=smem, size = 0x4, offset = 0x4, fixed_abs, tag = 'smem constant byte address 0x4 - core index']
  #allocation1 [shape = 'u32[72,128]{1,0:T(1,128)}', space=vmem, size = 0x9000, scoped, tag = 'internal scratch']
  %s0 = inlined_call_operand.vmem [shape: f32[4,4,128], index: 0, kind: input, shape index: {}]
  %s1 = inlined_call_operand.vmem [shape: f32[128,128], index: 1, kind: input, shape index: {}]
  %s2 = inlined_call_operand.vmem [shape: f32[1,128], index: 2, kind: input, shape index: {}]
  %s3 = inlined_call_operand.vmem [shape: f32[4,128], index: 3, kind: input, shape index: {}]
  %s4 = inlined_call_operand.vmem [shape: f32[128,256], index: 4, kind: input, shape index: {}]
  %s5 = inlined_call_operand.vmem [shape: f32[4,256], index: 5, kind: output, shape index: {}]
  %s6 = sld [smem:[#allocation0]]
  $region30: #{molvis_gnn_forward.12} parent=0
    _
  %s8 = ssub.s32 1, %s6
  %s9 = scalar_select 0, %s8, %s6
  // Predicated region
  $region2: #{molvis_gnn_forward.12} parent=0 // pred_check
    _
  $region3: #{molvis_gnn_forward.12} parent=0 // pred_check_branch
    %11 = sbr.rel (0) target = $region5
  $region4: #{molvis_gnn_forward.12} parent=0 // pred_region
    _
  $region5: #{molvis_gnn_forward.12} parent=0 // pred_fallthru
    _
  // Predicated region
  $region6: #{molvis_gnn_forward.12} parent=0 // pred_check
    _
  $region7: #{molvis_gnn_forward.12} parent=0 // pred_check_branch
    %13 = sbr.rel (0) target = $region9
  $region8: #{molvis_gnn_forward.12} parent=0 // pred_region
    _
  $region9: #{molvis_gnn_forward.12} parent=0 // pred_fallthru
    _
  // Predicated region
  $region10: #{molvis_gnn_forward.12} parent=0 // pred_check
    _
  $region11: #{molvis_gnn_forward.12} parent=0 // pred_check_branch
    %15 = sbr.rel (0) target = $region13
  $region12: #{molvis_gnn_forward.12} parent=0 // pred_region
    _
  $region13: #{molvis_gnn_forward.12} parent=0 // pred_fallthru
    _
  // Predicated region
  $region14: #{molvis_gnn_forward.12} parent=0 // pred_check
    _
  $region15: #{molvis_gnn_forward.12} parent=0 // pred_check_branch
    %17 = sbr.rel (0) target = $region17
  $region16: #{molvis_gnn_forward.12} parent=0 // pred_region
    _
  $region17: #{molvis_gnn_forward.12} parent=0 // pred_fallthru
    _
  // Predicated region
  $region18: #{molvis_gnn_forward.12} parent=0 // pred_check
    _
  $region19: #{molvis_gnn_forward.12} parent=0 // pred_check_branch
    %19 = sbr.rel (0) target = $region21
  $region20: #{molvis_gnn_forward.12} parent=0 // pred_region
    _
  $region21: #{molvis_gnn_forward.12} parent=0 // pred_fallthru
    _
  %v20 = vld [vmem:[%s1] sm:$0xff]
  %v21 = vld [vmem:[%s1 + $0x8] sm:$0xff]
  %v22 = vld [vmem:[%s1 + $0x10] sm:$0xff]
  %v23 = vld [vmem:[%s1 + $0x18] sm:$0xff]
  %v24 = vld [vmem:[%s1 + $0x20] sm:$0xff]
  %v25 = vld [vmem:[%s1 + $0x28] sm:$0xff]
  %v26 = vld [vmem:[%s1 + $0x30] sm:$0xff]
  %v27 = vld [vmem:[%s1 + $0x38] sm:$0xff]
  %v28 = vld [vmem:[%s1 + $0x40] sm:$0xff]
  %v29 = vld [vmem:[%s1 + $0x48] sm:$0xff]
  %v30 = vld [vmem:[%s1 + $0x50] sm:$0xff]
  %v31 = vld [vmem:[%s1 + $0x58] sm:$0xff]
  %v32 = vld [vmem:[%s1 + $0x60] sm:$0xff]
  %v33 = vld [vmem:[%s1 + $0x68] sm:$0xff]
  %v34 = vld [vmem:[%s1 + $0x70] sm:$0xff]
  %v35 = vld [vmem:[%s1 + $0x78] sm:$0xff]
  %v36 = vld [vmem:[%s2] sm:$0x1]
  %v37 = vld [vmem:[%s0] sm:$0xf]
  %v39 = vperm.slane %v36, 0
  %41 = vmatpush.msra.mxu0 %v35
  %42 = vmatpush.msra.mxu0 %v34
  %43 = vmatpush.msra.mxu0 %v33
  %44 = vmatpush.msra.mxu0 %v32
  %45 = vmatpush.msra.mxu0 %v31
  %46 = vmatpush.msra.mxu0 %v30
  %47 = vmatpush.msra.mxu0 %v29
  %48 = vmatpush.msra.mxu0 %v28
  %49 = vmatpush.msra.mxu0 %v27
  %50 = vmatpush.msra.mxu0 %v26
  %51 = vmatpush.msra.mxu0 %v25
  %52 = vmatpush.msra.mxu0 %v24
  %53 = vmatpush.msra.mxu0 %v23
  %54 = vmatpush.msra.mxu0 %v22
  %55 = vmatpush.msra.mxu0 %v21
  %56 = vmatpush.msra.mxu0 %v20
  %57 = vmatmul.f32.gmra.mxu0 %v37
  %v58 = vpop.f32.mrf.mxu0
  %v59 = vadd.f32 %v39, %v58
  %60 = vdwg.mxu0
  %v61 = vmax.f32 %v59, 0.0
  %s62 = scalar_lea.vmem %s0, 4
  %v63 = vld [vmem:[%s62] sm:$0xf]
  %64 = vmatpush.msra.mxu0 %v35
  %65 = vmatpush.msra.mxu0 %v34
  %66 = vmatpush.msra.mxu0 %v33
  %67 = vmatpush.msra.mxu0 %v32
  %68 = vmatpush.msra.mxu0 %v31
  %69 = vmatpush.msra.mxu0 %v30
  %70 = vmatpush.msra.mxu0 %v29
  %71 = vmatpush.msra.mxu0 %v28
  %72 = vmatpush.msra.mxu0 %v27
  %73 = vmatpush.msra.mxu0 %v26
  %74 = vmatpush.msra.mxu0 %v25
  %75 = vmatpush.msra.mxu0 %v24
  %76 = vmatpush.msra.mxu0 %v23
  %77 = vmatpush.msra.mxu0 %v22
  %78 = vmatpush.msra.mxu0 %v21
  %79 = vmatpush.msra.mxu0 %v20
  %80 = vmatmul.f32.gmra.mxu0 %v63
  %v81 = vpop.f32.mrf.mxu0
  %v82 = vadd.f32 %v39, %v81
  %83 = vdwg.mxu0
  %v84 = vmax.f32 %v82, 0.0
  %v85 = vmax.f32 %v61, %v84
  %s86 = scalar_lea.vmem %s0, 8
  %v87 = vld [vmem:[%s86] sm:$0xf]
  %88 = vmatpush.msra.mxu0 %v35
  %89 = vmatpush.msra.mxu0 %v34
  %90 = vmatpush.msra.mxu0 %v33
  %91 = vmatpush.msra.mxu0 %v32
  %92 = vmatpush.msra.mxu0 %v31
  %93 = vmatpush.msra.mxu0 %v30
  %94 = vmatpush.msra.mxu0 %v29
  %95 = vmatpush.msra.mxu0 %v28
  %96 = vmatpush.msra.mxu0 %v27
  %97 = vmatpush.msra.mxu0 %v26
  %98 = vmatpush.msra.mxu0 %v25
  %99 = vmatpush.msra.mxu0 %v24
  %100 = vmatpush.msra.mxu0 %v23
  %101 = vmatpush.msra.mxu0 %v22
  %102 = vmatpush.msra.mxu0 %v21
  %103 = vmatpush.msra.mxu0 %v20
  %104 = vmatmul.f32.gmra.mxu0 %v87
  %v105 = vpop.f32.mrf.mxu0
  %v106 = vadd.f32 %v39, %v105
  %107 = vdwg.mxu0
  %v108 = vmax.f32 %v106, 0.0
  %v109 = vmax.f32 %v85, %v108
  %s110 = scalar_lea.vmem %s0, 12
  %v111 = vld [vmem:[%s110] sm:$0xf]
  %112 = vmatpush.msra.mxu0 %v35
  %113 = vmatpush.msra.mxu0 %v34
  %114 = vmatpush.msra.mxu0 %v33
  %115 = vmatpush.msra.mxu0 %v32
  %116 = vmatpush.msra.mxu0 %v31
  %117 = vmatpush.msra.mxu0 %v30
  %118 = vmatpush.msra.mxu0 %v29
  %119 = vmatpush.msra.mxu0 %v28
  %120 = vmatpush.msra.mxu0 %v27
  %121 = vmatpush.msra.mxu0 %v26
  %122 = vmatpush.msra.mxu0 %v25
  %123 = vmatpush.msra.mxu0 %v24
  %124 = vmatpush.msra.mxu0 %v23
  %125 = vmatpush.msra.mxu0 %v22
  %126 = vmatpush.msra.mxu0 %v21
  %127 = vmatpush.msra.mxu0 %v20
  %128 = vmatmul.f32.gmra.mxu0 %v111
  %v129 = vpop.f32.mrf.mxu0
  %v130 = vadd.f32 %v39, %v129
  %131 = vdwg.mxu0
  %v132 = vmax.f32 %v130, 0.0
  %v133 = vmax.f32 %v109, %v132
  %v134 = vld [vmem:[%s3] sm:$0xf]
  %v135 = vadd.f32 %v133, %v134
  %v136 = vld [vmem:[%s4] sm:$0xff]
  %v137 = vld [vmem:[%s4 + $0x8] sm:$0xff]
  %v138 = vld [vmem:[%s4 + $0x10] sm:$0xff]
  %v139 = vld [vmem:[%s4 + $0x18] sm:$0xff]
  %v140 = vld [vmem:[%s4 + $0x20] sm:$0xff]
  %v141 = vld [vmem:[%s4 + $0x28] sm:$0xff]
  %v142 = vld [vmem:[%s4 + $0x30] sm:$0xff]
  %v143 = vld [vmem:[%s4 + $0x38] sm:$0xff]
  %v144 = vld [vmem:[%s4 + $0x40] sm:$0xff]
  %v145 = vld [vmem:[%s4 + $0x48] sm:$0xff]
  %v146 = vld [vmem:[%s4 + $0x50] sm:$0xff]
  %v147 = vld [vmem:[%s4 + $0x58] sm:$0xff]
  %v148 = vld [vmem:[%s4 + $0x60] sm:$0xff]
  %v149 = vld [vmem:[%s4 + $0x68] sm:$0xff]
  %v150 = vld [vmem:[%s4 + $0x70] sm:$0xff]
  %v151 = vld [vmem:[%s4 + $0x78] sm:$0xff]
  %v152 = vld [vmem:[%s4 + $0x80] sm:$0xff]
  %v153 = vld [vmem:[%s4 + $0x88] sm:$0xff]
  %v154 = vld [vmem:[%s4 + $0x90] sm:$0xff]
  %v155 = vld [vmem:[%s4 + $0x98] sm:$0xff]
  %v156 = vld [vmem:[%s4 + $0xa0] sm:$0xff]
  %v157 = vld [vmem:[%s4 + $0xa8] sm:$0xff]
  %v158 = vld [vmem:[%s4 + $0xb0] sm:$0xff]
  %v159 = vld [vmem:[%s4 + $0xb8] sm:$0xff]
  %v160 = vld [vmem:[%s4 + $0xc0] sm:$0xff]
  %v161 = vld [vmem:[%s4 + $0xc8] sm:$0xff]
  %v162 = vld [vmem:[%s4 + $0xd0] sm:$0xff]
  %v163 = vld [vmem:[%s4 + $0xd8] sm:$0xff]
  %v164 = vld [vmem:[%s4 + $0xe0] sm:$0xff]
  %v165 = vld [vmem:[%s4 + $0xe8] sm:$0xff]
  %v166 = vld [vmem:[%s4 + $0xf0] sm:$0xff]
  %v167 = vld [vmem:[%s4 + $0xf8] sm:$0xff]
  %168 = vmatpush.msra.mxu0 %v166
  %169 = vmatpush.msra.mxu0 %v164
  %170 = vmatpush.msra.mxu0 %v162
  %171 = vmatpush.msra.mxu0 %v160
  %172 = vmatpush.msra.mxu0 %v158
  %173 = vmatpush.msra.mxu0 %v156
  %174 = vmatpush.msra.mxu0 %v154
  %175 = vmatpush.msra.mxu0 %v152
  %176 = vmatpush.msra.mxu0 %v150
  %177 = vmatpush.msra.mxu0 %v148
  %178 = vmatpush.msra.mxu0 %v146
  %179 = vmatpush.msra.mxu0 %v144
  %180 = vmatpush.msra.mxu0 %v142
  %181 = vmatpush.msra.mxu0 %v140
  %182 = vmatpush.msra.mxu0 %v138
  %183 = vmatpush.msra.mxu0 %v136
  %184 = vmatmul.f32.gmra.mxu0 %v135
  %v185 = vpop.f32.mrf.mxu0
  %v186 = vadd.f32 0.0, %v185
  %187 = vdwg.mxu0
  %188 = vmatpush.msra.mxu0 %v167
  %189 = vmatpush.msra.mxu0 %v165
  %190 = vmatpush.msra.mxu0 %v163
  %191 = vmatpush.msra.mxu0 %v161
  %192 = vmatpush.msra.mxu0 %v159
  %193 = vmatpush.msra.mxu0 %v157
  %194 = vmatpush.msra.mxu0 %v155
  %195 = vmatpush.msra.mxu0 %v153
  %196 = vmatpush.msra.mxu0 %v151
  %197 = vmatpush.msra.mxu0 %v149
  %198 = vmatpush.msra.mxu0 %v147
  %199 = vmatpush.msra.mxu0 %v145
  %200 = vmatpush.msra.mxu0 %v143
  %201 = vmatpush.msra.mxu0 %v141
  %202 = vmatpush.msra.mxu0 %v139
  %203 = vmatpush.msra.mxu0 %v137
  %204 = vmatmul.f32.gmra.mxu0 %v135
  %v205 = vpop.f32.mrf.mxu0
  %v206 = vadd.f32 0.0, %v205
  %207 = vdwg.mxu0
  %v210 = vrot.slane %v206, 4
  %vm211 = vcmask 1043456
  %v212 = vsel %vm211, %v186, %v210
  %214 = vst [vmem:[%s5] sm:$0xff] %v212
  // Predicated region
  $region22: #{molvis_gnn_forward.12} parent=0 // pred_check
    _
  $region23: #{molvis_gnn_forward.12} parent=0 // pred_check_branch
    %216 = sbr.rel (0) target = $region25
  $region24: #{molvis_gnn_forward.12} parent=0 // pred_region
    _
  $region25: #{molvis_gnn_forward.12} parent=0 // pred_fallthru
    _
  // Predicated region
  $region26: #{molvis_gnn_forward.12} parent=0 // pred_check
    _
  $region27: #{molvis_gnn_forward.12} parent=0 // pred_check_branch
    %218 = sbr.rel (0) target = $region29
  $region28: #{molvis_gnn_forward.12} parent=0 // pred_region
    _
  $region29: #{molvis_gnn_forward.12} parent=0 // pred_fallthru
    _

// kernel: molvis_gnn_forward.14
$region0: #{molvis_gnn_forward.14}
  #allocation0 [shape = 'u32[]', space=smem, size = 0x4, offset = 0x4, fixed_abs, tag = 'smem constant byte address 0x4 - core index']
  #allocation1 [shape = 'u32[72,128]{1,0:T(1,128)}', space=vmem, size = 0x9000, scoped, tag = 'internal scratch']
  %s0 = inlined_call_operand.vmem [shape: f32[4,4], index: 0, kind: input, shape index: {}]
  %s1 = inlined_call_operand.vmem [shape: f32[4,4], index: 1, kind: input, shape index: {}]
  %s2 = inlined_call_operand.vmem [shape: f32[4,128], index: 2, kind: input, shape index: {}]
  %s3 = inlined_call_operand.vmem [shape: f32[4,128], index: 3, kind: input, shape index: {}]
  %s4 = inlined_call_operand.vmem [shape: f32[128,64], index: 4, kind: input, shape index: {}]
  %s5 = inlined_call_operand.vmem [shape: f32[128,64], index: 5, kind: input, shape index: {}]
  %s6 = inlined_call_operand.vmem [shape: f32[1,64], index: 6, kind: input, shape index: {}]
  %s7 = inlined_call_operand.vmem [shape: f32[128,64], index: 7, kind: input, shape index: {}]
  %s8 = inlined_call_operand.vmem [shape: f32[128,64], index: 8, kind: input, shape index: {}]
  %s9 = inlined_call_operand.vmem [shape: f32[1,64], index: 9, kind: input, shape index: {}]
  %s10 = inlined_call_operand.vmem [shape: f32[4,64], index: 10, kind: output, shape index: {0}]
  %s11 = inlined_call_operand.vmem [shape: f32[4,64], index: 11, kind: output, shape index: {1}]
  %12 = xla_tuple %s10, %s11
  %s13 = sld [smem:[#allocation0]]
  $region58: #{molvis_gnn_forward.14} parent=0
    _
  %s15 = ssub.s32 1, %s13
  %s16 = scalar_select 0, %s15, %s13
  // Predicated region
  $region2: #{molvis_gnn_forward.14} parent=0 // pred_check
    _
  $region3: #{molvis_gnn_forward.14} parent=0 // pred_check_branch
    %18 = sbr.rel (0) target = $region5
  $region4: #{molvis_gnn_forward.14} parent=0 // pred_region
    _
  $region5: #{molvis_gnn_forward.14} parent=0 // pred_fallthru
    _
  // Predicated region
  $region6: #{molvis_gnn_forward.14} parent=0 // pred_check
    _
  $region7: #{molvis_gnn_forward.14} parent=0 // pred_check_branch
    %20 = sbr.rel (0) target = $region9
  $region8: #{molvis_gnn_forward.14} parent=0 // pred_region
    _
  $region9: #{molvis_gnn_forward.14} parent=0 // pred_fallthru
    _
  // Predicated region
  $region10: #{molvis_gnn_forward.14} parent=0 // pred_check
    _
  $region11: #{molvis_gnn_forward.14} parent=0 // pred_check_branch
    %22 = sbr.rel (0) target = $region13
  $region12: #{molvis_gnn_forward.14} parent=0 // pred_region
    _
  $region13: #{molvis_gnn_forward.14} parent=0 // pred_fallthru
    _
  // Predicated region
  $region14: #{molvis_gnn_forward.14} parent=0 // pred_check
    _
  $region15: #{molvis_gnn_forward.14} parent=0 // pred_check_branch
    %24 = sbr.rel (0) target = $region17
  $region16: #{molvis_gnn_forward.14} parent=0 // pred_region
    _
  $region17: #{molvis_gnn_forward.14} parent=0 // pred_fallthru
    _
  // Predicated region
  $region18: #{molvis_gnn_forward.14} parent=0 // pred_check
    _
  $region19: #{molvis_gnn_forward.14} parent=0 // pred_check_branch
    %26 = sbr.rel (0) target = $region21
  $region20: #{molvis_gnn_forward.14} parent=0 // pred_region
    _
  $region21: #{molvis_gnn_forward.14} parent=0 // pred_fallthru
    _
  // Predicated region
  $region22: #{molvis_gnn_forward.14} parent=0 // pred_check
    _
  $region23: #{molvis_gnn_forward.14} parent=0 // pred_check_branch
    %28 = sbr.rel (0) target = $region25
  $region24: #{molvis_gnn_forward.14} parent=0 // pred_region
    _
  $region25: #{molvis_gnn_forward.14} parent=0 // pred_fallthru
    _
  // Predicated region
  $region26: #{molvis_gnn_forward.14} parent=0 // pred_check
    _
  $region27: #{molvis_gnn_forward.14} parent=0 // pred_check_branch
    %30 = sbr.rel (0) target = $region29
  $region28: #{molvis_gnn_forward.14} parent=0 // pred_region
    _
  $region29: #{molvis_gnn_forward.14} parent=0 // pred_fallthru
    _
  // Predicated region
  $region30: #{molvis_gnn_forward.14} parent=0 // pred_check
    _
  $region31: #{molvis_gnn_forward.14} parent=0 // pred_check_branch
    %32 = sbr.rel (0) target = $region33
  $region32: #{molvis_gnn_forward.14} parent=0 // pred_region
    _
  $region33: #{molvis_gnn_forward.14} parent=0 // pred_fallthru
    _
  // Predicated region
  $region34: #{molvis_gnn_forward.14} parent=0 // pred_check
    _
  $region35: #{molvis_gnn_forward.14} parent=0 // pred_check_branch
    %34 = sbr.rel (0) target = $region37
  $region36: #{molvis_gnn_forward.14} parent=0 // pred_region
    _
  $region37: #{molvis_gnn_forward.14} parent=0 // pred_fallthru
    _
  // Predicated region
  $region38: #{molvis_gnn_forward.14} parent=0 // pred_check
    _
  $region39: #{molvis_gnn_forward.14} parent=0 // pred_check_branch
    %36 = sbr.rel (0) target = $region41
  $region40: #{molvis_gnn_forward.14} parent=0 // pred_region
    _
  $region41: #{molvis_gnn_forward.14} parent=0 // pred_fallthru
    _
  %v37 = vld [vmem:[%s0] sm:$0xf]
  %v38 = vld [vmem:[%s1] sm:$0xf]
  %v39 = vld [vmem:[%s2] sm:$0xf]
  %v40 = vld [vmem:[%s3] sm:$0xf]
  %v41 = vld [vmem:[%s4] sm:$0xff]
  %v42 = vld [vmem:[%s4 + $0x8] sm:$0xff]
  %v43 = vld [vmem:[%s4 + $0x10] sm:$0xff]
  %v44 = vld [vmem:[%s4 + $0x18] sm:$0xff]
  %v45 = vld [vmem:[%s4 + $0x20] sm:$0xff]
  %v46 = vld [vmem:[%s4 + $0x28] sm:$0xff]
  %v47 = vld [vmem:[%s4 + $0x30] sm:$0xff]
  %v48 = vld [vmem:[%s4 + $0x38] sm:$0xff]
  %v49 = vld [vmem:[%s4 + $0x40] sm:$0xff]
  %v50 = vld [vmem:[%s4 + $0x48] sm:$0xff]
  %v51 = vld [vmem:[%s4 + $0x50] sm:$0xff]
  %v52 = vld [vmem:[%s4 + $0x58] sm:$0xff]
  %v53 = vld [vmem:[%s4 + $0x60] sm:$0xff]
  %v54 = vld [vmem:[%s4 + $0x68] sm:$0xff]
  %v55 = vld [vmem:[%s4 + $0x70] sm:$0xff]
  %v56 = vld [vmem:[%s4 + $0x78] sm:$0xff]
  %v57 = vld [vmem:[%s5] sm:$0xff]
  %v58 = vld [vmem:[%s5 + $0x8] sm:$0xff]
  %v59 = vld [vmem:[%s5 + $0x10] sm:$0xff]
  %v60 = vld [vmem:[%s5 + $0x18] sm:$0xff]
  %v61 = vld [vmem:[%s5 + $0x20] sm:$0xff]
  %v62 = vld [vmem:[%s5 + $0x28] sm:$0xff]
  %v63 = vld [vmem:[%s5 + $0x30] sm:$0xff]
  %v64 = vld [vmem:[%s5 + $0x38] sm:$0xff]
  %v65 = vld [vmem:[%s5 + $0x40] sm:$0xff]
  %v66 = vld [vmem:[%s5 + $0x48] sm:$0xff]
  %v67 = vld [vmem:[%s5 + $0x50] sm:$0xff]
  %v68 = vld [vmem:[%s5 + $0x58] sm:$0xff]
  %v69 = vld [vmem:[%s5 + $0x60] sm:$0xff]
  %v70 = vld [vmem:[%s5 + $0x68] sm:$0xff]
  %v71 = vld [vmem:[%s5 + $0x70] sm:$0xff]
  %v72 = vld [vmem:[%s5 + $0x78] sm:$0xff]
  %v73 = vld [vmem:[%s6] sm:$0x1]
  %v74 = vld [vmem:[%s7] sm:$0xff]
  %v75 = vld [vmem:[%s7 + $0x8] sm:$0xff]
  %v76 = vld [vmem:[%s7 + $0x10] sm:$0xff]
  %v77 = vld [vmem:[%s7 + $0x18] sm:$0xff]
  %v78 = vld [vmem:[%s7 + $0x20] sm:$0xff]
  %v79 = vld [vmem:[%s7 + $0x28] sm:$0xff]
  %v80 = vld [vmem:[%s7 + $0x30] sm:$0xff]
  %v81 = vld [vmem:[%s7 + $0x38] sm:$0xff]
  %v82 = vld [vmem:[%s7 + $0x40] sm:$0xff]
  %v83 = vld [vmem:[%s7 + $0x48] sm:$0xff]
  %v84 = vld [vmem:[%s7 + $0x50] sm:$0xff]
  %v85 = vld [vmem:[%s7 + $0x58] sm:$0xff]
  %v86 = vld [vmem:[%s7 + $0x60] sm:$0xff]
  %v87 = vld [vmem:[%s7 + $0x68] sm:$0xff]
  %v88 = vld [vmem:[%s7 + $0x70] sm:$0xff]
  %v89 = vld [vmem:[%s7 + $0x78] sm:$0xff]
  %v90 = vld [vmem:[%s8] sm:$0xff]
  %v91 = vld [vmem:[%s8 + $0x8] sm:$0xff]
  %v92 = vld [vmem:[%s8 + $0x10] sm:$0xff]
  %v93 = vld [vmem:[%s8 + $0x18] sm:$0xff]
  %v94 = vld [vmem:[%s8 + $0x20] sm:$0xff]
  %v95 = vld [vmem:[%s8 + $0x28] sm:$0xff]
  %v96 = vld [vmem:[%s8 + $0x30] sm:$0xff]
  %v97 = vld [vmem:[%s8 + $0x38] sm:$0xff]
  %v98 = vld [vmem:[%s8 + $0x40] sm:$0xff]
  %v99 = vld [vmem:[%s8 + $0x48] sm:$0xff]
  %v100 = vld [vmem:[%s8 + $0x50] sm:$0xff]
  %v101 = vld [vmem:[%s8 + $0x58] sm:$0xff]
  %v102 = vld [vmem:[%s8 + $0x60] sm:$0xff]
  %v103 = vld [vmem:[%s8 + $0x68] sm:$0xff]
  %v104 = vld [vmem:[%s8 + $0x70] sm:$0xff]
  %v105 = vld [vmem:[%s8 + $0x78] sm:$0xff]
  %v106 = vld [vmem:[%s9] sm:$0x1]
  %vm107 = vcmask 31744
  %v109 = vsel %vm107, %v37, 0
  %vm111 = vcmask 1043456
  %v113 = vsel %vm111, %v40, 0
  %115 = vmatpush.msra.mxu0 0.0
  %116 = vmatpush.msra.mxu0 0.0
  %117 = vmatpush.msra.mxu0 0.0
  %118 = vmatpush.msra.mxu0 0.0
  %119 = vmatpush.msra.mxu0 0.0
  %120 = vmatpush.msra.mxu0 0.0
  %121 = vmatpush.msra.mxu0 0.0
  %122 = vmatpush.msra.mxu0 0.0
  %123 = vmatpush.msra.mxu0 0.0
  %124 = vmatpush.msra.mxu0 0.0
  %125 = vmatpush.msra.mxu0 0.0
  %126 = vmatpush.msra.mxu0 0.0
  %127 = vmatpush.msra.mxu0 0.0
  %128 = vmatpush.msra.mxu0 0.0
  %129 = vmatpush.msra.mxu0 0.0
  %130 = vmatpush.msra.mxu0 %v113
  %131 = vmatmul.f32.gmra.mxu0 %v109
  %v132 = vpop.f32.mrf.mxu0
  %v133 = vadd.f32 0.0, %v132
  %134 = vdwg.mxu0
  %135 = vmatpush.msra.mxu0 %v72
  %136 = vmatpush.msra.mxu0 %v71
  %137 = vmatpush.msra.mxu0 %v70
  %138 = vmatpush.msra.mxu0 %v69
  %139 = vmatpush.msra.mxu0 %v68
  %140 = vmatpush.msra.mxu0 %v67
  %141 = vmatpush.msra.mxu0 %v66
  %142 = vmatpush.msra.mxu0 %v65
  %143 = vmatpush.msra.mxu0 %v64
  %144 = vmatpush.msra.mxu0 %v63
  %145 = vmatpush.msra.mxu0 %v62
  %146 = vmatpush.msra.mxu0 %v61
  %147 = vmatpush.msra.mxu0 %v60
  %148 = vmatpush.msra.mxu0 %v59
  %149 = vmatpush.msra.mxu0 %v58
  %150 = vmatpush.msra.mxu0 %v57
  %151 = vmatmul.f32.gmra.mxu0 %v39
  %v152 = vpop.f32.mrf.mxu0
  %v153 = vadd.f32 0.0, %v152
  %154 = vdwg.mxu0
  %155 = vmatpush.msra.mxu0 %v56
  %156 = vmatpush.msra.mxu0 %v55
  %157 = vmatpush.msra.mxu0 %v54
  %158 = vmatpush.msra.mxu0 %v53
  %159 = vmatpush.msra.mxu0 %v52
  %160 = vmatpush.msra.mxu0 %v51
  %161 = vmatpush.msra.mxu0 %v50
  %162 = vmatpush.msra.mxu0 %v49
  %163 = vmatpush.msra.mxu0 %v48
  %164 = vmatpush.msra.mxu0 %v47
  %165 = vmatpush.msra.mxu0 %v46
  %166 = vmatpush.msra.mxu0 %v45
  %167 = vmatpush.msra.mxu0 %v44
  %168 = vmatpush.msra.mxu0 %v43
  %169 = vmatpush.msra.mxu0 %v42
  %170 = vmatpush.msra.mxu0 %v41
  %171 = vmatmul.f32.gmra.mxu0 %v133
  %v172 = vpop.f32.mrf.mxu0
  %v173 = vadd.f32 %v153, %v172
  %174 = vdwg.mxu0
  %v176 = vperm.slane %v73, 0
  %v178 = vadd.f32 %v173, %v176
  %vm179 = vcmp.ge.f32.partialorder %v178, 0.0
  %v180 = vmul.f32 %v178, 0.2
  %v181 = vsel %vm179, %v178, %v180
  %vm182 = vcmask 519168
  %183 = vst.msk [vmem:[%s10] sm:$0xf] %vm182, %v181
  %v185 = vsel %vm107, %v38, 0
  %v188 = vsel %vm111, %v39, 0
  %190 = vmatpush.msra.mxu0 0.0
  %191 = vmatpush.msra.mxu0 0.0
  %192 = vmatpush.msra.mxu0 0.0
  %193 = vmatpush.msra.mxu0 0.0
  %194 = vmatpush.msra.mxu0 0.0
  %195 = vmatpush.msra.mxu0 0.0
  %196 = vmatpush.msra.mxu0 0.0
  %197 = vmatpush.msra.mxu0 0.0
  %198 = vmatpush.msra.mxu0 0.0
  %199 = vmatpush.msra.mxu0 0.0
  %200 = vmatpush.msra.mxu0 0.0
  %201 = vmatpush.msra.mxu0 0.0
  %202 = vmatpush.msra.mxu0 0.0
  %203 = vmatpush.msra.mxu0 0.0
  %204 = vmatpush.msra.mxu0 0.0
  %205 = vmatpush.msra.mxu0 %v188
  %206 = vmatmul.f32.gmra.mxu0 %v185
  %v207 = vpop.f32.mrf.mxu0
  %v208 = vadd.f32 0.0, %v207
  %209 = vdwg.mxu0
  %210 = vmatpush.msra.mxu0 %v105
  %211 = vmatpush.msra.mxu0 %v104
  %212 = vmatpush.msra.mxu0 %v103
  %213 = vmatpush.msra.mxu0 %v102
  %214 = vmatpush.msra.mxu0 %v101
  %215 = vmatpush.msra.mxu0 %v100
  %216 = vmatpush.msra.mxu0 %v99
  %217 = vmatpush.msra.mxu0 %v98
  %218 = vmatpush.msra.mxu0 %v97
  %219 = vmatpush.msra.mxu0 %v96
  %220 = vmatpush.msra.mxu0 %v95
  %221 = vmatpush.msra.mxu0 %v94
  %222 = vmatpush.msra.mxu0 %v93
  %223 = vmatpush.msra.mxu0 %v92
  %224 = vmatpush.msra.mxu0 %v91
  %225 = vmatpush.msra.mxu0 %v90
  %226 = vmatmul.f32.gmra.mxu0 %v40
  %v227 = vpop.f32.mrf.mxu0
  %v228 = vadd.f32 0.0, %v227
  %229 = vdwg.mxu0
  %230 = vmatpush.msra.mxu0 %v89
  %231 = vmatpush.msra.mxu0 %v88
  %232 = vmatpush.msra.mxu0 %v87
  %233 = vmatpush.msra.mxu0 %v86
  %234 = vmatpush.msra.mxu0 %v85
  %235 = vmatpush.msra.mxu0 %v84
  %236 = vmatpush.msra.mxu0 %v83
  %237 = vmatpush.msra.mxu0 %v82
  %238 = vmatpush.msra.mxu0 %v81
  %239 = vmatpush.msra.mxu0 %v80
  %240 = vmatpush.msra.mxu0 %v79
  %241 = vmatpush.msra.mxu0 %v78
  %242 = vmatpush.msra.mxu0 %v77
  %243 = vmatpush.msra.mxu0 %v76
  %244 = vmatpush.msra.mxu0 %v75
  %245 = vmatpush.msra.mxu0 %v74
  %246 = vmatmul.f32.gmra.mxu0 %v208
  %v247 = vpop.f32.mrf.mxu0
  %v248 = vadd.f32 %v228, %v247
  %249 = vdwg.mxu0
  %v251 = vperm.slane %v106, 0
  %v253 = vadd.f32 %v248, %v251
  %vm254 = vcmp.ge.f32.partialorder %v253, 0.0
  %v255 = vmul.f32 %v253, 0.2
  %v256 = vsel %vm254, %v253, %v255
  %257 = vst.msk [vmem:[%s11] sm:$0xf] %vm182, %v256
  // Predicated region
  $region42: #{molvis_gnn_forward.14} parent=0 // pred_check
    _
  $region43: #{molvis_gnn_forward.14} parent=0 // pred_check_branch
    %259 = sbr.rel (0) target = $region45
  $region44: #{molvis_gnn_forward.14} parent=0 // pred_region
    _
  $region45: #{molvis_gnn_forward.14} parent=0 // pred_fallthru
    _
  // Predicated region
  $region46: #{molvis_gnn_forward.14} parent=0 // pred_check
    _
  $region47: #{molvis_gnn_forward.14} parent=0 // pred_check_branch
    %261 = sbr.rel (0) target = $region49
  $region48: #{molvis_gnn_forward.14} parent=0 // pred_region
    _
  $region49: #{molvis_gnn_forward.14} parent=0 // pred_fallthru
    _
  // Predicated region
  $region50: #{molvis_gnn_forward.14} parent=0 // pred_check
    _
  $region51: #{molvis_gnn_forward.14} parent=0 // pred_check_branch
    %263 = sbr.rel (0) target = $region53
  $region52: #{molvis_gnn_forward.14} parent=0 // pred_region
    _
  $region53: #{molvis_gnn_forward.14} parent=0 // pred_fallthru
    _
  // Predicated region
  $region54: #{molvis_gnn_forward.14} parent=0 // pred_check
    _
  $region55: #{molvis_gnn_forward.14} parent=0 // pred_check_branch
    %265 = sbr.rel (0) target = $region57
  $region56: #{molvis_gnn_forward.14} parent=0 // pred_region
    _
  $region57: #{molvis_gnn_forward.14} parent=0 // pred_fallthru
    _

// kernel: molvis_gnn_forward.13
$region0: #{molvis_gnn_forward.13}
  #allocation0 [shape = 'u32[]', space=smem, size = 0x4, offset = 0x4, fixed_abs, tag = 'smem constant byte address 0x4 - core index']
  #allocation1 [shape = 'u32[72,128]{1,0:T(1,128)}', space=vmem, size = 0x9000, scoped, tag = 'internal scratch']
  %s0 = inlined_call_operand.vmem [shape: f32[4,4], index: 0, kind: input, shape index: {}]
  %s1 = inlined_call_operand.vmem [shape: f32[4,4], index: 1, kind: input, shape index: {}]
  %s2 = inlined_call_operand.vmem [shape: f32[4,256], index: 2, kind: input, shape index: {}]
  %s3 = inlined_call_operand.vmem [shape: f32[4,382], index: 3, kind: input, shape index: {}]
  %s4 = inlined_call_operand.vmem [shape: f32[382,256], index: 4, kind: input, shape index: {}]
  %s5 = inlined_call_operand.vmem [shape: f32[1,256], index: 5, kind: input, shape index: {}]
  %s6 = inlined_call_operand.vmem [shape: f32[256,128], index: 6, kind: input, shape index: {}]
  %s7 = inlined_call_operand.vmem [shape: f32[256,128], index: 7, kind: input, shape index: {}]
  %s8 = inlined_call_operand.vmem [shape: f32[1,128], index: 8, kind: input, shape index: {}]
  %s9 = inlined_call_operand.vmem [shape: f32[256,128], index: 9, kind: input, shape index: {}]
  %s10 = inlined_call_operand.vmem [shape: f32[256,128], index: 10, kind: input, shape index: {}]
  %s11 = inlined_call_operand.vmem [shape: f32[1,128], index: 11, kind: input, shape index: {}]
  %s12 = inlined_call_operand.vmem [shape: f32[4,128], index: 12, kind: output, shape index: {0}]
  %s13 = inlined_call_operand.vmem [shape: f32[4,128], index: 13, kind: output, shape index: {1}]
  %14 = xla_tuple %s12, %s13
  %s15 = sld [smem:[#allocation0]]
  $region66: #{molvis_gnn_forward.13} parent=0
    _
  %s17 = ssub.s32 1, %s15
  %s18 = scalar_select 0, %s17, %s15
  // Predicated region
  $region2: #{molvis_gnn_forward.13} parent=0 // pred_check
    _
  $region3: #{molvis_gnn_forward.13} parent=0 // pred_check_branch
    %20 = sbr.rel (0) target = $region5
  $region4: #{molvis_gnn_forward.13} parent=0 // pred_region
    _
  $region5: #{molvis_gnn_forward.13} parent=0 // pred_fallthru
    _
  // Predicated region
  $region6: #{molvis_gnn_forward.13} parent=0 // pred_check
    _
  $region7: #{molvis_gnn_forward.13} parent=0 // pred_check_branch
    %22 = sbr.rel (0) target = $region9
  $region8: #{molvis_gnn_forward.13} parent=0 // pred_region
    _
  $region9: #{molvis_gnn_forward.13} parent=0 // pred_fallthru
    _
  // Predicated region
  $region10: #{molvis_gnn_forward.13} parent=0 // pred_check
    _
  $region11: #{molvis_gnn_forward.13} parent=0 // pred_check_branch
    %24 = sbr.rel (0) target = $region13
  $region12: #{molvis_gnn_forward.13} parent=0 // pred_region
    _
  $region13: #{molvis_gnn_forward.13} parent=0 // pred_fallthru
    _
  // Predicated region
  $region14: #{molvis_gnn_forward.13} parent=0 // pred_check
    _
  $region15: #{molvis_gnn_forward.13} parent=0 // pred_check_branch
    %26 = sbr.rel (0) target = $region17
  $region16: #{molvis_gnn_forward.13} parent=0 // pred_region
    _
  $region17: #{molvis_gnn_forward.13} parent=0 // pred_fallthru
    _
  // Predicated region
  $region18: #{molvis_gnn_forward.13} parent=0 // pred_check
    _
  $region19: #{molvis_gnn_forward.13} parent=0 // pred_check_branch
    %28 = sbr.rel (0) target = $region21
  $region20: #{molvis_gnn_forward.13} parent=0 // pred_region
    _
  $region21: #{molvis_gnn_forward.13} parent=0 // pred_fallthru
    _
  // Predicated region
  $region22: #{molvis_gnn_forward.13} parent=0 // pred_check
    _
  $region23: #{molvis_gnn_forward.13} parent=0 // pred_check_branch
    %30 = sbr.rel (0) target = $region25
  $region24: #{molvis_gnn_forward.13} parent=0 // pred_region
    _
  $region25: #{molvis_gnn_forward.13} parent=0 // pred_fallthru
    _
  // Predicated region
  $region26: #{molvis_gnn_forward.13} parent=0 // pred_check
    _
  $region27: #{molvis_gnn_forward.13} parent=0 // pred_check_branch
    %32 = sbr.rel (0) target = $region29
  $region28: #{molvis_gnn_forward.13} parent=0 // pred_region
    _
  $region29: #{molvis_gnn_forward.13} parent=0 // pred_fallthru
    _
  // Predicated region
  $region30: #{molvis_gnn_forward.13} parent=0 // pred_check
    _
  $region31: #{molvis_gnn_forward.13} parent=0 // pred_check_branch
    %34 = sbr.rel (0) target = $region33
  $region32: #{molvis_gnn_forward.13} parent=0 // pred_region
    _
  $region33: #{molvis_gnn_forward.13} parent=0 // pred_fallthru
    _
  // Predicated region
  $region34: #{molvis_gnn_forward.13} parent=0 // pred_check
    _
  $region35: #{molvis_gnn_forward.13} parent=0 // pred_check_branch
    %36 = sbr.rel (0) target = $region37
  $region36: #{molvis_gnn_forward.13} parent=0 // pred_region
    _
  $region37: #{molvis_gnn_forward.13} parent=0 // pred_fallthru
    _
  // Predicated region
  $region38: #{molvis_gnn_forward.13} parent=0 // pred_check
    _
  $region39: #{molvis_gnn_forward.13} parent=0 // pred_check_branch
    %38 = sbr.rel (0) target = $region41
  $region40: #{molvis_gnn_forward.13} parent=0 // pred_region
    _
  $region41: #{molvis_gnn_forward.13} parent=0 // pred_fallthru
    _
  // Predicated region
  $region42: #{molvis_gnn_forward.13} parent=0 // pred_check
    _
  $region43: #{molvis_gnn_forward.13} parent=0 // pred_check_branch
    %40 = sbr.rel (0) target = $region45
  $region44: #{molvis_gnn_forward.13} parent=0 // pred_region
    _
  $region45: #{molvis_gnn_forward.13} parent=0 // pred_fallthru
    _
  // Predicated region
  $region46: #{molvis_gnn_forward.13} parent=0 // pred_check
    _
  $region47: #{molvis_gnn_forward.13} parent=0 // pred_check_branch
    %42 = sbr.rel (0) target = $region49
  $region48: #{molvis_gnn_forward.13} parent=0 // pred_region
    _
  $region49: #{molvis_gnn_forward.13} parent=0 // pred_fallthru
    _
  %v43 = vld [vmem:[%s3] sm:$0xff]
  %v44 = vld [vmem:[%s3 + $0x8] sm:$0xf]
  %v45 = vld [vmem:[%s4] sm:$0xff]
  %v46 = vld [vmem:[%s4 + $0x8] sm:$0xff]
  %v47 = vld [vmem:[%s4 + $0x10] sm:$0xff]
  %v48 = vld [vmem:[%s4 + $0x18] sm:$0xff]
  %v49 = vld [vmem:[%s4 + $0x20] sm:$0xff]
  %v50 = vld [vmem:[%s4 + $0x28] sm:$0xff]
  %v51 = vld [vmem:[%s4 + $0x30] sm:$0xff]
  %v52 = vld [vmem:[%s4 + $0x38] sm:$0xff]
  %v53 = vld [vmem:[%s4 + $0x40] sm:$0xff]
  %v54 = vld [vmem:[%s4 + $0x48] sm:$0xff]
  %v55 = vld [vmem:[%s4 + $0x50] sm:$0xff]
  %v56 = vld [vmem:[%s4 + $0x58] sm:$0xff]
  %v57 = vld [vmem:[%s4 + $0x60] sm:$0xff]
  %v58 = vld [vmem:[%s4 + $0x68] sm:$0xff]
  %v59 = vld [vmem:[%s4 + $0x70] sm:$0xff]
  %v60 = vld [vmem:[%s4 + $0x78] sm:$0xff]
  %v61 = vld [vmem:[%s4 + $0x80] sm:$0xff]
  %v62 = vld [vmem:[%s4 + $0x88] sm:$0xff]
  %v63 = vld [vmem:[%s4 + $0x90] sm:$0xff]
  %v64 = vld [vmem:[%s4 + $0x98] sm:$0xff]
  %v65 = vld [vmem:[%s4 + $0xa0] sm:$0xff]
  %v66 = vld [vmem:[%s4 + $0xa8] sm:$0xff]
  %v67 = vld [vmem:[%s4 + $0xb0] sm:$0xff]
  %v68 = vld [vmem:[%s4 + $0xb8] sm:$0xff]
  %v69 = vld [vmem:[%s4 + $0xc0] sm:$0xff]
  %v70 = vld [vmem:[%s4 + $0xc8] sm:$0xff]
  %v71 = vld [vmem:[%s4 + $0xd0] sm:$0xff]
  %v72 = vld [vmem:[%s4 + $0xd8] sm:$0xff]
  %v73 = vld [vmem:[%s4 + $0xe0] sm:$0xff]
  %v74 = vld [vmem:[%s4 + $0xe8] sm:$0xff]
  %v75 = vld [vmem:[%s4 + $0xf0] sm:$0xff]
  %v76 = vld [vmem:[%s4 + $0xf8] sm:$0xff]
  %v77 = vld [vmem:[%s4 + $0x100] sm:$0xff]
  %v78 = vld [vmem:[%s4 + $0x108] sm:$0xff]
  %v79 = vld [vmem:[%s4 + $0x110] sm:$0xff]
  %v80 = vld [vmem:[%s4 + $0x118] sm:$0xff]
  %v81 = vld [vmem:[%s4 + $0x120] sm:$0xff]
  %v82 = vld [vmem:[%s4 + $0x128] sm:$0xff]
  %v83 = vld [vmem:[%s4 + $0x130] sm:$0xff]
  %v84 = vld [vmem:[%s4 + $0x138] sm:$0xff]
  %v85 = vld [vmem:[%s4 + $0x140] sm:$0xff]
  %v86 = vld [vmem:[%s4 + $0x148] sm:$0xff]
  %v87 = vld [vmem:[%s4 + $0x150] sm:$0xff]
  %v88 = vld [vmem:[%s4 + $0x158] sm:$0xff]
  %v89 = vld [vmem:[%s4 + $0x160] sm:$0xff]
  %v90 = vld [vmem:[%s4 + $0x168] sm:$0xff]
  %v91 = vld [vmem:[%s4 + $0x170] sm:$0xff]
  %v92 = vld [vmem:[%s4 + $0x178] sm:$0xff]
  %v93 = vld [vmem:[%s4 + $0x180] sm:$0xff]
  %v94 = vld [vmem:[%s4 + $0x188] sm:$0xff]
  %v95 = vld [vmem:[%s4 + $0x190] sm:$0xff]
  %v96 = vld [vmem:[%s4 + $0x198] sm:$0xff]
  %v97 = vld [vmem:[%s4 + $0x1a0] sm:$0xff]
  %v98 = vld [vmem:[%s4 + $0x1a8] sm:$0xff]
  %v99 = vld [vmem:[%s4 + $0x1b0] sm:$0xff]
  %v100 = vld [vmem:[%s4 + $0x1b8] sm:$0xff]
  %v101 = vld [vmem:[%s4 + $0x1c0] sm:$0xff]
  %v102 = vld [vmem:[%s4 + $0x1c8] sm:$0xff]
  %v103 = vld [vmem:[%s4 + $0x1d0] sm:$0xff]
  %v104 = vld [vmem:[%s4 + $0x1d8] sm:$0xff]
  %v105 = vld [vmem:[%s4 + $0x1e0] sm:$0xff]
  %v106 = vld [vmem:[%s4 + $0x1e8] sm:$0xff]
  %v107 = vld [vmem:[%s4 + $0x1f0] sm:$0xff]
  %v108 = vld [vmem:[%s4 + $0x1f8] sm:$0xff]
  %v109 = vld [vmem:[%s4 + $0x200] sm:$0xff]
  %v110 = vld [vmem:[%s4 + $0x208] sm:$0xff]
  %v111 = vld [vmem:[%s4 + $0x210] sm:$0xff]
  %v112 = vld [vmem:[%s4 + $0x218] sm:$0xff]
  %v113 = vld [vmem:[%s4 + $0x220] sm:$0xff]
  %v114 = vld [vmem:[%s4 + $0x228] sm:$0xff]
  %v115 = vld [vmem:[%s4 + $0x230] sm:$0xff]
  %v116 = vld [vmem:[%s4 + $0x238] sm:$0xff]
  %v117 = vld [vmem:[%s4 + $0x240] sm:$0xff]
  %v118 = vld [vmem:[%s4 + $0x248] sm:$0xff]
  %v119 = vld [vmem:[%s4 + $0x250] sm:$0xff]
  %v120 = vld [vmem:[%s4 + $0x258] sm:$0xff]
  %v121 = vld [vmem:[%s4 + $0x260] sm:$0xff]
  %v122 = vld [vmem:[%s4 + $0x268] sm:$0xff]
  %v123 = vld [vmem:[%s4 + $0x270] sm:$0xff]
  %v124 = vld [vmem:[%s4 + $0x278] sm:$0xff]
  %v125 = vld [vmem:[%s4 + $0x280] sm:$0xff]
  %v126 = vld [vmem:[%s4 + $0x288] sm:$0xff]
  %v127 = vld [vmem:[%s4 + $0x290] sm:$0xff]
  %v128 = vld [vmem:[%s4 + $0x298] sm:$0xff]
  %v129 = vld [vmem:[%s4 + $0x2a0] sm:$0xff]
  %v130 = vld [vmem:[%s4 + $0x2a8] sm:$0xff]
  %v131 = vld [vmem:[%s4 + $0x2b0] sm:$0xff]
  %v132 = vld [vmem:[%s4 + $0x2b8] sm:$0xff]
  %v133 = vld [vmem:[%s4 + $0x2c0] sm:$0xff]
  %v134 = vld [vmem:[%s4 + $0x2c8] sm:$0xff]
  %v135 = vld [vmem:[%s4 + $0x2d0] sm:$0xff]
  %v136 = vld [vmem:[%s4 + $0x2d8] sm:$0xff]
  %v137 = vld [vmem:[%s4 + $0x2e0] sm:$0xff]
  %v138 = vld [vmem:[%s4 + $0x2e8] sm:$0xff]
  %v139 = vld [vmem:[%s4 + $0x2f0] sm:$0x3f]
  %v140 = vld [vmem:[%s4 + $0x2f8] sm:$0x3f]
  %v141 = vld [vmem:[%s5] sm:$0x3]
  %v143 = vperm.slane %v141, 0
  %v144 = vperm.slane %v141, 1
  %149 = vst [vmem:[#allocation1] ss:$2 sm:$0xff] %v43
  %s150 = scalar_lea.vmem [#allocation1], 16
  %151 = vst [vmem:[%s150] ss:$2 sm:$0xff] %v44
  %v152 = vld.sshfl [vmem:[#allocation1] sm:$0xff pattern:$0x75316420]
  %v153 = vld.sshfl [vmem:[#allocation1 + $0x8] sm:$0xff pattern:$0x75316420]
  %v154 = vld.sshfl [vmem:[#allocation1 + $0x10] sm:$0xff pattern:$0x75316420]
  %vm157 = vcmask 1031168
  %v158 = vsel %vm157, %v154, 0
  %vm160 = vcmask 1045504
  %v162 = vsel %vm160, %v139, 0
  %v165 = vsel %vm160, %v140, 0
  %167 = vmatpush.msra.mxu0 %v75
  %168 = vmatpush.msra.mxu0 %v73
  %169 = vmatpush.msra.mxu0 %v71
  %170 = vmatpush.msra.mxu0 %v69
  %171 = vmatpush.msra.mxu0 %v67
  %172 = vmatpush.msra.mxu0 %v65
  %173 = vmatpush.msra.mxu0 %v63
  %174 = vmatpush.msra.mxu0 %v61
  %175 = vmatpush.msra.mxu0 %v59
  %176 = vmatpush.msra.mxu0 %v57
  %177 = vmatpush.msra.mxu0 %v55
  %178 = vmatpush.msra.mxu0 %v53
  %179 = vmatpush.msra.mxu0 %v51
  %180 = vmatpush.msra.mxu0 %v49
  %181 = vmatpush.msra.mxu0 %v47
  %182 = vmatpush.msra.mxu0 %v45
  %183 = vmatmul.f32.gmra.mxu0 %v152
  %v184 = vpop.f32.mrf.mxu0
  %v185 = vadd.f32 %v143, %v184
  %186 = vdwg.mxu0
  %187 = vmatpush.msra.mxu0 %v107
  %188 = vmatpush.msra.mxu0 %v105
  %189 = vmatpush.msra.mxu0 %v103
  %190 = vmatpush.msra.mxu0 %v101
  %191 = vmatpush.msra.mxu0 %v99
  %192 = vmatpush.msra.mxu0 %v97
  %193 = vmatpush.msra.mxu0 %v95
  %194 = vmatpush.msra.mxu0 %v93
  %195 = vmatpush.msra.mxu0 %v91
  %196 = vmatpush.msra.mxu0 %v89
  %197 = vmatpush.msra.mxu0 %v87
  %198 = vmatpush.msra.mxu0 %v85
  %199 = vmatpush.msra.mxu0 %v83
  %200 = vmatpush.msra.mxu0 %v81
  %201 = vmatpush.msra.mxu0 %v79
  %202 = vmatpush.msra.mxu0 %v77
  %203 = vmatmul.f32.gmra.mxu0 %v153
  %v204 = vpop.f32.mrf.mxu0
  %v205 = vadd.f32 %v185, %v204
  %206 = vdwg.mxu0
  %207 = vmatpush.msra.mxu0 %v162
  %208 = vmatpush.msra.mxu0 %v137
  %209 = vmatpush.msra.mxu0 %v135
  %210 = vmatpush.msra.mxu0 %v133
  %211 = vmatpush.msra.mxu0 %v131
  %212 = vmatpush.msra.mxu0 %v129
  %213 = vmatpush.msra.mxu0 %v127
  %214 = vmatpush.msra.mxu0 %v125
  %215 = vmatpush.msra.mxu0 %v123
  %216 = vmatpush.msra.mxu0 %v121
  %217 = vmatpush.msra.mxu0 %v119
  %218 = vmatpush.msra.mxu0 %v117
  %219 = vmatpush.msra.mxu0 %v115
  %220 = vmatpush.msra.mxu0 %v113
  %221 = vmatpush.msra.mxu0 %v111
  %222 = vmatpush.msra.mxu0 %v109
  %223 = vmatmul.f32.gmra.mxu0 %v158
  %v224 = vpop.f32.mrf.mxu0
  %v225 = vadd.f32 %v205, %v224
  %226 = vdwg.mxu0
  %227 = vmatpush.msra.mxu0 %v76
  %228 = vmatpush.msra.mxu0 %v74
  %229 = vmatpush.msra.mxu0 %v72
  %230 = vmatpush.msra.mxu0 %v70
  %231 = vmatpush.msra.mxu0 %v68
  %232 = vmatpush.msra.mxu0 %v66
  %233 = vmatpush.msra.mxu0 %v64
  %234 = vmatpush.msra.mxu0 %v62
  %235 = vmatpush.msra.mxu0 %v60
  %236 = vmatpush.msra.mxu0 %v58
  %237 = vmatpush.msra.mxu0 %v56
  %238 = vmatpush.msra.mxu0 %v54
  %239 = vmatpush.msra.mxu0 %v52
  %240 = vmatpush.msra.mxu0 %v50
  %241 = vmatpush.msra.mxu0 %v48
  %242 = vmatpush.msra.mxu0 %v46
  %243 = vmatmul.f32.gmra.mxu0 %v152
  %v244 = vpop.f32.mrf.mxu0
  %v245 = vadd.f32 %v144, %v244
  %246 = vdwg.mxu0
  %247 = vmatpush.msra.mxu0 %v108
  %248 = vmatpush.msra.mxu0 %v106
  %249 = vmatpush.msra.mxu0 %v104
  %250 = vmatpush.msra.mxu0 %v102
  %251 = vmatpush.msra.mxu0 %v100
  %252 = vmatpush.msra.mxu0 %v98
  %253 = vmatpush.msra.mxu0 %v96
  %254 = vmatpush.msra.mxu0 %v94
  %255 = vmatpush.msra.mxu0 %v92
  %256 = vmatpush.msra.mxu0 %v90
  %257 = vmatpush.msra.mxu0 %v88
  %258 = vmatpush.msra.mxu0 %v86
  %259 = vmatpush.msra.mxu0 %v84
  %260 = vmatpush.msra.mxu0 %v82
  %261 = vmatpush.msra.mxu0 %v80
  %262 = vmatpush.msra.mxu0 %v78
  %263 = vmatmul.f32.gmra.mxu0 %v153
  %v264 = vpop.f32.mrf.mxu0
  %v265 = vadd.f32 %v245, %v264
  %266 = vdwg.mxu0
  %267 = vmatpush.msra.mxu0 %v165
  %268 = vmatpush.msra.mxu0 %v138
  %269 = vmatpush.msra.mxu0 %v136
  %270 = vmatpush.msra.mxu0 %v134
  %271 = vmatpush.msra.mxu0 %v132
  %272 = vmatpush.msra.mxu0 %v130
  %273 = vmatpush.msra.mxu0 %v128
  %274 = vmatpush.msra.mxu0 %v126
  %275 = vmatpush.msra.mxu0 %v124
  %276 = vmatpush.msra.mxu0 %v122
  %277 = vmatpush.msra.mxu0 %v120
  %278 = vmatpush.msra.mxu0 %v118
  %279 = vmatpush.msra.mxu0 %v116
  %280 = vmatpush.msra.mxu0 %v114
  %281 = vmatpush.msra.mxu0 %v112
  %282 = vmatpush.msra.mxu0 %v110
  %283 = vmatmul.f32.gmra.mxu0 %v158
  %v284 = vpop.f32.mrf.mxu0
  %v285 = vadd.f32 %v265, %v284
  %286 = vdwg.mxu0
  %v287 = vld [vmem:[%s0] sm:$0xf]
  %v288 = vld [vmem:[%s1] sm:$0xf]
  %v289 = vld [vmem:[%s2] sm:$0xff]
  %v290 = vld [vmem:[%s6] sm:$0xff]
  %v291 = vld [vmem:[%s6 + $0x8] sm:$0xff]
  %v292 = vld [vmem:[%s6 + $0x10] sm:$0xff]
  %v293 = vld [vmem:[%s6 + $0x18] sm:$0xff]
  %v294 = vld [vmem:[%s6 + $0x20] sm:$0xff]
  %v295 = vld [vmem:[%s6 + $0x28] sm:$0xff]
  %v296 = vld [vmem:[%s6 + $0x30] sm:$0xff]
  %v297 = vld [vmem:[%s6 + $0x38] sm:$0xff]
  %v298 = vld [vmem:[%s6 + $0x40] sm:$0xff]
  %v299 = vld [vmem:[%s6 + $0x48] sm:$0xff]
  %v300 = vld [vmem:[%s6 + $0x50] sm:$0xff]
  %v301 = vld [vmem:[%s6 + $0x58] sm:$0xff]
  %v302 = vld [vmem:[%s6 + $0x60] sm:$0xff]
  %v303 = vld [vmem:[%s6 + $0x68] sm:$0xff]
  %v304 = vld [vmem:[%s6 + $0x70] sm:$0xff]
  %v305 = vld [vmem:[%s6 + $0x78] sm:$0xff]
  %v306 = vld [vmem:[%s6 + $0x80] sm:$0xff]
  %v307 = vld [vmem:[%s6 + $0x88] sm:$0xff]
  %v308 = vld [vmem:[%s6 + $0x90] sm:$0xff]
  %v309 = vld [vmem:[%s6 + $0x98] sm:$0xff]
  %v310 = vld [vmem:[%s6 + $0xa0] sm:$0xff]
  %v311 = vld [vmem:[%s6 + $0xa8] sm:$0xff]
  %v312 = vld [vmem:[%s6 + $0xb0] sm:$0xff]
  %v313 = vld [vmem:[%s6 + $0xb8] sm:$0xff]
  %v314 = vld [vmem:[%s6 + $0xc0] sm:$0xff]
  %v315 = vld [vmem:[%s6 + $0xc8] sm:$0xff]
  %v316 = vld [vmem:[%s6 + $0xd0] sm:$0xff]
  %v317 = vld [vmem:[%s6 + $0xd8] sm:$0xff]
  %v318 = vld [vmem:[%s6 + $0xe0] sm:$0xff]
  %v319 = vld [vmem:[%s6 + $0xe8] sm:$0xff]
  %v320 = vld [vmem:[%s6 + $0xf0] sm:$0xff]
  %v321 = vld [vmem:[%s6 + $0xf8] sm:$0xff]
  %v322 = vld [vmem:[%s7] sm:$0xff]
  %v323 = vld [vmem:[%s7 + $0x8] sm:$0xff]
  %v324 = vld [vmem:[%s7 + $0x10] sm:$0xff]
  %v325 = vld [vmem:[%s7 + $0x18] sm:$0xff]
  %v326 = vld [vmem:[%s7 + $0x20] sm:$0xff]
  %v327 = vld [vmem:[%s7 + $0x28] sm:$0xff]
  %v328 = vld [vmem:[%s7 + $0x30] sm:$0xff]
  %v329 = vld [vmem:[%s7 + $0x38] sm:$0xff]
  %v330 = vld [vmem:[%s7 + $0x40] sm:$0xff]
  %v331 = vld [vmem:[%s7 + $0x48] sm:$0xff]
  %v332 = vld [vmem:[%s7 + $0x50] sm:$0xff]
  %v333 = vld [vmem:[%s7 + $0x58] sm:$0xff]
  %v334 = vld [vmem:[%s7 + $0x60] sm:$0xff]
  %v335 = vld [vmem:[%s7 + $0x68] sm:$0xff]
  %v336 = vld [vmem:[%s7 + $0x70] sm:$0xff]
  %v337 = vld [vmem:[%s7 + $0x78] sm:$0xff]
  %v338 = vld [vmem:[%s7 + $0x80] sm:$0xff]
  %v339 = vld [vmem:[%s7 + $0x88] sm:$0xff]
  %v340 = vld [vmem:[%s7 + $0x90] sm:$0xff]
  %v341 = vld [vmem:[%s7 + $0x98] sm:$0xff]
  %v342 = vld [vmem:[%s7 + $0xa0] sm:$0xff]
  %v343 = vld [vmem:[%s7 + $0xa8] sm:$0xff]
  %v344 = vld [vmem:[%s7 + $0xb0] sm:$0xff]
  %v345 = vld [vmem:[%s7 + $0xb8] sm:$0xff]
  %v346 = vld [vmem:[%s7 + $0xc0] sm:$0xff]
  %v347 = vld [vmem:[%s7 + $0xc8] sm:$0xff]
  %v348 = vld [vmem:[%s7 + $0xd0] sm:$0xff]
  %v349 = vld [vmem:[%s7 + $0xd8] sm:$0xff]
  %v350 = vld [vmem:[%s7 + $0xe0] sm:$0xff]
  %v351 = vld [vmem:[%s7 + $0xe8] sm:$0xff]
  %v352 = vld [vmem:[%s7 + $0xf0] sm:$0xff]
  %v353 = vld [vmem:[%s7 + $0xf8] sm:$0xff]
  %v354 = vld [vmem:[%s8] sm:$0x1]
  %v355 = vld [vmem:[%s9] sm:$0xff]
  %v356 = vld [vmem:[%s9 + $0x8] sm:$0xff]
  %v357 = vld [vmem:[%s9 + $0x10] sm:$0xff]
  %v358 = vld [vmem:[%s9 + $0x18] sm:$0xff]
  %v359 = vld [vmem:[%s9 + $0x20] sm:$0xff]
  %v360 = vld [vmem:[%s9 + $0x28] sm:$0xff]
  %v361 = vld [vmem:[%s9 + $0x30] sm:$0xff]
  %v362 = vld [vmem:[%s9 + $0x38] sm:$0xff]
  %v363 = vld [vmem:[%s9 + $0x40] sm:$0xff]
  %v364 = vld [vmem:[%s9 + $0x48] sm:$0xff]
  %v365 = vld [vmem:[%s9 + $0x50] sm:$0xff]
  %v366 = vld [vmem:[%s9 + $0x58] sm:$0xff]
  %v367 = vld [vmem:[%s9 + $0x60] sm:$0xff]
  %v368 = vld [vmem:[%s9 + $0x68] sm:$0xff]
  %v369 = vld [vmem:[%s9 + $0x70] sm:$0xff]
  %v370 = vld [vmem:[%s9 + $0x78] sm:$0xff]
  %v371 = vld [vmem:[%s9 + $0x80] sm:$0xff]
  %v372 = vld [vmem:[%s9 + $0x88] sm:$0xff]
  %v373 = vld [vmem:[%s9 + $0x90] sm:$0xff]
  %v374 = vld [vmem:[%s9 + $0x98] sm:$0xff]
  %v375 = vld [vmem:[%s9 + $0xa0] sm:$0xff]
  %v376 = vld [vmem:[%s9 + $0xa8] sm:$0xff]
  %v377 = vld [vmem:[%s9 + $0xb0] sm:$0xff]
  %v378 = vld [vmem:[%s9 + $0xb8] sm:$0xff]
  %v379 = vld [vmem:[%s9 + $0xc0] sm:$0xff]
  %v380 = vld [vmem:[%s9 + $0xc8] sm:$0xff]
  %v381 = vld [vmem:[%s9 + $0xd0] sm:$0xff]
  %v382 = vld [vmem:[%s9 + $0xd8] sm:$0xff]
  %v383 = vld [vmem:[%s9 + $0xe0] sm:$0xff]
  %v384 = vld [vmem:[%s9 + $0xe8] sm:$0xff]
  %v385 = vld [vmem:[%s9 + $0xf0] sm:$0xff]
  %v386 = vld [vmem:[%s9 + $0xf8] sm:$0xff]
  %v387 = vld [vmem:[%s10] sm:$0xff]
  %v388 = vld [vmem:[%s10 + $0x8] sm:$0xff]
  %v389 = vld [vmem:[%s10 + $0x10] sm:$0xff]
  %v390 = vld [vmem:[%s10 + $0x18] sm:$0xff]
  %v391 = vld [vmem:[%s10 + $0x20] sm:$0xff]
  %v392 = vld [vmem:[%s10 + $0x28] sm:$0xff]
  %v393 = vld [vmem:[%s10 + $0x30] sm:$0xff]
  %v394 = vld [vmem:[%s10 + $0x38] sm:$0xff]
  %v395 = vld [vmem:[%s10 + $0x40] sm:$0xff]
  %v396 = vld [vmem:[%s10 + $0x48] sm:$0xff]
  %v397 = vld [vmem:[%s10 + $0x50] sm:$0xff]
  %v398 = vld [vmem:[%s10 + $0x58] sm:$0xff]
  %v399 = vld [vmem:[%s10 + $0x60] sm:$0xff]
  %v400 = vld [vmem:[%s10 + $0x68] sm:$0xff]
  %v401 = vld [vmem:[%s10 + $0x70] sm:$0xff]
  %v402 = vld [vmem:[%s10 + $0x78] sm:$0xff]
  %v403 = vld [vmem:[%s10 + $0x80] sm:$0xff]
  %v404 = vld [vmem:[%s10 + $0x88] sm:$0xff]
  %v405 = vld [vmem:[%s10 + $0x90] sm:$0xff]
  %v406 = vld [vmem:[%s10 + $0x98] sm:$0xff]
  %v407 = vld [vmem:[%s10 + $0xa0] sm:$0xff]
  %v408 = vld [vmem:[%s10 + $0xa8] sm:$0xff]
  %v409 = vld [vmem:[%s10 + $0xb0] sm:$0xff]
  %v410 = vld [vmem:[%s10 + $0xb8] sm:$0xff]
  %v411 = vld [vmem:[%s10 + $0xc0] sm:$0xff]
  %v412 = vld [vmem:[%s10 + $0xc8] sm:$0xff]
  %v413 = vld [vmem:[%s10 + $0xd0] sm:$0xff]
  %v414 = vld [vmem:[%s10 + $0xd8] sm:$0xff]
  %v415 = vld [vmem:[%s10 + $0xe0] sm:$0xff]
  %v416 = vld [vmem:[%s10 + $0xe8] sm:$0xff]
  %v417 = vld [vmem:[%s10 + $0xf0] sm:$0xff]
  %v418 = vld [vmem:[%s10 + $0xf8] sm:$0xff]
  %v419 = vld [vmem:[%s11] sm:$0x1]
  %vm420 = vcmask 31744
  %v422 = vsel %vm420, %v287, 0
  %vm424 = vcmask 1043456
  %v426 = vsel %vm424, %v225, 0
  %v429 = vsel %vm424, %v285, 0
  %431 = vmatpush.msra.mxu0 0.0
  %432 = vmatpush.msra.mxu0 0.0
  %433 = vmatpush.msra.mxu0 0.0
  %434 = vmatpush.msra.mxu0 0.0
  %435 = vmatpush.msra.mxu0 0.0
  %436 = vmatpush.msra.mxu0 0.0
  %437 = vmatpush.msra.mxu0 0.0
  %438 = vmatpush.msra.mxu0 0.0
  %439 = vmatpush.msra.mxu0 0.0
  %440 = vmatpush.msra.mxu0 0.0
  %441 = vmatpush.msra.mxu0 0.0
  %442 = vmatpush.msra.mxu0 0.0
  %443 = vmatpush.msra.mxu0 0.0
  %444 = vmatpush.msra.mxu0 0.0
  %445 = vmatpush.msra.mxu0 0.0
  %446 = vmatpush.msra.mxu0 %v426
  %447 = vmatmul.f32.gmra.mxu0 %v422
  %v448 = vpop.f32.mrf.mxu0
  %v449 = vadd.f32 0.0, %v448
  %450 = vdwg.mxu0
  %451 = vmatpush.msra.mxu0 0.0
  %452 = vmatpush.msra.mxu0 0.0
  %453 = vmatpush.msra.mxu0 0.0
  %454 = vmatpush.msra.mxu0 0.0
  %455 = vmatpush.msra.mxu0 0.0
  %456 = vmatpush.msra.mxu0 0.0
  %457 = vmatpush.msra.mxu0 0.0
  %458 = vmatpush.msra.mxu0 0.0
  %459 = vmatpush.msra.mxu0 0.0
  %460 = vmatpush.msra.mxu0 0.0
  %461 = vmatpush.msra.mxu0 0.0
  %462 = vmatpush.msra.mxu0 0.0
  %463 = vmatpush.msra.mxu0 0.0
  %464 = vmatpush.msra.mxu0 0.0
  %465 = vmatpush.msra.mxu0 0.0
  %466 = vmatpush.msra.mxu0 %v429
  %467 = vmatmul.f32.gmra.mxu0 %v422
  %v468 = vpop.f32.mrf.mxu0
  %v469 = vadd.f32 0.0, %v468
  %470 = vdwg.mxu0
  %472 = vst [vmem:[#allocation1] ss:$2 sm:$0xff] %v289
  %v473 = vld.sshfl [vmem:[#allocation1] sm:$0xff pattern:$0x75316420]
  %v474 = vld.sshfl [vmem:[#allocation1 + $0x8] sm:$0xff pattern:$0x75316420]
  %477 = vmatpush.msra.mxu0 %v337
  %478 = vmatpush.msra.mxu0 %v336
  %479 = vmatpush.msra.mxu0 %v335
  %480 = vmatpush.msra.mxu0 %v334
  %481 = vmatpush.msra.mxu0 %v333
  %482 = vmatpush.msra.mxu0 %v332
  %483 = vmatpush.msra.mxu0 %v331
  %484 = vmatpush.msra.mxu0 %v330
  %485 = vmatpush.msra.mxu0 %v329
  %486 = vmatpush.msra.mxu0 %v328
  %487 = vmatpush.msra.mxu0 %v327
  %488 = vmatpush.msra.mxu0 %v326
  %489 = vmatpush.msra.mxu0 %v325
  %490 = vmatpush.msra.mxu0 %v324
  %491 = vmatpush.msra.mxu0 %v323
  %492 = vmatpush.msra.mxu0 %v322
  %493 = vmatmul.f32.gmra.mxu0 %v473
  %v494 = vpop.f32.mrf.mxu0
  %v495 = vadd.f32 0.0, %v494
  %496 = vdwg.mxu0
  %497 = vmatpush.msra.mxu0 %v353
  %498 = vmatpush.msra.mxu0 %v352
  %499 = vmatpush.msra.mxu0 %v351
  %500 = vmatpush.msra.mxu0 %v350
  %501 = vmatpush.msra.mxu0 %v349
  %502 = vmatpush.msra.mxu0 %v348
  %503 = vmatpush.msra.mxu0 %v347
  %504 = vmatpush.msra.mxu0 %v346
  %505 = vmatpush.msra.mxu0 %v345
  %506 = vmatpush.msra.mxu0 %v344
  %507 = vmatpush.msra.mxu0 %v343
  %508 = vmatpush.msra.mxu0 %v342
  %509 = vmatpush.msra.mxu0 %v341
  %510 = vmatpush.msra.mxu0 %v340
  %511 = vmatpush.msra.mxu0 %v339
  %512 = vmatpush.msra.mxu0 %v338
  %513 = vmatmul.f32.gmra.mxu0 %v474
  %v514 = vpop.f32.mrf.mxu0
  %v515 = vadd.f32 %v495, %v514
  %516 = vdwg.mxu0
  %517 = vmatpush.msra.mxu0 %v305
  %518 = vmatpush.msra.mxu0 %v304
  %519 = vmatpush.msra.mxu0 %v303
  %520 = vmatpush.msra.mxu0 %v302
  %521 = vmatpush.msra.mxu0 %v301
  %522 = vmatpush.msra.mxu0 %v300
  %523 = vmatpush.msra.mxu0 %v299
  %524 = vmatpush.msra.mxu0 %v298
  %525 = vmatpush.msra.mxu0 %v297
  %526 = vmatpush.msra.mxu0 %v296
  %527 = vmatpush.msra.mxu0 %v295
  %528 = vmatpush.msra.mxu0 %v294
  %529 = vmatpush.msra.mxu0 %v293
  %530 = vmatpush.msra.mxu0 %v292
  %531 = vmatpush.msra.mxu0 %v291
  %532 = vmatpush.msra.mxu0 %v290
  %533 = vmatmul.f32.gmra.mxu0 %v449
  %v534 = vpop.f32.mrf.mxu0
  %v535 = vadd.f32 %v515, %v534
  %536 = vdwg.mxu0
  %537 = vmatpush.msra.mxu0 %v321
  %538 = vmatpush.msra.mxu0 %v320
  %539 = vmatpush.msra.mxu0 %v319
  %540 = vmatpush.msra.mxu0 %v318
  %541 = vmatpush.msra.mxu0 %v317
  %542 = vmatpush.msra.mxu0 %v316
  %543 = vmatpush.msra.mxu0 %v315
  %544 = vmatpush.msra.mxu0 %v314
  %545 = vmatpush.msra.mxu0 %v313
  %546 = vmatpush.msra.mxu0 %v312
  %547 = vmatpush.msra.mxu0 %v311
  %548 = vmatpush.msra.mxu0 %v310
  %549 = vmatpush.msra.mxu0 %v309
  %550 = vmatpush.msra.mxu0 %v308
  %551 = vmatpush.msra.mxu0 %v307
  %552 = vmatpush.msra.mxu0 %v306
  %553 = vmatmul.f32.gmra.mxu0 %v469
  %v554 = vpop.f32.mrf.mxu0
  %v555 = vadd.f32 %v535, %v554
  %556 = vdwg.mxu0
  %v558 = vperm.slane %v354, 0
  %v560 = vadd.f32 %v555, %v558
  %vm561 = vcmp.ge.f32.partialorder %v560, 0.0
  %v562 = vmul.f32 %v560, 0.2
  %v563 = vsel %vm561, %v560, %v562
  %564 = vst [vmem:[%s12] sm:$0xf] %v563
  %565 = vst [vmem:[#allocation1] ss:$2 sm:$0xff] %v289
  %v566 = vld.sshfl [vmem:[#allocation1] sm:$0xff pattern:$0x75316420]
  %v567 = vld.sshfl [vmem:[#allocation1 + $0x8] sm:$0xff pattern:$0x75316420]
  %v569 = vsel %vm420, %v288, 0
  %v571 = vsel %vm424, %v566, 0
  %v573 = vsel %vm424, %v567, 0
  %575 = vmatpush.msra.mxu0 0.0
  %576 = vmatpush.msra.mxu0 0.0
  %577 = vmatpush.msra.mxu0 0.0
  %578 = vmatpush.msra.mxu0 0.0
  %579 = vmatpush.msra.mxu0 0.0
  %580 = vmatpush.msra.mxu0 0.0
  %581 = vmatpush.msra.mxu0 0.0
  %582 = vmatpush.msra.mxu0 0.0
  %583 = vmatpush.msra.mxu0 0.0
  %584 = vmatpush.msra.mxu0 0.0
  %585 = vmatpush.msra.mxu0 0.0
  %586 = vmatpush.msra.mxu0 0.0
  %587 = vmatpush.msra.mxu0 0.0
  %588 = vmatpush.msra.mxu0 0.0
  %589 = vmatpush.msra.mxu0 0.0
  %590 = vmatpush.msra.mxu0 %v571
  %591 = vmatmul.f32.gmra.mxu0 %v569
  %v592 = vpop.f32.mrf.mxu0
  %v593 = vadd.f32 0.0, %v592
  %594 = vdwg.mxu0
  %595 = vmatpush.msra.mxu0 0.0
  %596 = vmatpush.msra.mxu0 0.0
  %597 = vmatpush.msra.mxu0 0.0
  %598 = vmatpush.msra.mxu0 0.0
  %599 = vmatpush.msra.mxu0 0.0
  %600 = vmatpush.msra.mxu0 0.0
  %601 = vmatpush.msra.mxu0 0.0
  %602 = vmatpush.msra.mxu0 0.0
  %603 = vmatpush.msra.mxu0 0.0
  %604 = vmatpush.msra.mxu0 0.0
  %605 = vmatpush.msra.mxu0 0.0
  %606 = vmatpush.msra.mxu0 0.0
  %607 = vmatpush.msra.mxu0 0.0
  %608 = vmatpush.msra.mxu0 0.0
  %609 = vmatpush.msra.mxu0 0.0
  %610 = vmatpush.msra.mxu0 %v573
  %611 = vmatmul.f32.gmra.mxu0 %v569
  %v612 = vpop.f32.mrf.mxu0
  %v613 = vadd.f32 0.0, %v612
  %614 = vdwg.mxu0
  %615 = vmatpush.msra.mxu0 %v402
  %616 = vmatpush.msra.mxu0 %v401
  %617 = vmatpush.msra.mxu0 %v400
  %618 = vmatpush.msra.mxu0 %v399
  %619 = vmatpush.msra.mxu0 %v398
  %620 = vmatpush.msra.mxu0 %v397
  %621 = vmatpush.msra.mxu0 %v396
  %622 = vmatpush.msra.mxu0 %v395
  %623 = vmatpush.msra.mxu0 %v394
  %624 = vmatpush.msra.mxu0 %v393
  %625 = vmatpush.msra.mxu0 %v392
  %626 = vmatpush.msra.mxu0 %v391
  %627 = vmatpush.msra.mxu0 %v390
  %628 = vmatpush.msra.mxu0 %v389
  %629 = vmatpush.msra.mxu0 %v388
  %630 = vmatpush.msra.mxu0 %v387
  %631 = vmatmul.f32.gmra.mxu0 %v225
  %v632 = vpop.f32.mrf.mxu0
  %v633 = vadd.f32 0.0, %v632
  %634 = vdwg.mxu0
  %635 = vmatpush.msra.mxu0 %v418
  %636 = vmatpush.msra.mxu0 %v417
  %637 = vmatpush.msra.mxu0 %v416
  %638 = vmatpush.msra.mxu0 %v415
  %639 = vmatpush.msra.mxu0 %v414
  %640 = vmatpush.msra.mxu0 %v413
  %641 = vmatpush.msra.mxu0 %v412
  %642 = vmatpush.msra.mxu0 %v411
  %643 = vmatpush.msra.mxu0 %v410
  %644 = vmatpush.msra.mxu0 %v409
  %645 = vmatpush.msra.mxu0 %v408
  %646 = vmatpush.msra.mxu0 %v407
  %647 = vmatpush.msra.mxu0 %v406
  %648 = vmatpush.msra.mxu0 %v405
  %649 = vmatpush.msra.mxu0 %v404
  %650 = vmatpush.msra.mxu0 %v403
  %651 = vmatmul.f32.gmra.mxu0 %v285
  %v652 = vpop.f32.mrf.mxu0
  %v653 = vadd.f32 %v633, %v652
  %654 = vdwg.mxu0
  %655 = vmatpush.msra.mxu0 %v370
  %656 = vmatpush.msra.mxu0 %v369
  %657 = vmatpush.msra.mxu0 %v368
  %658 = vmatpush.msra.mxu0 %v367
  %659 = vmatpush.msra.mxu0 %v366
  %660 = vmatpush.msra.mxu0 %v365
  %661 = vmatpush.msra.mxu0 %v364
  %662 = vmatpush.msra.mxu0 %v363
  %663 = vmatpush.msra.mxu0 %v362
  %664 = vmatpush.msra.mxu0 %v361
  %665 = vmatpush.msra.mxu0 %v360
  %666 = vmatpush.msra.mxu0 %v359
  %667 = vmatpush.msra.mxu0 %v358
  %668 = vmatpush.msra.mxu0 %v357
  %669 = vmatpush.msra.mxu0 %v356
  %670 = vmatpush.msra.mxu0 %v355
  %671 = vmatmul.f32.gmra.mxu0 %v593
  %v672 = vpop.f32.mrf.mxu0
  %v673 = vadd.f32 %v653, %v672
  %674 = vdwg.mxu0
  %675 = vmatpush.msra.mxu0 %v386
  %676 = vmatpush.msra.mxu0 %v385
  %677 = vmatpush.msra.mxu0 %v384
  %678 = vmatpush.msra.mxu0 %v383
  %679 = vmatpush.msra.mxu0 %v382
  %680 = vmatpush.msra.mxu0 %v381
  %681 = vmatpush.msra.mxu0 %v380
  %682 = vmatpush.msra.mxu0 %v379
  %683 = vmatpush.msra.mxu0 %v378
  %684 = vmatpush.msra.mxu0 %v377
  %685 = vmatpush.msra.mxu0 %v376
  %686 = vmatpush.msra.mxu0 %v375
  %687 = vmatpush.msra.mxu0 %v374
  %688 = vmatpush.msra.mxu0 %v373
  %689 = vmatpush.msra.mxu0 %v372
  %690 = vmatpush.msra.mxu0 %v371
  %691 = vmatmul.f32.gmra.mxu0 %v613
  %v692 = vpop.f32.mrf.mxu0
  %v693 = vadd.f32 %v673, %v692
  %694 = vdwg.mxu0
  %v696 = vperm.slane %v419, 0
  %v698 = vadd.f32 %v693, %v696
  %vm699 = vcmp.ge.f32.partialorder %v698, 0.0
  %v700 = vmul.f32 %v698, 0.2
  %v701 = vsel %vm699, %v698, %v700
  %702 = vst [vmem:[%s13] sm:$0xf] %v701
  // Predicated region
  $region50: #{molvis_gnn_forward.13} parent=0 // pred_check
    _
  $region51: #{molvis_gnn_forward.13} parent=0 // pred_check_branch
    %704 = sbr.rel (0) target = $region53
  $region52: #{molvis_gnn_forward.13} parent=0 // pred_region
    _
  $region53: #{molvis_gnn_forward.13} parent=0 // pred_fallthru
    _
  // Predicated region
  $region54: #{molvis_gnn_forward.13} parent=0 // pred_check
    _
  $region55: #{molvis_gnn_forward.13} parent=0 // pred_check_branch
    %706 = sbr.rel (0) target = $region57
  $region56: #{molvis_gnn_forward.13} parent=0 // pred_region
    _
  $region57: #{molvis_gnn_forward.13} parent=0 // pred_fallthru
    _
  // Predicated region
  $region58: #{molvis_gnn_forward.13} parent=0 // pred_check
    _
  $region59: #{molvis_gnn_forward.13} parent=0 // pred_check_branch
    %708 = sbr.rel (0) target = $region61
  $region60: #{molvis_gnn_forward.13} parent=0 // pred_region
    _
  $region61: #{molvis_gnn_forward.13} parent=0 // pred_fallthru
    _
  // Predicated region
  $region62: #{molvis_gnn_forward.13} parent=0 // pred_check
    _
  $region63: #{molvis_gnn_forward.13} parent=0 // pred_check_branch
    %710 = sbr.rel (0) target = $region65
  $region64: #{molvis_gnn_forward.13} parent=0 // pred_region
    _
  $region65: #{molvis_gnn_forward.13} parent=0 // pred_fallthru
    _

// kernel: molvis_gnn_forward.15
$region0: #{molvis_gnn_forward.15}
  #allocation0 [shape = 'u32[]', space=smem, size = 0x4, offset = 0x4, fixed_abs, tag = 'smem constant byte address 0x4 - core index']
  #allocation1 [shape = 'u32[72,128]{1,0:T(1,128)}', space=vmem, size = 0x9000, scoped, tag = 'internal scratch']
  %s0 = inlined_call_operand.vmem [shape: f32[4,4], index: 0, kind: input, shape index: {}]
  %s1 = inlined_call_operand.vmem [shape: f32[4,4], index: 1, kind: input, shape index: {}]
  %s2 = inlined_call_operand.vmem [shape: f32[4,64], index: 2, kind: input, shape index: {}]
  %s3 = inlined_call_operand.vmem [shape: f32[4,64], index: 3, kind: input, shape index: {}]
  %s4 = inlined_call_operand.vmem [shape: f32[64,32], index: 4, kind: input, shape index: {}]
  %s5 = inlined_call_operand.vmem [shape: f32[64,32], index: 5, kind: input, shape index: {}]
  %s6 = inlined_call_operand.vmem [shape: f32[1,32], index: 6, kind: input, shape index: {}]
  %s7 = inlined_call_operand.vmem [shape: f32[64,32], index: 7, kind: input, shape index: {}]
  %s8 = inlined_call_operand.vmem [shape: f32[64,32], index: 8, kind: input, shape index: {}]
  %s9 = inlined_call_operand.vmem [shape: f32[1,32], index: 9, kind: input, shape index: {}]
  %s10 = inlined_call_operand.hbm [shape: f32[4,32], index: 10, kind: output, shape index: {0}]
  %s11 = inlined_call_operand.hbm [shape: f32[4,32], index: 11, kind: output, shape index: {1}]
  %12 = xla_tuple %s10, %s11
  %s13 = sld [smem:[#allocation0]]
  $region58: #{molvis_gnn_forward.15} parent=0
    _
  %s15 = ssub.s32 1, %s13
  %s16 = scalar_select 0, %s15, %s13
  $region1: #{molvis_gnn_forward.15} parent=0
    #allocation2 [shape = 'u8[2048]{0}', space=vmem, size = 0x800, scoped, tag = 'output window, operand 0, single buffered']
    #allocation3 [shape = 's32[1]{0}', space=sflag, size = 0x4, scoped, tag = 'scoped memory for molvis_gnn_forward.15']
    #allocation4 [shape = 'u8[2048]{0}', space=vmem, size = 0x800, scoped, tag = 'output window, operand 1, single buffered']
    #allocation5 [shape = 's32[1]{0}', space=sflag, size = 0x4, scoped, tag = 'scoped memory for molvis_gnn_forward.15']
    %17 = vsyncpa [#allocation3], 0
    %18 = vsyncpa [#allocation5], 0
    // Predicated region
    $region2: #{molvis_gnn_forward.15} parent=1 // pred_check
      _
    $region3: #{molvis_gnn_forward.15} parent=1 // pred_check_branch
      %20 = sbr.rel (0) target = $region5
    $region4: #{molvis_gnn_forward.15} parent=1 // pred_region
      _
    $region5: #{molvis_gnn_forward.15} parent=1 // pred_fallthru
      _
    // Predicated region
    $region6: #{molvis_gnn_forward.15} parent=1 // pred_check
      _
    $region7: #{molvis_gnn_forward.15} parent=1 // pred_check_branch
      %22 = sbr.rel (0) target = $region9
    $region8: #{molvis_gnn_forward.15} parent=1 // pred_region
      _
    $region9: #{molvis_gnn_forward.15} parent=1 // pred_fallthru
      _
    // Predicated region
    $region10: #{molvis_gnn_forward.15} parent=1 // pred_check
      _
    $region11: #{molvis_gnn_forward.15} parent=1 // pred_check_branch
      %24 = sbr.rel (0) target = $region13
    $region12: #{molvis_gnn_forward.15} parent=1 // pred_region
      _
    $region13: #{molvis_gnn_forward.15} parent=1 // pred_fallthru
      _
    // Predicated region
    $region14: #{molvis_gnn_forward.15} parent=1 // pred_check
      _
    $region15: #{molvis_gnn_forward.15} parent=1 // pred_check_branch
      %26 = sbr.rel (0) target = $region17
    $region16: #{molvis_gnn_forward.15} parent=1 // pred_region
      _
    $region17: #{molvis_gnn_forward.15} parent=1 // pred_fallthru
      _
    // Predicated region
    $region18: #{molvis_gnn_forward.15} parent=1 // pred_check
      _
    $region19: #{molvis_gnn_forward.15} parent=1 // pred_check_branch
      %28 = sbr.rel (0) target = $region21
    $region20: #{molvis_gnn_forward.15} parent=1 // pred_region
      _
    $region21: #{molvis_gnn_forward.15} parent=1 // pred_fallthru
      _
    // Predicated region
    $region22: #{molvis_gnn_forward.15} parent=1 // pred_check
      _
    $region23: #{molvis_gnn_forward.15} parent=1 // pred_check_branch
      %30 = sbr.rel (0) target = $region25
    $region24: #{molvis_gnn_forward.15} parent=1 // pred_region
      _
    $region25: #{molvis_gnn_forward.15} parent=1 // pred_fallthru
      _
    // Predicated region
    $region26: #{molvis_gnn_forward.15} parent=1 // pred_check
      _
    $region27: #{molvis_gnn_forward.15} parent=1 // pred_check_branch
      %32 = sbr.rel (0) target = $region29
    $region28: #{molvis_gnn_forward.15} parent=1 // pred_region
      _
    $region29: #{molvis_gnn_forward.15} parent=1 // pred_fallthru
      _
    // Predicated region
    $region30: #{molvis_gnn_forward.15} parent=1 // pred_check
      _
    $region31: #{molvis_gnn_forward.15} parent=1 // pred_check_branch
      %34 = sbr.rel (0) target = $region33
    $region32: #{molvis_gnn_forward.15} parent=1 // pred_region
      _
    $region33: #{molvis_gnn_forward.15} parent=1 // pred_fallthru
      _
    // Predicated region
    $region34: #{molvis_gnn_forward.15} parent=1 // pred_check
      _
    $region35: #{molvis_gnn_forward.15} parent=1 // pred_check_branch
      %36 = sbr.rel (0) target = $region37
    $region36: #{molvis_gnn_forward.15} parent=1 // pred_region
      _
    $region37: #{molvis_gnn_forward.15} parent=1 // pred_fallthru
      _
    // Predicated region
    $region38: #{molvis_gnn_forward.15} parent=1 // pred_check
      _
    $region39: #{molvis_gnn_forward.15} parent=1 // pred_check_branch
      %38 = sbr.rel (0) target = $region41
    $region40: #{molvis_gnn_forward.15} parent=1 // pred_region
      _
    $region41: #{molvis_gnn_forward.15} parent=1 // pred_fallthru
      _
    %v39 = vld [vmem:[%s0] sm:$0xf]
    %v40 = vld [vmem:[%s1] sm:$0xf]
    %v41 = vld [vmem:[%s2] sm:$0xf]
    %v42 = vld [vmem:[%s3] sm:$0xf]
    %v43 = vld [vmem:[%s4] sm:$0xff]
    %v44 = vld [vmem:[%s4 + $0x8] sm:$0xff]
    %v45 = vld [vmem:[%s4 + $0x10] sm:$0xff]
    %v46 = vld [vmem:[%s4 + $0x18] sm:$0xff]
    %v47 = vld [vmem:[%s4 + $0x20] sm:$0xff]
    %v48 = vld [vmem:[%s4 + $0x28] sm:$0xff]
    %v49 = vld [vmem:[%s4 + $0x30] sm:$0xff]
    %v50 = vld [vmem:[%s4 + $0x38] sm:$0xff]
    %v51 = vld [vmem:[%s5] sm:$0xff]
    %v52 = vld [vmem:[%s5 + $0x8] sm:$0xff]
    %v53 = vld [vmem:[%s5 + $0x10] sm:$0xff]
    %v54 = vld [vmem:[%s5 + $0x18] sm:$0xff]
    %v55 = vld [vmem:[%s5 + $0x20] sm:$0xff]
    %v56 = vld [vmem:[%s5 + $0x28] sm:$0xff]
    %v57 = vld [vmem:[%s5 + $0x30] sm:$0xff]
    %v58 = vld [vmem:[%s5 + $0x38] sm:$0xff]
    %v59 = vld [vmem:[%s6] sm:$0x1]
    %v60 = vld [vmem:[%s7] sm:$0xff]
    %v61 = vld [vmem:[%s7 + $0x8] sm:$0xff]
    %v62 = vld [vmem:[%s7 + $0x10] sm:$0xff]
    %v63 = vld [vmem:[%s7 + $0x18] sm:$0xff]
    %v64 = vld [vmem:[%s7 + $0x20] sm:$0xff]
    %v65 = vld [vmem:[%s7 + $0x28] sm:$0xff]
    %v66 = vld [vmem:[%s7 + $0x30] sm:$0xff]
    %v67 = vld [vmem:[%s7 + $0x38] sm:$0xff]
    %v68 = vld [vmem:[%s8] sm:$0xff]
    %v69 = vld [vmem:[%s8 + $0x8] sm:$0xff]
    %v70 = vld [vmem:[%s8 + $0x10] sm:$0xff]
    %v71 = vld [vmem:[%s8 + $0x18] sm:$0xff]
    %v72 = vld [vmem:[%s8 + $0x20] sm:$0xff]
    %v73 = vld [vmem:[%s8 + $0x28] sm:$0xff]
    %v74 = vld [vmem:[%s8 + $0x30] sm:$0xff]
    %v75 = vld [vmem:[%s8 + $0x38] sm:$0xff]
    %v76 = vld [vmem:[%s9] sm:$0x1]
    %vm77 = vcmask 31744
    %v79 = vsel %vm77, %v39, 0
    %vm81 = vcmask 1043456
    %v83 = vsel %vm81, %v42, 0
    %85 = vmatpush.msra.mxu0 0.0
    %86 = vmatpush.msra.mxu0 0.0
    %87 = vmatpush.msra.mxu0 0.0
    %88 = vmatpush.msra.mxu0 0.0
    %89 = vmatpush.msra.mxu0 0.0
    %90 = vmatpush.msra.mxu0 0.0
    %91 = vmatpush.msra.mxu0 0.0
    %92 = vmatpush.msra.mxu0 0.0
    %93 = vmatpush.msra.mxu0 0.0
    %94 = vmatpush.msra.mxu0 0.0
    %95 = vmatpush.msra.mxu0 0.0
    %96 = vmatpush.msra.mxu0 0.0
    %97 = vmatpush.msra.mxu0 0.0
    %98 = vmatpush.msra.mxu0 0.0
    %99 = vmatpush.msra.mxu0 0.0
    %100 = vmatpush.msra.mxu0 %v83
    %101 = vmatmul.f32.gmra.mxu0 %v79
    %v102 = vpop.f32.mrf.mxu0
    %v103 = vadd.f32 0.0, %v102
    %104 = vdwg.mxu0
    %vm105 = vcmask 523264
    %v107 = vsel %vm105, %v41, 0
    %109 = vmatpush.msra.mxu0 0.0
    %110 = vmatpush.msra.mxu0 0.0
    %111 = vmatpush.msra.mxu0 0.0
    %112 = vmatpush.msra.mxu0 0.0
    %113 = vmatpush.msra.mxu0 0.0
    %114 = vmatpush.msra.mxu0 0.0
    %115 = vmatpush.msra.mxu0 0.0
    %116 = vmatpush.msra.mxu0 0.0
    %117 = vmatpush.msra.mxu0 %v58
    %118 = vmatpush.msra.mxu0 %v57
    %119 = vmatpush.msra.mxu0 %v56
    %120 = vmatpush.msra.mxu0 %v55
    %121 = vmatpush.msra.mxu0 %v54
    %122 = vmatpush.msra.mxu0 %v53
    %123 = vmatpush.msra.mxu0 %v52
    %124 = vmatpush.msra.mxu0 %v51
    %125 = vmatmul.f32.gmra.mxu0 %v107
    %v126 = vpop.f32.mrf.mxu0
    %v127 = vadd.f32 0.0, %v126
    %128 = vdwg.mxu0
    %v130 = vsel %vm105, %v103, 0
    %132 = vmatpush.msra.mxu0 0.0
    %133 = vmatpush.msra.mxu0 0.0
    %134 = vmatpush.msra.mxu0 0.0
    %135 = vmatpush.msra.mxu0 0.0
    %136 = vmatpush.msra.mxu0 0.0
    %137 = vmatpush.msra.mxu0 0.0
    %138 = vmatpush.msra.mxu0 0.0
    %139 = vmatpush.msra.mxu0 0.0
    %140 = vmatpush.msra.mxu0 %v50
    %141 = vmatpush.msra.mxu0 %v49
    %142 = vmatpush.msra.mxu0 %v48
    %143 = vmatpush.msra.mxu0 %v47
    %144 = vmatpush.msra.mxu0 %v46
    %145 = vmatpush.msra.mxu0 %v45
    %146 = vmatpush.msra.mxu0 %v44
    %147 = vmatpush.msra.mxu0 %v43
    %148 = vmatmul.f32.gmra.mxu0 %v130
    %v149 = vpop.f32.mrf.mxu0
    %v150 = vadd.f32 %v127, %v149
    %151 = vdwg.mxu0
    %v153 = vperm.slane %v59, 0
    %v155 = vadd.f32 %v150, %v153
    %vm156 = vcmp.ge.f32.partialorder %v155, 0.0
    %v157 = vmul.f32 %v155, 0.2
    %v158 = vsel %vm156, %v155, %v157
    %vm159 = vcmask 257024
    %160 = vst.msk [vmem:[#allocation2] sm:$0xf] %vm159, %v158
    %v162 = vsel %vm77, %v40, 0
    %v164 = vsel %vm81, %v41, 0
    %166 = vmatpush.msra.mxu0 0.0
    %167 = vmatpush.msra.mxu0 0.0
    %168 = vmatpush.msra.mxu0 0.0
    %169 = vmatpush.msra.mxu0 0.0
    %170 = vmatpush.msra.mxu0 0.0
    %171 = vmatpush.msra.mxu0 0.0
    %172 = vmatpush.msra.mxu0 0.0
    %173 = vmatpush.msra.mxu0 0.0
    %174 = vmatpush.msra.mxu0 0.0
    %175 = vmatpush.msra.mxu0 0.0
    %176 = vmatpush.msra.mxu0 0.0
    %177 = vmatpush.msra.mxu0 0.0
    %178 = vmatpush.msra.mxu0 0.0
    %179 = vmatpush.msra.mxu0 0.0
    %180 = vmatpush.msra.mxu0 0.0
    %181 = vmatpush.msra.mxu0 %v164
    %182 = vmatmul.f32.gmra.mxu0 %v162
    %v183 = vpop.f32.mrf.mxu0
    %v184 = vadd.f32 0.0, %v183
    %185 = vdwg.mxu0
    %v186 = vsel %vm105, %v42, 0
    %188 = vmatpush.msra.mxu0 0.0
    %189 = vmatpush.msra.mxu0 0.0
    %190 = vmatpush.msra.mxu0 0.0
    %191 = vmatpush.msra.mxu0 0.0
    %192 = vmatpush.msra.mxu0 0.0
    %193 = vmatpush.msra.mxu0 0.0
    %194 = vmatpush.msra.mxu0 0.0
    %195 = vmatpush.msra.mxu0 0.0
    %196 = vmatpush.msra.mxu0 %v75
    %197 = vmatpush.msra.mxu0 %v74
    %198 = vmatpush.msra.mxu0 %v73
    %199 = vmatpush.msra.mxu0 %v72
    %200 = vmatpush.msra.mxu0 %v71
    %201 = vmatpush.msra.mxu0 %v70
    %202 = vmatpush.msra.mxu0 %v69
    %203 = vmatpush.msra.mxu0 %v68
    %204 = vmatmul.f32.gmra.mxu0 %v186
    %v205 = vpop.f32.mrf.mxu0
    %v206 = vadd.f32 0.0, %v205
    %207 = vdwg.mxu0
    %v209 = vsel %vm105, %v184, 0
    %211 = vmatpush.msra.mxu0 0.0
    %212 = vmatpush.msra.mxu0 0.0
    %213 = vmatpush.msra.mxu0 0.0
    %214 = vmatpush.msra.mxu0 0.0
    %215 = vmatpush.msra.mxu0 0.0
    %216 = vmatpush.msra.mxu0 0.0
    %217 = vmatpush.msra.mxu0 0.0
    %218 = vmatpush.msra.mxu0 0.0
    %219 = vmatpush.msra.mxu0 %v67
    %220 = vmatpush.msra.mxu0 %v66
    %221 = vmatpush.msra.mxu0 %v65
    %222 = vmatpush.msra.mxu0 %v64
    %223 = vmatpush.msra.mxu0 %v63
    %224 = vmatpush.msra.mxu0 %v62
    %225 = vmatpush.msra.mxu0 %v61
    %226 = vmatpush.msra.mxu0 %v60
    %227 = vmatmul.f32.gmra.mxu0 %v209
    %v228 = vpop.f32.mrf.mxu0
    %v229 = vadd.f32 %v206, %v228
    %230 = vdwg.mxu0
    %v232 = vperm.slane %v76, 0
    %v234 = vadd.f32 %v229, %v232
    %vm235 = vcmp.ge.f32.partialorder %v234, 0.0
    %v236 = vmul.f32 %v234, 0.2
    %v237 = vsel %vm235, %v234, %v236
    %238 = vst.msk [vmem:[#allocation4] sm:$0xf] %vm159, %v237
    // Predicated region
    $region42: #{molvis_gnn_forward.15} parent=1 // pred_check
      _
    $region43: #{molvis_gnn_forward.15} parent=1 // pred_check_branch
      %240 = sbr.rel (0) target = $region45
    $region44: #{molvis_gnn_forward.15} parent=1 // pred_region
      %242 = vsyncadd [#allocation3], 0
      %s244 = sshll.u32 [#allocation2], 4
      %s245 = int_to_ptr.vmem [resolvable:$true] %s244
      %s246 = sshll.u32 %s10, 4
      %s247 = int_to_ptr.hbm [resolvable:$true] %s246
      %249 = dma.vmem_to_hbm [thread:$0]  %s245, 64, %s247, [#allocation3]
    $region45: #{molvis_gnn_forward.15} parent=1 // pred_fallthru
      _
    // Predicated region
    $region46: #{molvis_gnn_forward.15} parent=1 // pred_check
      _
    $region47: #{molvis_gnn_forward.15} parent=1 // pred_check_branch
      %251 = sbr.rel (0) target = $region49
    $region48: #{molvis_gnn_forward.15} parent=1 // pred_region
      %253 = vsyncadd [#allocation5], 0
      %s255 = sshll.u32 [#allocation4], 4
      %s256 = int_to_ptr.vmem [resolvable:$true] %s255
      %s257 = sshll.u32 %s11, 4
      %s258 = int_to_ptr.hbm [resolvable:$true] %s257
      %260 = dma.vmem_to_hbm [thread:$0]  %s256, 64, %s258, [#allocation5]
    $region49: #{molvis_gnn_forward.15} parent=1 // pred_fallthru
      _
    // Predicated region
    $region50: #{molvis_gnn_forward.15} parent=1 // pred_check
      _
    $region51: #{molvis_gnn_forward.15} parent=1 // pred_check_branch
      %262 = sbr.rel (0) target = $region53
    $region52: #{molvis_gnn_forward.15} parent=1 // pred_region
      %264 = dma.done [#allocation3], 64
    $region53: #{molvis_gnn_forward.15} parent=1 // pred_fallthru
      _
    // Predicated region
    $region54: #{molvis_gnn_forward.15} parent=1 // pred_check
      _
    $region55: #{molvis_gnn_forward.15} parent=1 // pred_check_branch
      %266 = sbr.rel (0) target = $region57
    $region56: #{molvis_gnn_forward.15} parent=1 // pred_region
      %268 = dma.done [#allocation5], 64
    $region57: #{molvis_gnn_forward.15} parent=1 // pred_fallthru
      _
    %269 = vsyncpa [#allocation3], 1
    %270 = vsyncpa [#allocation5], 1

</llo_original>
